<compile_context>
chip_gen: v7x
topology: tpu7x:2x2x1
jax: 0.10.0
libtpu: 0.0.40
codegen_flags: <defaults>
</compile_context>

<pallas_src>
import jax
import jax.numpy as jnp
from jax.experimental import pallas as pl
from jax.experimental.pallas import tpu as pltpu

EPS = 1e-5                      # nn.BatchNorm2d default
_VMEM_LIMIT = 48 * 1024 * 1024  # explicit scoped-VMEM limit for every pass


# --------------------------- Pallas kernels -------------------------------- #

def _conv1x1_stats_kernel(x_ref, w_ref, h1_ref, ssum_ref, ssq_ref):
    """h1 = x @ W1 (tiled over M, bf16 MXU); accumulate BN1 batch stats in f32."""
    i = pl.program_id(0)
    h = jnp.dot(x_ref[...], w_ref[...], preferred_element_type=jnp.float32)
    h1_ref[...] = h.astype(h1_ref.dtype)

    @pl.when(i == 0)
    def _():
        ssum_ref[...] = jnp.zeros_like(ssum_ref)
        ssq_ref[...] = jnp.zeros_like(ssq_ref)

    ssum_ref[...] += jnp.sum(h, axis=0, keepdims=True)
    ssq_ref[...] += jnp.sum(h * h, axis=0, keepdims=True)


def _make_conv3x3_kernel(h_img, w_img, cp, tq):
    """Per-image: bn1+relu into a halo-padded VMEM scratch, then per HW-chunk
    pack the 9 shifted taps into one (TQ, 9*CP) slab and run a single deep-K
    matmul; accumulate BN2 batch stats of the conv output."""
    hw = h_img * w_img
    halo = ((w_img + 1 + 15) // 16) * 16   # >= W+1 rows of zero halo, 16-aligned
    n_chunks = hw // tq
    kdt = jnp.bfloat16

    def kernel(sc_ref, sh_ref, h1_ref, w2_ref, h2_ref, ssum_ref, ssq_ref,
               apad_ref, taps_ref):
        n = pl.program_id(0)

        @pl.when(n == 0)
        def _():
            ssum_ref[...] = jnp.zeros_like(ssum_ref)
            ssq_ref[...] = jnp.zeros_like(ssq_ref)

        # Zero the halo bands every step (cheap; no cross-step scratch deps).
        apad_ref[:halo, :] = jnp.zeros((halo, cp), kdt)
        apad_ref[halo + hw:, :] = jnp.zeros((halo, cp), kdt)

        # BN1 + ReLU parked in the halo scratch, chunk by chunk.
        sc = sc_ref[...]
        sh = sh_ref[...]
        for q in range(n_chunks):
            r0 = q * tq
            a = jnp.maximum(h1_ref[r0:r0 + tq, :] * sc + sh, 0.0)
            apad_ref[halo + r0:halo + r0 + tq, :] = a.astype(kdt)

        # W-direction boundary masks: (TQ, 1) columns, hoisted out of the loop
        # (TQ is a multiple of W, so the pattern is identical for every chunk
        # and the chunk-edge taps land on masked columns).
        col = jax.lax.broadcasted_iota(jnp.int32, (tq, 1), 0) % w_img
        not_first = col > 0
        not_last = col < (w_img - 1)

        ssum = jnp.zeros((1, cp), jnp.float32)
        ssq = jnp.zeros((1, cp), jnp.float32)
        for q in range(n_chunks):
            base = halo + q * tq
            # Pack the 9 taps contiguously -> one K = 9*CP matmul.
            for kh in range(3):
                for kw in range(3):
                    off = base + (kh - 1) * w_img + (kw - 1)
                    t = apad_ref[off:off + tq, :]
                    if kw == 0:
                        t = jnp.where(not_first, t, 0)
                    elif kw == 2:
                        t = jnp.where(not_last, t, 0)
                    c0 = (kh * 3 + kw) * cp
                    taps_ref[:, c0:c0 + cp] = t
            acc = jnp.dot(taps_ref[...], w2_ref[...],
                          preferred_element_type=jnp.float32)
            r0 = q * tq
            h2_ref[r0:r0 + tq, :] = acc.astype(h2_ref.dtype)
            ssum = ssum + jnp.sum(acc, axis=0, keepdims=True)
            ssq = ssq + jnp.sum(acc * acc, axis=0, keepdims=True)

        ssum_ref[...] += ssum
        ssq_ref[...] += ssq

    return kernel, halo


def _bnrelu_matmul_stats_kernel(h2_ref, sc_ref, sh_ref, w3_ref,
                                ssum_ref, ssq_ref):
    """BN3 batch stats of h3 = relu(bn2(h2)) @ W3 (tiled over M); no slab out."""
    i = pl.program_id(0)
    a = jnp.maximum(h2_ref[...] * sc_ref[...] + sh_ref[...], 0.0)
    h3 = jnp.dot(a.astype(jnp.bfloat16), w3_ref[...],
                 preferred_element_type=jnp.float32)

    @pl.when(i == 0)
    def _():
        ssum_ref[...] = jnp.zeros_like(ssum_ref)
        ssq_ref[...] = jnp.zeros_like(ssq_ref)

    ssum_ref[...] += jnp.sum(h3, axis=0, keepdims=True)
    ssq_ref[...] += jnp.sum(h3 * h3, axis=0, keepdims=True)


def _final_kernel(h2_ref, x_ref, sc2_ref, sh2_ref, w3_ref, sc3_ref, sh3_ref,
                  o_ref):
    """out = relu(bn3(relu(bn2(h2)) @ W3) + identity), tiled over M."""
    a = jnp.maximum(h2_ref[...] * sc2_ref[...] + sh2_ref[...], 0.0)
    h3 = jnp.dot(a.astype(jnp.bfloat16), w3_ref[...],
                 preferred_element_type=jnp.float32)
    o_ref[...] = jnp.maximum(h3 * sc3_ref[...] + sh3_ref[...] + x_ref[...], 0.0)


# ------------------------------ wrapper ------------------------------------ #

def _rup(c, m=128):
    return ((c + m - 1) // m) * m


def _pad2(a, rows, cols):
    r, c = a.shape
    return jnp.pad(a, ((0, rows - r), (0, cols - c)))


def _pick_tm(m, bytes_per_row, vmem_limit=_VMEM_LIMIT):
    """Largest row-tile that divides M, is a multiple of 8 and (double-buffered)
    fits roughly 2/3 of the scoped-VMEM limit."""
    cap = max(8, (vmem_limit // 3) // max(bytes_per_row, 1))
    for cand in (2048, 1024, 512, 256, 128, 64, 32, 16, 8):
        if cand <= cap and m % cand == 0:
            return cand
    d = (min(cap, m) // 8) * 8
    while d >= 8:
        if m % d == 0:
            return d
        d -= 8
    return m   # awkward M: whole-slab fallback (grid of 1)


def _pick_tq(h, w, target=512):
    """Largest multiple of W that divides H*W and is <= ~target rows."""
    k = 1
    for cand in range(1, h + 1):
        if h % cand == 0 and cand * w <= target:
            k = cand
    return k * w


def _bn_affine(ssum, ssq, count, gamma, beta):
    mean = ssum / count
    var = jnp.maximum(ssq / count - mean * mean, 0.0)
    scale = gamma * jax.lax.rsqrt(var + EPS)
    shift = beta - scale * mean
    return scale, shift


def bottleneck_forward(x_nchw, params):
    (w1, b1, g1, be1, w2, b2, g2, be2, w3, b3, g3, be3) = params
    del b1, b2, b3  # conv bias immediately before training-mode BN cancels exactly

    N, Cin, H, W = x_nchw.shape
    C1 = w1.shape[1]
    C4 = w3.shape[1]
    assert Cin == C4, "identity residual requires in_channels == out_channels*4"

    M = N * H * W
    HW = H * W
    CPI, CP1, CP4 = _rup(Cin), _rup(C1), _rup(C4)
    assert CPI == CP4

    # VMEM-budget-aware row tile (pass 4 has the widest per-row working set:
    # bf16 h2 + bf16 x + f32 out).
    bytes_per_row = 2 * CP1 + 2 * CP4 + 4 * CP4
    TM = _pick_tm(M, bytes_per_row)
    GM = M // TM
    TQ = _pick_tq(H, W)

    # layout plumbing: NCHW -> NHWC -> (M, C) slab, zero-padded channels, bf16
    x2d = jnp.transpose(x_nchw, (0, 2, 3, 1)).reshape(M, Cin)
    x2dp = _pad2(x2d, M, CPI).astype(jnp.bfloat16)

    w1p = _pad2(w1, CPI, CP1).astype(jnp.bfloat16)
    w2p = jnp.pad(w2, ((0, 0), (0, 0), (0, CP1 - C1), (0, CP1 - C1)))
    w2flat = w2p.reshape(9 * CP1, CP1).astype(jnp.bfloat16)   # (kh*3+kw, cin) x cout
    w3p = _pad2(w3, CP1, CP4).astype(jnp.bfloat16)
    g1p, be1p = _pad2(g1, 1, CP1), _pad2(be1, 1, CP1)
    g2p, be2p = _pad2(g2, 1, CP1), _pad2(be2, 1, CP1)
    g3p, be3p = _pad2(g3, 1, CP4), _pad2(be3, 1, CP4)

    row = lambda c: pl.BlockSpec((TM, c), lambda i: (i, 0))
    vec = lambda c: pl.BlockSpec((1, c), lambda i: (0, 0))
    full = lambda r, c: pl.BlockSpec((r, c), lambda i: (0, 0))
    statsh = lambda c: jax.ShapeDtypeStruct((1, c), jnp.float32)

    cp_arb = pltpu.CompilerParams(dimension_semantics=("arbitrary",),
                                  vmem_limit_bytes=_VMEM_LIMIT)
    cp_par = pltpu.CompilerParams(dimension_semantics=("parallel",),
                                  vmem_limit_bytes=_VMEM_LIMIT)

    # ---- pass 1: conv1 (1x1) tiled over M + BN1 batch-stat accumulation ----
    h1, s1, q1 = pl.pallas_call(
        _conv1x1_stats_kernel,
        grid=(GM,),
        in_specs=[row(CPI), full(CPI, CP1)],
        out_specs=[row(CP1), vec(CP1), vec(CP1)],
        out_shape=[jax.ShapeDtypeStruct((M, CP1), jnp.bfloat16),
                   statsh(CP1), statsh(CP1)],
        compiler_params=cp_arb,
    )(x2dp, w1p)
    sc1, sh1 = _bn_affine(s1, q1, M, g1p, be1p)

    # ---- pass 2: bn1+relu, 3x3 conv per image (chunked, single deep-K dot) ----
    h1_img = h1.reshape(N, HW, CP1)          # free: splits the leading dim
    conv_kernel, halo = _make_conv3x3_kernel(H, W, CP1, TQ)
    h2_img, s2, q2 = pl.pallas_call(
        conv_kernel,
        grid=(N,),
        in_specs=[vec(CP1), vec(CP1),
                  pl.BlockSpec((None, HW, CP1), lambda n: (n, 0, 0)),
                  full(9 * CP1, CP1)],
        out_specs=[pl.BlockSpec((None, HW, CP1), lambda n: (n, 0, 0)),
                   vec(CP1), vec(CP1)],
        out_shape=[jax.ShapeDtypeStruct((N, HW, CP1), jnp.bfloat16),
                   statsh(CP1), statsh(CP1)],
        scratch_shapes=[pltpu.VMEM((HW + 2 * halo, CP1), jnp.bfloat16),
                        pltpu.VMEM((TQ, 9 * CP1), jnp.bfloat16)],
        compiler_params=cp_arb,
    )(sc1, sh1, h1_img, w2flat)
    sc2, sh2 = _bn_affine(s2, q2, M, g2p, be2p)
    h2 = h2_img.reshape(M, CP1)

    # ---- pass 3: BN3 batch stats of h3 = relu(bn2(h2)) @ W3 ----
    s3, q3 = pl.pallas_call(
        _bnrelu_matmul_stats_kernel,
        grid=(GM,),
        in_specs=[row(CP1), vec(CP1), vec(CP1), full(CP1, CP4)],
        out_specs=[vec(CP4), vec(CP4)],
        out_shape=[statsh(CP4), statsh(CP4)],
        compiler_params=cp_arb,
    )(h2, sc2, sh2, w3p)
    sc3, sh3 = _bn_affine(s3, q3, M, g3p, be3p)

    # ---- pass 4: recompute conv3, apply bn3, add identity, relu ----
    out2d = pl.pallas_call(
        _final_kernel,
        grid=(GM,),
        in_specs=[row(CP1), row(CP4), vec(CP1), vec(CP1),
                  full(CP1, CP4), vec(CP4), vec(CP4)],
        out_specs=row(CP4),
        out_shape=jax.ShapeDtypeStruct((M, CP4), jnp.float32),
        compiler_params=cp_par,
    )(h2, x2dp, sc2, sh2, w3p, sc3, sh3)

    out = out2d[:, :C4].reshape(N, H, W, C4)
    return jnp.transpose(out, (0, 3, 1, 2))  # back to NCHW


# --------------------------- pure-JAX reference ----------------------------- #

def reference_forward(x_nchw, params):
    (w1, b1, g1, be1, w2, b2, g2, be2, w3, b3, g3, be3) = params

    def conv(x, w, b, pad):
        y = jax.lax.conv_general_dilated(
            x, w, window_strides=(1, 1), padding=pad,
            dimension_numbers=("NHWC", "HWIO", "NHWC"))
        return y + b.reshape(1, 1, 1, -1)

    def bn(x, g, be):
        mean = jnp.mean(x, axis=(0, 1, 2), keepdims=True)
        var = jnp.mean(jnp.square(x - mean), axis=(0, 1, 2), keepdims=True)
        return (g.reshape(1, 1, 1, -1) * (x - mean) * jax.lax.rsqrt(var + EPS)
                + be.reshape(1, 1, 1, -1))

    x = jnp.transpose(x_nchw, (0, 2, 3, 1))
    h = jax.nn.relu(bn(conv(x, w1.reshape(1, 1, *w1.shape), b1, "VALID"), g1, be1))
    h = jax.nn.relu(bn(conv(h, w2, b2, "SAME"), g2, be2))
    h = bn(conv(h, w3.reshape(1, 1, *w3.shape), b3, "VALID"), g3, be3)
    h = jax.nn.relu(h + x)
    return jnp.transpose(h, (0, 3, 1, 2))


# ---------------------------------- main ------------------------------------ #

if __name__ == "__main__":
    # identity_downsample=None, stride=1 => in_channels == out_channels * 4.
    N, Cin, H, W = 2, 16, 16, 16
    Cout = 4
    C1, C4 = Cout, Cout * 4        # C4 == Cin

    keys = jax.random.split(jax.random.PRNGKey(0), 13)
    x = jax.random.normal(keys[0], (N, Cin, H, W), jnp.float32)

    w1 = 0.1 * jax.random.normal(keys[1], (Cin, C1), jnp.float32)
    b1 = 0.1 * jax.random.normal(keys[2], (1, C1), jnp.float32)
    g1 = 1.0 + 0.1 * jax.random.normal(keys[3], (1, C1), jnp.float32)
    be1 = 0.1 * jax.random.normal(keys[4], (1, C1), jnp.float32)

    w2 = 0.1 * jax.random.normal(keys[5], (3, 3, C1, C1), jnp.float32)  # HWIO
    b2 = 0.1 * jax.random.normal(keys[6], (1, C1), jnp.float32)
    g2 = 1.0 + 0.1 * jax.random.normal(keys[7], (1, C1), jnp.float32)
    be2 = 0.1 * jax.random.normal(keys[8], (1, C1), jnp.float32)

    w3 = 0.1 * jax.random.normal(keys[9], (C1, C4), jnp.float32)
    b3 = 0.1 * jax.random.normal(keys[10], (1, C4), jnp.float32)
    g3 = 1.0 + 0.1 * jax.random.normal(keys[11], (1, C4), jnp.float32)
    be3 = 0.1 * jax.random.normal(keys[12], (1, C4), jnp.float32)

    params = (w1, b1, g1, be1, w2, b2, g2, be2, w3, b3, g3, be3)

    out = jax.jit(bottleneck_forward)(x, params)
    out = jax.block_until_ready(out)

    ref = jax.block_until_ready(reference_forward(x, params))
    assert out.shape == (N, C4, H, W)
    # bf16 MXU operands + bf16 intermediate slabs => looser tolerance vs the
    # f32 reference (a real structural bug produces O(1) post-BN errors).
    assert jnp.allclose(out, ref, rtol=1e-1, atol=1e-1), "mismatch vs JAX reference"

    # TODO(synk): BatchNorm running-stat updates (training-mode side effect) are
    # not materialized; they do not affect the forward output.
    print("KERNEL_OK")
</pallas_src>

<mosaic_0001>
module attributes {stable_mosaic.version = 11 : i64} {
  func.func @_conv1x1_stats_kernel(%arg0: i32, %arg1: memref<512x128xbf16, #tpu.memory_space<vmem>>, %arg2: memref<128x128xbf16, #tpu.memory_space<vmem>>, %arg3: memref<512x128xbf16, #tpu.memory_space<vmem>>, %arg4: memref<1x128xf32, #tpu.memory_space<vmem>>, %arg5: memref<1x128xf32, #tpu.memory_space<vmem>>) attributes {dimension_semantics = [#tpu.dimension_semantics<arbitrary>], iteration_bounds = array<i64: 1>, scalar_prefetch = 0 : i64, scratch_operands = 0 : i64, tpu.core_type = #tpu.core_type<tc>, window_params = [{transform_indices = @transform_0, window_bounds = array<i64: 512, 128>}, {pipeline_mode = #tpu.pipeline_mode<synchronous>, transform_indices = @transform_1, window_bounds = array<i64: 128, 128>}, {transform_indices = @transform_2, window_bounds = array<i64: 512, 128>}, {pipeline_mode = #tpu.pipeline_mode<synchronous>, transform_indices = @transform_3, window_bounds = array<i64: 1, 128>}, {pipeline_mode = #tpu.pipeline_mode<synchronous>, transform_indices = @transform_4, window_bounds = array<i64: 1, 128>}]} {
    %c0 = arith.constant 0 : index
    %c0_0 = arith.constant 0 : index
    %0 = vector.load %arg1[%c0, %c0_0] : memref<512x128xbf16, #tpu.memory_space<vmem>>, vector<512x128xbf16>
    %c0_1 = arith.constant 0 : index
    %c0_2 = arith.constant 0 : index
    %1 = vector.load %arg2[%c0_1, %c0_2] : memref<128x128xbf16, #tpu.memory_space<vmem>>, vector<128x128xbf16>
    %cst = arith.constant dense<0.000000e+00> : vector<512x128xf32>
    %2 = tpu.matmul %0, %1, %cst {dimension_numbers = #tpu.dot_dimension_numbers<[1], [0], [0], [1], [0, 0, 1, 1], [], []>} : vector<512x128xbf16>, vector<128x128xbf16>, vector<512x128xf32> -> vector<512x128xf32>
    %3 = arith.truncf %2 : vector<512x128xf32> to vector<512x128xbf16>
    %c0_3 = arith.constant 0 : index
    %c0_4 = arith.constant 0 : index
    %4 = vector.load %arg3[%c0_3, %c0_4] : memref<512x128xbf16, #tpu.memory_space<vmem>>, vector<512x128xbf16>
    tpu.vector_store %arg3[%c0_3, %c0_4], %3 {strides = array<i32>} : memref<512x128xbf16, #tpu.memory_space<vmem>>, vector<512x128xbf16>,
    %c0_i32 = arith.constant 0 : i32
    %5 = arith.cmpi eq, %arg0, %c0_i32 : i32
    %6 = arith.extui %5 : i1 to i32
    %c0_i32_5 = arith.constant 0 : i32
    %7 = arith.cmpi ne, %6, %c0_i32_5 : i32
    scf.if %7 {
      %cst_16 = arith.constant 0.000000e+00 : f32
      %19 = vector.broadcast %cst_16 : f32 to vector<1x128xf32>
      %c0_17 = arith.constant 0 : index
      %c0_18 = arith.constant 0 : index
      %20 = vector.load %arg4[%c0_17, %c0_18] : memref<1x128xf32, #tpu.memory_space<vmem>>, vector<1x128xf32>
      tpu.vector_store %arg4[%c0_17, %c0_18], %19 {strides = array<i32>} : memref<1x128xf32, #tpu.memory_space<vmem>>, vector<1x128xf32>,
      %cst_19 = arith.constant 0.000000e+00 : f32
      %21 = vector.broadcast %cst_19 : f32 to vector<1x128xf32>
      %c0_20 = arith.constant 0 : index
      %c0_21 = arith.constant 0 : index
      %22 = vector.load %arg5[%c0_20, %c0_21] : memref<1x128xf32, #tpu.memory_space<vmem>>, vector<1x128xf32>
      tpu.vector_store %arg5[%c0_20, %c0_21], %21 {strides = array<i32>} : memref<1x128xf32, #tpu.memory_space<vmem>>, vector<1x128xf32>,
    } else {
    }
    %c0_6 = arith.constant 0 : index
    %c0_7 = arith.constant 0 : index
    %8 = vector.load %arg4[%c0_6, %c0_7] : memref<1x128xf32, #tpu.memory_space<vmem>>, vector<1x128xf32>
    %cst_8 = arith.constant dense<0.000000e+00> : vector<128xf32>
    %9 = vector.multi_reduction <add>, %2, %cst_8 [0] : vector<512x128xf32> to vector<128xf32>
    %10 = vector.shape_cast %9 : vector<128xf32> to vector<1x128xf32>
    %11 = arith.addf %8, %10 : vector<1x128xf32>
    %c0_9 = arith.constant 0 : index
    %c0_10 = arith.constant 0 : index
    %12 = vector.load %arg4[%c0_9, %c0_10] : memref<1x128xf32, #tpu.memory_space<vmem>>, vector<1x128xf32>
    tpu.vector_store %arg4[%c0_9, %c0_10], %11 {strides = array<i32>} : memref<1x128xf32, #tpu.memory_space<vmem>>, vector<1x128xf32>,
    %c0_11 = arith.constant 0 : index
    %c0_12 = arith.constant 0 : index
    %13 = vector.load %arg5[%c0_11, %c0_12] : memref<1x128xf32, #tpu.memory_space<vmem>>, vector<1x128xf32>
    %14 = arith.mulf %2, %2 : vector<512x128xf32>
    %cst_13 = arith.constant dense<0.000000e+00> : vector<128xf32>
    %15 = vector.multi_reduction <add>, %14, %cst_13 [0] : vector<512x128xf32> to vector<128xf32>
    %16 = vector.shape_cast %15 : vector<128xf32> to vector<1x128xf32>
    %17 = arith.addf %13, %16 : vector<1x128xf32>
    %c0_14 = arith.constant 0 : index
    %c0_15 = arith.constant 0 : index
    %18 = vector.load %arg5[%c0_14, %c0_15] : memref<1x128xf32, #tpu.memory_space<vmem>>, vector<1x128xf32>
    tpu.vector_store %arg5[%c0_14, %c0_15], %17 {strides = array<i32>} : memref<1x128xf32, #tpu.memory_space<vmem>>, vector<1x128xf32>,
    return
  }
  func.func @transform_0(%arg0: i32) -> (i32, i32) {
    %c0_i32 = arith.constant 0 : i32
    %c0_i32_0 = arith.constant 0 : i32
    return %arg0, %c0_i32 : i32, i32
  }
  func.func @transform_1(%arg0: i32) -> (i32, i32) {
    %c0_i32 = arith.constant 0 : i32
    %c0_i32_0 = arith.constant 0 : i32
    %c0_i32_1 = arith.constant 0 : i32
    return %c0_i32, %c0_i32_0 : i32, i32
  }
  func.func @transform_2(%arg0: i32) -> (i32, i32) {
    %c0_i32 = arith.constant 0 : i32
    %c0_i32_0 = arith.constant 0 : i32
    return %arg0, %c0_i32 : i32, i32
  }
  func.func @transform_3(%arg0: i32) -> (i32, i32) {
    %c0_i32 = arith.constant 0 : i32
    %c0_i32_0 = arith.constant 0 : i32
    %c0_i32_1 = arith.constant 0 : i32
    return %c0_i32, %c0_i32_0 : i32, i32
  }
  func.func @transform_4(%arg0: i32) -> (i32, i32) {
    %c0_i32 = arith.constant 0 : i32
    %c0_i32_0 = arith.constant 0 : i32
    %c0_i32_1 = arith.constant 0 : i32
    return %c0_i32, %c0_i32_0 : i32, i32
  }
}

module attributes {stable_mosaic.version = 11 : i64} {
  func.func @kernel(%arg0: i32, %arg1: memref<1x128xf32, #tpu.memory_space<vmem>>, %arg2: memref<1x128xf32, #tpu.memory_space<vmem>>, %arg3: memref<1x256x128xbf16, #tpu.memory_space<vmem>>, %arg4: memref<1152x128xbf16, #tpu.memory_space<vmem>>, %arg5: memref<1x256x128xbf16, #tpu.memory_space<vmem>>, %arg6: memref<1x128xf32, #tpu.memory_space<vmem>>, %arg7: memref<1x128xf32, #tpu.memory_space<vmem>>, %arg8: memref<320x128xbf16, #tpu.memory_space<vmem>>, %arg9: memref<256x1152xbf16, #tpu.memory_space<vmem>>) attributes {dimension_semantics = [#tpu.dimension_semantics<arbitrary>], iteration_bounds = array<i64: 2>, scalar_prefetch = 0 : i64, scratch_operands = 2 : i64, tpu.core_type = #tpu.core_type<tc>, window_params = [{pipeline_mode = #tpu.pipeline_mode<synchronous>, transform_indices = @transform_0, window_bounds = array<i64: 1, 128>}, {pipeline_mode = #tpu.pipeline_mode<synchronous>, transform_indices = @transform_1, window_bounds = array<i64: 1, 128>}, {transform_indices = @transform_2, window_bounds = array<i64: 1, 256, 128>}, {pipeline_mode = #tpu.pipeline_mode<synchronous>, transform_indices = @transform_3, window_bounds = array<i64: 1152, 128>}, {transform_indices = @transform_4, window_bounds = array<i64: 1, 256, 128>}, {pipeline_mode = #tpu.pipeline_mode<synchronous>, transform_indices = @transform_5, window_bounds = array<i64: 1, 128>}, {pipeline_mode = #tpu.pipeline_mode<synchronous>, transform_indices = @transform_6, window_bounds = array<i64: 1, 128>}]} {
    %c0_i32 = arith.constant 0 : i32
    %0 = arith.cmpi eq, %arg0, %c0_i32 : i32
    %1 = arith.extui %0 : i1 to i32
    %c0_i32_0 = arith.constant 0 : i32
    %2 = arith.cmpi ne, %1, %c0_i32_0 : i32
    scf.if %2 {
      %cst_64 = arith.constant 0.000000e+00 : f32
      %111 = vector.broadcast %cst_64 : f32 to vector<1x128xf32>
      %c0_65 = arith.constant 0 : index
      %c0_66 = arith.constant 0 : index
      %112 = vector.load %arg6[%c0_65, %c0_66] : memref<1x128xf32, #tpu.memory_space<vmem>>, vector<1x128xf32>
      tpu.vector_store %arg6[%c0_65, %c0_66], %111 {strides = array<i32>} : memref<1x128xf32, #tpu.memory_space<vmem>>, vector<1x128xf32>,
      %cst_67 = arith.constant 0.000000e+00 : f32
      %113 = vector.broadcast %cst_67 : f32 to vector<1x128xf32>
      %c0_68 = arith.constant 0 : index
      %c0_69 = arith.constant 0 : index
      %114 = vector.load %arg7[%c0_68, %c0_69] : memref<1x128xf32, #tpu.memory_space<vmem>>, vector<1x128xf32>
      tpu.vector_store %arg7[%c0_68, %c0_69], %113 {strides = array<i32>} : memref<1x128xf32, #tpu.memory_space<vmem>>, vector<1x128xf32>,
    } else {
    }
    %cst = arith.constant 0.000000e+00 : bf16
    %3 = vector.broadcast %cst : bf16 to vector<32x128xbf16>
    %c0 = arith.constant 0 : index
    %c0_1 = arith.constant 0 : index
    %4 = vector.load %arg8[%c0, %c0_1] : memref<320x128xbf16, #tpu.memory_space<vmem>>, vector<32x128xbf16>
    tpu.vector_store %arg8[%c0, %c0_1], %3 {strides = array<i32>} : memref<320x128xbf16, #tpu.memory_space<vmem>>, vector<32x128xbf16>,
    %cst_2 = arith.constant 0.000000e+00 : bf16
    %5 = vector.broadcast %cst_2 : bf16 to vector<32x128xbf16>
    %c288 = arith.constant 288 : index
    %c0_3 = arith.constant 0 : index
    %6 = vector.load %arg8[%c288, %c0_3] : memref<320x128xbf16, #tpu.memory_space<vmem>>, vector<32x128xbf16>
    tpu.vector_store %arg8[%c288, %c0_3], %5 {strides = array<i32>} : memref<320x128xbf16, #tpu.memory_space<vmem>>, vector<32x128xbf16>,
    %c0_4 = arith.constant 0 : index
    %c0_5 = arith.constant 0 : index
    %7 = vector.load %arg1[%c0_4, %c0_5] : memref<1x128xf32, #tpu.memory_space<vmem>>, vector<1x128xf32>
    %c0_6 = arith.constant 0 : index
    %c0_7 = arith.constant 0 : index
    %8 = vector.load %arg2[%c0_6, %c0_7] : memref<1x128xf32, #tpu.memory_space<vmem>>, vector<1x128xf32>
    %c0_8 = arith.constant 0 : index
    %c0_9 = arith.constant 0 : index
    %c0_10 = arith.constant 0 : index
    %9 = vector.load %arg3[%c0_8, %c0_9, %c0_10] : memref<1x256x128xbf16, #tpu.memory_space<vmem>>, vector<1x256x128xbf16>
    %10 = vector.shape_cast %9 : vector<1x256x128xbf16> to vector<256x128xbf16>
    %11 = arith.extf %10 : vector<256x128xbf16> to vector<256x128xf32>
    %12 = vector.broadcast %7 : vector<1x128xf32> to vector<256x128xf32>
    %13 = arith.mulf %11, %12 : vector<256x128xf32>
    %14 = vector.broadcast %8 : vector<1x128xf32> to vector<256x128xf32>
    %15 = arith.addf %13, %14 : vector<256x128xf32>
    %cst_11 = arith.constant 0.000000e+00 : f32
    %16 = vector.broadcast %cst_11 : f32 to vector<256x128xf32>
    %17 = arith.maximumf %15, %16 : vector<256x128xf32>
    %18 = arith.truncf %17 : vector<256x128xf32> to vector<256x128xbf16>
    %c32 = arith.constant 32 : index
    %c0_12 = arith.constant 0 : index
    %19 = vector.load %arg8[%c32, %c0_12] : memref<320x128xbf16, #tpu.memory_space<vmem>>, vector<256x128xbf16>
    tpu.vector_store %arg8[%c32, %c0_12], %18 {strides = array<i32>} : memref<320x128xbf16, #tpu.memory_space<vmem>>, vector<256x128xbf16>,
    %20 = tpu.iota {dimensions = array<i32: 0>} : vector<256x1xi32>
    %c16_i32 = arith.constant 16 : i32
    %c0_i32_13 = arith.constant 0 : i32
    %21 = arith.cmpi eq, %c16_i32, %c0_i32_13 : i32
    %c1_i32 = arith.constant 1 : i32
    %22 = arith.select %21, %c1_i32, %c16_i32 : i32
    %23 = vector.broadcast %22 : i32 to vector<256x1xi32>
    %24 = arith.remsi %20, %23 : vector<256x1xi32>
    %c0_i32_14 = arith.constant 0 : i32
    %25 = vector.broadcast %c0_i32_14 : i32 to vector<256x1xi32>
    %26 = arith.cmpi ne, %24, %25 : vector<256x1xi32>
    %c0_i32_15 = arith.constant 0 : i32
    %27 = vector.broadcast %c0_i32_15 : i32 to vector<256x1xi32>
    %28 = arith.cmpi slt, %24, %27 : vector<256x1xi32>
    %c0_i32_16 = arith.constant 0 : i32
    %29 = arith.cmpi slt, %22, %c0_i32_16 : i32
    %30 = vector.broadcast %29 : i1 to vector<256x1xi1>
    %31 = vector.broadcast %30 : vector<256x1xi1> to vector<256x1xi1>
    %32 = arith.xori %28, %31 : vector<256x1xi1>
    %33 = arith.andi %32, %26 : vector<256x1xi1>
    %34 = vector.broadcast %22 : i32 to vector<256x1xi32>
    %35 = arith.addi %24, %34 : vector<256x1xi32>
    %36 = arith.select %33, %35, %24 : vector<256x1xi1>, vector<256x1xi32>
    %c0_i32_17 = arith.constant 0 : i32
    %37 = vector.broadcast %c0_i32_17 : i32 to vector<256x1xi32>
    %38 = arith.cmpi sgt, %36, %37 : vector<256x1xi32>
    %c15_i32 = arith.constant 15 : i32
    %39 = vector.broadcast %c15_i32 : i32 to vector<256x1xi32>
    %40 = arith.cmpi slt, %36, %39 : vector<256x1xi32>
    %cst_18 = arith.constant 0.000000e+00 : f32
    %41 = vector.broadcast %cst_18 : f32 to vector<1x128xf32>
    %cst_19 = arith.constant 0.000000e+00 : f32
    %42 = vector.broadcast %cst_19 : f32 to vector<1x128xf32>
    %c15 = arith.constant 15 : index
    %c0_20 = arith.constant 0 : index
    %43 = vector.load %arg8[%c15, %c0_20] : memref<320x128xbf16, #tpu.memory_space<vmem>>, vector<256x128xbf16>
    %c0_i32_21 = arith.constant 0 : i32
    %44 = arith.sitofp %c0_i32_21 : i32 to bf16
    %45 = vector.shape_cast %38 : vector<256x1xi1> to vector<256x1xi1>
    %46 = vector.broadcast %45 : vector<256x1xi1> to vector<256x128xi1>
    %47 = vector.broadcast %44 : bf16 to vector<256x128xbf16>
    %48 = arith.select %46, %43, %47 : vector<256x128xi1>, vector<256x128xbf16>
    %c0_22 = arith.constant 0 : index
    %c0_23 = arith.constant 0 : index
    %49 = vector.load %arg9[%c0_22, %c0_23] : memref<256x1152xbf16, #tpu.memory_space<vmem>>, vector<256x128xbf16>
    tpu.vector_store %arg9[%c0_22, %c0_23], %48 {strides = array<i32>} : memref<256x1152xbf16, #tpu.memory_space<vmem>>, vector<256x128xbf16>,
    %c16 = arith.constant 16 : index
    %c0_24 = arith.constant 0 : index
    %50 = vector.load %arg8[%c16, %c0_24] : memref<320x128xbf16, #tpu.memory_space<vmem>>, vector<256x128xbf16>
    %c0_25 = arith.constant 0 : index
    %c128 = arith.constant 128 : index
    %51 = vector.load %arg9[%c0_25, %c128] : memref<256x1152xbf16, #tpu.memory_space<vmem>>, vector<256x128xbf16>
    tpu.vector_store %arg9[%c0_25, %c128], %50 {strides = array<i32>} : memref<256x1152xbf16, #tpu.memory_space<vmem>>, vector<256x128xbf16>,
    %c17 = arith.constant 17 : index
    %c0_26 = arith.constant 0 : index
    %52 = vector.load %arg8[%c17, %c0_26] : memref<320x128xbf16, #tpu.memory_space<vmem>>, vector<256x128xbf16>
    %c0_i32_27 = arith.constant 0 : i32
    %53 = arith.sitofp %c0_i32_27 : i32 to bf16
    %54 = vector.shape_cast %40 : vector<256x1xi1> to vector<256x1xi1>
    %55 = vector.broadcast %54 : vector<256x1xi1> to vector<256x128xi1>
    %56 = vector.broadcast %53 : bf16 to vector<256x128xbf16>
    %57 = arith.select %55, %52, %56 : vector<256x128xi1>, vector<256x128xbf16>
    %c0_28 = arith.constant 0 : index
    %c256 = arith.constant 256 : index
    %58 = vector.load %arg9[%c0_28, %c256] : memref<256x1152xbf16, #tpu.memory_space<vmem>>, vector<256x128xbf16>
    tpu.vector_store %arg9[%c0_28, %c256], %57 {strides = array<i32>} : memref<256x1152xbf16, #tpu.memory_space<vmem>>, vector<256x128xbf16>,
    %c31 = arith.constant 31 : index
    %c0_29 = arith.constant 0 : index
    %59 = vector.load %arg8[%c31, %c0_29] : memref<320x128xbf16, #tpu.memory_space<vmem>>, vector<256x128xbf16>
    %c0_i32_30 = arith.constant 0 : i32
    %60 = arith.sitofp %c0_i32_30 : i32 to bf16
    %61 = vector.shape_cast %38 : vector<256x1xi1> to vector<256x1xi1>
    %62 = vector.broadcast %61 : vector<256x1xi1> to vector<256x128xi1>
    %63 = vector.broadcast %60 : bf16 to vector<256x128xbf16>
    %64 = arith.select %62, %59, %63 : vector<256x128xi1>, vector<256x128xbf16>
    %c0_31 = arith.constant 0 : index
    %c384 = arith.constant 384 : index
    %65 = vector.load %arg9[%c0_31, %c384] : memref<256x1152xbf16, #tpu.memory_space<vmem>>, vector<256x128xbf16>
    tpu.vector_store %arg9[%c0_31, %c384], %64 {strides = array<i32>} : memref<256x1152xbf16, #tpu.memory_space<vmem>>, vector<256x128xbf16>,
    %c32_32 = arith.constant 32 : index
    %c0_33 = arith.constant 0 : index
    %66 = vector.load %arg8[%c32_32, %c0_33] : memref<320x128xbf16, #tpu.memory_space<vmem>>, vector<256x128xbf16>
    %c0_34 = arith.constant 0 : index
    %c512 = arith.constant 512 : index
    %67 = vector.load %arg9[%c0_34, %c512] : memref<256x1152xbf16, #tpu.memory_space<vmem>>, vector<256x128xbf16>
    tpu.vector_store %arg9[%c0_34, %c512], %66 {strides = array<i32>} : memref<256x1152xbf16, #tpu.memory_space<vmem>>, vector<256x128xbf16>,
    %c33 = arith.constant 33 : index
    %c0_35 = arith.constant 0 : index
    %68 = vector.load %arg8[%c33, %c0_35] : memref<320x128xbf16, #tpu.memory_space<vmem>>, vector<256x128xbf16>
    %c0_i32_36 = arith.constant 0 : i32
    %69 = arith.sitofp %c0_i32_36 : i32 to bf16
    %70 = vector.shape_cast %40 : vector<256x1xi1> to vector<256x1xi1>
    %71 = vector.broadcast %70 : vector<256x1xi1> to vector<256x128xi1>
    %72 = vector.broadcast %69 : bf16 to vector<256x128xbf16>
    %73 = arith.select %71, %68, %72 : vector<256x128xi1>, vector<256x128xbf16>
    %c0_37 = arith.constant 0 : index
    %c640 = arith.constant 640 : index
    %74 = vector.load %arg9[%c0_37, %c640] : memref<256x1152xbf16, #tpu.memory_space<vmem>>, vector<256x128xbf16>
    tpu.vector_store %arg9[%c0_37, %c640], %73 {strides = array<i32>} : memref<256x1152xbf16, #tpu.memory_space<vmem>>, vector<256x128xbf16>,
    %c47 = arith.constant 47 : index
    %c0_38 = arith.constant 0 : index
    %75 = vector.load %arg8[%c47, %c0_38] : memref<320x128xbf16, #tpu.memory_space<vmem>>, vector<256x128xbf16>
    %c0_i32_39 = arith.constant 0 : i32
    %76 = arith.sitofp %c0_i32_39 : i32 to bf16
    %77 = vector.shape_cast %38 : vector<256x1xi1> to vector<256x1xi1>
    %78 = vector.broadcast %77 : vector<256x1xi1> to vector<256x128xi1>
    %79 = vector.broadcast %76 : bf16 to vector<256x128xbf16>
    %80 = arith.select %78, %75, %79 : vector<256x128xi1>, vector<256x128xbf16>
    %c0_40 = arith.constant 0 : index
    %c768 = arith.constant 768 : index
    %81 = vector.load %arg9[%c0_40, %c768] : memref<256x1152xbf16, #tpu.memory_space<vmem>>, vector<256x128xbf16>
    tpu.vector_store %arg9[%c0_40, %c768], %80 {strides = array<i32>} : memref<256x1152xbf16, #tpu.memory_space<vmem>>, vector<256x128xbf16>,
    %c48 = arith.constant 48 : index
    %c0_41 = arith.constant 0 : index
    %82 = vector.load %arg8[%c48, %c0_41] : memref<320x128xbf16, #tpu.memory_space<vmem>>, vector<256x128xbf16>
    %c0_42 = arith.constant 0 : index
    %c896 = arith.constant 896 : index
    %83 = vector.load %arg9[%c0_42, %c896] : memref<256x1152xbf16, #tpu.memory_space<vmem>>, vector<256x128xbf16>
    tpu.vector_store %arg9[%c0_42, %c896], %82 {strides = array<i32>} : memref<256x1152xbf16, #tpu.memory_space<vmem>>, vector<256x128xbf16>,
    %c49 = arith.constant 49 : index
    %c0_43 = arith.constant 0 : index
    %84 = vector.load %arg8[%c49, %c0_43] : memref<320x128xbf16, #tpu.memory_space<vmem>>, vector<256x128xbf16>
    %c0_i32_44 = arith.constant 0 : i32
    %85 = arith.sitofp %c0_i32_44 : i32 to bf16
    %86 = vector.shape_cast %40 : vector<256x1xi1> to vector<256x1xi1>
    %87 = vector.broadcast %86 : vector<256x1xi1> to vector<256x128xi1>
    %88 = vector.broadcast %85 : bf16 to vector<256x128xbf16>
    %89 = arith.select %87, %84, %88 : vector<256x128xi1>, vector<256x128xbf16>
    %c0_45 = arith.constant 0 : index
    %c1024 = arith.constant 1024 : index
    %90 = vector.load %arg9[%c0_45, %c1024] : memref<256x1152xbf16, #tpu.memory_space<vmem>>, vector<256x128xbf16>
    tpu.vector_store %arg9[%c0_45, %c1024], %89 {strides = array<i32>} : memref<256x1152xbf16, #tpu.memory_space<vmem>>, vector<256x128xbf16>,
    %c0_46 = arith.constant 0 : index
    %c0_47 = arith.constant 0 : index
    %91 = vector.load %arg9[%c0_46, %c0_47] : memref<256x1152xbf16, #tpu.memory_space<vmem>>, vector<256x1152xbf16>
    %c0_48 = arith.constant 0 : index
    %c0_49 = arith.constant 0 : index
    %92 = vector.load %arg4[%c0_48, %c0_49] : memref<1152x128xbf16, #tpu.memory_space<vmem>>, vector<1152x128xbf16>
    %cst_50 = arith.constant dense<0.000000e+00> : vector<256x128xf32>
    %93 = tpu.matmul %91, %92, %cst_50 {dimension_numbers = #tpu.dot_dimension_numbers<[1], [0], [0], [1], [0, 0, 1, 1], [], []>} : vector<256x1152xbf16>, vector<1152x128xbf16>, vector<256x128xf32> -> vector<256x128xf32>
    %94 = arith.truncf %93 : vector<256x128xf32> to vector<256x128xbf16>
    %c0_51 = arith.constant 0 : index
    %c0_52 = arith.constant 0 : index
    %c0_53 = arith.constant 0 : index
    %95 = vector.load %arg5[%c0_51, %c0_52, %c0_53] : memref<1x256x128xbf16, #tpu.memory_space<vmem>>, vector<1x256x128xbf16>
    %96 = vector.shape_cast %95 : vector<1x256x128xbf16> to vector<256x128xbf16>
    %97 = vector.shape_cast %94 : vector<256x128xbf16> to vector<1x256x128xbf16>
    tpu.vector_store %arg5[%c0_51, %c0_52, %c0_53], %97 {strides = array<i32>} : memref<1x256x128xbf16, #tpu.memory_space<vmem>>, vector<1x256x128xbf16>,
    %cst_54 = arith.constant dense<0.000000e+00> : vector<128xf32>
    %98 = vector.multi_reduction <add>, %93, %cst_54 [0] : vector<256x128xf32> to vector<128xf32>
    %99 = vector.shape_cast %98 : vector<128xf32> to vector<1x128xf32>
    %100 = arith.addf %41, %99 : vector<1x128xf32>
    %101 = arith.mulf %93, %93 : vector<256x128xf32>
    %cst_55 = arith.constant dense<0.000000e+00> : vector<128xf32>
    %102 = vector.multi_reduction <add>, %101, %cst_55 [0] : vector<256x128xf32> to vector<128xf32>
    %103 = vector.shape_cast %102 : vector<128xf32> to vector<1x128xf32>
    %104 = arith.addf %42, %103 : vector<1x128xf32>
    %c0_56 = arith.constant 0 : index
    %c0_57 = arith.constant 0 : index
    %105 = vector.load %arg6[%c0_56, %c0_57] : memref<1x128xf32, #tpu.memory_space<vmem>>, vector<1x128xf32>
    %106 = arith.addf %105, %100 : vector<1x128xf32>
    %c0_58 = arith.constant 0 : index
    %c0_59 = arith.constant 0 : index
    %107 = vector.load %arg6[%c0_58, %c0_59] : memref<1x128xf32, #tpu.memory_space<vmem>>, vector<1x128xf32>
    tpu.vector_store %arg6[%c0_58, %c0_59], %106 {strides = array<i32>} : memref<1x128xf32, #tpu.memory_space<vmem>>, vector<1x128xf32>,
    %c0_60 = arith.constant 0 : index
    %c0_61 = arith.constant 0 : index
    %108 = vector.load %arg7[%c0_60, %c0_61] : memref<1x128xf32, #tpu.memory_space<vmem>>, vector<1x128xf32>
    %109 = arith.addf %108, %104 : vector<1x128xf32>
    %c0_62 = arith.constant 0 : index
    %c0_63 = arith.constant 0 : index
    %110 = vector.load %arg7[%c0_62, %c0_63] : memref<1x128xf32, #tpu.memory_space<vmem>>, vector<1x128xf32>
    tpu.vector_store %arg7[%c0_62, %c0_63], %109 {strides = array<i32>} : memref<1x128xf32, #tpu.memory_space<vmem>>, vector<1x128xf32>,
    return
  }
  func.func @transform_0(%arg0: i32) -> (i32, i32) {
    %c0_i32 = arith.constant 0 : i32
    %c0_i32_0 = arith.constant 0 : i32
    %c0_i32_1 = arith.constant 0 : i32
    return %c0_i32, %c0_i32_0 : i32, i32
  }
  func.func @transform_1(%arg0: i32) -> (i32, i32) {
    %c0_i32 = arith.constant 0 : i32
    %c0_i32_0 = arith.constant 0 : i32
    %c0_i32_1 = arith.constant 0 : i32
    return %c0_i32, %c0_i32_0 : i32, i32
  }
  func.func @transform_2(%arg0: i32) -> (i32, i32, i32) {
    %c0_i32 = arith.constant 0 : i32
    %c0_i32_0 = arith.constant 0 : i32
    %c0_i32_1 = arith.constant 0 : i32
    return %arg0, %c0_i32, %c0_i32_0 : i32, i32, i32
  }
  func.func @transform_3(%arg0: i32) -> (i32, i32) {
    %c0_i32 = arith.constant 0 : i32
    %c0_i32_0 = arith.constant 0 : i32
    %c0_i32_1 = arith.constant 0 : i32
    return %c0_i32, %c0_i32_0 : i32, i32
  }
  func.func @transform_4(%arg0: i32) -> (i32, i32, i32) {
    %c0_i32 = arith.constant 0 : i32
    %c0_i32_0 = arith.constant 0 : i32
    %c0_i32_1 = arith.constant 0 : i32
    return %arg0, %c0_i32, %c0_i32_0 : i32, i32, i32
  }
  func.func @transform_5(%arg0: i32) -> (i32, i32) {
    %c0_i32 = arith.constant 0 : i32
    %c0_i32_0 = arith.constant 0 : i32
    %c0_i32_1 = arith.constant 0 : i32
    return %c0_i32, %c0_i32_0 : i32, i32
  }
  func.func @transform_6(%arg0: i32) -> (i32, i32) {
    %c0_i32 = arith.constant 0 : i32
    %c0_i32_0 = arith.constant 0 : i32
    %c0_i32_1 = arith.constant 0 : i32
    return %c0_i32, %c0_i32_0 : i32, i32
  }
}

module attributes {stable_mosaic.version = 11 : i64} {
  func.func @_final_kernel(%arg0: i32, %arg1: memref<512x128xbf16, #tpu.memory_space<vmem>>, %arg2: memref<512x128xbf16, #tpu.memory_space<vmem>>, %arg3: memref<1x128xf32, #tpu.memory_space<vmem>>, %arg4: memref<1x128xf32, #tpu.memory_space<vmem>>, %arg5: memref<128x128xbf16, #tpu.memory_space<vmem>>, %arg6: memref<1x128xf32, #tpu.memory_space<vmem>>, %arg7: memref<1x128xf32, #tpu.memory_space<vmem>>, %arg8: memref<512x128xf32, #tpu.memory_space<vmem>>) attributes {dimension_semantics = [#tpu.dimension_semantics<parallel>], iteration_bounds = array<i64: 1>, scalar_prefetch = 0 : i64, scratch_operands = 0 : i64, tpu.core_type = #tpu.core_type<tc>, window_params = [{transform_indices = @transform_0, window_bounds = array<i64: 512, 128>}, {transform_indices = @transform_1, window_bounds = array<i64: 512, 128>}, {pipeline_mode = #tpu.pipeline_mode<synchronous>, transform_indices = @transform_2, window_bounds = array<i64: 1, 128>}, {pipeline_mode = #tpu.pipeline_mode<synchronous>, transform_indices = @transform_3, window_bounds = array<i64: 1, 128>}, {pipeline_mode = #tpu.pipeline_mode<synchronous>, transform_indices = @transform_4, window_bounds = array<i64: 128, 128>}, {pipeline_mode = #tpu.pipeline_mode<synchronous>, transform_indices = @transform_5, window_bounds = array<i64: 1, 128>}, {pipeline_mode = #tpu.pipeline_mode<synchronous>, transform_indices = @transform_6, window_bounds = array<i64: 1, 128>}, {transform_indices = @transform_7, window_bounds = array<i64: 512, 128>}]} {
    %c0 = arith.constant 0 : index
    %c0_0 = arith.constant 0 : index
    %0 = vector.load %arg1[%c0, %c0_0] : memref<512x128xbf16, #tpu.memory_space<vmem>>, vector<512x128xbf16>
    %c0_1 = arith.constant 0 : index
    %c0_2 = arith.constant 0 : index
    %1 = vector.load %arg3[%c0_1, %c0_2] : memref<1x128xf32, #tpu.memory_space<vmem>>, vector<1x128xf32>
    %2 = arith.extf %0 : vector<512x128xbf16> to vector<512x128xf32>
    %3 = vector.broadcast %1 : vector<1x128xf32> to vector<512x128xf32>
    %4 = arith.mulf %2, %3 : vector<512x128xf32>
    %c0_3 = arith.constant 0 : index
    %c0_4 = arith.constant 0 : index
    %5 = vector.load %arg4[%c0_3, %c0_4] : memref<1x128xf32, #tpu.memory_space<vmem>>, vector<1x128xf32>
    %6 = vector.broadcast %5 : vector<1x128xf32> to vector<512x128xf32>
    %7 = arith.addf %4, %6 : vector<512x128xf32>
    %cst = arith.constant 0.000000e+00 : f32
    %8 = vector.broadcast %cst : f32 to vector<512x128xf32>
    %9 = arith.maximumf %7, %8 : vector<512x128xf32>
    %10 = arith.truncf %9 : vector<512x128xf32> to vector<512x128xbf16>
    %c0_5 = arith.constant 0 : index
    %c0_6 = arith.constant 0 : index
    %11 = vector.load %arg5[%c0_5, %c0_6] : memref<128x128xbf16, #tpu.memory_space<vmem>>, vector<128x128xbf16>
    %cst_7 = arith.constant dense<0.000000e+00> : vector<512x128xf32>
    %12 = tpu.matmul %10, %11, %cst_7 {dimension_numbers = #tpu.dot_dimension_numbers<[1], [0], [0], [1], [0, 0, 1, 1], [], []>} : vector<512x128xbf16>, vector<128x128xbf16>, vector<512x128xf32> -> vector<512x128xf32>
    %c0_8 = arith.constant 0 : index
    %c0_9 = arith.constant 0 : index
    %13 = vector.load %arg6[%c0_8, %c0_9] : memref<1x128xf32, #tpu.memory_space<vmem>>, vector<1x128xf32>
    %14 = vector.broadcast %13 : vector<1x128xf32> to vector<512x128xf32>
    %15 = arith.mulf %12, %14 : vector<512x128xf32>
    %c0_10 = arith.constant 0 : index
    %c0_11 = arith.constant 0 : index
    %16 = vector.load %arg7[%c0_10, %c0_11] : memref<1x128xf32, #tpu.memory_space<vmem>>, vector<1x128xf32>
    %17 = vector.broadcast %16 : vector<1x128xf32> to vector<512x128xf32>
    %18 = arith.addf %15, %17 : vector<512x128xf32>
    %c0_12 = arith.constant 0 : index
    %c0_13 = arith.constant 0 : index
    %19 = vector.load %arg2[%c0_12, %c0_13] : memref<512x128xbf16, #tpu.memory_space<vmem>>, vector<512x128xbf16>
    %20 = arith.extf %19 : vector<512x128xbf16> to vector<512x128xf32>
    %21 = arith.addf %18, %20 : vector<512x128xf32>
    %cst_14 = arith.constant 0.000000e+00 : f32
    %22 = vector.broadcast %cst_14 : f32 to vector<512x128xf32>
    %23 = arith.maximumf %21, %22 : vector<512x128xf32>
    %c0_15 = arith.constant 0 : index
    %c0_16 = arith.constant 0 : index
    %24 = vector.load %arg8[%c0_15, %c0_16] : memref<512x128xf32, #tpu.memory_space<vmem>>, vector<512x128xf32>
    tpu.vector_store %arg8[%c0_15, %c0_16], %23 {strides = array<i32>} : memref<512x128xf32, #tpu.memory_space<vmem>>, vector<512x128xf32>,
    return
  }
  func.func @transform_0(%arg0: i32) -> (i32, i32) {
    %c0_i32 = arith.constant 0 : i32
    %c0_i32_0 = arith.constant 0 : i32
    return %arg0, %c0_i32 : i32, i32
  }
  func.func @transform_1(%arg0: i32) -> (i32, i32) {
    %c0_i32 = arith.constant 0 : i32
    %c0_i32_0 = arith.constant 0 : i32
    return %arg0, %c0_i32 : i32, i32
  }
  func.func @transform_2(%arg0: i32) -> (i32, i32) {
    %c0_i32 = arith.constant 0 : i32
    %c0_i32_0 = arith.constant 0 : i32
    %c0_i32_1 = arith.constant 0 : i32
    return %c0_i32, %c0_i32_0 : i32, i32
  }
  func.func @transform_3(%arg0: i32) -> (i32, i32) {
    %c0_i32 = arith.constant 0 : i32
    %c0_i32_0 = arith.constant 0 : i32
    %c0_i32_1 = arith.constant 0 : i32
    return %c0_i32, %c0_i32_0 : i32, i32
  }
  func.func @transform_4(%arg0: i32) -> (i32, i32) {
    %c0_i32 = arith.constant 0 : i32
    %c0_i32_0 = arith.constant 0 : i32
    %c0_i32_1 = arith.constant 0 : i32
    return %c0_i32, %c0_i32_0 : i32, i32
  }
  func.func @transform_5(%arg0: i32) -> (i32, i32) {
    %c0_i32 = arith.constant 0 : i32
    %c0_i32_0 = arith.constant 0 : i32
    %c0_i32_1 = arith.constant 0 : i32
    return %c0_i32, %c0_i32_0 : i32, i32
  }
  func.func @transform_6(%arg0: i32) -> (i32, i32) {
    %c0_i32 = arith.constant 0 : i32
    %c0_i32_0 = arith.constant 0 : i32
    %c0_i32_1 = arith.constant 0 : i32
    return %c0_i32, %c0_i32_0 : i32, i32
  }
  func.func @transform_7(%arg0: i32) -> (i32, i32) {
    %c0_i32 = arith.constant 0 : i32
    %c0_i32_0 = arith.constant 0 : i32
    return %arg0, %c0_i32 : i32, i32
  }
}

module attributes {stable_mosaic.version = 11 : i64} {
  func.func @_bnrelu_matmul_stats_kernel(%arg0: i32, %arg1: memref<512x128xbf16, #tpu.memory_space<vmem>>, %arg2: memref<1x128xf32, #tpu.memory_space<vmem>>, %arg3: memref<1x128xf32, #tpu.memory_space<vmem>>, %arg4: memref<128x128xbf16, #tpu.memory_space<vmem>>, %arg5: memref<1x128xf32, #tpu.memory_space<vmem>>, %arg6: memref<1x128xf32, #tpu.memory_space<vmem>>) attributes {dimension_semantics = [#tpu.dimension_semantics<arbitrary>], iteration_bounds = array<i64: 1>, scalar_prefetch = 0 : i64, scratch_operands = 0 : i64, tpu.core_type = #tpu.core_type<tc>, window_params = [{transform_indices = @transform_0, window_bounds = array<i64: 512, 128>}, {pipeline_mode = #tpu.pipeline_mode<synchronous>, transform_indices = @transform_1, window_bounds = array<i64: 1, 128>}, {pipeline_mode = #tpu.pipeline_mode<synchronous>, transform_indices = @transform_2, window_bounds = array<i64: 1, 128>}, {pipeline_mode = #tpu.pipeline_mode<synchronous>, transform_indices = @transform_3, window_bounds = array<i64: 128, 128>}, {pipeline_mode = #tpu.pipeline_mode<synchronous>, transform_indices = @transform_4, window_bounds = array<i64: 1, 128>}, {pipeline_mode = #tpu.pipeline_mode<synchronous>, transform_indices = @transform_5, window_bounds = array<i64: 1, 128>}]} {
    %c0 = arith.constant 0 : index
    %c0_0 = arith.constant 0 : index
    %0 = vector.load %arg1[%c0, %c0_0] : memref<512x128xbf16, #tpu.memory_space<vmem>>, vector<512x128xbf16>
    %c0_1 = arith.constant 0 : index
    %c0_2 = arith.constant 0 : index
    %1 = vector.load %arg2[%c0_1, %c0_2] : memref<1x128xf32, #tpu.memory_space<vmem>>, vector<1x128xf32>
    %2 = arith.extf %0 : vector<512x128xbf16> to vector<512x128xf32>
    %3 = vector.broadcast %1 : vector<1x128xf32> to vector<512x128xf32>
    %4 = arith.mulf %2, %3 : vector<512x128xf32>
    %c0_3 = arith.constant 0 : index
    %c0_4 = arith.constant 0 : index
    %5 = vector.load %arg3[%c0_3, %c0_4] : memref<1x128xf32, #tpu.memory_space<vmem>>, vector<1x128xf32>
    %6 = vector.broadcast %5 : vector<1x128xf32> to vector<512x128xf32>
    %7 = arith.addf %4, %6 : vector<512x128xf32>
    %cst = arith.constant 0.000000e+00 : f32
    %8 = vector.broadcast %cst : f32 to vector<512x128xf32>
    %9 = arith.maximumf %7, %8 : vector<512x128xf32>
    %10 = arith.truncf %9 : vector<512x128xf32> to vector<512x128xbf16>
    %c0_5 = arith.constant 0 : index
    %c0_6 = arith.constant 0 : index
    %11 = vector.load %arg4[%c0_5, %c0_6] : memref<128x128xbf16, #tpu.memory_space<vmem>>, vector<128x128xbf16>
    %cst_7 = arith.constant dense<0.000000e+00> : vector<512x128xf32>
    %12 = tpu.matmul %10, %11, %cst_7 {dimension_numbers = #tpu.dot_dimension_numbers<[1], [0], [0], [1], [0, 0, 1, 1], [], []>} : vector<512x128xbf16>, vector<128x128xbf16>, vector<512x128xf32> -> vector<512x128xf32>
    %c0_i32 = arith.constant 0 : i32
    %13 = arith.cmpi eq, %arg0, %c0_i32 : i32
    %14 = arith.extui %13 : i1 to i32
    %c0_i32_8 = arith.constant 0 : i32
    %15 = arith.cmpi ne, %14, %c0_i32_8 : i32
    scf.if %15 {
      %cst_19 = arith.constant 0.000000e+00 : f32
      %27 = vector.broadcast %cst_19 : f32 to vector<1x128xf32>
      %c0_20 = arith.constant 0 : index
      %c0_21 = arith.constant 0 : index
      %28 = vector.load %arg5[%c0_20, %c0_21] : memref<1x128xf32, #tpu.memory_space<vmem>>, vector<1x128xf32>
      tpu.vector_store %arg5[%c0_20, %c0_21], %27 {strides = array<i32>} : memref<1x128xf32, #tpu.memory_space<vmem>>, vector<1x128xf32>,
      %cst_22 = arith.constant 0.000000e+00 : f32
      %29 = vector.broadcast %cst_22 : f32 to vector<1x128xf32>
      %c0_23 = arith.constant 0 : index
      %c0_24 = arith.constant 0 : index
      %30 = vector.load %arg6[%c0_23, %c0_24] : memref<1x128xf32, #tpu.memory_space<vmem>>, vector<1x128xf32>
      tpu.vector_store %arg6[%c0_23, %c0_24], %29 {strides = array<i32>} : memref<1x128xf32, #tpu.memory_space<vmem>>, vector<1x128xf32>,
    } else {
    }
    %c0_9 = arith.constant 0 : index
    %c0_10 = arith.constant 0 : index
    %16 = vector.load %arg5[%c0_9, %c0_10] : memref<1x128xf32, #tpu.memory_space<vmem>>, vector<1x128xf32>
    %cst_11 = arith.constant dense<0.000000e+00> : vector<128xf32>
    %17 = vector.multi_reduction <add>, %12, %cst_11 [0] : vector<512x128xf32> to vector<128xf32>
    %18 = vector.shape_cast %17 : vector<128xf32> to vector<1x128xf32>
    %19 = arith.addf %16, %18 : vector<1x128xf32>
    %c0_12 = arith.constant 0 : index
    %c0_13 = arith.constant 0 : index
    %20 = vector.load %arg5[%c0_12, %c0_13] : memref<1x128xf32, #tpu.memory_space<vmem>>, vector<1x128xf32>
    tpu.vector_store %arg5[%c0_12, %c0_13], %19 {strides = array<i32>} : memref<1x128xf32, #tpu.memory_space<vmem>>, vector<1x128xf32>,
    %c0_14 = arith.constant 0 : index
    %c0_15 = arith.constant 0 : index
    %21 = vector.load %arg6[%c0_14, %c0_15] : memref<1x128xf32, #tpu.memory_space<vmem>>, vector<1x128xf32>
    %22 = arith.mulf %12, %12 : vector<512x128xf32>
    %cst_16 = arith.constant dense<0.000000e+00> : vector<128xf32>
    %23 = vector.multi_reduction <add>, %22, %cst_16 [0] : vector<512x128xf32> to vector<128xf32>
    %24 = vector.shape_cast %23 : vector<128xf32> to vector<1x128xf32>
    %25 = arith.addf %21, %24 : vector<1x128xf32>
    %c0_17 = arith.constant 0 : index
    %c0_18 = arith.constant 0 : index
    %26 = vector.load %arg6[%c0_17, %c0_18] : memref<1x128xf32, #tpu.memory_space<vmem>>, vector<1x128xf32>
    tpu.vector_store %arg6[%c0_17, %c0_18], %25 {strides = array<i32>} : memref<1x128xf32, #tpu.memory_space<vmem>>, vector<1x128xf32>,
    return
  }
  func.func @transform_0(%arg0: i32) -> (i32, i32) {
    %c0_i32 = arith.constant 0 : i32
    %c0_i32_0 = arith.constant 0 : i32
    return %arg0, %c0_i32 : i32, i32
  }
  func.func @transform_1(%arg0: i32) -> (i32, i32) {
    %c0_i32 = arith.constant 0 : i32
    %c0_i32_0 = arith.constant 0 : i32
    %c0_i32_1 = arith.constant 0 : i32
    return %c0_i32, %c0_i32_0 : i32, i32
  }
  func.func @transform_2(%arg0: i32) -> (i32, i32) {
    %c0_i32 = arith.constant 0 : i32
    %c0_i32_0 = arith.constant 0 : i32
    %c0_i32_1 = arith.constant 0 : i32
    return %c0_i32, %c0_i32_0 : i32, i32
  }
  func.func @transform_3(%arg0: i32) -> (i32, i32) {
    %c0_i32 = arith.constant 0 : i32
    %c0_i32_0 = arith.constant 0 : i32
    %c0_i32_1 = arith.constant 0 : i32
    return %c0_i32, %c0_i32_0 : i32, i32
  }
  func.func @transform_4(%arg0: i32) -> (i32, i32) {
    %c0_i32 = arith.constant 0 : i32
    %c0_i32_0 = arith.constant 0 : i32
    %c0_i32_1 = arith.constant 0 : i32
    return %c0_i32, %c0_i32_0 : i32, i32
  }
  func.func @transform_5(%arg0: i32) -> (i32, i32) {
    %c0_i32 = arith.constant 0 : i32
    %c0_i32_0 = arith.constant 0 : i32
    %c0_i32_1 = arith.constant 0 : i32
    return %c0_i32, %c0_i32_0 : i32, i32
  }
}

</mosaic_0001>

<llo_original>
// kernel: bottleneck_forward.4
$region0: #{bottleneck_forward.4}
  #allocation0 [shape = 'u32[]', space=smem, size = 0x4, offset = 0x4, fixed_abs, tag = 'smem constant byte address 0x4 - core index']
  #allocation1 [shape = 'u32[144,128]{1,0:T(1,128)}', space=vmem, size = 0x12000, scoped, tag = 'internal scratch']
  %s0 = inlined_call_operand.vmem [shape: bf16[512,128], index: 0, kind: input, shape index: {}]
  %s1 = inlined_call_operand.vmem [shape: bf16[128,128], index: 1, kind: input, shape index: {}]
  %s2 = inlined_call_operand.vmem [shape: bf16[512,128], index: 2, kind: output, shape index: {0}]
  %s3 = inlined_call_operand.vmem [shape: f32[1,128], index: 3, kind: output, shape index: {1}]
  %s4 = inlined_call_operand.vmem [shape: f32[1,128], index: 4, kind: output, shape index: {2}]
  %5 = xla_tuple %s2, %s3, %s4
  %s6 = sld [smem:[#allocation0]]
  $region38: #{bottleneck_forward.4} parent=0
    _
  %s8 = ssub.s32 1, %s6
  %s9 = scalar_select 0, %s8, %s6
  // Predicated region
  $region2: #{bottleneck_forward.4} parent=0 // pred_check
    _
  $region3: #{bottleneck_forward.4} parent=0 // pred_check_branch
    %11 = sbr.rel (0) target = $region5
  $region4: #{bottleneck_forward.4} parent=0 // pred_region
    _
  $region5: #{bottleneck_forward.4} parent=0 // pred_fallthru
    _
  // Predicated region
  $region6: #{bottleneck_forward.4} parent=0 // pred_check
    _
  $region7: #{bottleneck_forward.4} parent=0 // pred_check_branch
    %13 = sbr.rel (0) target = $region9
  $region8: #{bottleneck_forward.4} parent=0 // pred_region
    _
  $region9: #{bottleneck_forward.4} parent=0 // pred_fallthru
    _
  %v15 = vld [vmem:[%s0] sm:$0xf]
  %v16 = vld [vmem:[%s0 + $0x4] sm:$0xf]
  %v17 = vld [vmem:[%s0 + $0x8] sm:$0xf]
  %v18 = vld [vmem:[%s0 + $0xc] sm:$0xf]
  %v19 = vld [vmem:[%s0 + $0x10] sm:$0xf]
  %v20 = vld [vmem:[%s0 + $0x14] sm:$0xf]
  %v21 = vld [vmem:[%s0 + $0x18] sm:$0xf]
  %v22 = vld [vmem:[%s0 + $0x1c] sm:$0xf]
  %v23 = vld [vmem:[%s0 + $0x20] sm:$0xf]
  %v24 = vld [vmem:[%s0 + $0x24] sm:$0xf]
  %v25 = vld [vmem:[%s0 + $0x28] sm:$0xf]
  %v26 = vld [vmem:[%s0 + $0x2c] sm:$0xf]
  %v27 = vld [vmem:[%s0 + $0x30] sm:$0xf]
  %v28 = vld [vmem:[%s0 + $0x34] sm:$0xf]
  %v29 = vld [vmem:[%s0 + $0x38] sm:$0xf]
  %v30 = vld [vmem:[%s0 + $0x3c] sm:$0xf]
  %v31 = vld [vmem:[%s0 + $0x40] sm:$0xf]
  %v32 = vld [vmem:[%s0 + $0x44] sm:$0xf]
  %v33 = vld [vmem:[%s0 + $0x48] sm:$0xf]
  %v34 = vld [vmem:[%s0 + $0x4c] sm:$0xf]
  %v35 = vld [vmem:[%s0 + $0x50] sm:$0xf]
  %v36 = vld [vmem:[%s0 + $0x54] sm:$0xf]
  %v37 = vld [vmem:[%s0 + $0x58] sm:$0xf]
  %v38 = vld [vmem:[%s0 + $0x5c] sm:$0xf]
  %v39 = vld [vmem:[%s0 + $0x60] sm:$0xf]
  %v40 = vld [vmem:[%s0 + $0x64] sm:$0xf]
  %v41 = vld [vmem:[%s0 + $0x68] sm:$0xf]
  %v42 = vld [vmem:[%s0 + $0x6c] sm:$0xf]
  %v43 = vld [vmem:[%s0 + $0x70] sm:$0xf]
  %v44 = vld [vmem:[%s0 + $0x74] sm:$0xf]
  %v45 = vld [vmem:[%s0 + $0x78] sm:$0xf]
  %v46 = vld [vmem:[%s0 + $0x7c] sm:$0xf]
  %v47 = vld [vmem:[%s0 + $0x80] sm:$0xf]
  %v48 = vld [vmem:[%s0 + $0x84] sm:$0xf]
  %v49 = vld [vmem:[%s0 + $0x88] sm:$0xf]
  %v50 = vld [vmem:[%s0 + $0x8c] sm:$0xf]
  %v51 = vld [vmem:[%s0 + $0x90] sm:$0xf]
  %v52 = vld [vmem:[%s0 + $0x94] sm:$0xf]
  %v53 = vld [vmem:[%s0 + $0x98] sm:$0xf]
  %v54 = vld [vmem:[%s0 + $0x9c] sm:$0xf]
  %v55 = vld [vmem:[%s0 + $0xa0] sm:$0xf]
  %v56 = vld [vmem:[%s0 + $0xa4] sm:$0xf]
  %v57 = vld [vmem:[%s0 + $0xa8] sm:$0xf]
  %v58 = vld [vmem:[%s0 + $0xac] sm:$0xf]
  %v59 = vld [vmem:[%s0 + $0xb0] sm:$0xf]
  %v60 = vld [vmem:[%s0 + $0xb4] sm:$0xf]
  %v61 = vld [vmem:[%s0 + $0xb8] sm:$0xf]
  %v62 = vld [vmem:[%s0 + $0xbc] sm:$0xf]
  %v63 = vld [vmem:[%s0 + $0xc0] sm:$0xf]
  %v64 = vld [vmem:[%s0 + $0xc4] sm:$0xf]
  %v65 = vld [vmem:[%s0 + $0xc8] sm:$0xf]
  %v66 = vld [vmem:[%s0 + $0xcc] sm:$0xf]
  %v67 = vld [vmem:[%s0 + $0xd0] sm:$0xf]
  %v68 = vld [vmem:[%s0 + $0xd4] sm:$0xf]
  %v69 = vld [vmem:[%s0 + $0xd8] sm:$0xf]
  %v70 = vld [vmem:[%s0 + $0xdc] sm:$0xf]
  %v71 = vld [vmem:[%s0 + $0xe0] sm:$0xf]
  %v72 = vld [vmem:[%s0 + $0xe4] sm:$0xf]
  %v73 = vld [vmem:[%s0 + $0xe8] sm:$0xf]
  %v74 = vld [vmem:[%s0 + $0xec] sm:$0xf]
  %v75 = vld [vmem:[%s0 + $0xf0] sm:$0xf]
  %v76 = vld [vmem:[%s0 + $0xf4] sm:$0xf]
  %v77 = vld [vmem:[%s0 + $0xf8] sm:$0xf]
  %v78 = vld [vmem:[%s0 + $0xfc] sm:$0xf]
  %v79 = vld [vmem:[%s1] sm:$0xf]
  %v80 = vld [vmem:[%s1 + $0x4] sm:$0xf]
  %v81 = vld [vmem:[%s1 + $0x8] sm:$0xf]
  %v82 = vld [vmem:[%s1 + $0xc] sm:$0xf]
  %v83 = vld [vmem:[%s1 + $0x10] sm:$0xf]
  %v84 = vld [vmem:[%s1 + $0x14] sm:$0xf]
  %v85 = vld [vmem:[%s1 + $0x18] sm:$0xf]
  %v86 = vld [vmem:[%s1 + $0x1c] sm:$0xf]
  %v87 = vld [vmem:[%s1 + $0x20] sm:$0xf]
  %v88 = vld [vmem:[%s1 + $0x24] sm:$0xf]
  %v89 = vld [vmem:[%s1 + $0x28] sm:$0xf]
  %v90 = vld [vmem:[%s1 + $0x2c] sm:$0xf]
  %v91 = vld [vmem:[%s1 + $0x30] sm:$0xf]
  %v92 = vld [vmem:[%s1 + $0x34] sm:$0xf]
  %v93 = vld [vmem:[%s1 + $0x38] sm:$0xf]
  %v94 = vld [vmem:[%s1 + $0x3c] sm:$0xf]
  %v159 = vunpack.c.l.b16 %v15
  %v160 = vunpack.c.l.b16 %v16
  %v161 = vunpack.c.l.b16 %v17
  %v162 = vunpack.c.l.b16 %v18
  %v163 = vunpack.c.l.b16 %v19
  %v164 = vunpack.c.l.b16 %v20
  %v165 = vunpack.c.l.b16 %v21
  %v166 = vunpack.c.l.b16 %v22
  %v167 = vunpack.c.l.b16 %v23
  %v168 = vunpack.c.l.b16 %v24
  %v169 = vunpack.c.l.b16 %v25
  %v170 = vunpack.c.l.b16 %v26
  %v171 = vunpack.c.l.b16 %v27
  %v172 = vunpack.c.l.b16 %v28
  %v173 = vunpack.c.l.b16 %v29
  %v174 = vunpack.c.l.b16 %v30
  %v175 = vunpack.c.l.b16 %v31
  %v176 = vunpack.c.l.b16 %v32
  %v177 = vunpack.c.l.b16 %v33
  %v178 = vunpack.c.l.b16 %v34
  %v179 = vunpack.c.l.b16 %v35
  %v180 = vunpack.c.l.b16 %v36
  %v181 = vunpack.c.l.b16 %v37
  %v182 = vunpack.c.l.b16 %v38
  %v183 = vunpack.c.l.b16 %v39
  %v184 = vunpack.c.l.b16 %v40
  %v185 = vunpack.c.l.b16 %v41
  %v186 = vunpack.c.l.b16 %v42
  %v187 = vunpack.c.l.b16 %v43
  %v188 = vunpack.c.l.b16 %v44
  %v189 = vunpack.c.l.b16 %v45
  %v190 = vunpack.c.l.b16 %v46
  %v191 = vunpack.c.l.b16 %v47
  %v192 = vunpack.c.l.b16 %v48
  %v193 = vunpack.c.l.b16 %v49
  %v194 = vunpack.c.l.b16 %v50
  %v195 = vunpack.c.l.b16 %v51
  %v196 = vunpack.c.l.b16 %v52
  %v197 = vunpack.c.l.b16 %v53
  %v198 = vunpack.c.l.b16 %v54
  %v199 = vunpack.c.l.b16 %v55
  %v200 = vunpack.c.l.b16 %v56
  %v201 = vunpack.c.l.b16 %v57
  %v202 = vunpack.c.l.b16 %v58
  %v203 = vunpack.c.l.b16 %v59
  %v204 = vunpack.c.l.b16 %v60
  %v205 = vunpack.c.l.b16 %v61
  %v206 = vunpack.c.l.b16 %v62
  %v207 = vunpack.c.l.b16 %v63
  %v208 = vunpack.c.l.b16 %v64
  %v209 = vunpack.c.l.b16 %v65
  %v210 = vunpack.c.l.b16 %v66
  %v211 = vunpack.c.l.b16 %v67
  %v212 = vunpack.c.l.b16 %v68
  %v213 = vunpack.c.l.b16 %v69
  %v214 = vunpack.c.l.b16 %v70
  %v215 = vunpack.c.l.b16 %v71
  %v216 = vunpack.c.l.b16 %v72
  %v217 = vunpack.c.l.b16 %v73
  %v218 = vunpack.c.l.b16 %v74
  %v219 = vunpack.c.l.b16 %v75
  %v220 = vunpack.c.l.b16 %v76
  %v221 = vunpack.c.l.b16 %v77
  %v222 = vunpack.c.l.b16 %v78
  %v223 = vpack.c.b16 %v160, %v159
  %v224 = vpack.c.b16 %v162, %v161
  %v225 = vpack.c.b16 %v164, %v163
  %v226 = vpack.c.b16 %v166, %v165
  %v227 = vpack.c.b16 %v168, %v167
  %v228 = vpack.c.b16 %v170, %v169
  %v229 = vpack.c.b16 %v172, %v171
  %v230 = vpack.c.b16 %v174, %v173
  %v231 = vpack.c.b16 %v176, %v175
  %v232 = vpack.c.b16 %v178, %v177
  %v233 = vpack.c.b16 %v180, %v179
  %v234 = vpack.c.b16 %v182, %v181
  %v235 = vpack.c.b16 %v184, %v183
  %v236 = vpack.c.b16 %v186, %v185
  %v237 = vpack.c.b16 %v188, %v187
  %v238 = vpack.c.b16 %v190, %v189
  %v239 = vpack.c.b16 %v192, %v191
  %v240 = vpack.c.b16 %v194, %v193
  %v241 = vpack.c.b16 %v196, %v195
  %v242 = vpack.c.b16 %v198, %v197
  %v243 = vpack.c.b16 %v200, %v199
  %v244 = vpack.c.b16 %v202, %v201
  %v245 = vpack.c.b16 %v204, %v203
  %v246 = vpack.c.b16 %v206, %v205
  %v247 = vpack.c.b16 %v208, %v207
  %v248 = vpack.c.b16 %v210, %v209
  %v249 = vpack.c.b16 %v212, %v211
  %v250 = vpack.c.b16 %v214, %v213
  %v251 = vpack.c.b16 %v216, %v215
  %v252 = vpack.c.b16 %v218, %v217
  %v253 = vpack.c.b16 %v220, %v219
  %v254 = vpack.c.b16 %v222, %v221
  %v303 = vunpack.c.l.b16 %v79
  %v304 = vunpack.c.l.b16 %v80
  %v305 = vunpack.c.l.b16 %v81
  %v306 = vunpack.c.l.b16 %v82
  %v307 = vunpack.c.l.b16 %v83
  %v308 = vunpack.c.l.b16 %v84
  %v309 = vunpack.c.l.b16 %v85
  %v310 = vunpack.c.l.b16 %v86
  %v311 = vunpack.c.l.b16 %v87
  %v312 = vunpack.c.l.b16 %v88
  %v313 = vunpack.c.l.b16 %v89
  %v314 = vunpack.c.l.b16 %v90
  %v315 = vunpack.c.l.b16 %v91
  %v316 = vunpack.c.l.b16 %v92
  %v317 = vunpack.c.l.b16 %v93
  %v318 = vunpack.c.l.b16 %v94
  %v319 = vpack.c.b16 %v304, %v303
  %v320 = vpack.c.b16 %v306, %v305
  %v321 = vpack.c.b16 %v308, %v307
  %v322 = vpack.c.b16 %v310, %v309
  %v323 = vpack.c.b16 %v312, %v311
  %v324 = vpack.c.b16 %v314, %v313
  %v325 = vpack.c.b16 %v316, %v315
  %v326 = vpack.c.b16 %v318, %v317
  %335 = vmatprep.subr.bf16.mxu0 0
  %336 = vmatpush1.bf16.msra.mxu0 %v319
  %337 = vmatprep.subr.bf16.mxu0 0
  %338 = vmatpush1.bf16.msra.mxu0 %v320
  %339 = vmatprep.subr.bf16.mxu0 0
  %340 = vmatpush1.bf16.msra.mxu0 %v321
  %341 = vmatprep.subr.bf16.mxu0 0
  %342 = vmatpush1.bf16.msra.mxu0 %v322
  %343 = vmatprep.subr.bf16.mxu0 0
  %344 = vmatpush1.bf16.msra.mxu0 %v323
  %345 = vmatprep.subr.bf16.mxu0 0
  %346 = vmatpush1.bf16.msra.mxu0 %v324
  %347 = vmatprep.subr.bf16.mxu0 0
  %348 = vmatpush1.bf16.msra.mxu0 %v325
  %349 = vmatprep.subr.bf16.mxu0 0
  %350 = vmatpush1.bf16.msra.mxu0 %v326
  %351 = vmatprep.subr.bf16.mxu0 0
  %352 = vmatpush1.bf16.msra.mxu0 0
  %353 = vmatprep.subr.bf16.mxu0 0
  %354 = vmatpush1.bf16.msra.mxu0 0
  %355 = vmatprep.subr.bf16.mxu0 0
  %356 = vmatpush1.bf16.msra.mxu0 0
  %357 = vmatprep.subr.bf16.mxu0 0
  %358 = vmatpush1.bf16.msra.mxu0 0
  %359 = vmatprep.subr.bf16.mxu0 0
  %360 = vmatpush1.bf16.msra.mxu0 0
  %361 = vmatprep.subr.bf16.mxu0 0
  %362 = vmatpush1.bf16.msra.mxu0 0
  %363 = vmatprep.subr.bf16.mxu0 0
  %364 = vmatpush1.bf16.msra.mxu0 0
  %365 = vmatprep.subr.bf16.mxu0 0
  %366 = vmatpush1.bf16.msra.mxu0 0
  %367 = vmatprep.mubr.bf16.mxu0 0
  %368 = vmatmul.mubr.bf16.gmra.mrb[0].mxu0 %v223
  %v369 = vpop.f32.mrb[0].mxu0
  %v370 = vadd.f32 0.0, %v369
  %v371 = vpop.f32.mrb[0].mxu0
  %v372 = vpop.f32.mrb[0].mxu0
  %v373 = vadd.f32 0.0, %v372
  %v374 = vpop.f32.mrb[0].mxu0
  %375 = vmatprep.mubr.bf16.mxu0 0
  %376 = vmatmul.mubr.bf16.gmra.mrb[0].mxu0 %v224
  %v377 = vpop.f32.mrb[0].mxu0
  %v378 = vadd.f32 0.0, %v377
  %v379 = vpop.f32.mrb[0].mxu0
  %v380 = vpop.f32.mrb[0].mxu0
  %v381 = vadd.f32 0.0, %v380
  %v382 = vpop.f32.mrb[0].mxu0
  %383 = vmatprep.mubr.bf16.mxu0 0
  %384 = vmatmul.mubr.bf16.gmra.mrb[0].mxu0 %v225
  %v385 = vpop.f32.mrb[0].mxu0
  %v386 = vadd.f32 0.0, %v385
  %v387 = vpop.f32.mrb[0].mxu0
  %v388 = vpop.f32.mrb[0].mxu0
  %v389 = vadd.f32 0.0, %v388
  %v390 = vpop.f32.mrb[0].mxu0
  %391 = vmatprep.mubr.bf16.mxu0 0
  %392 = vmatmul.mubr.bf16.gmra.mrb[0].mxu0 %v226
  %v393 = vpop.f32.mrb[0].mxu0
  %v394 = vadd.f32 0.0, %v393
  %v395 = vpop.f32.mrb[0].mxu0
  %v396 = vpop.f32.mrb[0].mxu0
  %v397 = vadd.f32 0.0, %v396
  %v398 = vpop.f32.mrb[0].mxu0
  %399 = vmatprep.mubr.bf16.mxu0 0
  %400 = vmatmul.mubr.bf16.gmra.mrb[0].mxu0 %v227
  %v401 = vpop.f32.mrb[0].mxu0
  %v402 = vadd.f32 0.0, %v401
  %v403 = vpop.f32.mrb[0].mxu0
  %v404 = vpop.f32.mrb[0].mxu0
  %v405 = vadd.f32 0.0, %v404
  %v406 = vpop.f32.mrb[0].mxu0
  %407 = vmatprep.mubr.bf16.mxu0 0
  %408 = vmatmul.mubr.bf16.gmra.mrb[0].mxu0 %v228
  %v409 = vpop.f32.mrb[0].mxu0
  %v410 = vadd.f32 0.0, %v409
  %v411 = vpop.f32.mrb[0].mxu0
  %v412 = vpop.f32.mrb[0].mxu0
  %v413 = vadd.f32 0.0, %v412
  %v414 = vpop.f32.mrb[0].mxu0
  %415 = vmatprep.mubr.bf16.mxu0 0
  %416 = vmatmul.mubr.bf16.gmra.mrb[0].mxu0 %v229
  %v417 = vpop.f32.mrb[0].mxu0
  %v418 = vadd.f32 0.0, %v417
  %v419 = vpop.f32.mrb[0].mxu0
  %v420 = vpop.f32.mrb[0].mxu0
  %v421 = vadd.f32 0.0, %v420
  %v422 = vpop.f32.mrb[0].mxu0
  %423 = vmatprep.mubr.bf16.mxu0 0
  %424 = vmatmul.mubr.bf16.gmra.mrb[0].mxu0 %v230
  %v425 = vpop.f32.mrb[0].mxu0
  %v426 = vadd.f32 0.0, %v425
  %v427 = vpop.f32.mrb[0].mxu0
  %v428 = vpop.f32.mrb[0].mxu0
  %v429 = vadd.f32 0.0, %v428
  %v430 = vpop.f32.mrb[0].mxu0
  %431 = vmatprep.mubr.bf16.mxu0 0
  %432 = vmatmul.mubr.bf16.gmra.mrb[0].mxu0 %v231
  %v433 = vpop.f32.mrb[0].mxu0
  %v434 = vadd.f32 0.0, %v433
  %v435 = vpop.f32.mrb[0].mxu0
  %v436 = vpop.f32.mrb[0].mxu0
  %v437 = vadd.f32 0.0, %v436
  %v438 = vpop.f32.mrb[0].mxu0
  %439 = vmatprep.mubr.bf16.mxu0 0
  %440 = vmatmul.mubr.bf16.gmra.mrb[0].mxu0 %v232
  %v441 = vpop.f32.mrb[0].mxu0
  %v442 = vadd.f32 0.0, %v441
  %v443 = vpop.f32.mrb[0].mxu0
  %v444 = vpop.f32.mrb[0].mxu0
  %v445 = vadd.f32 0.0, %v444
  %v446 = vpop.f32.mrb[0].mxu0
  %447 = vmatprep.mubr.bf16.mxu0 0
  %448 = vmatmul.mubr.bf16.gmra.mrb[0].mxu0 %v233
  %v449 = vpop.f32.mrb[0].mxu0
  %v450 = vadd.f32 0.0, %v449
  %v451 = vpop.f32.mrb[0].mxu0
  %v452 = vpop.f32.mrb[0].mxu0
  %v453 = vadd.f32 0.0, %v452
  %v454 = vpop.f32.mrb[0].mxu0
  %455 = vmatprep.mubr.bf16.mxu0 0
  %456 = vmatmul.mubr.bf16.gmra.mrb[0].mxu0 %v234
  %v457 = vpop.f32.mrb[0].mxu0
  %v458 = vadd.f32 0.0, %v457
  %v459 = vpop.f32.mrb[0].mxu0
  %v460 = vpop.f32.mrb[0].mxu0
  %v461 = vadd.f32 0.0, %v460
  %v462 = vpop.f32.mrb[0].mxu0
  %463 = vmatprep.mubr.bf16.mxu0 0
  %464 = vmatmul.mubr.bf16.gmra.mrb[0].mxu0 %v235
  %v465 = vpop.f32.mrb[0].mxu0
  %v466 = vadd.f32 0.0, %v465
  %v467 = vpop.f32.mrb[0].mxu0
  %v468 = vpop.f32.mrb[0].mxu0
  %v469 = vadd.f32 0.0, %v468
  %v470 = vpop.f32.mrb[0].mxu0
  %471 = vmatprep.mubr.bf16.mxu0 0
  %472 = vmatmul.mubr.bf16.gmra.mrb[0].mxu0 %v236
  %v473 = vpop.f32.mrb[0].mxu0
  %v474 = vadd.f32 0.0, %v473
  %v475 = vpop.f32.mrb[0].mxu0
  %v476 = vpop.f32.mrb[0].mxu0
  %v477 = vadd.f32 0.0, %v476
  %v478 = vpop.f32.mrb[0].mxu0
  %479 = vmatprep.mubr.bf16.mxu0 0
  %480 = vmatmul.mubr.bf16.gmra.mrb[0].mxu0 %v237
  %v481 = vpop.f32.mrb[0].mxu0
  %v482 = vadd.f32 0.0, %v481
  %v483 = vpop.f32.mrb[0].mxu0
  %v484 = vpop.f32.mrb[0].mxu0
  %v485 = vadd.f32 0.0, %v484
  %v486 = vpop.f32.mrb[0].mxu0
  %487 = vmatprep.mubr.bf16.mxu0 0
  %488 = vmatmul.mubr.bf16.gmra.mrb[0].mxu0 %v238
  %v489 = vpop.f32.mrb[0].mxu0
  %v490 = vadd.f32 0.0, %v489
  %v491 = vpop.f32.mrb[0].mxu0
  %v492 = vpop.f32.mrb[0].mxu0
  %v493 = vadd.f32 0.0, %v492
  %v494 = vpop.f32.mrb[0].mxu0
  %495 = vmatprep.mubr.bf16.mxu0 0
  %496 = vmatmul.mubr.bf16.gmra.mrb[0].mxu0 %v239
  %v497 = vpop.f32.mrb[0].mxu0
  %v498 = vadd.f32 0.0, %v497
  %v499 = vpop.f32.mrb[0].mxu0
  %v500 = vpop.f32.mrb[0].mxu0
  %v501 = vadd.f32 0.0, %v500
  %v502 = vpop.f32.mrb[0].mxu0
  %503 = vmatprep.mubr.bf16.mxu0 0
  %504 = vmatmul.mubr.bf16.gmra.mrb[0].mxu0 %v240
  %v505 = vpop.f32.mrb[0].mxu0
  %v506 = vadd.f32 0.0, %v505
  %v507 = vpop.f32.mrb[0].mxu0
  %v508 = vpop.f32.mrb[0].mxu0
  %v509 = vadd.f32 0.0, %v508
  %v510 = vpop.f32.mrb[0].mxu0
  %511 = vmatprep.mubr.bf16.mxu0 0
  %512 = vmatmul.mubr.bf16.gmra.mrb[0].mxu0 %v241
  %v513 = vpop.f32.mrb[0].mxu0
  %v514 = vadd.f32 0.0, %v513
  %v515 = vpop.f32.mrb[0].mxu0
  %v516 = vpop.f32.mrb[0].mxu0
  %v517 = vadd.f32 0.0, %v516
  %v518 = vpop.f32.mrb[0].mxu0
  %519 = vmatprep.mubr.bf16.mxu0 0
  %520 = vmatmul.mubr.bf16.gmra.mrb[0].mxu0 %v242
  %v521 = vpop.f32.mrb[0].mxu0
  %v522 = vadd.f32 0.0, %v521
  %v523 = vpop.f32.mrb[0].mxu0
  %v524 = vpop.f32.mrb[0].mxu0
  %v525 = vadd.f32 0.0, %v524
  %v526 = vpop.f32.mrb[0].mxu0
  %527 = vmatprep.mubr.bf16.mxu0 0
  %528 = vmatmul.mubr.bf16.gmra.mrb[0].mxu0 %v243
  %v529 = vpop.f32.mrb[0].mxu0
  %v530 = vadd.f32 0.0, %v529
  %v531 = vpop.f32.mrb[0].mxu0
  %v532 = vpop.f32.mrb[0].mxu0
  %v533 = vadd.f32 0.0, %v532
  %v534 = vpop.f32.mrb[0].mxu0
  %535 = vmatprep.mubr.bf16.mxu0 0
  %536 = vmatmul.mubr.bf16.gmra.mrb[0].mxu0 %v244
  %v537 = vpop.f32.mrb[0].mxu0
  %v538 = vadd.f32 0.0, %v537
  %v539 = vpop.f32.mrb[0].mxu0
  %v540 = vpop.f32.mrb[0].mxu0
  %v541 = vadd.f32 0.0, %v540
  %v542 = vpop.f32.mrb[0].mxu0
  %543 = vmatprep.mubr.bf16.mxu0 0
  %544 = vmatmul.mubr.bf16.gmra.mrb[0].mxu0 %v245
  %v545 = vpop.f32.mrb[0].mxu0
  %v546 = vadd.f32 0.0, %v545
  %v547 = vpop.f32.mrb[0].mxu0
  %v548 = vpop.f32.mrb[0].mxu0
  %v549 = vadd.f32 0.0, %v548
  %v550 = vpop.f32.mrb[0].mxu0
  %551 = vmatprep.mubr.bf16.mxu0 0
  %552 = vmatmul.mubr.bf16.gmra.mrb[0].mxu0 %v246
  %v553 = vpop.f32.mrb[0].mxu0
  %v554 = vadd.f32 0.0, %v553
  %v555 = vpop.f32.mrb[0].mxu0
  %v556 = vpop.f32.mrb[0].mxu0
  %v557 = vadd.f32 0.0, %v556
  %v558 = vpop.f32.mrb[0].mxu0
  %559 = vmatprep.mubr.bf16.mxu0 0
  %560 = vmatmul.mubr.bf16.gmra.mrb[0].mxu0 %v247
  %v561 = vpop.f32.mrb[0].mxu0
  %v562 = vadd.f32 0.0, %v561
  %v563 = vpop.f32.mrb[0].mxu0
  %v564 = vpop.f32.mrb[0].mxu0
  %v565 = vadd.f32 0.0, %v564
  %v566 = vpop.f32.mrb[0].mxu0
  %567 = vmatprep.mubr.bf16.mxu0 0
  %568 = vmatmul.mubr.bf16.gmra.mrb[0].mxu0 %v248
  %v569 = vpop.f32.mrb[0].mxu0
  %v570 = vadd.f32 0.0, %v569
  %v571 = vpop.f32.mrb[0].mxu0
  %v572 = vpop.f32.mrb[0].mxu0
  %v573 = vadd.f32 0.0, %v572
  %v574 = vpop.f32.mrb[0].mxu0
  %575 = vmatprep.mubr.bf16.mxu0 0
  %576 = vmatmul.mubr.bf16.gmra.mrb[0].mxu0 %v249
  %v577 = vpop.f32.mrb[0].mxu0
  %v578 = vadd.f32 0.0, %v577
  %v579 = vpop.f32.mrb[0].mxu0
  %v580 = vpop.f32.mrb[0].mxu0
  %v581 = vadd.f32 0.0, %v580
  %v582 = vpop.f32.mrb[0].mxu0
  %583 = vmatprep.mubr.bf16.mxu0 0
  %584 = vmatmul.mubr.bf16.gmra.mrb[0].mxu0 %v250
  %v585 = vpop.f32.mrb[0].mxu0
  %v586 = vadd.f32 0.0, %v585
  %v587 = vpop.f32.mrb[0].mxu0
  %v588 = vpop.f32.mrb[0].mxu0
  %v589 = vadd.f32 0.0, %v588
  %v590 = vpop.f32.mrb[0].mxu0
  %591 = vmatprep.mubr.bf16.mxu0 0
  %592 = vmatmul.mubr.bf16.gmra.mrb[0].mxu0 %v251
  %v593 = vpop.f32.mrb[0].mxu0
  %v594 = vadd.f32 0.0, %v593
  %v595 = vpop.f32.mrb[0].mxu0
  %v596 = vpop.f32.mrb[0].mxu0
  %v597 = vadd.f32 0.0, %v596
  %v598 = vpop.f32.mrb[0].mxu0
  %599 = vmatprep.mubr.bf16.mxu0 0
  %600 = vmatmul.mubr.bf16.gmra.mrb[0].mxu0 %v252
  %v601 = vpop.f32.mrb[0].mxu0
  %v602 = vadd.f32 0.0, %v601
  %v603 = vpop.f32.mrb[0].mxu0
  %v604 = vpop.f32.mrb[0].mxu0
  %v605 = vadd.f32 0.0, %v604
  %v606 = vpop.f32.mrb[0].mxu0
  %607 = vmatprep.mubr.bf16.mxu0 0
  %608 = vmatmul.mubr.bf16.gmra.mrb[0].mxu0 %v253
  %v609 = vpop.f32.mrb[0].mxu0
  %v610 = vadd.f32 0.0, %v609
  %v611 = vpop.f32.mrb[0].mxu0
  %v612 = vpop.f32.mrb[0].mxu0
  %v613 = vadd.f32 0.0, %v612
  %v614 = vpop.f32.mrb[0].mxu0
  %615 = vmatprep.mubr.bf16.mxu0 0
  %616 = vmatmul.mubr.bf16.gmra.mrb[0].mxu0 %v254
  %v617 = vpop.f32.mrb[0].mxu0
  %v618 = vadd.f32 0.0, %v617
  %v619 = vpop.f32.mrb[0].mxu0
  %v620 = vpop.f32.mrb[0].mxu0
  %v621 = vadd.f32 0.0, %v620
  %v622 = vpop.f32.mrb[0].mxu0
  %623 = vdwg.mxu0
  %v624 = vpack.c.bf16 %v373, %v370
  %v625 = vpack.c.bf16 %v381, %v378
  %v626 = vpack.c.bf16 %v389, %v386
  %v627 = vpack.c.bf16 %v397, %v394
  %v628 = vpack.c.bf16 %v405, %v402
  %v629 = vpack.c.bf16 %v413, %v410
  %v630 = vpack.c.bf16 %v421, %v418
  %v631 = vpack.c.bf16 %v429, %v426
  %v632 = vpack.c.bf16 %v437, %v434
  %v633 = vpack.c.bf16 %v445, %v442
  %v634 = vpack.c.bf16 %v453, %v450
  %v635 = vpack.c.bf16 %v461, %v458
  %v636 = vpack.c.bf16 %v469, %v466
  %v637 = vpack.c.bf16 %v477, %v474
  %v638 = vpack.c.bf16 %v485, %v482
  %v639 = vpack.c.bf16 %v493, %v490
  %v640 = vpack.c.bf16 %v501, %v498
  %v641 = vpack.c.bf16 %v509, %v506
  %v642 = vpack.c.bf16 %v517, %v514
  %v643 = vpack.c.bf16 %v525, %v522
  %v644 = vpack.c.bf16 %v533, %v530
  %v645 = vpack.c.bf16 %v541, %v538
  %v646 = vpack.c.bf16 %v549, %v546
  %v647 = vpack.c.bf16 %v557, %v554
  %v648 = vpack.c.bf16 %v565, %v562
  %v649 = vpack.c.bf16 %v573, %v570
  %v650 = vpack.c.bf16 %v581, %v578
  %v651 = vpack.c.bf16 %v589, %v586
  %v652 = vpack.c.bf16 %v597, %v594
  %v653 = vpack.c.bf16 %v605, %v602
  %v654 = vpack.c.bf16 %v613, %v610
  %v655 = vpack.c.bf16 %v621, %v618
  %v688 = vunpack.c.l.b16 %v624
  %v689 = vunpack.c.h.b16 %v624
  %v690 = vunpack.c.l.b16 %v625
  %v691 = vunpack.c.h.b16 %v625
  %v692 = vunpack.c.l.b16 %v626
  %v693 = vunpack.c.h.b16 %v626
  %v694 = vunpack.c.l.b16 %v627
  %v695 = vunpack.c.h.b16 %v627
  %v696 = vunpack.c.l.b16 %v628
  %v697 = vunpack.c.h.b16 %v628
  %v698 = vunpack.c.l.b16 %v629
  %v699 = vunpack.c.h.b16 %v629
  %v700 = vunpack.c.l.b16 %v630
  %v701 = vunpack.c.h.b16 %v630
  %v702 = vunpack.c.l.b16 %v631
  %v703 = vunpack.c.h.b16 %v631
  %v704 = vunpack.c.l.b16 %v632
  %v705 = vunpack.c.h.b16 %v632
  %v706 = vunpack.c.l.b16 %v633
  %v707 = vunpack.c.h.b16 %v633
  %v708 = vunpack.c.l.b16 %v634
  %v709 = vunpack.c.h.b16 %v634
  %v710 = vunpack.c.l.b16 %v635
  %v711 = vunpack.c.h.b16 %v635
  %v712 = vunpack.c.l.b16 %v636
  %v713 = vunpack.c.h.b16 %v636
  %v714 = vunpack.c.l.b16 %v637
  %v715 = vunpack.c.h.b16 %v637
  %v716 = vunpack.c.l.b16 %v638
  %v717 = vunpack.c.h.b16 %v638
  %v718 = vunpack.c.l.b16 %v639
  %v719 = vunpack.c.h.b16 %v639
  %v720 = vunpack.c.l.b16 %v640
  %v721 = vunpack.c.h.b16 %v640
  %v722 = vunpack.c.l.b16 %v641
  %v723 = vunpack.c.h.b16 %v641
  %v724 = vunpack.c.l.b16 %v642
  %v725 = vunpack.c.h.b16 %v642
  %v726 = vunpack.c.l.b16 %v643
  %v727 = vunpack.c.h.b16 %v643
  %v728 = vunpack.c.l.b16 %v644
  %v729 = vunpack.c.h.b16 %v644
  %v730 = vunpack.c.l.b16 %v645
  %v731 = vunpack.c.h.b16 %v645
  %v732 = vunpack.c.l.b16 %v646
  %v733 = vunpack.c.h.b16 %v646
  %v734 = vunpack.c.l.b16 %v647
  %v735 = vunpack.c.h.b16 %v647
  %v736 = vunpack.c.l.b16 %v648
  %v737 = vunpack.c.h.b16 %v648
  %v738 = vunpack.c.l.b16 %v649
  %v739 = vunpack.c.h.b16 %v649
  %v740 = vunpack.c.l.b16 %v650
  %v741 = vunpack.c.h.b16 %v650
  %v742 = vunpack.c.l.b16 %v651
  %v743 = vunpack.c.h.b16 %v651
  %v744 = vunpack.c.l.b16 %v652
  %v745 = vunpack.c.h.b16 %v652
  %v746 = vunpack.c.l.b16 %v653
  %v747 = vunpack.c.h.b16 %v653
  %v748 = vunpack.c.l.b16 %v654
  %v749 = vunpack.c.h.b16 %v654
  %v750 = vunpack.c.l.b16 %v655
  %v751 = vunpack.c.h.b16 %v655
  %v752 = vpack.c.b16 %v688, %v688
  %v753 = vpack.c.b16 %v689, %v689
  %v754 = vpack.c.b16 %v690, %v690
  %v755 = vpack.c.b16 %v691, %v691
  %v756 = vpack.c.b16 %v692, %v692
  %v757 = vpack.c.b16 %v693, %v693
  %v758 = vpack.c.b16 %v694, %v694
  %v759 = vpack.c.b16 %v695, %v695
  %v760 = vpack.c.b16 %v696, %v696
  %v761 = vpack.c.b16 %v697, %v697
  %v762 = vpack.c.b16 %v698, %v698
  %v763 = vpack.c.b16 %v699, %v699
  %v764 = vpack.c.b16 %v700, %v700
  %v765 = vpack.c.b16 %v701, %v701
  %v766 = vpack.c.b16 %v702, %v702
  %v767 = vpack.c.b16 %v703, %v703
  %v768 = vpack.c.b16 %v704, %v704
  %v769 = vpack.c.b16 %v705, %v705
  %v770 = vpack.c.b16 %v706, %v706
  %v771 = vpack.c.b16 %v707, %v707
  %v772 = vpack.c.b16 %v708, %v708
  %v773 = vpack.c.b16 %v709, %v709
  %v774 = vpack.c.b16 %v710, %v710
  %v775 = vpack.c.b16 %v711, %v711
  %v776 = vpack.c.b16 %v712, %v712
  %v777 = vpack.c.b16 %v713, %v713
  %v778 = vpack.c.b16 %v714, %v714
  %v779 = vpack.c.b16 %v715, %v715
  %v780 = vpack.c.b16 %v716, %v716
  %v781 = vpack.c.b16 %v717, %v717
  %v782 = vpack.c.b16 %v718, %v718
  %v783 = vpack.c.b16 %v719, %v719
  %v784 = vpack.c.b16 %v720, %v720
  %v785 = vpack.c.b16 %v721, %v721
  %v786 = vpack.c.b16 %v722, %v722
  %v787 = vpack.c.b16 %v723, %v723
  %v788 = vpack.c.b16 %v724, %v724
  %v789 = vpack.c.b16 %v725, %v725
  %v790 = vpack.c.b16 %v726, %v726
  %v791 = vpack.c.b16 %v727, %v727
  %v792 = vpack.c.b16 %v728, %v728
  %v793 = vpack.c.b16 %v729, %v729
  %v794 = vpack.c.b16 %v730, %v730
  %v795 = vpack.c.b16 %v731, %v731
  %v796 = vpack.c.b16 %v732, %v732
  %v797 = vpack.c.b16 %v733, %v733
  %v798 = vpack.c.b16 %v734, %v734
  %v799 = vpack.c.b16 %v735, %v735
  %v800 = vpack.c.b16 %v736, %v736
  %v801 = vpack.c.b16 %v737, %v737
  %v802 = vpack.c.b16 %v738, %v738
  %v803 = vpack.c.b16 %v739, %v739
  %v804 = vpack.c.b16 %v740, %v740
  %v805 = vpack.c.b16 %v741, %v741
  %v806 = vpack.c.b16 %v742, %v742
  %v807 = vpack.c.b16 %v743, %v743
  %v808 = vpack.c.b16 %v744, %v744
  %v809 = vpack.c.b16 %v745, %v745
  %v810 = vpack.c.b16 %v746, %v746
  %v811 = vpack.c.b16 %v747, %v747
  %v812 = vpack.c.b16 %v748, %v748
  %v813 = vpack.c.b16 %v749, %v749
  %v814 = vpack.c.b16 %v750, %v750
  %v815 = vpack.c.b16 %v751, %v751
  %880 = vst [vmem:[%s2] sm:$0xf] %v752
  %881 = vst [vmem:[%s2 + $0x4] sm:$0xf] %v753
  %882 = vst [vmem:[%s2 + $0x8] sm:$0xf] %v754
  %883 = vst [vmem:[%s2 + $0xc] sm:$0xf] %v755
  %884 = vst [vmem:[%s2 + $0x10] sm:$0xf] %v756
  %885 = vst [vmem:[%s2 + $0x14] sm:$0xf] %v757
  %886 = vst [vmem:[%s2 + $0x18] sm:$0xf] %v758
  %887 = vst [vmem:[%s2 + $0x1c] sm:$0xf] %v759
  %888 = vst [vmem:[%s2 + $0x20] sm:$0xf] %v760
  %889 = vst [vmem:[%s2 + $0x24] sm:$0xf] %v761
  %890 = vst [vmem:[%s2 + $0x28] sm:$0xf] %v762
  %891 = vst [vmem:[%s2 + $0x2c] sm:$0xf] %v763
  %892 = vst [vmem:[%s2 + $0x30] sm:$0xf] %v764
  %893 = vst [vmem:[%s2 + $0x34] sm:$0xf] %v765
  %894 = vst [vmem:[%s2 + $0x38] sm:$0xf] %v766
  %895 = vst [vmem:[%s2 + $0x3c] sm:$0xf] %v767
  %896 = vst [vmem:[%s2 + $0x40] sm:$0xf] %v768
  %897 = vst [vmem:[%s2 + $0x44] sm:$0xf] %v769
  %898 = vst [vmem:[%s2 + $0x48] sm:$0xf] %v770
  %899 = vst [vmem:[%s2 + $0x4c] sm:$0xf] %v771
  %900 = vst [vmem:[%s2 + $0x50] sm:$0xf] %v772
  %901 = vst [vmem:[%s2 + $0x54] sm:$0xf] %v773
  %902 = vst [vmem:[%s2 + $0x58] sm:$0xf] %v774
  %903 = vst [vmem:[%s2 + $0x5c] sm:$0xf] %v775
  %904 = vst [vmem:[%s2 + $0x60] sm:$0xf] %v776
  %905 = vst [vmem:[%s2 + $0x64] sm:$0xf] %v777
  %906 = vst [vmem:[%s2 + $0x68] sm:$0xf] %v778
  %907 = vst [vmem:[%s2 + $0x6c] sm:$0xf] %v779
  %908 = vst [vmem:[%s2 + $0x70] sm:$0xf] %v780
  %909 = vst [vmem:[%s2 + $0x74] sm:$0xf] %v781
  %910 = vst [vmem:[%s2 + $0x78] sm:$0xf] %v782
  %911 = vst [vmem:[%s2 + $0x7c] sm:$0xf] %v783
  %912 = vst [vmem:[%s2 + $0x80] sm:$0xf] %v784
  %913 = vst [vmem:[%s2 + $0x84] sm:$0xf] %v785
  %914 = vst [vmem:[%s2 + $0x88] sm:$0xf] %v786
  %915 = vst [vmem:[%s2 + $0x8c] sm:$0xf] %v787
  %916 = vst [vmem:[%s2 + $0x90] sm:$0xf] %v788
  %917 = vst [vmem:[%s2 + $0x94] sm:$0xf] %v789
  %918 = vst [vmem:[%s2 + $0x98] sm:$0xf] %v790
  %919 = vst [vmem:[%s2 + $0x9c] sm:$0xf] %v791
  %920 = vst [vmem:[%s2 + $0xa0] sm:$0xf] %v792
  %921 = vst [vmem:[%s2 + $0xa4] sm:$0xf] %v793
  %922 = vst [vmem:[%s2 + $0xa8] sm:$0xf] %v794
  %923 = vst [vmem:[%s2 + $0xac] sm:$0xf] %v795
  %924 = vst [vmem:[%s2 + $0xb0] sm:$0xf] %v796
  %925 = vst [vmem:[%s2 + $0xb4] sm:$0xf] %v797
  %926 = vst [vmem:[%s2 + $0xb8] sm:$0xf] %v798
  %927 = vst [vmem:[%s2 + $0xbc] sm:$0xf] %v799
  %928 = vst [vmem:[%s2 + $0xc0] sm:$0xf] %v800
  %929 = vst [vmem:[%s2 + $0xc4] sm:$0xf] %v801
  %930 = vst [vmem:[%s2 + $0xc8] sm:$0xf] %v802
  %931 = vst [vmem:[%s2 + $0xcc] sm:$0xf] %v803
  %932 = vst [vmem:[%s2 + $0xd0] sm:$0xf] %v804
  %933 = vst [vmem:[%s2 + $0xd4] sm:$0xf] %v805
  %934 = vst [vmem:[%s2 + $0xd8] sm:$0xf] %v806
  %935 = vst [vmem:[%s2 + $0xdc] sm:$0xf] %v807
  %936 = vst [vmem:[%s2 + $0xe0] sm:$0xf] %v808
  %937 = vst [vmem:[%s2 + $0xe4] sm:$0xf] %v809
  %938 = vst [vmem:[%s2 + $0xe8] sm:$0xf] %v810
  %939 = vst [vmem:[%s2 + $0xec] sm:$0xf] %v811
  %940 = vst [vmem:[%s2 + $0xf0] sm:$0xf] %v812
  %941 = vst [vmem:[%s2 + $0xf4] sm:$0xf] %v813
  %942 = vst [vmem:[%s2 + $0xf8] sm:$0xf] %v814
  %943 = vst [vmem:[%s2 + $0xfc] sm:$0xf] %v815
  %p944 = scmp.eq.s32.totalorder 0, 0
  // Predicated region
  $region10: #{bottleneck_forward.4} parent=0 // pred_check
    %p945 = pneg %p944
  $region11: #{bottleneck_forward.4} parent=0 // pred_check_branch
    %947 = sbr.rel (%p945) target = $region13
  $region12: #{bottleneck_forward.4} parent=0 // pred_region
    %948 = vst [vmem:[%s3] sm:$0x1] 0.0
    %949 = vst [vmem:[%s4] sm:$0x1] 0.0
  $region13: #{bottleneck_forward.4} parent=0 // pred_fallthru
    _
  %v950 = vld [vmem:[%s3] sm:$0x1]
  %v951 = vadd.f32 %v370, %v373
  %v952 = vadd.f32 %v951, %v378
  %v953 = vadd.f32 %v952, %v381
  %v954 = vadd.f32 %v953, %v386
  %v955 = vadd.f32 %v954, %v389
  %v956 = vadd.f32 %v955, %v394
  %v957 = vadd.f32 %v956, %v397
  %v958 = vadd.f32 %v957, %v402
  %v959 = vadd.f32 %v958, %v405
  %v960 = vadd.f32 %v959, %v410
  %v961 = vadd.f32 %v960, %v413
  %v962 = vadd.f32 %v961, %v418
  %v963 = vadd.f32 %v962, %v421
  %v964 = vadd.f32 %v963, %v426
  %v965 = vadd.f32 %v964, %v429
  %v966 = vadd.f32 %v965, %v434
  %v967 = vadd.f32 %v966, %v437
  %v968 = vadd.f32 %v967, %v442
  %v969 = vadd.f32 %v968, %v445
  %v970 = vadd.f32 %v969, %v450
  %v971 = vadd.f32 %v970, %v453
  %v972 = vadd.f32 %v971, %v458
  %v973 = vadd.f32 %v972, %v461
  %v974 = vadd.f32 %v973, %v466
  %v975 = vadd.f32 %v974, %v469
  %v976 = vadd.f32 %v975, %v474
  %v977 = vadd.f32 %v976, %v477
  %v978 = vadd.f32 %v977, %v482
  %v979 = vadd.f32 %v978, %v485
  %v980 = vadd.f32 %v979, %v490
  %v981 = vadd.f32 %v980, %v493
  %v982 = vadd.f32 %v981, %v498
  %v983 = vadd.f32 %v982, %v501
  %v984 = vadd.f32 %v983, %v506
  %v985 = vadd.f32 %v984, %v509
  %v986 = vadd.f32 %v985, %v514
  %v987 = vadd.f32 %v986, %v517
  %v988 = vadd.f32 %v987, %v522
  %v989 = vadd.f32 %v988, %v525
  %v990 = vadd.f32 %v989, %v530
  %v991 = vadd.f32 %v990, %v533
  %v992 = vadd.f32 %v991, %v538
  %v993 = vadd.f32 %v992, %v541
  %v994 = vadd.f32 %v993, %v546
  %v995 = vadd.f32 %v994, %v549
  %v996 = vadd.f32 %v995, %v554
  %v997 = vadd.f32 %v996, %v557
  %v998 = vadd.f32 %v997, %v562
  %v999 = vadd.f32 %v998, %v565
  %v1000 = vadd.f32 %v999, %v570
  %v1001 = vadd.f32 %v1000, %v573
  %v1002 = vadd.f32 %v1001, %v578
  %v1003 = vadd.f32 %v1002, %v581
  %v1004 = vadd.f32 %v1003, %v586
  %v1005 = vadd.f32 %v1004, %v589
  %v1006 = vadd.f32 %v1005, %v594
  %v1007 = vadd.f32 %v1006, %v597
  %v1008 = vadd.f32 %v1007, %v602
  %v1009 = vadd.f32 %v1008, %v605
  %v1010 = vadd.f32 %v1009, %v610
  %v1011 = vadd.f32 %v1010, %v613
  %v1012 = vadd.f32 %v1011, %v618
  %v1013 = vadd.f32 %v1012, %v621
  %v1014 = vrot.slane %v1013, 4
  %v1015 = vadd.f32 %v1013, %v1014
  %v1016 = vrot.slane %v1015, 2
  %v1017 = vadd.f32 %v1015, %v1016
  %v1018 = vrot.slane %v1017, 1
  %v1019 = vadd.f32 %v1017, %v1018
  %v1020 = vadd.f32 %v950, %v1019
  %1021 = vst [vmem:[%s3] sm:$0x1] %v1020
  %v1022 = vld [vmem:[%s4] sm:$0x1]
  %v1023 = vmul.f32 %v370, %v370
  %v1024 = vmul.f32 %v373, %v373
  %v1025 = vmul.f32 %v378, %v378
  %v1026 = vmul.f32 %v381, %v381
  %v1027 = vmul.f32 %v386, %v386
  %v1028 = vmul.f32 %v389, %v389
  %v1029 = vmul.f32 %v394, %v394
  %v1030 = vmul.f32 %v397, %v397
  %v1031 = vmul.f32 %v402, %v402
  %v1032 = vmul.f32 %v405, %v405
  %v1033 = vmul.f32 %v410, %v410
  %v1034 = vmul.f32 %v413, %v413
  %v1035 = vmul.f32 %v418, %v418
  %v1036 = vmul.f32 %v421, %v421
  %v1037 = vmul.f32 %v426, %v426
  %v1038 = vmul.f32 %v429, %v429
  %v1039 = vmul.f32 %v434, %v434
  %v1040 = vmul.f32 %v437, %v437
  %v1041 = vmul.f32 %v442, %v442
  %v1042 = vmul.f32 %v445, %v445
  %v1043 = vmul.f32 %v450, %v450
  %v1044 = vmul.f32 %v453, %v453
  %v1045 = vmul.f32 %v458, %v458
  %v1046 = vmul.f32 %v461, %v461
  %v1047 = vmul.f32 %v466, %v466
  %v1048 = vmul.f32 %v469, %v469
  %v1049 = vmul.f32 %v474, %v474
  %v1050 = vmul.f32 %v477, %v477
  %v1051 = vmul.f32 %v482, %v482
  %v1052 = vmul.f32 %v485, %v485
  %v1053 = vmul.f32 %v490, %v490
  %v1054 = vmul.f32 %v493, %v493
  %v1055 = vmul.f32 %v498, %v498
  %v1056 = vmul.f32 %v501, %v501
  %v1057 = vmul.f32 %v506, %v506
  %v1058 = vmul.f32 %v509, %v509
  %v1059 = vmul.f32 %v514, %v514
  %v1060 = vmul.f32 %v517, %v517
  %v1061 = vmul.f32 %v522, %v522
  %v1062 = vmul.f32 %v525, %v525
  %v1063 = vmul.f32 %v530, %v530
  %v1064 = vmul.f32 %v533, %v533
  %v1065 = vmul.f32 %v538, %v538
  %v1066 = vmul.f32 %v541, %v541
  %v1067 = vmul.f32 %v546, %v546
  %v1068 = vmul.f32 %v549, %v549
  %v1069 = vmul.f32 %v554, %v554
  %v1070 = vmul.f32 %v557, %v557
  %v1071 = vmul.f32 %v562, %v562
  %v1072 = vmul.f32 %v565, %v565
  %v1073 = vmul.f32 %v570, %v570
  %v1074 = vmul.f32 %v573, %v573
  %v1075 = vmul.f32 %v578, %v578
  %v1076 = vmul.f32 %v581, %v581
  %v1077 = vmul.f32 %v586, %v586
  %v1078 = vmul.f32 %v589, %v589
  %v1079 = vmul.f32 %v594, %v594
  %v1080 = vmul.f32 %v597, %v597
  %v1081 = vmul.f32 %v602, %v602
  %v1082 = vmul.f32 %v605, %v605
  %v1083 = vmul.f32 %v610, %v610
  %v1084 = vmul.f32 %v613, %v613
  %v1085 = vmul.f32 %v618, %v618
  %v1086 = vmul.f32 %v621, %v621
  %v1087 = vadd.f32 %v1023, %v1024
  %v1088 = vadd.f32 %v1087, %v1025
  %v1089 = vadd.f32 %v1088, %v1026
  %v1090 = vadd.f32 %v1089, %v1027
  %v1091 = vadd.f32 %v1090, %v1028
  %v1092 = vadd.f32 %v1091, %v1029
  %v1093 = vadd.f32 %v1092, %v1030
  %v1094 = vadd.f32 %v1093, %v1031
  %v1095 = vadd.f32 %v1094, %v1032
  %v1096 = vadd.f32 %v1095, %v1033
  %v1097 = vadd.f32 %v1096, %v1034
  %v1098 = vadd.f32 %v1097, %v1035
  %v1099 = vadd.f32 %v1098, %v1036
  %v1100 = vadd.f32 %v1099, %v1037
  %v1101 = vadd.f32 %v1100, %v1038
  %v1102 = vadd.f32 %v1101, %v1039
  %v1103 = vadd.f32 %v1102, %v1040
  %v1104 = vadd.f32 %v1103, %v1041
  %v1105 = vadd.f32 %v1104, %v1042
  %v1106 = vadd.f32 %v1105, %v1043
  %v1107 = vadd.f32 %v1106, %v1044
  %v1108 = vadd.f32 %v1107, %v1045
  %v1109 = vadd.f32 %v1108, %v1046
  %v1110 = vadd.f32 %v1109, %v1047
  %v1111 = vadd.f32 %v1110, %v1048
  %v1112 = vadd.f32 %v1111, %v1049
  %v1113 = vadd.f32 %v1112, %v1050
  %v1114 = vadd.f32 %v1113, %v1051
  %v1115 = vadd.f32 %v1114, %v1052
  %v1116 = vadd.f32 %v1115, %v1053
  %v1117 = vadd.f32 %v1116, %v1054
  %v1118 = vadd.f32 %v1117, %v1055
  %v1119 = vadd.f32 %v1118, %v1056
  %v1120 = vadd.f32 %v1119, %v1057
  %v1121 = vadd.f32 %v1120, %v1058
  %v1122 = vadd.f32 %v1121, %v1059
  %v1123 = vadd.f32 %v1122, %v1060
  %v1124 = vadd.f32 %v1123, %v1061
  %v1125 = vadd.f32 %v1124, %v1062
  %v1126 = vadd.f32 %v1125, %v1063
  %v1127 = vadd.f32 %v1126, %v1064
  %v1128 = vadd.f32 %v1127, %v1065
  %v1129 = vadd.f32 %v1128, %v1066
  %v1130 = vadd.f32 %v1129, %v1067
  %v1131 = vadd.f32 %v1130, %v1068
  %v1132 = vadd.f32 %v1131, %v1069
  %v1133 = vadd.f32 %v1132, %v1070
  %v1134 = vadd.f32 %v1133, %v1071
  %v1135 = vadd.f32 %v1134, %v1072
  %v1136 = vadd.f32 %v1135, %v1073
  %v1137 = vadd.f32 %v1136, %v1074
  %v1138 = vadd.f32 %v1137, %v1075
  %v1139 = vadd.f32 %v1138, %v1076
  %v1140 = vadd.f32 %v1139, %v1077
  %v1141 = vadd.f32 %v1140, %v1078
  %v1142 = vadd.f32 %v1141, %v1079
  %v1143 = vadd.f32 %v1142, %v1080
  %v1144 = vadd.f32 %v1143, %v1081
  %v1145 = vadd.f32 %v1144, %v1082
  %v1146 = vadd.f32 %v1145, %v1083
  %v1147 = vadd.f32 %v1146, %v1084
  %v1148 = vadd.f32 %v1147, %v1085
  %v1149 = vadd.f32 %v1148, %v1086
  %v1150 = vrot.slane %v1149, 4
  %v1151 = vadd.f32 %v1149, %v1150
  %v1152 = vrot.slane %v1151, 2
  %v1153 = vadd.f32 %v1151, %v1152
  %v1154 = vrot.slane %v1153, 1
  %v1155 = vadd.f32 %v1153, %v1154
  %v1156 = vadd.f32 %v1022, %v1155
  %1157 = vst [vmem:[%s4] sm:$0x1] %v1156
  // Predicated region
  $region14: #{bottleneck_forward.4} parent=0 // pred_check
    _
  $region15: #{bottleneck_forward.4} parent=0 // pred_check_branch
    %1159 = sbr.rel (0) target = $region17
  $region16: #{bottleneck_forward.4} parent=0 // pred_region
    _
  $region17: #{bottleneck_forward.4} parent=0 // pred_fallthru
    _
  // Predicated region
  $region18: #{bottleneck_forward.4} parent=0 // pred_check
    _
  $region19: #{bottleneck_forward.4} parent=0 // pred_check_branch
    %1161 = sbr.rel (0) target = $region21
  $region20: #{bottleneck_forward.4} parent=0 // pred_region
    _
  $region21: #{bottleneck_forward.4} parent=0 // pred_fallthru
    _
  // Predicated region
  $region22: #{bottleneck_forward.4} parent=0 // pred_check
    _
  $region23: #{bottleneck_forward.4} parent=0 // pred_check_branch
    %1163 = sbr.rel (0) target = $region25
  $region24: #{bottleneck_forward.4} parent=0 // pred_region
    _
  $region25: #{bottleneck_forward.4} parent=0 // pred_fallthru
    _
  // Predicated region
  $region26: #{bottleneck_forward.4} parent=0 // pred_check
    _
  $region27: #{bottleneck_forward.4} parent=0 // pred_check_branch
    %1165 = sbr.rel (0) target = $region29
  $region28: #{bottleneck_forward.4} parent=0 // pred_region
    _
  $region29: #{bottleneck_forward.4} parent=0 // pred_fallthru
    _
  // Predicated region
  $region30: #{bottleneck_forward.4} parent=0 // pred_check
    _
  $region31: #{bottleneck_forward.4} parent=0 // pred_check_branch
    %1167 = sbr.rel (0) target = $region33
  $region32: #{bottleneck_forward.4} parent=0 // pred_region
    _
  $region33: #{bottleneck_forward.4} parent=0 // pred_fallthru
    _
  // Predicated region
  $region34: #{bottleneck_forward.4} parent=0 // pred_check
    _
  $region35: #{bottleneck_forward.4} parent=0 // pred_check_branch
    %1169 = sbr.rel (0) target = $region37
  $region36: #{bottleneck_forward.4} parent=0 // pred_region
    _
  $region37: #{bottleneck_forward.4} parent=0 // pred_fallthru
    _

// kernel: bottleneck_forward.7
$region0: #{bottleneck_forward.7}
  #allocation0 [shape = 'u32[]', space=smem, size = 0x4, offset = 0x4, fixed_abs, tag = 'smem constant byte address 0x4 - core index']
  #allocation1 [shape = 'u32[144,128]{1,0:T(1,128)}', space=vmem, size = 0x12000, scoped, tag = 'internal scratch']
  %s0 = inlined_call_operand.vmem [shape: bf16[512,128], index: 0, kind: input, shape index: {}]
  %s1 = inlined_call_operand.vmem [shape: bf16[512,128], index: 1, kind: input, shape index: {}]
  %s2 = inlined_call_operand.vmem [shape: f32[1,128], index: 2, kind: input, shape index: {}]
  %s3 = inlined_call_operand.vmem [shape: f32[1,128], index: 3, kind: input, shape index: {}]
  %s4 = inlined_call_operand.vmem [shape: bf16[128,128], index: 4, kind: input, shape index: {}]
  %s5 = inlined_call_operand.vmem [shape: f32[1,128], index: 5, kind: input, shape index: {}]
  %s6 = inlined_call_operand.vmem [shape: f32[1,128], index: 6, kind: input, shape index: {}]
  %s7 = inlined_call_operand.vmem [shape: f32[512,128], index: 7, kind: output, shape index: {}]
  %s8 = sld [smem:[#allocation0]]
  $region38: #{bottleneck_forward.7} parent=0
    _
  %s10 = ssub.s32 1, %s8
  %s11 = scalar_select 0, %s10, %s8
  // Predicated region
  $region2: #{bottleneck_forward.7} parent=0 // pred_check
    _
  $region3: #{bottleneck_forward.7} parent=0 // pred_check_branch
    %13 = sbr.rel (0) target = $region5
  $region4: #{bottleneck_forward.7} parent=0 // pred_region
    _
  $region5: #{bottleneck_forward.7} parent=0 // pred_fallthru
    _
  // Predicated region
  $region6: #{bottleneck_forward.7} parent=0 // pred_check
    _
  $region7: #{bottleneck_forward.7} parent=0 // pred_check_branch
    %15 = sbr.rel (0) target = $region9
  $region8: #{bottleneck_forward.7} parent=0 // pred_region
    _
  $region9: #{bottleneck_forward.7} parent=0 // pred_fallthru
    _
  // Predicated region
  $region10: #{bottleneck_forward.7} parent=0 // pred_check
    _
  $region11: #{bottleneck_forward.7} parent=0 // pred_check_branch
    %17 = sbr.rel (0) target = $region13
  $region12: #{bottleneck_forward.7} parent=0 // pred_region
    _
  $region13: #{bottleneck_forward.7} parent=0 // pred_fallthru
    _
  // Predicated region
  $region14: #{bottleneck_forward.7} parent=0 // pred_check
    _
  $region15: #{bottleneck_forward.7} parent=0 // pred_check_branch
    %19 = sbr.rel (0) target = $region17
  $region16: #{bottleneck_forward.7} parent=0 // pred_region
    _
  $region17: #{bottleneck_forward.7} parent=0 // pred_fallthru
    _
  // Predicated region
  $region18: #{bottleneck_forward.7} parent=0 // pred_check
    _
  $region19: #{bottleneck_forward.7} parent=0 // pred_check_branch
    %21 = sbr.rel (0) target = $region21
  $region20: #{bottleneck_forward.7} parent=0 // pred_region
    _
  $region21: #{bottleneck_forward.7} parent=0 // pred_fallthru
    _
  // Predicated region
  $region22: #{bottleneck_forward.7} parent=0 // pred_check
    _
  $region23: #{bottleneck_forward.7} parent=0 // pred_check_branch
    %23 = sbr.rel (0) target = $region25
  $region24: #{bottleneck_forward.7} parent=0 // pred_region
    _
  $region25: #{bottleneck_forward.7} parent=0 // pred_fallthru
    _
  // Predicated region
  $region26: #{bottleneck_forward.7} parent=0 // pred_check
    _
  $region27: #{bottleneck_forward.7} parent=0 // pred_check_branch
    %25 = sbr.rel (0) target = $region29
  $region28: #{bottleneck_forward.7} parent=0 // pred_region
    _
  $region29: #{bottleneck_forward.7} parent=0 // pred_fallthru
    _
  %v27 = vld [vmem:[%s0] sm:$0xf]
  %v28 = vld [vmem:[%s0 + $0x4] sm:$0xf]
  %v29 = vld [vmem:[%s0 + $0x8] sm:$0xf]
  %v30 = vld [vmem:[%s0 + $0xc] sm:$0xf]
  %v31 = vld [vmem:[%s0 + $0x10] sm:$0xf]
  %v32 = vld [vmem:[%s0 + $0x14] sm:$0xf]
  %v33 = vld [vmem:[%s0 + $0x18] sm:$0xf]
  %v34 = vld [vmem:[%s0 + $0x1c] sm:$0xf]
  %v35 = vld [vmem:[%s0 + $0x20] sm:$0xf]
  %v36 = vld [vmem:[%s0 + $0x24] sm:$0xf]
  %v37 = vld [vmem:[%s0 + $0x28] sm:$0xf]
  %v38 = vld [vmem:[%s0 + $0x2c] sm:$0xf]
  %v39 = vld [vmem:[%s0 + $0x30] sm:$0xf]
  %v40 = vld [vmem:[%s0 + $0x34] sm:$0xf]
  %v41 = vld [vmem:[%s0 + $0x38] sm:$0xf]
  %v42 = vld [vmem:[%s0 + $0x3c] sm:$0xf]
  %v43 = vld [vmem:[%s0 + $0x40] sm:$0xf]
  %v44 = vld [vmem:[%s0 + $0x44] sm:$0xf]
  %v45 = vld [vmem:[%s0 + $0x48] sm:$0xf]
  %v46 = vld [vmem:[%s0 + $0x4c] sm:$0xf]
  %v47 = vld [vmem:[%s0 + $0x50] sm:$0xf]
  %v48 = vld [vmem:[%s0 + $0x54] sm:$0xf]
  %v49 = vld [vmem:[%s0 + $0x58] sm:$0xf]
  %v50 = vld [vmem:[%s0 + $0x5c] sm:$0xf]
  %v51 = vld [vmem:[%s0 + $0x60] sm:$0xf]
  %v52 = vld [vmem:[%s0 + $0x64] sm:$0xf]
  %v53 = vld [vmem:[%s0 + $0x68] sm:$0xf]
  %v54 = vld [vmem:[%s0 + $0x6c] sm:$0xf]
  %v55 = vld [vmem:[%s0 + $0x70] sm:$0xf]
  %v56 = vld [vmem:[%s0 + $0x74] sm:$0xf]
  %v57 = vld [vmem:[%s0 + $0x78] sm:$0xf]
  %v58 = vld [vmem:[%s0 + $0x7c] sm:$0xf]
  %v59 = vld [vmem:[%s0 + $0x80] sm:$0xf]
  %v60 = vld [vmem:[%s0 + $0x84] sm:$0xf]
  %v61 = vld [vmem:[%s0 + $0x88] sm:$0xf]
  %v62 = vld [vmem:[%s0 + $0x8c] sm:$0xf]
  %v63 = vld [vmem:[%s0 + $0x90] sm:$0xf]
  %v64 = vld [vmem:[%s0 + $0x94] sm:$0xf]
  %v65 = vld [vmem:[%s0 + $0x98] sm:$0xf]
  %v66 = vld [vmem:[%s0 + $0x9c] sm:$0xf]
  %v67 = vld [vmem:[%s0 + $0xa0] sm:$0xf]
  %v68 = vld [vmem:[%s0 + $0xa4] sm:$0xf]
  %v69 = vld [vmem:[%s0 + $0xa8] sm:$0xf]
  %v70 = vld [vmem:[%s0 + $0xac] sm:$0xf]
  %v71 = vld [vmem:[%s0 + $0xb0] sm:$0xf]
  %v72 = vld [vmem:[%s0 + $0xb4] sm:$0xf]
  %v73 = vld [vmem:[%s0 + $0xb8] sm:$0xf]
  %v74 = vld [vmem:[%s0 + $0xbc] sm:$0xf]
  %v75 = vld [vmem:[%s0 + $0xc0] sm:$0xf]
  %v76 = vld [vmem:[%s0 + $0xc4] sm:$0xf]
  %v77 = vld [vmem:[%s0 + $0xc8] sm:$0xf]
  %v78 = vld [vmem:[%s0 + $0xcc] sm:$0xf]
  %v79 = vld [vmem:[%s0 + $0xd0] sm:$0xf]
  %v80 = vld [vmem:[%s0 + $0xd4] sm:$0xf]
  %v81 = vld [vmem:[%s0 + $0xd8] sm:$0xf]
  %v82 = vld [vmem:[%s0 + $0xdc] sm:$0xf]
  %v83 = vld [vmem:[%s0 + $0xe0] sm:$0xf]
  %v84 = vld [vmem:[%s0 + $0xe4] sm:$0xf]
  %v85 = vld [vmem:[%s0 + $0xe8] sm:$0xf]
  %v86 = vld [vmem:[%s0 + $0xec] sm:$0xf]
  %v87 = vld [vmem:[%s0 + $0xf0] sm:$0xf]
  %v88 = vld [vmem:[%s0 + $0xf4] sm:$0xf]
  %v89 = vld [vmem:[%s0 + $0xf8] sm:$0xf]
  %v90 = vld [vmem:[%s0 + $0xfc] sm:$0xf]
  %v91 = vld [vmem:[%s2] sm:$0x1]
  %v92 = vunpack.c.l.bf16 %v27
  %v93 = vunpack.c.l.bf16 %v28
  %v94 = vunpack.c.l.bf16 %v29
  %v95 = vunpack.c.l.bf16 %v30
  %v96 = vunpack.c.l.bf16 %v31
  %v97 = vunpack.c.l.bf16 %v32
  %v98 = vunpack.c.l.bf16 %v33
  %v99 = vunpack.c.l.bf16 %v34
  %v100 = vunpack.c.l.bf16 %v35
  %v101 = vunpack.c.l.bf16 %v36
  %v102 = vunpack.c.l.bf16 %v37
  %v103 = vunpack.c.l.bf16 %v38
  %v104 = vunpack.c.l.bf16 %v39
  %v105 = vunpack.c.l.bf16 %v40
  %v106 = vunpack.c.l.bf16 %v41
  %v107 = vunpack.c.l.bf16 %v42
  %v108 = vunpack.c.l.bf16 %v43
  %v109 = vunpack.c.l.bf16 %v44
  %v110 = vunpack.c.l.bf16 %v45
  %v111 = vunpack.c.l.bf16 %v46
  %v112 = vunpack.c.l.bf16 %v47
  %v113 = vunpack.c.l.bf16 %v48
  %v114 = vunpack.c.l.bf16 %v49
  %v115 = vunpack.c.l.bf16 %v50
  %v116 = vunpack.c.l.bf16 %v51
  %v117 = vunpack.c.l.bf16 %v52
  %v118 = vunpack.c.l.bf16 %v53
  %v119 = vunpack.c.l.bf16 %v54
  %v120 = vunpack.c.l.bf16 %v55
  %v121 = vunpack.c.l.bf16 %v56
  %v122 = vunpack.c.l.bf16 %v57
  %v123 = vunpack.c.l.bf16 %v58
  %v124 = vunpack.c.l.bf16 %v59
  %v125 = vunpack.c.l.bf16 %v60
  %v126 = vunpack.c.l.bf16 %v61
  %v127 = vunpack.c.l.bf16 %v62
  %v128 = vunpack.c.l.bf16 %v63
  %v129 = vunpack.c.l.bf16 %v64
  %v130 = vunpack.c.l.bf16 %v65
  %v131 = vunpack.c.l.bf16 %v66
  %v132 = vunpack.c.l.bf16 %v67
  %v133 = vunpack.c.l.bf16 %v68
  %v134 = vunpack.c.l.bf16 %v69
  %v135 = vunpack.c.l.bf16 %v70
  %v136 = vunpack.c.l.bf16 %v71
  %v137 = vunpack.c.l.bf16 %v72
  %v138 = vunpack.c.l.bf16 %v73
  %v139 = vunpack.c.l.bf16 %v74
  %v140 = vunpack.c.l.bf16 %v75
  %v141 = vunpack.c.l.bf16 %v76
  %v142 = vunpack.c.l.bf16 %v77
  %v143 = vunpack.c.l.bf16 %v78
  %v144 = vunpack.c.l.bf16 %v79
  %v145 = vunpack.c.l.bf16 %v80
  %v146 = vunpack.c.l.bf16 %v81
  %v147 = vunpack.c.l.bf16 %v82
  %v148 = vunpack.c.l.bf16 %v83
  %v149 = vunpack.c.l.bf16 %v84
  %v150 = vunpack.c.l.bf16 %v85
  %v151 = vunpack.c.l.bf16 %v86
  %v152 = vunpack.c.l.bf16 %v87
  %v153 = vunpack.c.l.bf16 %v88
  %v154 = vunpack.c.l.bf16 %v89
  %v155 = vunpack.c.l.bf16 %v90
  %v157 = vlaneseq
  %v158 = vshrl.u32 %v157, 7
  %v159 = vsub.s32 0, %v158
  %v160 = vrot.slane %v91, %v159
  %v162 = vmul.f32 %v92, %v160
  %v163 = vmul.f32 %v93, %v160
  %v164 = vmul.f32 %v94, %v160
  %v165 = vmul.f32 %v95, %v160
  %v166 = vmul.f32 %v96, %v160
  %v167 = vmul.f32 %v97, %v160
  %v168 = vmul.f32 %v98, %v160
  %v169 = vmul.f32 %v99, %v160
  %v170 = vmul.f32 %v100, %v160
  %v171 = vmul.f32 %v101, %v160
  %v172 = vmul.f32 %v102, %v160
  %v173 = vmul.f32 %v103, %v160
  %v174 = vmul.f32 %v104, %v160
  %v175 = vmul.f32 %v105, %v160
  %v176 = vmul.f32 %v106, %v160
  %v177 = vmul.f32 %v107, %v160
  %v178 = vmul.f32 %v108, %v160
  %v179 = vmul.f32 %v109, %v160
  %v180 = vmul.f32 %v110, %v160
  %v181 = vmul.f32 %v111, %v160
  %v182 = vmul.f32 %v112, %v160
  %v183 = vmul.f32 %v113, %v160
  %v184 = vmul.f32 %v114, %v160
  %v185 = vmul.f32 %v115, %v160
  %v186 = vmul.f32 %v116, %v160
  %v187 = vmul.f32 %v117, %v160
  %v188 = vmul.f32 %v118, %v160
  %v189 = vmul.f32 %v119, %v160
  %v190 = vmul.f32 %v120, %v160
  %v191 = vmul.f32 %v121, %v160
  %v192 = vmul.f32 %v122, %v160
  %v193 = vmul.f32 %v123, %v160
  %v194 = vmul.f32 %v124, %v160
  %v195 = vmul.f32 %v125, %v160
  %v196 = vmul.f32 %v126, %v160
  %v197 = vmul.f32 %v127, %v160
  %v198 = vmul.f32 %v128, %v160
  %v199 = vmul.f32 %v129, %v160
  %v200 = vmul.f32 %v130, %v160
  %v201 = vmul.f32 %v131, %v160
  %v202 = vmul.f32 %v132, %v160
  %v203 = vmul.f32 %v133, %v160
  %v204 = vmul.f32 %v134, %v160
  %v205 = vmul.f32 %v135, %v160
  %v206 = vmul.f32 %v136, %v160
  %v207 = vmul.f32 %v137, %v160
  %v208 = vmul.f32 %v138, %v160
  %v209 = vmul.f32 %v139, %v160
  %v210 = vmul.f32 %v140, %v160
  %v211 = vmul.f32 %v141, %v160
  %v212 = vmul.f32 %v142, %v160
  %v213 = vmul.f32 %v143, %v160
  %v214 = vmul.f32 %v144, %v160
  %v215 = vmul.f32 %v145, %v160
  %v216 = vmul.f32 %v146, %v160
  %v217 = vmul.f32 %v147, %v160
  %v218 = vmul.f32 %v148, %v160
  %v219 = vmul.f32 %v149, %v160
  %v220 = vmul.f32 %v150, %v160
  %v221 = vmul.f32 %v151, %v160
  %v222 = vmul.f32 %v152, %v160
  %v223 = vmul.f32 %v153, %v160
  %v224 = vmul.f32 %v154, %v160
  %v225 = vmul.f32 %v155, %v160
  %v226 = vld [vmem:[%s3] sm:$0x1]
  %v228 = vlaneseq
  %v229 = vshrl.u32 %v228, 7
  %v230 = vsub.s32 0, %v229
  %v231 = vrot.slane %v226, %v230
  %v233 = vadd.f32 %v162, %v231
  %v234 = vadd.f32 %v163, %v231
  %v235 = vadd.f32 %v164, %v231
  %v236 = vadd.f32 %v165, %v231
  %v237 = vadd.f32 %v166, %v231
  %v238 = vadd.f32 %v167, %v231
  %v239 = vadd.f32 %v168, %v231
  %v240 = vadd.f32 %v169, %v231
  %v241 = vadd.f32 %v170, %v231
  %v242 = vadd.f32 %v171, %v231
  %v243 = vadd.f32 %v172, %v231
  %v244 = vadd.f32 %v173, %v231
  %v245 = vadd.f32 %v174, %v231
  %v246 = vadd.f32 %v175, %v231
  %v247 = vadd.f32 %v176, %v231
  %v248 = vadd.f32 %v177, %v231
  %v249 = vadd.f32 %v178, %v231
  %v250 = vadd.f32 %v179, %v231
  %v251 = vadd.f32 %v180, %v231
  %v252 = vadd.f32 %v181, %v231
  %v253 = vadd.f32 %v182, %v231
  %v254 = vadd.f32 %v183, %v231
  %v255 = vadd.f32 %v184, %v231
  %v256 = vadd.f32 %v185, %v231
  %v257 = vadd.f32 %v186, %v231
  %v258 = vadd.f32 %v187, %v231
  %v259 = vadd.f32 %v188, %v231
  %v260 = vadd.f32 %v189, %v231
  %v261 = vadd.f32 %v190, %v231
  %v262 = vadd.f32 %v191, %v231
  %v263 = vadd.f32 %v192, %v231
  %v264 = vadd.f32 %v193, %v231
  %v265 = vadd.f32 %v194, %v231
  %v266 = vadd.f32 %v195, %v231
  %v267 = vadd.f32 %v196, %v231
  %v268 = vadd.f32 %v197, %v231
  %v269 = vadd.f32 %v198, %v231
  %v270 = vadd.f32 %v199, %v231
  %v271 = vadd.f32 %v200, %v231
  %v272 = vadd.f32 %v201, %v231
  %v273 = vadd.f32 %v202, %v231
  %v274 = vadd.f32 %v203, %v231
  %v275 = vadd.f32 %v204, %v231
  %v276 = vadd.f32 %v205, %v231
  %v277 = vadd.f32 %v206, %v231
  %v278 = vadd.f32 %v207, %v231
  %v279 = vadd.f32 %v208, %v231
  %v280 = vadd.f32 %v209, %v231
  %v281 = vadd.f32 %v210, %v231
  %v282 = vadd.f32 %v211, %v231
  %v283 = vadd.f32 %v212, %v231
  %v284 = vadd.f32 %v213, %v231
  %v285 = vadd.f32 %v214, %v231
  %v286 = vadd.f32 %v215, %v231
  %v287 = vadd.f32 %v216, %v231
  %v288 = vadd.f32 %v217, %v231
  %v289 = vadd.f32 %v218, %v231
  %v290 = vadd.f32 %v219, %v231
  %v291 = vadd.f32 %v220, %v231
  %v292 = vadd.f32 %v221, %v231
  %v293 = vadd.f32 %v222, %v231
  %v294 = vadd.f32 %v223, %v231
  %v295 = vadd.f32 %v224, %v231
  %v296 = vadd.f32 %v225, %v231
  %v297 = vmax.f32 %v233, 0.0
  %v298 = vmax.f32 %v234, 0.0
  %v299 = vmax.f32 %v235, 0.0
  %v300 = vmax.f32 %v236, 0.0
  %v301 = vmax.f32 %v237, 0.0
  %v302 = vmax.f32 %v238, 0.0
  %v303 = vmax.f32 %v239, 0.0
  %v304 = vmax.f32 %v240, 0.0
  %v305 = vmax.f32 %v241, 0.0
  %v306 = vmax.f32 %v242, 0.0
  %v307 = vmax.f32 %v243, 0.0
  %v308 = vmax.f32 %v244, 0.0
  %v309 = vmax.f32 %v245, 0.0
  %v310 = vmax.f32 %v246, 0.0
  %v311 = vmax.f32 %v247, 0.0
  %v312 = vmax.f32 %v248, 0.0
  %v313 = vmax.f32 %v249, 0.0
  %v314 = vmax.f32 %v250, 0.0
  %v315 = vmax.f32 %v251, 0.0
  %v316 = vmax.f32 %v252, 0.0
  %v317 = vmax.f32 %v253, 0.0
  %v318 = vmax.f32 %v254, 0.0
  %v319 = vmax.f32 %v255, 0.0
  %v320 = vmax.f32 %v256, 0.0
  %v321 = vmax.f32 %v257, 0.0
  %v322 = vmax.f32 %v258, 0.0
  %v323 = vmax.f32 %v259, 0.0
  %v324 = vmax.f32 %v260, 0.0
  %v325 = vmax.f32 %v261, 0.0
  %v326 = vmax.f32 %v262, 0.0
  %v327 = vmax.f32 %v263, 0.0
  %v328 = vmax.f32 %v264, 0.0
  %v329 = vmax.f32 %v265, 0.0
  %v330 = vmax.f32 %v266, 0.0
  %v331 = vmax.f32 %v267, 0.0
  %v332 = vmax.f32 %v268, 0.0
  %v333 = vmax.f32 %v269, 0.0
  %v334 = vmax.f32 %v270, 0.0
  %v335 = vmax.f32 %v271, 0.0
  %v336 = vmax.f32 %v272, 0.0
  %v337 = vmax.f32 %v273, 0.0
  %v338 = vmax.f32 %v274, 0.0
  %v339 = vmax.f32 %v275, 0.0
  %v340 = vmax.f32 %v276, 0.0
  %v341 = vmax.f32 %v277, 0.0
  %v342 = vmax.f32 %v278, 0.0
  %v343 = vmax.f32 %v279, 0.0
  %v344 = vmax.f32 %v280, 0.0
  %v345 = vmax.f32 %v281, 0.0
  %v346 = vmax.f32 %v282, 0.0
  %v347 = vmax.f32 %v283, 0.0
  %v348 = vmax.f32 %v284, 0.0
  %v349 = vmax.f32 %v285, 0.0
  %v350 = vmax.f32 %v286, 0.0
  %v351 = vmax.f32 %v287, 0.0
  %v352 = vmax.f32 %v288, 0.0
  %v353 = vmax.f32 %v289, 0.0
  %v354 = vmax.f32 %v290, 0.0
  %v355 = vmax.f32 %v291, 0.0
  %v356 = vmax.f32 %v292, 0.0
  %v357 = vmax.f32 %v293, 0.0
  %v358 = vmax.f32 %v294, 0.0
  %v359 = vmax.f32 %v295, 0.0
  %v360 = vmax.f32 %v296, 0.0
  %v361 = vpack.c.bf16 %v298, %v297
  %v362 = vpack.c.bf16 %v300, %v299
  %v363 = vpack.c.bf16 %v302, %v301
  %v364 = vpack.c.bf16 %v304, %v303
  %v365 = vpack.c.bf16 %v306, %v305
  %v366 = vpack.c.bf16 %v308, %v307
  %v367 = vpack.c.bf16 %v310, %v309
  %v368 = vpack.c.bf16 %v312, %v311
  %v369 = vpack.c.bf16 %v314, %v313
  %v370 = vpack.c.bf16 %v316, %v315
  %v371 = vpack.c.bf16 %v318, %v317
  %v372 = vpack.c.bf16 %v320, %v319
  %v373 = vpack.c.bf16 %v322, %v321
  %v374 = vpack.c.bf16 %v324, %v323
  %v375 = vpack.c.bf16 %v326, %v325
  %v376 = vpack.c.bf16 %v328, %v327
  %v377 = vpack.c.bf16 %v330, %v329
  %v378 = vpack.c.bf16 %v332, %v331
  %v379 = vpack.c.bf16 %v334, %v333
  %v380 = vpack.c.bf16 %v336, %v335
  %v381 = vpack.c.bf16 %v338, %v337
  %v382 = vpack.c.bf16 %v340, %v339
  %v383 = vpack.c.bf16 %v342, %v341
  %v384 = vpack.c.bf16 %v344, %v343
  %v385 = vpack.c.bf16 %v346, %v345
  %v386 = vpack.c.bf16 %v348, %v347
  %v387 = vpack.c.bf16 %v350, %v349
  %v388 = vpack.c.bf16 %v352, %v351
  %v389 = vpack.c.bf16 %v354, %v353
  %v390 = vpack.c.bf16 %v356, %v355
  %v391 = vpack.c.bf16 %v358, %v357
  %v392 = vpack.c.bf16 %v360, %v359
  %v393 = vld [vmem:[%s4] sm:$0xf]
  %v394 = vld [vmem:[%s4 + $0x4] sm:$0xf]
  %v395 = vld [vmem:[%s4 + $0x8] sm:$0xf]
  %v396 = vld [vmem:[%s4 + $0xc] sm:$0xf]
  %v397 = vld [vmem:[%s4 + $0x10] sm:$0xf]
  %v398 = vld [vmem:[%s4 + $0x14] sm:$0xf]
  %v399 = vld [vmem:[%s4 + $0x18] sm:$0xf]
  %v400 = vld [vmem:[%s4 + $0x1c] sm:$0xf]
  %v401 = vld [vmem:[%s4 + $0x20] sm:$0xf]
  %v402 = vld [vmem:[%s4 + $0x24] sm:$0xf]
  %v403 = vld [vmem:[%s4 + $0x28] sm:$0xf]
  %v404 = vld [vmem:[%s4 + $0x2c] sm:$0xf]
  %v405 = vld [vmem:[%s4 + $0x30] sm:$0xf]
  %v406 = vld [vmem:[%s4 + $0x34] sm:$0xf]
  %v407 = vld [vmem:[%s4 + $0x38] sm:$0xf]
  %v408 = vld [vmem:[%s4 + $0x3c] sm:$0xf]
  %v425 = vunpack.c.l.b16 %v393
  %v426 = vunpack.c.l.b16 %v394
  %v427 = vunpack.c.l.b16 %v395
  %v428 = vunpack.c.l.b16 %v396
  %v429 = vunpack.c.l.b16 %v397
  %v430 = vunpack.c.l.b16 %v398
  %v431 = vunpack.c.l.b16 %v399
  %v432 = vunpack.c.l.b16 %v400
  %v433 = vunpack.c.l.b16 %v401
  %v434 = vunpack.c.l.b16 %v402
  %v435 = vunpack.c.l.b16 %v403
  %v436 = vunpack.c.l.b16 %v404
  %v437 = vunpack.c.l.b16 %v405
  %v438 = vunpack.c.l.b16 %v406
  %v439 = vunpack.c.l.b16 %v407
  %v440 = vunpack.c.l.b16 %v408
  %v441 = vpack.c.b16 %v426, %v425
  %v442 = vpack.c.b16 %v428, %v427
  %v443 = vpack.c.b16 %v430, %v429
  %v444 = vpack.c.b16 %v432, %v431
  %v445 = vpack.c.b16 %v434, %v433
  %v446 = vpack.c.b16 %v436, %v435
  %v447 = vpack.c.b16 %v438, %v437
  %v448 = vpack.c.b16 %v440, %v439
  %457 = vmatprep.subr.bf16.mxu0 0
  %458 = vmatpush1.bf16.msra.mxu0 %v441
  %459 = vmatprep.subr.bf16.mxu0 0
  %460 = vmatpush1.bf16.msra.mxu0 %v442
  %461 = vmatprep.subr.bf16.mxu0 0
  %462 = vmatpush1.bf16.msra.mxu0 %v443
  %463 = vmatprep.subr.bf16.mxu0 0
  %464 = vmatpush1.bf16.msra.mxu0 %v444
  %465 = vmatprep.subr.bf16.mxu0 0
  %466 = vmatpush1.bf16.msra.mxu0 %v445
  %467 = vmatprep.subr.bf16.mxu0 0
  %468 = vmatpush1.bf16.msra.mxu0 %v446
  %469 = vmatprep.subr.bf16.mxu0 0
  %470 = vmatpush1.bf16.msra.mxu0 %v447
  %471 = vmatprep.subr.bf16.mxu0 0
  %472 = vmatpush1.bf16.msra.mxu0 %v448
  %473 = vmatprep.subr.bf16.mxu0 0
  %474 = vmatpush1.bf16.msra.mxu0 0
  %475 = vmatprep.subr.bf16.mxu0 0
  %476 = vmatpush1.bf16.msra.mxu0 0
  %477 = vmatprep.subr.bf16.mxu0 0
  %478 = vmatpush1.bf16.msra.mxu0 0
  %479 = vmatprep.subr.bf16.mxu0 0
  %480 = vmatpush1.bf16.msra.mxu0 0
  %481 = vmatprep.subr.bf16.mxu0 0
  %482 = vmatpush1.bf16.msra.mxu0 0
  %483 = vmatprep.subr.bf16.mxu0 0
  %484 = vmatpush1.bf16.msra.mxu0 0
  %485 = vmatprep.subr.bf16.mxu0 0
  %486 = vmatpush1.bf16.msra.mxu0 0
  %487 = vmatprep.subr.bf16.mxu0 0
  %488 = vmatpush1.bf16.msra.mxu0 0
  %489 = vmatprep.mubr.bf16.mxu0 0
  %490 = vmatmul.mubr.bf16.gmra.mrb[0].mxu0 %v361
  %v491 = vpop.f32.mrb[0].mxu0
  %v492 = vadd.f32 0.0, %v491
  %v493 = vpop.f32.mrb[0].mxu0
  %v494 = vpop.f32.mrb[0].mxu0
  %v495 = vadd.f32 0.0, %v494
  %v496 = vpop.f32.mrb[0].mxu0
  %497 = vmatprep.mubr.bf16.mxu0 0
  %498 = vmatmul.mubr.bf16.gmra.mrb[0].mxu0 %v362
  %v499 = vpop.f32.mrb[0].mxu0
  %v500 = vadd.f32 0.0, %v499
  %v501 = vpop.f32.mrb[0].mxu0
  %v502 = vpop.f32.mrb[0].mxu0
  %v503 = vadd.f32 0.0, %v502
  %v504 = vpop.f32.mrb[0].mxu0
  %505 = vmatprep.mubr.bf16.mxu0 0
  %506 = vmatmul.mubr.bf16.gmra.mrb[0].mxu0 %v363
  %v507 = vpop.f32.mrb[0].mxu0
  %v508 = vadd.f32 0.0, %v507
  %v509 = vpop.f32.mrb[0].mxu0
  %v510 = vpop.f32.mrb[0].mxu0
  %v511 = vadd.f32 0.0, %v510
  %v512 = vpop.f32.mrb[0].mxu0
  %513 = vmatprep.mubr.bf16.mxu0 0
  %514 = vmatmul.mubr.bf16.gmra.mrb[0].mxu0 %v364
  %v515 = vpop.f32.mrb[0].mxu0
  %v516 = vadd.f32 0.0, %v515
  %v517 = vpop.f32.mrb[0].mxu0
  %v518 = vpop.f32.mrb[0].mxu0
  %v519 = vadd.f32 0.0, %v518
  %v520 = vpop.f32.mrb[0].mxu0
  %521 = vmatprep.mubr.bf16.mxu0 0
  %522 = vmatmul.mubr.bf16.gmra.mrb[0].mxu0 %v365
  %v523 = vpop.f32.mrb[0].mxu0
  %v524 = vadd.f32 0.0, %v523
  %v525 = vpop.f32.mrb[0].mxu0
  %v526 = vpop.f32.mrb[0].mxu0
  %v527 = vadd.f32 0.0, %v526
  %v528 = vpop.f32.mrb[0].mxu0
  %529 = vmatprep.mubr.bf16.mxu0 0
  %530 = vmatmul.mubr.bf16.gmra.mrb[0].mxu0 %v366
  %v531 = vpop.f32.mrb[0].mxu0
  %v532 = vadd.f32 0.0, %v531
  %v533 = vpop.f32.mrb[0].mxu0
  %v534 = vpop.f32.mrb[0].mxu0
  %v535 = vadd.f32 0.0, %v534
  %v536 = vpop.f32.mrb[0].mxu0
  %537 = vmatprep.mubr.bf16.mxu0 0
  %538 = vmatmul.mubr.bf16.gmra.mrb[0].mxu0 %v367
  %v539 = vpop.f32.mrb[0].mxu0
  %v540 = vadd.f32 0.0, %v539
  %v541 = vpop.f32.mrb[0].mxu0
  %v542 = vpop.f32.mrb[0].mxu0
  %v543 = vadd.f32 0.0, %v542
  %v544 = vpop.f32.mrb[0].mxu0
  %545 = vmatprep.mubr.bf16.mxu0 0
  %546 = vmatmul.mubr.bf16.gmra.mrb[0].mxu0 %v368
  %v547 = vpop.f32.mrb[0].mxu0
  %v548 = vadd.f32 0.0, %v547
  %v549 = vpop.f32.mrb[0].mxu0
  %v550 = vpop.f32.mrb[0].mxu0
  %v551 = vadd.f32 0.0, %v550
  %v552 = vpop.f32.mrb[0].mxu0
  %553 = vmatprep.mubr.bf16.mxu0 0
  %554 = vmatmul.mubr.bf16.gmra.mrb[0].mxu0 %v369
  %v555 = vpop.f32.mrb[0].mxu0
  %v556 = vadd.f32 0.0, %v555
  %v557 = vpop.f32.mrb[0].mxu0
  %v558 = vpop.f32.mrb[0].mxu0
  %v559 = vadd.f32 0.0, %v558
  %v560 = vpop.f32.mrb[0].mxu0
  %561 = vmatprep.mubr.bf16.mxu0 0
  %562 = vmatmul.mubr.bf16.gmra.mrb[0].mxu0 %v370
  %v563 = vpop.f32.mrb[0].mxu0
  %v564 = vadd.f32 0.0, %v563
  %v565 = vpop.f32.mrb[0].mxu0
  %v566 = vpop.f32.mrb[0].mxu0
  %v567 = vadd.f32 0.0, %v566
  %v568 = vpop.f32.mrb[0].mxu0
  %569 = vmatprep.mubr.bf16.mxu0 0
  %570 = vmatmul.mubr.bf16.gmra.mrb[0].mxu0 %v371
  %v571 = vpop.f32.mrb[0].mxu0
  %v572 = vadd.f32 0.0, %v571
  %v573 = vpop.f32.mrb[0].mxu0
  %v574 = vpop.f32.mrb[0].mxu0
  %v575 = vadd.f32 0.0, %v574
  %v576 = vpop.f32.mrb[0].mxu0
  %577 = vmatprep.mubr.bf16.mxu0 0
  %578 = vmatmul.mubr.bf16.gmra.mrb[0].mxu0 %v372
  %v579 = vpop.f32.mrb[0].mxu0
  %v580 = vadd.f32 0.0, %v579
  %v581 = vpop.f32.mrb[0].mxu0
  %v582 = vpop.f32.mrb[0].mxu0
  %v583 = vadd.f32 0.0, %v582
  %v584 = vpop.f32.mrb[0].mxu0
  %585 = vmatprep.mubr.bf16.mxu0 0
  %586 = vmatmul.mubr.bf16.gmra.mrb[0].mxu0 %v373
  %v587 = vpop.f32.mrb[0].mxu0
  %v588 = vadd.f32 0.0, %v587
  %v589 = vpop.f32.mrb[0].mxu0
  %v590 = vpop.f32.mrb[0].mxu0
  %v591 = vadd.f32 0.0, %v590
  %v592 = vpop.f32.mrb[0].mxu0
  %593 = vmatprep.mubr.bf16.mxu0 0
  %594 = vmatmul.mubr.bf16.gmra.mrb[0].mxu0 %v374
  %v595 = vpop.f32.mrb[0].mxu0
  %v596 = vadd.f32 0.0, %v595
  %v597 = vpop.f32.mrb[0].mxu0
  %v598 = vpop.f32.mrb[0].mxu0
  %v599 = vadd.f32 0.0, %v598
  %v600 = vpop.f32.mrb[0].mxu0
  %601 = vmatprep.mubr.bf16.mxu0 0
  %602 = vmatmul.mubr.bf16.gmra.mrb[0].mxu0 %v375
  %v603 = vpop.f32.mrb[0].mxu0
  %v604 = vadd.f32 0.0, %v603
  %v605 = vpop.f32.mrb[0].mxu0
  %v606 = vpop.f32.mrb[0].mxu0
  %v607 = vadd.f32 0.0, %v606
  %v608 = vpop.f32.mrb[0].mxu0
  %609 = vmatprep.mubr.bf16.mxu0 0
  %610 = vmatmul.mubr.bf16.gmra.mrb[0].mxu0 %v376
  %v611 = vpop.f32.mrb[0].mxu0
  %v612 = vadd.f32 0.0, %v611
  %v613 = vpop.f32.mrb[0].mxu0
  %v614 = vpop.f32.mrb[0].mxu0
  %v615 = vadd.f32 0.0, %v614
  %v616 = vpop.f32.mrb[0].mxu0
  %617 = vmatprep.mubr.bf16.mxu0 0
  %618 = vmatmul.mubr.bf16.gmra.mrb[0].mxu0 %v377
  %v619 = vpop.f32.mrb[0].mxu0
  %v620 = vadd.f32 0.0, %v619
  %v621 = vpop.f32.mrb[0].mxu0
  %v622 = vpop.f32.mrb[0].mxu0
  %v623 = vadd.f32 0.0, %v622
  %v624 = vpop.f32.mrb[0].mxu0
  %625 = vmatprep.mubr.bf16.mxu0 0
  %626 = vmatmul.mubr.bf16.gmra.mrb[0].mxu0 %v378
  %v627 = vpop.f32.mrb[0].mxu0
  %v628 = vadd.f32 0.0, %v627
  %v629 = vpop.f32.mrb[0].mxu0
  %v630 = vpop.f32.mrb[0].mxu0
  %v631 = vadd.f32 0.0, %v630
  %v632 = vpop.f32.mrb[0].mxu0
  %633 = vmatprep.mubr.bf16.mxu0 0
  %634 = vmatmul.mubr.bf16.gmra.mrb[0].mxu0 %v379
  %v635 = vpop.f32.mrb[0].mxu0
  %v636 = vadd.f32 0.0, %v635
  %v637 = vpop.f32.mrb[0].mxu0
  %v638 = vpop.f32.mrb[0].mxu0
  %v639 = vadd.f32 0.0, %v638
  %v640 = vpop.f32.mrb[0].mxu0
  %641 = vmatprep.mubr.bf16.mxu0 0
  %642 = vmatmul.mubr.bf16.gmra.mrb[0].mxu0 %v380
  %v643 = vpop.f32.mrb[0].mxu0
  %v644 = vadd.f32 0.0, %v643
  %v645 = vpop.f32.mrb[0].mxu0
  %v646 = vpop.f32.mrb[0].mxu0
  %v647 = vadd.f32 0.0, %v646
  %v648 = vpop.f32.mrb[0].mxu0
  %649 = vmatprep.mubr.bf16.mxu0 0
  %650 = vmatmul.mubr.bf16.gmra.mrb[0].mxu0 %v381
  %v651 = vpop.f32.mrb[0].mxu0
  %v652 = vadd.f32 0.0, %v651
  %v653 = vpop.f32.mrb[0].mxu0
  %v654 = vpop.f32.mrb[0].mxu0
  %v655 = vadd.f32 0.0, %v654
  %v656 = vpop.f32.mrb[0].mxu0
  %657 = vmatprep.mubr.bf16.mxu0 0
  %658 = vmatmul.mubr.bf16.gmra.mrb[0].mxu0 %v382
  %v659 = vpop.f32.mrb[0].mxu0
  %v660 = vadd.f32 0.0, %v659
  %v661 = vpop.f32.mrb[0].mxu0
  %v662 = vpop.f32.mrb[0].mxu0
  %v663 = vadd.f32 0.0, %v662
  %v664 = vpop.f32.mrb[0].mxu0
  %665 = vmatprep.mubr.bf16.mxu0 0
  %666 = vmatmul.mubr.bf16.gmra.mrb[0].mxu0 %v383
  %v667 = vpop.f32.mrb[0].mxu0
  %v668 = vadd.f32 0.0, %v667
  %v669 = vpop.f32.mrb[0].mxu0
  %v670 = vpop.f32.mrb[0].mxu0
  %v671 = vadd.f32 0.0, %v670
  %v672 = vpop.f32.mrb[0].mxu0
  %673 = vmatprep.mubr.bf16.mxu0 0
  %674 = vmatmul.mubr.bf16.gmra.mrb[0].mxu0 %v384
  %v675 = vpop.f32.mrb[0].mxu0
  %v676 = vadd.f32 0.0, %v675
  %v677 = vpop.f32.mrb[0].mxu0
  %v678 = vpop.f32.mrb[0].mxu0
  %v679 = vadd.f32 0.0, %v678
  %v680 = vpop.f32.mrb[0].mxu0
  %681 = vmatprep.mubr.bf16.mxu0 0
  %682 = vmatmul.mubr.bf16.gmra.mrb[0].mxu0 %v385
  %v683 = vpop.f32.mrb[0].mxu0
  %v684 = vadd.f32 0.0, %v683
  %v685 = vpop.f32.mrb[0].mxu0
  %v686 = vpop.f32.mrb[0].mxu0
  %v687 = vadd.f32 0.0, %v686
  %v688 = vpop.f32.mrb[0].mxu0
  %689 = vmatprep.mubr.bf16.mxu0 0
  %690 = vmatmul.mubr.bf16.gmra.mrb[0].mxu0 %v386
  %v691 = vpop.f32.mrb[0].mxu0
  %v692 = vadd.f32 0.0, %v691
  %v693 = vpop.f32.mrb[0].mxu0
  %v694 = vpop.f32.mrb[0].mxu0
  %v695 = vadd.f32 0.0, %v694
  %v696 = vpop.f32.mrb[0].mxu0
  %697 = vmatprep.mubr.bf16.mxu0 0
  %698 = vmatmul.mubr.bf16.gmra.mrb[0].mxu0 %v387
  %v699 = vpop.f32.mrb[0].mxu0
  %v700 = vadd.f32 0.0, %v699
  %v701 = vpop.f32.mrb[0].mxu0
  %v702 = vpop.f32.mrb[0].mxu0
  %v703 = vadd.f32 0.0, %v702
  %v704 = vpop.f32.mrb[0].mxu0
  %705 = vmatprep.mubr.bf16.mxu0 0
  %706 = vmatmul.mubr.bf16.gmra.mrb[0].mxu0 %v388
  %v707 = vpop.f32.mrb[0].mxu0
  %v708 = vadd.f32 0.0, %v707
  %v709 = vpop.f32.mrb[0].mxu0
  %v710 = vpop.f32.mrb[0].mxu0
  %v711 = vadd.f32 0.0, %v710
  %v712 = vpop.f32.mrb[0].mxu0
  %713 = vmatprep.mubr.bf16.mxu0 0
  %714 = vmatmul.mubr.bf16.gmra.mrb[0].mxu0 %v389
  %v715 = vpop.f32.mrb[0].mxu0
  %v716 = vadd.f32 0.0, %v715
  %v717 = vpop.f32.mrb[0].mxu0
  %v718 = vpop.f32.mrb[0].mxu0
  %v719 = vadd.f32 0.0, %v718
  %v720 = vpop.f32.mrb[0].mxu0
  %721 = vmatprep.mubr.bf16.mxu0 0
  %722 = vmatmul.mubr.bf16.gmra.mrb[0].mxu0 %v390
  %v723 = vpop.f32.mrb[0].mxu0
  %v724 = vadd.f32 0.0, %v723
  %v725 = vpop.f32.mrb[0].mxu0
  %v726 = vpop.f32.mrb[0].mxu0
  %v727 = vadd.f32 0.0, %v726
  %v728 = vpop.f32.mrb[0].mxu0
  %729 = vmatprep.mubr.bf16.mxu0 0
  %730 = vmatmul.mubr.bf16.gmra.mrb[0].mxu0 %v391
  %v731 = vpop.f32.mrb[0].mxu0
  %v732 = vadd.f32 0.0, %v731
  %v733 = vpop.f32.mrb[0].mxu0
  %v734 = vpop.f32.mrb[0].mxu0
  %v735 = vadd.f32 0.0, %v734
  %v736 = vpop.f32.mrb[0].mxu0
  %737 = vmatprep.mubr.bf16.mxu0 0
  %738 = vmatmul.mubr.bf16.gmra.mrb[0].mxu0 %v392
  %v739 = vpop.f32.mrb[0].mxu0
  %v740 = vadd.f32 0.0, %v739
  %v741 = vpop.f32.mrb[0].mxu0
  %v742 = vpop.f32.mrb[0].mxu0
  %v743 = vadd.f32 0.0, %v742
  %v744 = vpop.f32.mrb[0].mxu0
  %745 = vdwg.mxu0
  %v746 = vld [vmem:[%s5] sm:$0x1]
  %v748 = vlaneseq
  %v749 = vshrl.u32 %v748, 7
  %v750 = vsub.s32 0, %v749
  %v751 = vrot.slane %v746, %v750
  %v753 = vmul.f32 %v492, %v751
  %v754 = vmul.f32 %v495, %v751
  %v755 = vmul.f32 %v500, %v751
  %v756 = vmul.f32 %v503, %v751
  %v757 = vmul.f32 %v508, %v751
  %v758 = vmul.f32 %v511, %v751
  %v759 = vmul.f32 %v516, %v751
  %v760 = vmul.f32 %v519, %v751
  %v761 = vmul.f32 %v524, %v751
  %v762 = vmul.f32 %v527, %v751
  %v763 = vmul.f32 %v532, %v751
  %v764 = vmul.f32 %v535, %v751
  %v765 = vmul.f32 %v540, %v751
  %v766 = vmul.f32 %v543, %v751
  %v767 = vmul.f32 %v548, %v751
  %v768 = vmul.f32 %v551, %v751
  %v769 = vmul.f32 %v556, %v751
  %v770 = vmul.f32 %v559, %v751
  %v771 = vmul.f32 %v564, %v751
  %v772 = vmul.f32 %v567, %v751
  %v773 = vmul.f32 %v572, %v751
  %v774 = vmul.f32 %v575, %v751
  %v775 = vmul.f32 %v580, %v751
  %v776 = vmul.f32 %v583, %v751
  %v777 = vmul.f32 %v588, %v751
  %v778 = vmul.f32 %v591, %v751
  %v779 = vmul.f32 %v596, %v751
  %v780 = vmul.f32 %v599, %v751
  %v781 = vmul.f32 %v604, %v751
  %v782 = vmul.f32 %v607, %v751
  %v783 = vmul.f32 %v612, %v751
  %v784 = vmul.f32 %v615, %v751
  %v785 = vmul.f32 %v620, %v751
  %v786 = vmul.f32 %v623, %v751
  %v787 = vmul.f32 %v628, %v751
  %v788 = vmul.f32 %v631, %v751
  %v789 = vmul.f32 %v636, %v751
  %v790 = vmul.f32 %v639, %v751
  %v791 = vmul.f32 %v644, %v751
  %v792 = vmul.f32 %v647, %v751
  %v793 = vmul.f32 %v652, %v751
  %v794 = vmul.f32 %v655, %v751
  %v795 = vmul.f32 %v660, %v751
  %v796 = vmul.f32 %v663, %v751
  %v797 = vmul.f32 %v668, %v751
  %v798 = vmul.f32 %v671, %v751
  %v799 = vmul.f32 %v676, %v751
  %v800 = vmul.f32 %v679, %v751
  %v801 = vmul.f32 %v684, %v751
  %v802 = vmul.f32 %v687, %v751
  %v803 = vmul.f32 %v692, %v751
  %v804 = vmul.f32 %v695, %v751
  %v805 = vmul.f32 %v700, %v751
  %v806 = vmul.f32 %v703, %v751
  %v807 = vmul.f32 %v708, %v751
  %v808 = vmul.f32 %v711, %v751
  %v809 = vmul.f32 %v716, %v751
  %v810 = vmul.f32 %v719, %v751
  %v811 = vmul.f32 %v724, %v751
  %v812 = vmul.f32 %v727, %v751
  %v813 = vmul.f32 %v732, %v751
  %v814 = vmul.f32 %v735, %v751
  %v815 = vmul.f32 %v740, %v751
  %v816 = vmul.f32 %v743, %v751
  %v817 = vld [vmem:[%s6] sm:$0x1]
  %v819 = vlaneseq
  %v820 = vshrl.u32 %v819, 7
  %v821 = vsub.s32 0, %v820
  %v822 = vrot.slane %v817, %v821
  %v824 = vadd.f32 %v753, %v822
  %v825 = vadd.f32 %v754, %v822
  %v826 = vadd.f32 %v755, %v822
  %v827 = vadd.f32 %v756, %v822
  %v828 = vadd.f32 %v757, %v822
  %v829 = vadd.f32 %v758, %v822
  %v830 = vadd.f32 %v759, %v822
  %v831 = vadd.f32 %v760, %v822
  %v832 = vadd.f32 %v761, %v822
  %v833 = vadd.f32 %v762, %v822
  %v834 = vadd.f32 %v763, %v822
  %v835 = vadd.f32 %v764, %v822
  %v836 = vadd.f32 %v765, %v822
  %v837 = vadd.f32 %v766, %v822
  %v838 = vadd.f32 %v767, %v822
  %v839 = vadd.f32 %v768, %v822
  %v840 = vadd.f32 %v769, %v822
  %v841 = vadd.f32 %v770, %v822
  %v842 = vadd.f32 %v771, %v822
  %v843 = vadd.f32 %v772, %v822
  %v844 = vadd.f32 %v773, %v822
  %v845 = vadd.f32 %v774, %v822
  %v846 = vadd.f32 %v775, %v822
  %v847 = vadd.f32 %v776, %v822
  %v848 = vadd.f32 %v777, %v822
  %v849 = vadd.f32 %v778, %v822
  %v850 = vadd.f32 %v779, %v822
  %v851 = vadd.f32 %v780, %v822
  %v852 = vadd.f32 %v781, %v822
  %v853 = vadd.f32 %v782, %v822
  %v854 = vadd.f32 %v783, %v822
  %v855 = vadd.f32 %v784, %v822
  %v856 = vadd.f32 %v785, %v822
  %v857 = vadd.f32 %v786, %v822
  %v858 = vadd.f32 %v787, %v822
  %v859 = vadd.f32 %v788, %v822
  %v860 = vadd.f32 %v789, %v822
  %v861 = vadd.f32 %v790, %v822
  %v862 = vadd.f32 %v791, %v822
  %v863 = vadd.f32 %v792, %v822
  %v864 = vadd.f32 %v793, %v822
  %v865 = vadd.f32 %v794, %v822
  %v866 = vadd.f32 %v795, %v822
  %v867 = vadd.f32 %v796, %v822
  %v868 = vadd.f32 %v797, %v822
  %v869 = vadd.f32 %v798, %v822
  %v870 = vadd.f32 %v799, %v822
  %v871 = vadd.f32 %v800, %v822
  %v872 = vadd.f32 %v801, %v822
  %v873 = vadd.f32 %v802, %v822
  %v874 = vadd.f32 %v803, %v822
  %v875 = vadd.f32 %v804, %v822
  %v876 = vadd.f32 %v805, %v822
  %v877 = vadd.f32 %v806, %v822
  %v878 = vadd.f32 %v807, %v822
  %v879 = vadd.f32 %v808, %v822
  %v880 = vadd.f32 %v809, %v822
  %v881 = vadd.f32 %v810, %v822
  %v882 = vadd.f32 %v811, %v822
  %v883 = vadd.f32 %v812, %v822
  %v884 = vadd.f32 %v813, %v822
  %v885 = vadd.f32 %v814, %v822
  %v886 = vadd.f32 %v815, %v822
  %v887 = vadd.f32 %v816, %v822
  %v888 = vld [vmem:[%s1] sm:$0xf]
  %v889 = vld [vmem:[%s1 + $0x4] sm:$0xf]
  %v890 = vld [vmem:[%s1 + $0x8] sm:$0xf]
  %v891 = vld [vmem:[%s1 + $0xc] sm:$0xf]
  %v892 = vld [vmem:[%s1 + $0x10] sm:$0xf]
  %v893 = vld [vmem:[%s1 + $0x14] sm:$0xf]
  %v894 = vld [vmem:[%s1 + $0x18] sm:$0xf]
  %v895 = vld [vmem:[%s1 + $0x1c] sm:$0xf]
  %v896 = vld [vmem:[%s1 + $0x20] sm:$0xf]
  %v897 = vld [vmem:[%s1 + $0x24] sm:$0xf]
  %v898 = vld [vmem:[%s1 + $0x28] sm:$0xf]
  %v899 = vld [vmem:[%s1 + $0x2c] sm:$0xf]
  %v900 = vld [vmem:[%s1 + $0x30] sm:$0xf]
  %v901 = vld [vmem:[%s1 + $0x34] sm:$0xf]
  %v902 = vld [vmem:[%s1 + $0x38] sm:$0xf]
  %v903 = vld [vmem:[%s1 + $0x3c] sm:$0xf]
  %v904 = vld [vmem:[%s1 + $0x40] sm:$0xf]
  %v905 = vld [vmem:[%s1 + $0x44] sm:$0xf]
  %v906 = vld [vmem:[%s1 + $0x48] sm:$0xf]
  %v907 = vld [vmem:[%s1 + $0x4c] sm:$0xf]
  %v908 = vld [vmem:[%s1 + $0x50] sm:$0xf]
  %v909 = vld [vmem:[%s1 + $0x54] sm:$0xf]
  %v910 = vld [vmem:[%s1 + $0x58] sm:$0xf]
  %v911 = vld [vmem:[%s1 + $0x5c] sm:$0xf]
  %v912 = vld [vmem:[%s1 + $0x60] sm:$0xf]
  %v913 = vld [vmem:[%s1 + $0x64] sm:$0xf]
  %v914 = vld [vmem:[%s1 + $0x68] sm:$0xf]
  %v915 = vld [vmem:[%s1 + $0x6c] sm:$0xf]
  %v916 = vld [vmem:[%s1 + $0x70] sm:$0xf]
  %v917 = vld [vmem:[%s1 + $0x74] sm:$0xf]
  %v918 = vld [vmem:[%s1 + $0x78] sm:$0xf]
  %v919 = vld [vmem:[%s1 + $0x7c] sm:$0xf]
  %v920 = vld [vmem:[%s1 + $0x80] sm:$0xf]
  %v921 = vld [vmem:[%s1 + $0x84] sm:$0xf]
  %v922 = vld [vmem:[%s1 + $0x88] sm:$0xf]
  %v923 = vld [vmem:[%s1 + $0x8c] sm:$0xf]
  %v924 = vld [vmem:[%s1 + $0x90] sm:$0xf]
  %v925 = vld [vmem:[%s1 + $0x94] sm:$0xf]
  %v926 = vld [vmem:[%s1 + $0x98] sm:$0xf]
  %v927 = vld [vmem:[%s1 + $0x9c] sm:$0xf]
  %v928 = vld [vmem:[%s1 + $0xa0] sm:$0xf]
  %v929 = vld [vmem:[%s1 + $0xa4] sm:$0xf]
  %v930 = vld [vmem:[%s1 + $0xa8] sm:$0xf]
  %v931 = vld [vmem:[%s1 + $0xac] sm:$0xf]
  %v932 = vld [vmem:[%s1 + $0xb0] sm:$0xf]
  %v933 = vld [vmem:[%s1 + $0xb4] sm:$0xf]
  %v934 = vld [vmem:[%s1 + $0xb8] sm:$0xf]
  %v935 = vld [vmem:[%s1 + $0xbc] sm:$0xf]
  %v936 = vld [vmem:[%s1 + $0xc0] sm:$0xf]
  %v937 = vld [vmem:[%s1 + $0xc4] sm:$0xf]
  %v938 = vld [vmem:[%s1 + $0xc8] sm:$0xf]
  %v939 = vld [vmem:[%s1 + $0xcc] sm:$0xf]
  %v940 = vld [vmem:[%s1 + $0xd0] sm:$0xf]
  %v941 = vld [vmem:[%s1 + $0xd4] sm:$0xf]
  %v942 = vld [vmem:[%s1 + $0xd8] sm:$0xf]
  %v943 = vld [vmem:[%s1 + $0xdc] sm:$0xf]
  %v944 = vld [vmem:[%s1 + $0xe0] sm:$0xf]
  %v945 = vld [vmem:[%s1 + $0xe4] sm:$0xf]
  %v946 = vld [vmem:[%s1 + $0xe8] sm:$0xf]
  %v947 = vld [vmem:[%s1 + $0xec] sm:$0xf]
  %v948 = vld [vmem:[%s1 + $0xf0] sm:$0xf]
  %v949 = vld [vmem:[%s1 + $0xf4] sm:$0xf]
  %v950 = vld [vmem:[%s1 + $0xf8] sm:$0xf]
  %v951 = vld [vmem:[%s1 + $0xfc] sm:$0xf]
  %v952 = vunpack.c.l.bf16 %v888
  %v953 = vunpack.c.l.bf16 %v889
  %v954 = vunpack.c.l.bf16 %v890
  %v955 = vunpack.c.l.bf16 %v891
  %v956 = vunpack.c.l.bf16 %v892
  %v957 = vunpack.c.l.bf16 %v893
  %v958 = vunpack.c.l.bf16 %v894
  %v959 = vunpack.c.l.bf16 %v895
  %v960 = vunpack.c.l.bf16 %v896
  %v961 = vunpack.c.l.bf16 %v897
  %v962 = vunpack.c.l.bf16 %v898
  %v963 = vunpack.c.l.bf16 %v899
  %v964 = vunpack.c.l.bf16 %v900
  %v965 = vunpack.c.l.bf16 %v901
  %v966 = vunpack.c.l.bf16 %v902
  %v967 = vunpack.c.l.bf16 %v903
  %v968 = vunpack.c.l.bf16 %v904
  %v969 = vunpack.c.l.bf16 %v905
  %v970 = vunpack.c.l.bf16 %v906
  %v971 = vunpack.c.l.bf16 %v907
  %v972 = vunpack.c.l.bf16 %v908
  %v973 = vunpack.c.l.bf16 %v909
  %v974 = vunpack.c.l.bf16 %v910
  %v975 = vunpack.c.l.bf16 %v911
  %v976 = vunpack.c.l.bf16 %v912
  %v977 = vunpack.c.l.bf16 %v913
  %v978 = vunpack.c.l.bf16 %v914
  %v979 = vunpack.c.l.bf16 %v915
  %v980 = vunpack.c.l.bf16 %v916
  %v981 = vunpack.c.l.bf16 %v917
  %v982 = vunpack.c.l.bf16 %v918
  %v983 = vunpack.c.l.bf16 %v919
  %v984 = vunpack.c.l.bf16 %v920
  %v985 = vunpack.c.l.bf16 %v921
  %v986 = vunpack.c.l.bf16 %v922
  %v987 = vunpack.c.l.bf16 %v923
  %v988 = vunpack.c.l.bf16 %v924
  %v989 = vunpack.c.l.bf16 %v925
  %v990 = vunpack.c.l.bf16 %v926
  %v991 = vunpack.c.l.bf16 %v927
  %v992 = vunpack.c.l.bf16 %v928
  %v993 = vunpack.c.l.bf16 %v929
  %v994 = vunpack.c.l.bf16 %v930
  %v995 = vunpack.c.l.bf16 %v931
  %v996 = vunpack.c.l.bf16 %v932
  %v997 = vunpack.c.l.bf16 %v933
  %v998 = vunpack.c.l.bf16 %v934
  %v999 = vunpack.c.l.bf16 %v935
  %v1000 = vunpack.c.l.bf16 %v936
  %v1001 = vunpack.c.l.bf16 %v937
  %v1002 = vunpack.c.l.bf16 %v938
  %v1003 = vunpack.c.l.bf16 %v939
  %v1004 = vunpack.c.l.bf16 %v940
  %v1005 = vunpack.c.l.bf16 %v941
  %v1006 = vunpack.c.l.bf16 %v942
  %v1007 = vunpack.c.l.bf16 %v943
  %v1008 = vunpack.c.l.bf16 %v944
  %v1009 = vunpack.c.l.bf16 %v945
  %v1010 = vunpack.c.l.bf16 %v946
  %v1011 = vunpack.c.l.bf16 %v947
  %v1012 = vunpack.c.l.bf16 %v948
  %v1013 = vunpack.c.l.bf16 %v949
  %v1014 = vunpack.c.l.bf16 %v950
  %v1015 = vunpack.c.l.bf16 %v951
  %v1016 = vadd.f32 %v824, %v952
  %v1017 = vadd.f32 %v825, %v953
  %v1018 = vadd.f32 %v826, %v954
  %v1019 = vadd.f32 %v827, %v955
  %v1020 = vadd.f32 %v828, %v956
  %v1021 = vadd.f32 %v829, %v957
  %v1022 = vadd.f32 %v830, %v958
  %v1023 = vadd.f32 %v831, %v959
  %v1024 = vadd.f32 %v832, %v960
  %v1025 = vadd.f32 %v833, %v961
  %v1026 = vadd.f32 %v834, %v962
  %v1027 = vadd.f32 %v835, %v963
  %v1028 = vadd.f32 %v836, %v964
  %v1029 = vadd.f32 %v837, %v965
  %v1030 = vadd.f32 %v838, %v966
  %v1031 = vadd.f32 %v839, %v967
  %v1032 = vadd.f32 %v840, %v968
  %v1033 = vadd.f32 %v841, %v969
  %v1034 = vadd.f32 %v842, %v970
  %v1035 = vadd.f32 %v843, %v971
  %v1036 = vadd.f32 %v844, %v972
  %v1037 = vadd.f32 %v845, %v973
  %v1038 = vadd.f32 %v846, %v974
  %v1039 = vadd.f32 %v847, %v975
  %v1040 = vadd.f32 %v848, %v976
  %v1041 = vadd.f32 %v849, %v977
  %v1042 = vadd.f32 %v850, %v978
  %v1043 = vadd.f32 %v851, %v979
  %v1044 = vadd.f32 %v852, %v980
  %v1045 = vadd.f32 %v853, %v981
  %v1046 = vadd.f32 %v854, %v982
  %v1047 = vadd.f32 %v855, %v983
  %v1048 = vadd.f32 %v856, %v984
  %v1049 = vadd.f32 %v857, %v985
  %v1050 = vadd.f32 %v858, %v986
  %v1051 = vadd.f32 %v859, %v987
  %v1052 = vadd.f32 %v860, %v988
  %v1053 = vadd.f32 %v861, %v989
  %v1054 = vadd.f32 %v862, %v990
  %v1055 = vadd.f32 %v863, %v991
  %v1056 = vadd.f32 %v864, %v992
  %v1057 = vadd.f32 %v865, %v993
  %v1058 = vadd.f32 %v866, %v994
  %v1059 = vadd.f32 %v867, %v995
  %v1060 = vadd.f32 %v868, %v996
  %v1061 = vadd.f32 %v869, %v997
  %v1062 = vadd.f32 %v870, %v998
  %v1063 = vadd.f32 %v871, %v999
  %v1064 = vadd.f32 %v872, %v1000
  %v1065 = vadd.f32 %v873, %v1001
  %v1066 = vadd.f32 %v874, %v1002
  %v1067 = vadd.f32 %v875, %v1003
  %v1068 = vadd.f32 %v876, %v1004
  %v1069 = vadd.f32 %v877, %v1005
  %v1070 = vadd.f32 %v878, %v1006
  %v1071 = vadd.f32 %v879, %v1007
  %v1072 = vadd.f32 %v880, %v1008
  %v1073 = vadd.f32 %v881, %v1009
  %v1074 = vadd.f32 %v882, %v1010
  %v1075 = vadd.f32 %v883, %v1011
  %v1076 = vadd.f32 %v884, %v1012
  %v1077 = vadd.f32 %v885, %v1013
  %v1078 = vadd.f32 %v886, %v1014
  %v1079 = vadd.f32 %v887, %v1015
  %v1080 = vmax.f32 %v1016, 0.0
  %v1081 = vmax.f32 %v1017, 0.0
  %v1082 = vmax.f32 %v1018, 0.0
  %v1083 = vmax.f32 %v1019, 0.0
  %v1084 = vmax.f32 %v1020, 0.0
  %v1085 = vmax.f32 %v1021, 0.0
  %v1086 = vmax.f32 %v1022, 0.0
  %v1087 = vmax.f32 %v1023, 0.0
  %v1088 = vmax.f32 %v1024, 0.0
  %v1089 = vmax.f32 %v1025, 0.0
  %v1090 = vmax.f32 %v1026, 0.0
  %v1091 = vmax.f32 %v1027, 0.0
  %v1092 = vmax.f32 %v1028, 0.0
  %v1093 = vmax.f32 %v1029, 0.0
  %v1094 = vmax.f32 %v1030, 0.0
  %v1095 = vmax.f32 %v1031, 0.0
  %v1096 = vmax.f32 %v1032, 0.0
  %v1097 = vmax.f32 %v1033, 0.0
  %v1098 = vmax.f32 %v1034, 0.0
  %v1099 = vmax.f32 %v1035, 0.0
  %v1100 = vmax.f32 %v1036, 0.0
  %v1101 = vmax.f32 %v1037, 0.0
  %v1102 = vmax.f32 %v1038, 0.0
  %v1103 = vmax.f32 %v1039, 0.0
  %v1104 = vmax.f32 %v1040, 0.0
  %v1105 = vmax.f32 %v1041, 0.0
  %v1106 = vmax.f32 %v1042, 0.0
  %v1107 = vmax.f32 %v1043, 0.0
  %v1108 = vmax.f32 %v1044, 0.0
  %v1109 = vmax.f32 %v1045, 0.0
  %v1110 = vmax.f32 %v1046, 0.0
  %v1111 = vmax.f32 %v1047, 0.0
  %v1112 = vmax.f32 %v1048, 0.0
  %v1113 = vmax.f32 %v1049, 0.0
  %v1114 = vmax.f32 %v1050, 0.0
  %v1115 = vmax.f32 %v1051, 0.0
  %v1116 = vmax.f32 %v1052, 0.0
  %v1117 = vmax.f32 %v1053, 0.0
  %v1118 = vmax.f32 %v1054, 0.0
  %v1119 = vmax.f32 %v1055, 0.0
  %v1120 = vmax.f32 %v1056, 0.0
  %v1121 = vmax.f32 %v1057, 0.0
  %v1122 = vmax.f32 %v1058, 0.0
  %v1123 = vmax.f32 %v1059, 0.0
  %v1124 = vmax.f32 %v1060, 0.0
  %v1125 = vmax.f32 %v1061, 0.0
  %v1126 = vmax.f32 %v1062, 0.0
  %v1127 = vmax.f32 %v1063, 0.0
  %v1128 = vmax.f32 %v1064, 0.0
  %v1129 = vmax.f32 %v1065, 0.0
  %v1130 = vmax.f32 %v1066, 0.0
  %v1131 = vmax.f32 %v1067, 0.0
  %v1132 = vmax.f32 %v1068, 0.0
  %v1133 = vmax.f32 %v1069, 0.0
  %v1134 = vmax.f32 %v1070, 0.0
  %v1135 = vmax.f32 %v1071, 0.0
  %v1136 = vmax.f32 %v1072, 0.0
  %v1137 = vmax.f32 %v1073, 0.0
  %v1138 = vmax.f32 %v1074, 0.0
  %v1139 = vmax.f32 %v1075, 0.0
  %v1140 = vmax.f32 %v1076, 0.0
  %v1141 = vmax.f32 %v1077, 0.0
  %v1142 = vmax.f32 %v1078, 0.0
  %v1143 = vmax.f32 %v1079, 0.0
  %1144 = vst [vmem:[%s7] sm:$0xff] %v1080
  %1145 = vst [vmem:[%s7 + $0x8] sm:$0xff] %v1081
  %1146 = vst [vmem:[%s7 + $0x10] sm:$0xff] %v1082
  %1147 = vst [vmem:[%s7 + $0x18] sm:$0xff] %v1083
  %1148 = vst [vmem:[%s7 + $0x20] sm:$0xff] %v1084
  %1149 = vst [vmem:[%s7 + $0x28] sm:$0xff] %v1085
  %1150 = vst [vmem:[%s7 + $0x30] sm:$0xff] %v1086
  %1151 = vst [vmem:[%s7 + $0x38] sm:$0xff] %v1087
  %1152 = vst [vmem:[%s7 + $0x40] sm:$0xff] %v1088
  %1153 = vst [vmem:[%s7 + $0x48] sm:$0xff] %v1089
  %1154 = vst [vmem:[%s7 + $0x50] sm:$0xff] %v1090
  %1155 = vst [vmem:[%s7 + $0x58] sm:$0xff] %v1091
  %1156 = vst [vmem:[%s7 + $0x60] sm:$0xff] %v1092
  %1157 = vst [vmem:[%s7 + $0x68] sm:$0xff] %v1093
  %1158 = vst [vmem:[%s7 + $0x70] sm:$0xff] %v1094
  %1159 = vst [vmem:[%s7 + $0x78] sm:$0xff] %v1095
  %1160 = vst [vmem:[%s7 + $0x80] sm:$0xff] %v1096
  %1161 = vst [vmem:[%s7 + $0x88] sm:$0xff] %v1097
  %1162 = vst [vmem:[%s7 + $0x90] sm:$0xff] %v1098
  %1163 = vst [vmem:[%s7 + $0x98] sm:$0xff] %v1099
  %1164 = vst [vmem:[%s7 + $0xa0] sm:$0xff] %v1100
  %1165 = vst [vmem:[%s7 + $0xa8] sm:$0xff] %v1101
  %1166 = vst [vmem:[%s7 + $0xb0] sm:$0xff] %v1102
  %1167 = vst [vmem:[%s7 + $0xb8] sm:$0xff] %v1103
  %1168 = vst [vmem:[%s7 + $0xc0] sm:$0xff] %v1104
  %1169 = vst [vmem:[%s7 + $0xc8] sm:$0xff] %v1105
  %1170 = vst [vmem:[%s7 + $0xd0] sm:$0xff] %v1106
  %1171 = vst [vmem:[%s7 + $0xd8] sm:$0xff] %v1107
  %1172 = vst [vmem:[%s7 + $0xe0] sm:$0xff] %v1108
  %1173 = vst [vmem:[%s7 + $0xe8] sm:$0xff] %v1109
  %1174 = vst [vmem:[%s7 + $0xf0] sm:$0xff] %v1110
  %1175 = vst [vmem:[%s7 + $0xf8] sm:$0xff] %v1111
  %1176 = vst [vmem:[%s7 + $0x100] sm:$0xff] %v1112
  %1177 = vst [vmem:[%s7 + $0x108] sm:$0xff] %v1113
  %1178 = vst [vmem:[%s7 + $0x110] sm:$0xff] %v1114
  %1179 = vst [vmem:[%s7 + $0x118] sm:$0xff] %v1115
  %1180 = vst [vmem:[%s7 + $0x120] sm:$0xff] %v1116
  %1181 = vst [vmem:[%s7 + $0x128] sm:$0xff] %v1117
  %1182 = vst [vmem:[%s7 + $0x130] sm:$0xff] %v1118
  %1183 = vst [vmem:[%s7 + $0x138] sm:$0xff] %v1119
  %1184 = vst [vmem:[%s7 + $0x140] sm:$0xff] %v1120
  %1185 = vst [vmem:[%s7 + $0x148] sm:$0xff] %v1121
  %1186 = vst [vmem:[%s7 + $0x150] sm:$0xff] %v1122
  %1187 = vst [vmem:[%s7 + $0x158] sm:$0xff] %v1123
  %1188 = vst [vmem:[%s7 + $0x160] sm:$0xff] %v1124
  %1189 = vst [vmem:[%s7 + $0x168] sm:$0xff] %v1125
  %1190 = vst [vmem:[%s7 + $0x170] sm:$0xff] %v1126
  %1191 = vst [vmem:[%s7 + $0x178] sm:$0xff] %v1127
  %1192 = vst [vmem:[%s7 + $0x180] sm:$0xff] %v1128
  %1193 = vst [vmem:[%s7 + $0x188] sm:$0xff] %v1129
  %1194 = vst [vmem:[%s7 + $0x190] sm:$0xff] %v1130
  %1195 = vst [vmem:[%s7 + $0x198] sm:$0xff] %v1131
  %1196 = vst [vmem:[%s7 + $0x1a0] sm:$0xff] %v1132
  %1197 = vst [vmem:[%s7 + $0x1a8] sm:$0xff] %v1133
  %1198 = vst [vmem:[%s7 + $0x1b0] sm:$0xff] %v1134
  %1199 = vst [vmem:[%s7 + $0x1b8] sm:$0xff] %v1135
  %1200 = vst [vmem:[%s7 + $0x1c0] sm:$0xff] %v1136
  %1201 = vst [vmem:[%s7 + $0x1c8] sm:$0xff] %v1137
  %1202 = vst [vmem:[%s7 + $0x1d0] sm:$0xff] %v1138
  %1203 = vst [vmem:[%s7 + $0x1d8] sm:$0xff] %v1139
  %1204 = vst [vmem:[%s7 + $0x1e0] sm:$0xff] %v1140
  %1205 = vst [vmem:[%s7 + $0x1e8] sm:$0xff] %v1141
  %1206 = vst [vmem:[%s7 + $0x1f0] sm:$0xff] %v1142
  %1207 = vst [vmem:[%s7 + $0x1f8] sm:$0xff] %v1143
  // Predicated region
  $region30: #{bottleneck_forward.7} parent=0 // pred_check
    _
  $region31: #{bottleneck_forward.7} parent=0 // pred_check_branch
    %1209 = sbr.rel (0) target = $region33
  $region32: #{bottleneck_forward.7} parent=0 // pred_region
    _
  $region33: #{bottleneck_forward.7} parent=0 // pred_fallthru
    _
  // Predicated region
  $region34: #{bottleneck_forward.7} parent=0 // pred_check
    _
  $region35: #{bottleneck_forward.7} parent=0 // pred_check_branch
    %1211 = sbr.rel (0) target = $region37
  $region36: #{bottleneck_forward.7} parent=0 // pred_region
    _
  $region37: #{bottleneck_forward.7} parent=0 // pred_fallthru
    _

// kernel: bottleneck_forward.6
$region0: #{bottleneck_forward.6}
  #allocation0 [shape = 'u32[]', space=smem, size = 0x4, offset = 0x4, fixed_abs, tag = 'smem constant byte address 0x4 - core index']
  #allocation1 [shape = 'u32[144,128]{1,0:T(1,128)}', space=vmem, size = 0x12000, scoped, tag = 'internal scratch']
  %s0 = inlined_call_operand.vmem [shape: bf16[512,128], index: 0, kind: input, shape index: {}]
  %s1 = inlined_call_operand.vmem [shape: f32[1,128], index: 1, kind: input, shape index: {}]
  %s2 = inlined_call_operand.vmem [shape: f32[1,128], index: 2, kind: input, shape index: {}]
  %s3 = inlined_call_operand.vmem [shape: bf16[128,128], index: 3, kind: input, shape index: {}]
  %s4 = inlined_call_operand.vmem [shape: f32[1,128], index: 4, kind: output, shape index: {0}]
  %s5 = inlined_call_operand.vmem [shape: f32[1,128], index: 5, kind: output, shape index: {1}]
  %6 = xla_tuple %s4, %s5
  %s7 = sld [smem:[#allocation0]]
  $region38: #{bottleneck_forward.6} parent=0
    _
  %s9 = ssub.s32 1, %s7
  %s10 = scalar_select 0, %s9, %s7
  // Predicated region
  $region2: #{bottleneck_forward.6} parent=0 // pred_check
    _
  $region3: #{bottleneck_forward.6} parent=0 // pred_check_branch
    %12 = sbr.rel (0) target = $region5
  $region4: #{bottleneck_forward.6} parent=0 // pred_region
    _
  $region5: #{bottleneck_forward.6} parent=0 // pred_fallthru
    _
  // Predicated region
  $region6: #{bottleneck_forward.6} parent=0 // pred_check
    _
  $region7: #{bottleneck_forward.6} parent=0 // pred_check_branch
    %14 = sbr.rel (0) target = $region9
  $region8: #{bottleneck_forward.6} parent=0 // pred_region
    _
  $region9: #{bottleneck_forward.6} parent=0 // pred_fallthru
    _
  // Predicated region
  $region10: #{bottleneck_forward.6} parent=0 // pred_check
    _
  $region11: #{bottleneck_forward.6} parent=0 // pred_check_branch
    %16 = sbr.rel (0) target = $region13
  $region12: #{bottleneck_forward.6} parent=0 // pred_region
    _
  $region13: #{bottleneck_forward.6} parent=0 // pred_fallthru
    _
  // Predicated region
  $region14: #{bottleneck_forward.6} parent=0 // pred_check
    _
  $region15: #{bottleneck_forward.6} parent=0 // pred_check_branch
    %18 = sbr.rel (0) target = $region17
  $region16: #{bottleneck_forward.6} parent=0 // pred_region
    _
  $region17: #{bottleneck_forward.6} parent=0 // pred_fallthru
    _
  %v20 = vld [vmem:[%s0] sm:$0xf]
  %v21 = vld [vmem:[%s0 + $0x4] sm:$0xf]
  %v22 = vld [vmem:[%s0 + $0x8] sm:$0xf]
  %v23 = vld [vmem:[%s0 + $0xc] sm:$0xf]
  %v24 = vld [vmem:[%s0 + $0x10] sm:$0xf]
  %v25 = vld [vmem:[%s0 + $0x14] sm:$0xf]
  %v26 = vld [vmem:[%s0 + $0x18] sm:$0xf]
  %v27 = vld [vmem:[%s0 + $0x1c] sm:$0xf]
  %v28 = vld [vmem:[%s0 + $0x20] sm:$0xf]
  %v29 = vld [vmem:[%s0 + $0x24] sm:$0xf]
  %v30 = vld [vmem:[%s0 + $0x28] sm:$0xf]
  %v31 = vld [vmem:[%s0 + $0x2c] sm:$0xf]
  %v32 = vld [vmem:[%s0 + $0x30] sm:$0xf]
  %v33 = vld [vmem:[%s0 + $0x34] sm:$0xf]
  %v34 = vld [vmem:[%s0 + $0x38] sm:$0xf]
  %v35 = vld [vmem:[%s0 + $0x3c] sm:$0xf]
  %v36 = vld [vmem:[%s0 + $0x40] sm:$0xf]
  %v37 = vld [vmem:[%s0 + $0x44] sm:$0xf]
  %v38 = vld [vmem:[%s0 + $0x48] sm:$0xf]
  %v39 = vld [vmem:[%s0 + $0x4c] sm:$0xf]
  %v40 = vld [vmem:[%s0 + $0x50] sm:$0xf]
  %v41 = vld [vmem:[%s0 + $0x54] sm:$0xf]
  %v42 = vld [vmem:[%s0 + $0x58] sm:$0xf]
  %v43 = vld [vmem:[%s0 + $0x5c] sm:$0xf]
  %v44 = vld [vmem:[%s0 + $0x60] sm:$0xf]
  %v45 = vld [vmem:[%s0 + $0x64] sm:$0xf]
  %v46 = vld [vmem:[%s0 + $0x68] sm:$0xf]
  %v47 = vld [vmem:[%s0 + $0x6c] sm:$0xf]
  %v48 = vld [vmem:[%s0 + $0x70] sm:$0xf]
  %v49 = vld [vmem:[%s0 + $0x74] sm:$0xf]
  %v50 = vld [vmem:[%s0 + $0x78] sm:$0xf]
  %v51 = vld [vmem:[%s0 + $0x7c] sm:$0xf]
  %v52 = vld [vmem:[%s0 + $0x80] sm:$0xf]
  %v53 = vld [vmem:[%s0 + $0x84] sm:$0xf]
  %v54 = vld [vmem:[%s0 + $0x88] sm:$0xf]
  %v55 = vld [vmem:[%s0 + $0x8c] sm:$0xf]
  %v56 = vld [vmem:[%s0 + $0x90] sm:$0xf]
  %v57 = vld [vmem:[%s0 + $0x94] sm:$0xf]
  %v58 = vld [vmem:[%s0 + $0x98] sm:$0xf]
  %v59 = vld [vmem:[%s0 + $0x9c] sm:$0xf]
  %v60 = vld [vmem:[%s0 + $0xa0] sm:$0xf]
  %v61 = vld [vmem:[%s0 + $0xa4] sm:$0xf]
  %v62 = vld [vmem:[%s0 + $0xa8] sm:$0xf]
  %v63 = vld [vmem:[%s0 + $0xac] sm:$0xf]
  %v64 = vld [vmem:[%s0 + $0xb0] sm:$0xf]
  %v65 = vld [vmem:[%s0 + $0xb4] sm:$0xf]
  %v66 = vld [vmem:[%s0 + $0xb8] sm:$0xf]
  %v67 = vld [vmem:[%s0 + $0xbc] sm:$0xf]
  %v68 = vld [vmem:[%s0 + $0xc0] sm:$0xf]
  %v69 = vld [vmem:[%s0 + $0xc4] sm:$0xf]
  %v70 = vld [vmem:[%s0 + $0xc8] sm:$0xf]
  %v71 = vld [vmem:[%s0 + $0xcc] sm:$0xf]
  %v72 = vld [vmem:[%s0 + $0xd0] sm:$0xf]
  %v73 = vld [vmem:[%s0 + $0xd4] sm:$0xf]
  %v74 = vld [vmem:[%s0 + $0xd8] sm:$0xf]
  %v75 = vld [vmem:[%s0 + $0xdc] sm:$0xf]
  %v76 = vld [vmem:[%s0 + $0xe0] sm:$0xf]
  %v77 = vld [vmem:[%s0 + $0xe4] sm:$0xf]
  %v78 = vld [vmem:[%s0 + $0xe8] sm:$0xf]
  %v79 = vld [vmem:[%s0 + $0xec] sm:$0xf]
  %v80 = vld [vmem:[%s0 + $0xf0] sm:$0xf]
  %v81 = vld [vmem:[%s0 + $0xf4] sm:$0xf]
  %v82 = vld [vmem:[%s0 + $0xf8] sm:$0xf]
  %v83 = vld [vmem:[%s0 + $0xfc] sm:$0xf]
  %v84 = vld [vmem:[%s1] sm:$0x1]
  %v85 = vunpack.c.l.bf16 %v20
  %v86 = vunpack.c.l.bf16 %v21
  %v87 = vunpack.c.l.bf16 %v22
  %v88 = vunpack.c.l.bf16 %v23
  %v89 = vunpack.c.l.bf16 %v24
  %v90 = vunpack.c.l.bf16 %v25
  %v91 = vunpack.c.l.bf16 %v26
  %v92 = vunpack.c.l.bf16 %v27
  %v93 = vunpack.c.l.bf16 %v28
  %v94 = vunpack.c.l.bf16 %v29
  %v95 = vunpack.c.l.bf16 %v30
  %v96 = vunpack.c.l.bf16 %v31
  %v97 = vunpack.c.l.bf16 %v32
  %v98 = vunpack.c.l.bf16 %v33
  %v99 = vunpack.c.l.bf16 %v34
  %v100 = vunpack.c.l.bf16 %v35
  %v101 = vunpack.c.l.bf16 %v36
  %v102 = vunpack.c.l.bf16 %v37
  %v103 = vunpack.c.l.bf16 %v38
  %v104 = vunpack.c.l.bf16 %v39
  %v105 = vunpack.c.l.bf16 %v40
  %v106 = vunpack.c.l.bf16 %v41
  %v107 = vunpack.c.l.bf16 %v42
  %v108 = vunpack.c.l.bf16 %v43
  %v109 = vunpack.c.l.bf16 %v44
  %v110 = vunpack.c.l.bf16 %v45
  %v111 = vunpack.c.l.bf16 %v46
  %v112 = vunpack.c.l.bf16 %v47
  %v113 = vunpack.c.l.bf16 %v48
  %v114 = vunpack.c.l.bf16 %v49
  %v115 = vunpack.c.l.bf16 %v50
  %v116 = vunpack.c.l.bf16 %v51
  %v117 = vunpack.c.l.bf16 %v52
  %v118 = vunpack.c.l.bf16 %v53
  %v119 = vunpack.c.l.bf16 %v54
  %v120 = vunpack.c.l.bf16 %v55
  %v121 = vunpack.c.l.bf16 %v56
  %v122 = vunpack.c.l.bf16 %v57
  %v123 = vunpack.c.l.bf16 %v58
  %v124 = vunpack.c.l.bf16 %v59
  %v125 = vunpack.c.l.bf16 %v60
  %v126 = vunpack.c.l.bf16 %v61
  %v127 = vunpack.c.l.bf16 %v62
  %v128 = vunpack.c.l.bf16 %v63
  %v129 = vunpack.c.l.bf16 %v64
  %v130 = vunpack.c.l.bf16 %v65
  %v131 = vunpack.c.l.bf16 %v66
  %v132 = vunpack.c.l.bf16 %v67
  %v133 = vunpack.c.l.bf16 %v68
  %v134 = vunpack.c.l.bf16 %v69
  %v135 = vunpack.c.l.bf16 %v70
  %v136 = vunpack.c.l.bf16 %v71
  %v137 = vunpack.c.l.bf16 %v72
  %v138 = vunpack.c.l.bf16 %v73
  %v139 = vunpack.c.l.bf16 %v74
  %v140 = vunpack.c.l.bf16 %v75
  %v141 = vunpack.c.l.bf16 %v76
  %v142 = vunpack.c.l.bf16 %v77
  %v143 = vunpack.c.l.bf16 %v78
  %v144 = vunpack.c.l.bf16 %v79
  %v145 = vunpack.c.l.bf16 %v80
  %v146 = vunpack.c.l.bf16 %v81
  %v147 = vunpack.c.l.bf16 %v82
  %v148 = vunpack.c.l.bf16 %v83
  %v150 = vlaneseq
  %v151 = vshrl.u32 %v150, 7
  %v152 = vsub.s32 0, %v151
  %v153 = vrot.slane %v84, %v152
  %v155 = vmul.f32 %v85, %v153
  %v156 = vmul.f32 %v86, %v153
  %v157 = vmul.f32 %v87, %v153
  %v158 = vmul.f32 %v88, %v153
  %v159 = vmul.f32 %v89, %v153
  %v160 = vmul.f32 %v90, %v153
  %v161 = vmul.f32 %v91, %v153
  %v162 = vmul.f32 %v92, %v153
  %v163 = vmul.f32 %v93, %v153
  %v164 = vmul.f32 %v94, %v153
  %v165 = vmul.f32 %v95, %v153
  %v166 = vmul.f32 %v96, %v153
  %v167 = vmul.f32 %v97, %v153
  %v168 = vmul.f32 %v98, %v153
  %v169 = vmul.f32 %v99, %v153
  %v170 = vmul.f32 %v100, %v153
  %v171 = vmul.f32 %v101, %v153
  %v172 = vmul.f32 %v102, %v153
  %v173 = vmul.f32 %v103, %v153
  %v174 = vmul.f32 %v104, %v153
  %v175 = vmul.f32 %v105, %v153
  %v176 = vmul.f32 %v106, %v153
  %v177 = vmul.f32 %v107, %v153
  %v178 = vmul.f32 %v108, %v153
  %v179 = vmul.f32 %v109, %v153
  %v180 = vmul.f32 %v110, %v153
  %v181 = vmul.f32 %v111, %v153
  %v182 = vmul.f32 %v112, %v153
  %v183 = vmul.f32 %v113, %v153
  %v184 = vmul.f32 %v114, %v153
  %v185 = vmul.f32 %v115, %v153
  %v186 = vmul.f32 %v116, %v153
  %v187 = vmul.f32 %v117, %v153
  %v188 = vmul.f32 %v118, %v153
  %v189 = vmul.f32 %v119, %v153
  %v190 = vmul.f32 %v120, %v153
  %v191 = vmul.f32 %v121, %v153
  %v192 = vmul.f32 %v122, %v153
  %v193 = vmul.f32 %v123, %v153
  %v194 = vmul.f32 %v124, %v153
  %v195 = vmul.f32 %v125, %v153
  %v196 = vmul.f32 %v126, %v153
  %v197 = vmul.f32 %v127, %v153
  %v198 = vmul.f32 %v128, %v153
  %v199 = vmul.f32 %v129, %v153
  %v200 = vmul.f32 %v130, %v153
  %v201 = vmul.f32 %v131, %v153
  %v202 = vmul.f32 %v132, %v153
  %v203 = vmul.f32 %v133, %v153
  %v204 = vmul.f32 %v134, %v153
  %v205 = vmul.f32 %v135, %v153
  %v206 = vmul.f32 %v136, %v153
  %v207 = vmul.f32 %v137, %v153
  %v208 = vmul.f32 %v138, %v153
  %v209 = vmul.f32 %v139, %v153
  %v210 = vmul.f32 %v140, %v153
  %v211 = vmul.f32 %v141, %v153
  %v212 = vmul.f32 %v142, %v153
  %v213 = vmul.f32 %v143, %v153
  %v214 = vmul.f32 %v144, %v153
  %v215 = vmul.f32 %v145, %v153
  %v216 = vmul.f32 %v146, %v153
  %v217 = vmul.f32 %v147, %v153
  %v218 = vmul.f32 %v148, %v153
  %v219 = vld [vmem:[%s2] sm:$0x1]
  %v221 = vlaneseq
  %v222 = vshrl.u32 %v221, 7
  %v223 = vsub.s32 0, %v222
  %v224 = vrot.slane %v219, %v223
  %v226 = vadd.f32 %v155, %v224
  %v227 = vadd.f32 %v156, %v224
  %v228 = vadd.f32 %v157, %v224
  %v229 = vadd.f32 %v158, %v224
  %v230 = vadd.f32 %v159, %v224
  %v231 = vadd.f32 %v160, %v224
  %v232 = vadd.f32 %v161, %v224
  %v233 = vadd.f32 %v162, %v224
  %v234 = vadd.f32 %v163, %v224
  %v235 = vadd.f32 %v164, %v224
  %v236 = vadd.f32 %v165, %v224
  %v237 = vadd.f32 %v166, %v224
  %v238 = vadd.f32 %v167, %v224
  %v239 = vadd.f32 %v168, %v224
  %v240 = vadd.f32 %v169, %v224
  %v241 = vadd.f32 %v170, %v224
  %v242 = vadd.f32 %v171, %v224
  %v243 = vadd.f32 %v172, %v224
  %v244 = vadd.f32 %v173, %v224
  %v245 = vadd.f32 %v174, %v224
  %v246 = vadd.f32 %v175, %v224
  %v247 = vadd.f32 %v176, %v224
  %v248 = vadd.f32 %v177, %v224
  %v249 = vadd.f32 %v178, %v224
  %v250 = vadd.f32 %v179, %v224
  %v251 = vadd.f32 %v180, %v224
  %v252 = vadd.f32 %v181, %v224
  %v253 = vadd.f32 %v182, %v224
  %v254 = vadd.f32 %v183, %v224
  %v255 = vadd.f32 %v184, %v224
  %v256 = vadd.f32 %v185, %v224
  %v257 = vadd.f32 %v186, %v224
  %v258 = vadd.f32 %v187, %v224
  %v259 = vadd.f32 %v188, %v224
  %v260 = vadd.f32 %v189, %v224
  %v261 = vadd.f32 %v190, %v224
  %v262 = vadd.f32 %v191, %v224
  %v263 = vadd.f32 %v192, %v224
  %v264 = vadd.f32 %v193, %v224
  %v265 = vadd.f32 %v194, %v224
  %v266 = vadd.f32 %v195, %v224
  %v267 = vadd.f32 %v196, %v224
  %v268 = vadd.f32 %v197, %v224
  %v269 = vadd.f32 %v198, %v224
  %v270 = vadd.f32 %v199, %v224
  %v271 = vadd.f32 %v200, %v224
  %v272 = vadd.f32 %v201, %v224
  %v273 = vadd.f32 %v202, %v224
  %v274 = vadd.f32 %v203, %v224
  %v275 = vadd.f32 %v204, %v224
  %v276 = vadd.f32 %v205, %v224
  %v277 = vadd.f32 %v206, %v224
  %v278 = vadd.f32 %v207, %v224
  %v279 = vadd.f32 %v208, %v224
  %v280 = vadd.f32 %v209, %v224
  %v281 = vadd.f32 %v210, %v224
  %v282 = vadd.f32 %v211, %v224
  %v283 = vadd.f32 %v212, %v224
  %v284 = vadd.f32 %v213, %v224
  %v285 = vadd.f32 %v214, %v224
  %v286 = vadd.f32 %v215, %v224
  %v287 = vadd.f32 %v216, %v224
  %v288 = vadd.f32 %v217, %v224
  %v289 = vadd.f32 %v218, %v224
  %v290 = vmax.f32 %v226, 0.0
  %v291 = vmax.f32 %v227, 0.0
  %v292 = vmax.f32 %v228, 0.0
  %v293 = vmax.f32 %v229, 0.0
  %v294 = vmax.f32 %v230, 0.0
  %v295 = vmax.f32 %v231, 0.0
  %v296 = vmax.f32 %v232, 0.0
  %v297 = vmax.f32 %v233, 0.0
  %v298 = vmax.f32 %v234, 0.0
  %v299 = vmax.f32 %v235, 0.0
  %v300 = vmax.f32 %v236, 0.0
  %v301 = vmax.f32 %v237, 0.0
  %v302 = vmax.f32 %v238, 0.0
  %v303 = vmax.f32 %v239, 0.0
  %v304 = vmax.f32 %v240, 0.0
  %v305 = vmax.f32 %v241, 0.0
  %v306 = vmax.f32 %v242, 0.0
  %v307 = vmax.f32 %v243, 0.0
  %v308 = vmax.f32 %v244, 0.0
  %v309 = vmax.f32 %v245, 0.0
  %v310 = vmax.f32 %v246, 0.0
  %v311 = vmax.f32 %v247, 0.0
  %v312 = vmax.f32 %v248, 0.0
  %v313 = vmax.f32 %v249, 0.0
  %v314 = vmax.f32 %v250, 0.0
  %v315 = vmax.f32 %v251, 0.0
  %v316 = vmax.f32 %v252, 0.0
  %v317 = vmax.f32 %v253, 0.0
  %v318 = vmax.f32 %v254, 0.0
  %v319 = vmax.f32 %v255, 0.0
  %v320 = vmax.f32 %v256, 0.0
  %v321 = vmax.f32 %v257, 0.0
  %v322 = vmax.f32 %v258, 0.0
  %v323 = vmax.f32 %v259, 0.0
  %v324 = vmax.f32 %v260, 0.0
  %v325 = vmax.f32 %v261, 0.0
  %v326 = vmax.f32 %v262, 0.0
  %v327 = vmax.f32 %v263, 0.0
  %v328 = vmax.f32 %v264, 0.0
  %v329 = vmax.f32 %v265, 0.0
  %v330 = vmax.f32 %v266, 0.0
  %v331 = vmax.f32 %v267, 0.0
  %v332 = vmax.f32 %v268, 0.0
  %v333 = vmax.f32 %v269, 0.0
  %v334 = vmax.f32 %v270, 0.0
  %v335 = vmax.f32 %v271, 0.0
  %v336 = vmax.f32 %v272, 0.0
  %v337 = vmax.f32 %v273, 0.0
  %v338 = vmax.f32 %v274, 0.0
  %v339 = vmax.f32 %v275, 0.0
  %v340 = vmax.f32 %v276, 0.0
  %v341 = vmax.f32 %v277, 0.0
  %v342 = vmax.f32 %v278, 0.0
  %v343 = vmax.f32 %v279, 0.0
  %v344 = vmax.f32 %v280, 0.0
  %v345 = vmax.f32 %v281, 0.0
  %v346 = vmax.f32 %v282, 0.0
  %v347 = vmax.f32 %v283, 0.0
  %v348 = vmax.f32 %v284, 0.0
  %v349 = vmax.f32 %v285, 0.0
  %v350 = vmax.f32 %v286, 0.0
  %v351 = vmax.f32 %v287, 0.0
  %v352 = vmax.f32 %v288, 0.0
  %v353 = vmax.f32 %v289, 0.0
  %v354 = vpack.c.bf16 %v291, %v290
  %v355 = vpack.c.bf16 %v293, %v292
  %v356 = vpack.c.bf16 %v295, %v294
  %v357 = vpack.c.bf16 %v297, %v296
  %v358 = vpack.c.bf16 %v299, %v298
  %v359 = vpack.c.bf16 %v301, %v300
  %v360 = vpack.c.bf16 %v303, %v302
  %v361 = vpack.c.bf16 %v305, %v304
  %v362 = vpack.c.bf16 %v307, %v306
  %v363 = vpack.c.bf16 %v309, %v308
  %v364 = vpack.c.bf16 %v311, %v310
  %v365 = vpack.c.bf16 %v313, %v312
  %v366 = vpack.c.bf16 %v315, %v314
  %v367 = vpack.c.bf16 %v317, %v316
  %v368 = vpack.c.bf16 %v319, %v318
  %v369 = vpack.c.bf16 %v321, %v320
  %v370 = vpack.c.bf16 %v323, %v322
  %v371 = vpack.c.bf16 %v325, %v324
  %v372 = vpack.c.bf16 %v327, %v326
  %v373 = vpack.c.bf16 %v329, %v328
  %v374 = vpack.c.bf16 %v331, %v330
  %v375 = vpack.c.bf16 %v333, %v332
  %v376 = vpack.c.bf16 %v335, %v334
  %v377 = vpack.c.bf16 %v337, %v336
  %v378 = vpack.c.bf16 %v339, %v338
  %v379 = vpack.c.bf16 %v341, %v340
  %v380 = vpack.c.bf16 %v343, %v342
  %v381 = vpack.c.bf16 %v345, %v344
  %v382 = vpack.c.bf16 %v347, %v346
  %v383 = vpack.c.bf16 %v349, %v348
  %v384 = vpack.c.bf16 %v351, %v350
  %v385 = vpack.c.bf16 %v353, %v352
  %v386 = vld [vmem:[%s3] sm:$0xf]
  %v387 = vld [vmem:[%s3 + $0x4] sm:$0xf]
  %v388 = vld [vmem:[%s3 + $0x8] sm:$0xf]
  %v389 = vld [vmem:[%s3 + $0xc] sm:$0xf]
  %v390 = vld [vmem:[%s3 + $0x10] sm:$0xf]
  %v391 = vld [vmem:[%s3 + $0x14] sm:$0xf]
  %v392 = vld [vmem:[%s3 + $0x18] sm:$0xf]
  %v393 = vld [vmem:[%s3 + $0x1c] sm:$0xf]
  %v394 = vld [vmem:[%s3 + $0x20] sm:$0xf]
  %v395 = vld [vmem:[%s3 + $0x24] sm:$0xf]
  %v396 = vld [vmem:[%s3 + $0x28] sm:$0xf]
  %v397 = vld [vmem:[%s3 + $0x2c] sm:$0xf]
  %v398 = vld [vmem:[%s3 + $0x30] sm:$0xf]
  %v399 = vld [vmem:[%s3 + $0x34] sm:$0xf]
  %v400 = vld [vmem:[%s3 + $0x38] sm:$0xf]
  %v401 = vld [vmem:[%s3 + $0x3c] sm:$0xf]
  %v418 = vunpack.c.l.b16 %v386
  %v419 = vunpack.c.l.b16 %v387
  %v420 = vunpack.c.l.b16 %v388
  %v421 = vunpack.c.l.b16 %v389
  %v422 = vunpack.c.l.b16 %v390
  %v423 = vunpack.c.l.b16 %v391
  %v424 = vunpack.c.l.b16 %v392
  %v425 = vunpack.c.l.b16 %v393
  %v426 = vunpack.c.l.b16 %v394
  %v427 = vunpack.c.l.b16 %v395
  %v428 = vunpack.c.l.b16 %v396
  %v429 = vunpack.c.l.b16 %v397
  %v430 = vunpack.c.l.b16 %v398
  %v431 = vunpack.c.l.b16 %v399
  %v432 = vunpack.c.l.b16 %v400
  %v433 = vunpack.c.l.b16 %v401
  %v434 = vpack.c.b16 %v419, %v418
  %v435 = vpack.c.b16 %v421, %v420
  %v436 = vpack.c.b16 %v423, %v422
  %v437 = vpack.c.b16 %v425, %v424
  %v438 = vpack.c.b16 %v427, %v426
  %v439 = vpack.c.b16 %v429, %v428
  %v440 = vpack.c.b16 %v431, %v430
  %v441 = vpack.c.b16 %v433, %v432
  %450 = vmatprep.subr.bf16.mxu0 0
  %451 = vmatpush1.bf16.msra.mxu0 %v434
  %452 = vmatprep.subr.bf16.mxu0 0
  %453 = vmatpush1.bf16.msra.mxu0 %v435
  %454 = vmatprep.subr.bf16.mxu0 0
  %455 = vmatpush1.bf16.msra.mxu0 %v436
  %456 = vmatprep.subr.bf16.mxu0 0
  %457 = vmatpush1.bf16.msra.mxu0 %v437
  %458 = vmatprep.subr.bf16.mxu0 0
  %459 = vmatpush1.bf16.msra.mxu0 %v438
  %460 = vmatprep.subr.bf16.mxu0 0
  %461 = vmatpush1.bf16.msra.mxu0 %v439
  %462 = vmatprep.subr.bf16.mxu0 0
  %463 = vmatpush1.bf16.msra.mxu0 %v440
  %464 = vmatprep.subr.bf16.mxu0 0
  %465 = vmatpush1.bf16.msra.mxu0 %v441
  %466 = vmatprep.subr.bf16.mxu0 0
  %467 = vmatpush1.bf16.msra.mxu0 0
  %468 = vmatprep.subr.bf16.mxu0 0
  %469 = vmatpush1.bf16.msra.mxu0 0
  %470 = vmatprep.subr.bf16.mxu0 0
  %471 = vmatpush1.bf16.msra.mxu0 0
  %472 = vmatprep.subr.bf16.mxu0 0
  %473 = vmatpush1.bf16.msra.mxu0 0
  %474 = vmatprep.subr.bf16.mxu0 0
  %475 = vmatpush1.bf16.msra.mxu0 0
  %476 = vmatprep.subr.bf16.mxu0 0
  %477 = vmatpush1.bf16.msra.mxu0 0
  %478 = vmatprep.subr.bf16.mxu0 0
  %479 = vmatpush1.bf16.msra.mxu0 0
  %480 = vmatprep.subr.bf16.mxu0 0
  %481 = vmatpush1.bf16.msra.mxu0 0
  %482 = vmatprep.mubr.bf16.mxu0 0
  %483 = vmatmul.mubr.bf16.gmra.mrb[0].mxu0 %v354
  %v484 = vpop.f32.mrb[0].mxu0
  %v485 = vadd.f32 0.0, %v484
  %v486 = vpop.f32.mrb[0].mxu0
  %v487 = vpop.f32.mrb[0].mxu0
  %v488 = vadd.f32 0.0, %v487
  %v489 = vpop.f32.mrb[0].mxu0
  %490 = vmatprep.mubr.bf16.mxu0 0
  %491 = vmatmul.mubr.bf16.gmra.mrb[0].mxu0 %v355
  %v492 = vpop.f32.mrb[0].mxu0
  %v493 = vadd.f32 0.0, %v492
  %v494 = vpop.f32.mrb[0].mxu0
  %v495 = vpop.f32.mrb[0].mxu0
  %v496 = vadd.f32 0.0, %v495
  %v497 = vpop.f32.mrb[0].mxu0
  %498 = vmatprep.mubr.bf16.mxu0 0
  %499 = vmatmul.mubr.bf16.gmra.mrb[0].mxu0 %v356
  %v500 = vpop.f32.mrb[0].mxu0
  %v501 = vadd.f32 0.0, %v500
  %v502 = vpop.f32.mrb[0].mxu0
  %v503 = vpop.f32.mrb[0].mxu0
  %v504 = vadd.f32 0.0, %v503
  %v505 = vpop.f32.mrb[0].mxu0
  %506 = vmatprep.mubr.bf16.mxu0 0
  %507 = vmatmul.mubr.bf16.gmra.mrb[0].mxu0 %v357
  %v508 = vpop.f32.mrb[0].mxu0
  %v509 = vadd.f32 0.0, %v508
  %v510 = vpop.f32.mrb[0].mxu0
  %v511 = vpop.f32.mrb[0].mxu0
  %v512 = vadd.f32 0.0, %v511
  %v513 = vpop.f32.mrb[0].mxu0
  %514 = vmatprep.mubr.bf16.mxu0 0
  %515 = vmatmul.mubr.bf16.gmra.mrb[0].mxu0 %v358
  %v516 = vpop.f32.mrb[0].mxu0
  %v517 = vadd.f32 0.0, %v516
  %v518 = vpop.f32.mrb[0].mxu0
  %v519 = vpop.f32.mrb[0].mxu0
  %v520 = vadd.f32 0.0, %v519
  %v521 = vpop.f32.mrb[0].mxu0
  %522 = vmatprep.mubr.bf16.mxu0 0
  %523 = vmatmul.mubr.bf16.gmra.mrb[0].mxu0 %v359
  %v524 = vpop.f32.mrb[0].mxu0
  %v525 = vadd.f32 0.0, %v524
  %v526 = vpop.f32.mrb[0].mxu0
  %v527 = vpop.f32.mrb[0].mxu0
  %v528 = vadd.f32 0.0, %v527
  %v529 = vpop.f32.mrb[0].mxu0
  %530 = vmatprep.mubr.bf16.mxu0 0
  %531 = vmatmul.mubr.bf16.gmra.mrb[0].mxu0 %v360
  %v532 = vpop.f32.mrb[0].mxu0
  %v533 = vadd.f32 0.0, %v532
  %v534 = vpop.f32.mrb[0].mxu0
  %v535 = vpop.f32.mrb[0].mxu0
  %v536 = vadd.f32 0.0, %v535
  %v537 = vpop.f32.mrb[0].mxu0
  %538 = vmatprep.mubr.bf16.mxu0 0
  %539 = vmatmul.mubr.bf16.gmra.mrb[0].mxu0 %v361
  %v540 = vpop.f32.mrb[0].mxu0
  %v541 = vadd.f32 0.0, %v540
  %v542 = vpop.f32.mrb[0].mxu0
  %v543 = vpop.f32.mrb[0].mxu0
  %v544 = vadd.f32 0.0, %v543
  %v545 = vpop.f32.mrb[0].mxu0
  %546 = vmatprep.mubr.bf16.mxu0 0
  %547 = vmatmul.mubr.bf16.gmra.mrb[0].mxu0 %v362
  %v548 = vpop.f32.mrb[0].mxu0
  %v549 = vadd.f32 0.0, %v548
  %v550 = vpop.f32.mrb[0].mxu0
  %v551 = vpop.f32.mrb[0].mxu0
  %v552 = vadd.f32 0.0, %v551
  %v553 = vpop.f32.mrb[0].mxu0
  %554 = vmatprep.mubr.bf16.mxu0 0
  %555 = vmatmul.mubr.bf16.gmra.mrb[0].mxu0 %v363
  %v556 = vpop.f32.mrb[0].mxu0
  %v557 = vadd.f32 0.0, %v556
  %v558 = vpop.f32.mrb[0].mxu0
  %v559 = vpop.f32.mrb[0].mxu0
  %v560 = vadd.f32 0.0, %v559
  %v561 = vpop.f32.mrb[0].mxu0
  %562 = vmatprep.mubr.bf16.mxu0 0
  %563 = vmatmul.mubr.bf16.gmra.mrb[0].mxu0 %v364
  %v564 = vpop.f32.mrb[0].mxu0
  %v565 = vadd.f32 0.0, %v564
  %v566 = vpop.f32.mrb[0].mxu0
  %v567 = vpop.f32.mrb[0].mxu0
  %v568 = vadd.f32 0.0, %v567
  %v569 = vpop.f32.mrb[0].mxu0
  %570 = vmatprep.mubr.bf16.mxu0 0
  %571 = vmatmul.mubr.bf16.gmra.mrb[0].mxu0 %v365
  %v572 = vpop.f32.mrb[0].mxu0
  %v573 = vadd.f32 0.0, %v572
  %v574 = vpop.f32.mrb[0].mxu0
  %v575 = vpop.f32.mrb[0].mxu0
  %v576 = vadd.f32 0.0, %v575
  %v577 = vpop.f32.mrb[0].mxu0
  %578 = vmatprep.mubr.bf16.mxu0 0
  %579 = vmatmul.mubr.bf16.gmra.mrb[0].mxu0 %v366
  %v580 = vpop.f32.mrb[0].mxu0
  %v581 = vadd.f32 0.0, %v580
  %v582 = vpop.f32.mrb[0].mxu0
  %v583 = vpop.f32.mrb[0].mxu0
  %v584 = vadd.f32 0.0, %v583
  %v585 = vpop.f32.mrb[0].mxu0
  %586 = vmatprep.mubr.bf16.mxu0 0
  %587 = vmatmul.mubr.bf16.gmra.mrb[0].mxu0 %v367
  %v588 = vpop.f32.mrb[0].mxu0
  %v589 = vadd.f32 0.0, %v588
  %v590 = vpop.f32.mrb[0].mxu0
  %v591 = vpop.f32.mrb[0].mxu0
  %v592 = vadd.f32 0.0, %v591
  %v593 = vpop.f32.mrb[0].mxu0
  %594 = vmatprep.mubr.bf16.mxu0 0
  %595 = vmatmul.mubr.bf16.gmra.mrb[0].mxu0 %v368
  %v596 = vpop.f32.mrb[0].mxu0
  %v597 = vadd.f32 0.0, %v596
  %v598 = vpop.f32.mrb[0].mxu0
  %v599 = vpop.f32.mrb[0].mxu0
  %v600 = vadd.f32 0.0, %v599
  %v601 = vpop.f32.mrb[0].mxu0
  %602 = vmatprep.mubr.bf16.mxu0 0
  %603 = vmatmul.mubr.bf16.gmra.mrb[0].mxu0 %v369
  %v604 = vpop.f32.mrb[0].mxu0
  %v605 = vadd.f32 0.0, %v604
  %v606 = vpop.f32.mrb[0].mxu0
  %v607 = vpop.f32.mrb[0].mxu0
  %v608 = vadd.f32 0.0, %v607
  %v609 = vpop.f32.mrb[0].mxu0
  %610 = vmatprep.mubr.bf16.mxu0 0
  %611 = vmatmul.mubr.bf16.gmra.mrb[0].mxu0 %v370
  %v612 = vpop.f32.mrb[0].mxu0
  %v613 = vadd.f32 0.0, %v612
  %v614 = vpop.f32.mrb[0].mxu0
  %v615 = vpop.f32.mrb[0].mxu0
  %v616 = vadd.f32 0.0, %v615
  %v617 = vpop.f32.mrb[0].mxu0
  %618 = vmatprep.mubr.bf16.mxu0 0
  %619 = vmatmul.mubr.bf16.gmra.mrb[0].mxu0 %v371
  %v620 = vpop.f32.mrb[0].mxu0
  %v621 = vadd.f32 0.0, %v620
  %v622 = vpop.f32.mrb[0].mxu0
  %v623 = vpop.f32.mrb[0].mxu0
  %v624 = vadd.f32 0.0, %v623
  %v625 = vpop.f32.mrb[0].mxu0
  %626 = vmatprep.mubr.bf16.mxu0 0
  %627 = vmatmul.mubr.bf16.gmra.mrb[0].mxu0 %v372
  %v628 = vpop.f32.mrb[0].mxu0
  %v629 = vadd.f32 0.0, %v628
  %v630 = vpop.f32.mrb[0].mxu0
  %v631 = vpop.f32.mrb[0].mxu0
  %v632 = vadd.f32 0.0, %v631
  %v633 = vpop.f32.mrb[0].mxu0
  %634 = vmatprep.mubr.bf16.mxu0 0
  %635 = vmatmul.mubr.bf16.gmra.mrb[0].mxu0 %v373
  %v636 = vpop.f32.mrb[0].mxu0
  %v637 = vadd.f32 0.0, %v636
  %v638 = vpop.f32.mrb[0].mxu0
  %v639 = vpop.f32.mrb[0].mxu0
  %v640 = vadd.f32 0.0, %v639
  %v641 = vpop.f32.mrb[0].mxu0
  %642 = vmatprep.mubr.bf16.mxu0 0
  %643 = vmatmul.mubr.bf16.gmra.mrb[0].mxu0 %v374
  %v644 = vpop.f32.mrb[0].mxu0
  %v645 = vadd.f32 0.0, %v644
  %v646 = vpop.f32.mrb[0].mxu0
  %v647 = vpop.f32.mrb[0].mxu0
  %v648 = vadd.f32 0.0, %v647
  %v649 = vpop.f32.mrb[0].mxu0
  %650 = vmatprep.mubr.bf16.mxu0 0
  %651 = vmatmul.mubr.bf16.gmra.mrb[0].mxu0 %v375
  %v652 = vpop.f32.mrb[0].mxu0
  %v653 = vadd.f32 0.0, %v652
  %v654 = vpop.f32.mrb[0].mxu0
  %v655 = vpop.f32.mrb[0].mxu0
  %v656 = vadd.f32 0.0, %v655
  %v657 = vpop.f32.mrb[0].mxu0
  %658 = vmatprep.mubr.bf16.mxu0 0
  %659 = vmatmul.mubr.bf16.gmra.mrb[0].mxu0 %v376
  %v660 = vpop.f32.mrb[0].mxu0
  %v661 = vadd.f32 0.0, %v660
  %v662 = vpop.f32.mrb[0].mxu0
  %v663 = vpop.f32.mrb[0].mxu0
  %v664 = vadd.f32 0.0, %v663
  %v665 = vpop.f32.mrb[0].mxu0
  %666 = vmatprep.mubr.bf16.mxu0 0
  %667 = vmatmul.mubr.bf16.gmra.mrb[0].mxu0 %v377
  %v668 = vpop.f32.mrb[0].mxu0
  %v669 = vadd.f32 0.0, %v668
  %v670 = vpop.f32.mrb[0].mxu0
  %v671 = vpop.f32.mrb[0].mxu0
  %v672 = vadd.f32 0.0, %v671
  %v673 = vpop.f32.mrb[0].mxu0
  %674 = vmatprep.mubr.bf16.mxu0 0
  %675 = vmatmul.mubr.bf16.gmra.mrb[0].mxu0 %v378
  %v676 = vpop.f32.mrb[0].mxu0
  %v677 = vadd.f32 0.0, %v676
  %v678 = vpop.f32.mrb[0].mxu0
  %v679 = vpop.f32.mrb[0].mxu0
  %v680 = vadd.f32 0.0, %v679
  %v681 = vpop.f32.mrb[0].mxu0
  %682 = vmatprep.mubr.bf16.mxu0 0
  %683 = vmatmul.mubr.bf16.gmra.mrb[0].mxu0 %v379
  %v684 = vpop.f32.mrb[0].mxu0
  %v685 = vadd.f32 0.0, %v684
  %v686 = vpop.f32.mrb[0].mxu0
  %v687 = vpop.f32.mrb[0].mxu0
  %v688 = vadd.f32 0.0, %v687
  %v689 = vpop.f32.mrb[0].mxu0
  %690 = vmatprep.mubr.bf16.mxu0 0
  %691 = vmatmul.mubr.bf16.gmra.mrb[0].mxu0 %v380
  %v692 = vpop.f32.mrb[0].mxu0
  %v693 = vadd.f32 0.0, %v692
  %v694 = vpop.f32.mrb[0].mxu0
  %v695 = vpop.f32.mrb[0].mxu0
  %v696 = vadd.f32 0.0, %v695
  %v697 = vpop.f32.mrb[0].mxu0
  %698 = vmatprep.mubr.bf16.mxu0 0
  %699 = vmatmul.mubr.bf16.gmra.mrb[0].mxu0 %v381
  %v700 = vpop.f32.mrb[0].mxu0
  %v701 = vadd.f32 0.0, %v700
  %v702 = vpop.f32.mrb[0].mxu0
  %v703 = vpop.f32.mrb[0].mxu0
  %v704 = vadd.f32 0.0, %v703
  %v705 = vpop.f32.mrb[0].mxu0
  %706 = vmatprep.mubr.bf16.mxu0 0
  %707 = vmatmul.mubr.bf16.gmra.mrb[0].mxu0 %v382
  %v708 = vpop.f32.mrb[0].mxu0
  %v709 = vadd.f32 0.0, %v708
  %v710 = vpop.f32.mrb[0].mxu0
  %v711 = vpop.f32.mrb[0].mxu0
  %v712 = vadd.f32 0.0, %v711
  %v713 = vpop.f32.mrb[0].mxu0
  %714 = vmatprep.mubr.bf16.mxu0 0
  %715 = vmatmul.mubr.bf16.gmra.mrb[0].mxu0 %v383
  %v716 = vpop.f32.mrb[0].mxu0
  %v717 = vadd.f32 0.0, %v716
  %v718 = vpop.f32.mrb[0].mxu0
  %v719 = vpop.f32.mrb[0].mxu0
  %v720 = vadd.f32 0.0, %v719
  %v721 = vpop.f32.mrb[0].mxu0
  %722 = vmatprep.mubr.bf16.mxu0 0
  %723 = vmatmul.mubr.bf16.gmra.mrb[0].mxu0 %v384
  %v724 = vpop.f32.mrb[0].mxu0
  %v725 = vadd.f32 0.0, %v724
  %v726 = vpop.f32.mrb[0].mxu0
  %v727 = vpop.f32.mrb[0].mxu0
  %v728 = vadd.f32 0.0, %v727
  %v729 = vpop.f32.mrb[0].mxu0
  %730 = vmatprep.mubr.bf16.mxu0 0
  %731 = vmatmul.mubr.bf16.gmra.mrb[0].mxu0 %v385
  %v732 = vpop.f32.mrb[0].mxu0
  %v733 = vadd.f32 0.0, %v732
  %v734 = vpop.f32.mrb[0].mxu0
  %v735 = vpop.f32.mrb[0].mxu0
  %v736 = vadd.f32 0.0, %v735
  %v737 = vpop.f32.mrb[0].mxu0
  %738 = vdwg.mxu0
  %p739 = scmp.eq.s32.totalorder 0, 0
  // Predicated region
  $region18: #{bottleneck_forward.6} parent=0 // pred_check
    %p740 = pneg %p739
  $region19: #{bottleneck_forward.6} parent=0 // pred_check_branch
    %742 = sbr.rel (%p740) target = $region21
  $region20: #{bottleneck_forward.6} parent=0 // pred_region
    %743 = vst [vmem:[%s4] sm:$0x1] 0.0
    %744 = vst [vmem:[%s5] sm:$0x1] 0.0
  $region21: #{bottleneck_forward.6} parent=0 // pred_fallthru
    _
  %v745 = vld [vmem:[%s4] sm:$0x1]
  %v746 = vadd.f32 %v485, %v488
  %v747 = vadd.f32 %v746, %v493
  %v748 = vadd.f32 %v747, %v496
  %v749 = vadd.f32 %v748, %v501
  %v750 = vadd.f32 %v749, %v504
  %v751 = vadd.f32 %v750, %v509
  %v752 = vadd.f32 %v751, %v512
  %v753 = vadd.f32 %v752, %v517
  %v754 = vadd.f32 %v753, %v520
  %v755 = vadd.f32 %v754, %v525
  %v756 = vadd.f32 %v755, %v528
  %v757 = vadd.f32 %v756, %v533
  %v758 = vadd.f32 %v757, %v536
  %v759 = vadd.f32 %v758, %v541
  %v760 = vadd.f32 %v759, %v544
  %v761 = vadd.f32 %v760, %v549
  %v762 = vadd.f32 %v761, %v552
  %v763 = vadd.f32 %v762, %v557
  %v764 = vadd.f32 %v763, %v560
  %v765 = vadd.f32 %v764, %v565
  %v766 = vadd.f32 %v765, %v568
  %v767 = vadd.f32 %v766, %v573
  %v768 = vadd.f32 %v767, %v576
  %v769 = vadd.f32 %v768, %v581
  %v770 = vadd.f32 %v769, %v584
  %v771 = vadd.f32 %v770, %v589
  %v772 = vadd.f32 %v771, %v592
  %v773 = vadd.f32 %v772, %v597
  %v774 = vadd.f32 %v773, %v600
  %v775 = vadd.f32 %v774, %v605
  %v776 = vadd.f32 %v775, %v608
  %v777 = vadd.f32 %v776, %v613
  %v778 = vadd.f32 %v777, %v616
  %v779 = vadd.f32 %v778, %v621
  %v780 = vadd.f32 %v779, %v624
  %v781 = vadd.f32 %v780, %v629
  %v782 = vadd.f32 %v781, %v632
  %v783 = vadd.f32 %v782, %v637
  %v784 = vadd.f32 %v783, %v640
  %v785 = vadd.f32 %v784, %v645
  %v786 = vadd.f32 %v785, %v648
  %v787 = vadd.f32 %v786, %v653
  %v788 = vadd.f32 %v787, %v656
  %v789 = vadd.f32 %v788, %v661
  %v790 = vadd.f32 %v789, %v664
  %v791 = vadd.f32 %v790, %v669
  %v792 = vadd.f32 %v791, %v672
  %v793 = vadd.f32 %v792, %v677
  %v794 = vadd.f32 %v793, %v680
  %v795 = vadd.f32 %v794, %v685
  %v796 = vadd.f32 %v795, %v688
  %v797 = vadd.f32 %v796, %v693
  %v798 = vadd.f32 %v797, %v696
  %v799 = vadd.f32 %v798, %v701
  %v800 = vadd.f32 %v799, %v704
  %v801 = vadd.f32 %v800, %v709
  %v802 = vadd.f32 %v801, %v712
  %v803 = vadd.f32 %v802, %v717
  %v804 = vadd.f32 %v803, %v720
  %v805 = vadd.f32 %v804, %v725
  %v806 = vadd.f32 %v805, %v728
  %v807 = vadd.f32 %v806, %v733
  %v808 = vadd.f32 %v807, %v736
  %v809 = vrot.slane %v808, 4
  %v810 = vadd.f32 %v808, %v809
  %v811 = vrot.slane %v810, 2
  %v812 = vadd.f32 %v810, %v811
  %v813 = vrot.slane %v812, 1
  %v814 = vadd.f32 %v812, %v813
  %v815 = vadd.f32 %v745, %v814
  %816 = vst [vmem:[%s4] sm:$0x1] %v815
  %v817 = vld [vmem:[%s5] sm:$0x1]
  %v818 = vmul.f32 %v485, %v485
  %v819 = vmul.f32 %v488, %v488
  %v820 = vmul.f32 %v493, %v493
  %v821 = vmul.f32 %v496, %v496
  %v822 = vmul.f32 %v501, %v501
  %v823 = vmul.f32 %v504, %v504
  %v824 = vmul.f32 %v509, %v509
  %v825 = vmul.f32 %v512, %v512
  %v826 = vmul.f32 %v517, %v517
  %v827 = vmul.f32 %v520, %v520
  %v828 = vmul.f32 %v525, %v525
  %v829 = vmul.f32 %v528, %v528
  %v830 = vmul.f32 %v533, %v533
  %v831 = vmul.f32 %v536, %v536
  %v832 = vmul.f32 %v541, %v541
  %v833 = vmul.f32 %v544, %v544
  %v834 = vmul.f32 %v549, %v549
  %v835 = vmul.f32 %v552, %v552
  %v836 = vmul.f32 %v557, %v557
  %v837 = vmul.f32 %v560, %v560
  %v838 = vmul.f32 %v565, %v565
  %v839 = vmul.f32 %v568, %v568
  %v840 = vmul.f32 %v573, %v573
  %v841 = vmul.f32 %v576, %v576
  %v842 = vmul.f32 %v581, %v581
  %v843 = vmul.f32 %v584, %v584
  %v844 = vmul.f32 %v589, %v589
  %v845 = vmul.f32 %v592, %v592
  %v846 = vmul.f32 %v597, %v597
  %v847 = vmul.f32 %v600, %v600
  %v848 = vmul.f32 %v605, %v605
  %v849 = vmul.f32 %v608, %v608
  %v850 = vmul.f32 %v613, %v613
  %v851 = vmul.f32 %v616, %v616
  %v852 = vmul.f32 %v621, %v621
  %v853 = vmul.f32 %v624, %v624
  %v854 = vmul.f32 %v629, %v629
  %v855 = vmul.f32 %v632, %v632
  %v856 = vmul.f32 %v637, %v637
  %v857 = vmul.f32 %v640, %v640
  %v858 = vmul.f32 %v645, %v645
  %v859 = vmul.f32 %v648, %v648
  %v860 = vmul.f32 %v653, %v653
  %v861 = vmul.f32 %v656, %v656
  %v862 = vmul.f32 %v661, %v661
  %v863 = vmul.f32 %v664, %v664
  %v864 = vmul.f32 %v669, %v669
  %v865 = vmul.f32 %v672, %v672
  %v866 = vmul.f32 %v677, %v677
  %v867 = vmul.f32 %v680, %v680
  %v868 = vmul.f32 %v685, %v685
  %v869 = vmul.f32 %v688, %v688
  %v870 = vmul.f32 %v693, %v693
  %v871 = vmul.f32 %v696, %v696
  %v872 = vmul.f32 %v701, %v701
  %v873 = vmul.f32 %v704, %v704
  %v874 = vmul.f32 %v709, %v709
  %v875 = vmul.f32 %v712, %v712
  %v876 = vmul.f32 %v717, %v717
  %v877 = vmul.f32 %v720, %v720
  %v878 = vmul.f32 %v725, %v725
  %v879 = vmul.f32 %v728, %v728
  %v880 = vmul.f32 %v733, %v733
  %v881 = vmul.f32 %v736, %v736
  %v882 = vadd.f32 %v818, %v819
  %v883 = vadd.f32 %v882, %v820
  %v884 = vadd.f32 %v883, %v821
  %v885 = vadd.f32 %v884, %v822
  %v886 = vadd.f32 %v885, %v823
  %v887 = vadd.f32 %v886, %v824
  %v888 = vadd.f32 %v887, %v825
  %v889 = vadd.f32 %v888, %v826
  %v890 = vadd.f32 %v889, %v827
  %v891 = vadd.f32 %v890, %v828
  %v892 = vadd.f32 %v891, %v829
  %v893 = vadd.f32 %v892, %v830
  %v894 = vadd.f32 %v893, %v831
  %v895 = vadd.f32 %v894, %v832
  %v896 = vadd.f32 %v895, %v833
  %v897 = vadd.f32 %v896, %v834
  %v898 = vadd.f32 %v897, %v835
  %v899 = vadd.f32 %v898, %v836
  %v900 = vadd.f32 %v899, %v837
  %v901 = vadd.f32 %v900, %v838
  %v902 = vadd.f32 %v901, %v839
  %v903 = vadd.f32 %v902, %v840
  %v904 = vadd.f32 %v903, %v841
  %v905 = vadd.f32 %v904, %v842
  %v906 = vadd.f32 %v905, %v843
  %v907 = vadd.f32 %v906, %v844
  %v908 = vadd.f32 %v907, %v845
  %v909 = vadd.f32 %v908, %v846
  %v910 = vadd.f32 %v909, %v847
  %v911 = vadd.f32 %v910, %v848
  %v912 = vadd.f32 %v911, %v849
  %v913 = vadd.f32 %v912, %v850
  %v914 = vadd.f32 %v913, %v851
  %v915 = vadd.f32 %v914, %v852
  %v916 = vadd.f32 %v915, %v853
  %v917 = vadd.f32 %v916, %v854
  %v918 = vadd.f32 %v917, %v855
  %v919 = vadd.f32 %v918, %v856
  %v920 = vadd.f32 %v919, %v857
  %v921 = vadd.f32 %v920, %v858
  %v922 = vadd.f32 %v921, %v859
  %v923 = vadd.f32 %v922, %v860
  %v924 = vadd.f32 %v923, %v861
  %v925 = vadd.f32 %v924, %v862
  %v926 = vadd.f32 %v925, %v863
  %v927 = vadd.f32 %v926, %v864
  %v928 = vadd.f32 %v927, %v865
  %v929 = vadd.f32 %v928, %v866
  %v930 = vadd.f32 %v929, %v867
  %v931 = vadd.f32 %v930, %v868
  %v932 = vadd.f32 %v931, %v869
  %v933 = vadd.f32 %v932, %v870
  %v934 = vadd.f32 %v933, %v871
  %v935 = vadd.f32 %v934, %v872
  %v936 = vadd.f32 %v935, %v873
  %v937 = vadd.f32 %v936, %v874
  %v938 = vadd.f32 %v937, %v875
  %v939 = vadd.f32 %v938, %v876
  %v940 = vadd.f32 %v939, %v877
  %v941 = vadd.f32 %v940, %v878
  %v942 = vadd.f32 %v941, %v879
  %v943 = vadd.f32 %v942, %v880
  %v944 = vadd.f32 %v943, %v881
  %v945 = vrot.slane %v944, 4
  %v946 = vadd.f32 %v944, %v945
  %v947 = vrot.slane %v946, 2
  %v948 = vadd.f32 %v946, %v947
  %v949 = vrot.slane %v948, 1
  %v950 = vadd.f32 %v948, %v949
  %v951 = vadd.f32 %v817, %v950
  %952 = vst [vmem:[%s5] sm:$0x1] %v951
  // Predicated region
  $region22: #{bottleneck_forward.6} parent=0 // pred_check
    _
  $region23: #{bottleneck_forward.6} parent=0 // pred_check_branch
    %954 = sbr.rel (0) target = $region25
  $region24: #{bottleneck_forward.6} parent=0 // pred_region
    _
  $region25: #{bottleneck_forward.6} parent=0 // pred_fallthru
    _
  // Predicated region
  $region26: #{bottleneck_forward.6} parent=0 // pred_check
    _
  $region27: #{bottleneck_forward.6} parent=0 // pred_check_branch
    %956 = sbr.rel (0) target = $region29
  $region28: #{bottleneck_forward.6} parent=0 // pred_region
    _
  $region29: #{bottleneck_forward.6} parent=0 // pred_fallthru
    _
  // Predicated region
  $region30: #{bottleneck_forward.6} parent=0 // pred_check
    _
  $region31: #{bottleneck_forward.6} parent=0 // pred_check_branch
    %958 = sbr.rel (0) target = $region33
  $region32: #{bottleneck_forward.6} parent=0 // pred_region
    _
  $region33: #{bottleneck_forward.6} parent=0 // pred_fallthru
    _
  // Predicated region
  $region34: #{bottleneck_forward.6} parent=0 // pred_check
    _
  $region35: #{bottleneck_forward.6} parent=0 // pred_check_branch
    %960 = sbr.rel (0) target = $region37
  $region36: #{bottleneck_forward.6} parent=0 // pred_region
    _
  $region37: #{bottleneck_forward.6} parent=0 // pred_fallthru
    _

// kernel: bottleneck_forward.5
$region0: #{bottleneck_forward.5}
  #allocation0 [shape = 'u32[]', space=smem, size = 0x4, offset = 0x4, fixed_abs, tag = 'smem constant byte address 0x4 - core index']
  #allocation1 [shape = 'u32[144,128]{1,0:T(1,128)}', space=vmem, size = 0x12000, scoped, tag = 'internal scratch']
  #allocation2 [shape = 'bf16[320,128]{1,0:T(16,128)(2,1)}', space=vmem, size = 0x14000, scoped, tag = 'scratch operand']
  #allocation3 [shape = 'bf16[256,1152]{1,0:T(16,128)(2,1)}', space=vmem, size = 0x90000, scoped, tag = 'scratch operand']
  %s0 = inlined_call_operand.vmem [shape: f32[1,128], index: 0, kind: input, shape index: {}]
  %s1 = inlined_call_operand.vmem [shape: f32[1,128], index: 1, kind: input, shape index: {}]
  %s2 = inlined_call_operand.vmem [shape: bf16[2,256,128], index: 2, kind: input, shape index: {}]
  %s3 = inlined_call_operand.vmem [shape: bf16[1152,128], index: 3, kind: input, shape index: {}]
  %s4 = inlined_call_operand.vmem [shape: bf16[2,256,128], index: 4, kind: output, shape index: {0}]
  %s5 = inlined_call_operand.vmem [shape: f32[1,128], index: 5, kind: output, shape index: {1}]
  %s6 = inlined_call_operand.vmem [shape: f32[1,128], index: 6, kind: output, shape index: {2}]
  %7 = xla_tuple %s4, %s5, %s6
  %s8 = sld [smem:[#allocation0]]
  $region69: #{bottleneck_forward.5} parent=0
    _
  %s10 = ssub.s32 1, %s8
  %s11 = scalar_select 0, %s10, %s8
  loop: start=0, step=1, limit=4
  $region2: #{bottleneck_forward.5} parent=0 // loop_pre_header
    _
  $region3: #{bottleneck_forward.5} parent=0 // loop_header
    %s13 = sphi 0, %s17
    %p14 = scmp.ge.s32.totalorder %s13, 4
    %s21 = sphi 0, %s21
    %s23 = sphi 0, %s21
    %s24 = sphi 0, %s23
    %s38 = sphi 0, %s24
    %s42 = sphi 0, %s42
    %s44 = sphi 0, %s42
    %s45 = sphi 0, %s44
    %s59 = sphi 0, %s45
    %s65 = sphi 0, %s67
    %s68 = sphi 0, %s65
    %s69 = sphi 0, %s68
    %s85 = sphi 0, %s69
    %s89 = sphi 0, %s89
    %s91 = sphi 0, %s89
    %s92 = sphi 0, %s91
    %s106 = sphi 0, %s92
    %s112 = sphi 0, %s114
    %s115 = sphi 0, %s112
    %s116 = sphi 0, %s115
    %s132 = sphi 0, %s116
    %s136 = sphi 0, %s136
    %s138 = sphi 0, %s136
    %s139 = sphi 0, %s138
    %s153 = sphi 0, %s139
    %s157 = sphi 0, %s157
    %s159 = sphi 0, %s157
    %s160 = sphi 0, %s159
    %s174 = sphi 0, %s160
  $region4: #{bottleneck_forward.5} parent=0 // loop_header_branch
    %16 = sbr.rel (%p14) target = $region8
  $region5: #{bottleneck_forward.5} parent=0 // loop_body
    %s18 = ssub.s32 %s13, 1
    %s19 = ssub.s32 %s13, 2
    %s20 = sadd.s32 %s13, 1
    %s22 = sadd.s32 %s21, 1
    %p25 = scmp.eq.s32.totalorder %s13, 1
    %p26 = scmp.ne.s32.totalorder %s21, %s23
    %p27 = scmp.eq.s32.totalorder %s13, 0
    %p28 = por %p26, %p27
    %p29 = scmp.ne.s32.totalorder %s21, %s23
    %p30 = scmp.eq.s32.totalorder %s18, 1
    %p31 = por %p29, %p30
    %p32 = scmp.ne.s32.totalorder %s23, %s24
    %p33 = scmp.eq.s32.totalorder %s18, 0
    %p34 = por %p32, %p33
    %p35 = scmp.ne.s32.totalorder %s23, %s24
    %p36 = scmp.eq.s32.totalorder %s19, 1
    %p37 = por %p35, %p36
    %p39 = scmp.ne.s32.totalorder %s24, %s38
    %p40 = scmp.eq.s32.totalorder %s19, 0
    %p41 = por %p39, %p40
    %s43 = sadd.s32 %s42, 1
    %p46 = scmp.eq.s32.totalorder %s13, 1
    %p47 = scmp.ne.s32.totalorder %s42, %s44
    %p48 = scmp.eq.s32.totalorder %s13, 0
    %p49 = por %p47, %p48
    %p50 = scmp.ne.s32.totalorder %s42, %s44
    %p51 = scmp.eq.s32.totalorder %s18, 1
    %p52 = por %p50, %p51
    %p53 = scmp.ne.s32.totalorder %s44, %s45
    %p54 = scmp.eq.s32.totalorder %s18, 0
    %p55 = por %p53, %p54
    %p56 = scmp.ne.s32.totalorder %s44, %s45
    %p57 = scmp.eq.s32.totalorder %s19, 1
    %p58 = por %p56, %p57
    %p60 = scmp.ne.s32.totalorder %s45, %s59
    %p61 = scmp.eq.s32.totalorder %s19, 0
    %p62 = por %p60, %p61
    %s63 = ssub.s32 %s13, %s20
    %p64 = scmp.eq.s32.totalorder %s63, 0
    %s66 = sadd.s32 %s65, 1
    %s67 = scalar_select %p64, %s65, %s66
    %p70 = pneg %p64
    %p71 = scmp.eq.s32.totalorder %s13, 1
    %p72 = por %p70, %p71
    %p73 = scmp.ne.s32.totalorder %s65, %s68
    %p74 = scmp.eq.s32.totalorder %s13, 0
    %p75 = por %p73, %p74
    %p76 = scmp.ne.s32.totalorder %s65, %s68
    %p77 = scmp.eq.s32.totalorder %s18, 1
    %p78 = por %p76, %p77
    %p79 = scmp.ne.s32.totalorder %s68, %s69
    %p80 = scmp.eq.s32.totalorder %s18, 0
    %p81 = por %p79, %p80
    %p82 = scmp.ne.s32.totalorder %s68, %s69
    %p83 = scmp.eq.s32.totalorder %s19, 1
    %p84 = por %p82, %p83
    %p86 = scmp.ne.s32.totalorder %s69, %s85
    %p87 = scmp.eq.s32.totalorder %s19, 0
    %p88 = por %p86, %p87
    %s90 = sadd.s32 %s89, 1
    %p93 = scmp.eq.s32.totalorder %s13, 1
    %p94 = scmp.ne.s32.totalorder %s89, %s91
    %p95 = scmp.eq.s32.totalorder %s13, 0
    %p96 = por %p94, %p95
    %p97 = scmp.ne.s32.totalorder %s89, %s91
    %p98 = scmp.eq.s32.totalorder %s18, 1
    %p99 = por %p97, %p98
    %p100 = scmp.ne.s32.totalorder %s91, %s92
    %p101 = scmp.eq.s32.totalorder %s18, 0
    %p102 = por %p100, %p101
    %p103 = scmp.ne.s32.totalorder %s91, %s92
    %p104 = scmp.eq.s32.totalorder %s19, 1
    %p105 = por %p103, %p104
    %p107 = scmp.ne.s32.totalorder %s92, %s106
    %p108 = scmp.eq.s32.totalorder %s19, 0
    %p109 = por %p107, %p108
    %s110 = ssub.s32 %s13, %s20
    %p111 = scmp.eq.s32.totalorder %s110, 0
    %s113 = sadd.s32 %s112, 1
    %s114 = scalar_select %p111, %s112, %s113
    %p117 = pneg %p111
    %p118 = scmp.eq.s32.totalorder %s13, 1
    %p119 = por %p117, %p118
    %p120 = scmp.ne.s32.totalorder %s112, %s115
    %p121 = scmp.eq.s32.totalorder %s13, 0
    %p122 = por %p120, %p121
    %p123 = scmp.ne.s32.totalorder %s112, %s115
    %p124 = scmp.eq.s32.totalorder %s18, 1
    %p125 = por %p123, %p124
    %p126 = scmp.ne.s32.totalorder %s115, %s116
    %p127 = scmp.eq.s32.totalorder %s18, 0
    %p128 = por %p126, %p127
    %p129 = scmp.ne.s32.totalorder %s115, %s116
    %p130 = scmp.eq.s32.totalorder %s19, 1
    %p131 = por %p129, %p130
    %p133 = scmp.ne.s32.totalorder %s116, %s132
    %p134 = scmp.eq.s32.totalorder %s19, 0
    %p135 = por %p133, %p134
    %s137 = sadd.s32 %s136, 1
    %p140 = scmp.eq.s32.totalorder %s13, 1
    %p141 = scmp.ne.s32.totalorder %s136, %s138
    %p142 = scmp.eq.s32.totalorder %s13, 0
    %p143 = por %p141, %p142
    %p144 = scmp.ne.s32.totalorder %s136, %s138
    %p145 = scmp.eq.s32.totalorder %s18, 1
    %p146 = por %p144, %p145
    %p147 = scmp.ne.s32.totalorder %s138, %s139
    %p148 = scmp.eq.s32.totalorder %s18, 0
    %p149 = por %p147, %p148
    %p150 = scmp.ne.s32.totalorder %s138, %s139
    %p151 = scmp.eq.s32.totalorder %s19, 1
    %p152 = por %p150, %p151
    %p154 = scmp.ne.s32.totalorder %s139, %s153
    %p155 = scmp.eq.s32.totalorder %s19, 0
    %p156 = por %p154, %p155
    %s158 = sadd.s32 %s157, 1
    %p161 = scmp.eq.s32.totalorder %s13, 1
    %p162 = scmp.ne.s32.totalorder %s157, %s159
    %p163 = scmp.eq.s32.totalorder %s13, 0
    %p164 = por %p162, %p163
    %p165 = scmp.ne.s32.totalorder %s157, %s159
    %p166 = scmp.eq.s32.totalorder %s18, 1
    %p167 = por %p165, %p166
    %p168 = scmp.ne.s32.totalorder %s159, %s160
    %p169 = scmp.eq.s32.totalorder %s18, 0
    %p170 = por %p168, %p169
    %p171 = scmp.ne.s32.totalorder %s159, %s160
    %p172 = scmp.eq.s32.totalorder %s19, 1
    %p173 = por %p171, %p172
    %p175 = scmp.ne.s32.totalorder %s160, %s174
    %p176 = scmp.eq.s32.totalorder %s19, 0
    %p177 = por %p175, %p176
    %p178 = scmp.le.s32.totalorder 1, %s13
    %p179 = scmp.lt.s32.totalorder %s13, 3
    %p180 = pnand %p178, %p179
    %p181 = pneg %p180
    // Predicated region
    $region9: #{bottleneck_forward.5} parent=5 // pred_check
      _
    $region10: #{bottleneck_forward.5} parent=5 // pred_check_branch
      %183 = sbr.rel (%p180) target = $region12
    $region11: #{bottleneck_forward.5} parent=5 // pred_region
      %s184 = ssub.s32 %s13, 1
      // Predicated region
      $region13: #{bottleneck_forward.5} parent=11 // pred_check
        %p185 = pneg %p34
      $region14: #{bottleneck_forward.5} parent=11 // pred_check_branch
        %187 = sbr.rel (%p185) target = $region16
      $region15: #{bottleneck_forward.5} parent=11 // pred_region
        _
      $region16: #{bottleneck_forward.5} parent=11 // pred_fallthru
        _
      // Predicated region
      $region17: #{bottleneck_forward.5} parent=11 // pred_check
        %p188 = pneg %p55
      $region18: #{bottleneck_forward.5} parent=11 // pred_check_branch
        %190 = sbr.rel (%p188) target = $region20
      $region19: #{bottleneck_forward.5} parent=11 // pred_region
        _
      $region20: #{bottleneck_forward.5} parent=11 // pred_fallthru
        _
      // Predicated region
      $region21: #{bottleneck_forward.5} parent=11 // pred_check
        %p191 = pneg %p102
      $region22: #{bottleneck_forward.5} parent=11 // pred_check_branch
        %193 = sbr.rel (%p191) target = $region24
      $region23: #{bottleneck_forward.5} parent=11 // pred_region
        _
      $region24: #{bottleneck_forward.5} parent=11 // pred_fallthru
        _
    $region12: #{bottleneck_forward.5} parent=5 // pred_fallthru
      _
    %p194 = scmp.lt.s32.totalorder %s13, 2
    // Predicated region
    $region25: #{bottleneck_forward.5} parent=5 // pred_check
      %p195 = pneg %p194
    $region26: #{bottleneck_forward.5} parent=5 // pred_check_branch
      %197 = sbr.rel (%p195) target = $region28
    $region27: #{bottleneck_forward.5} parent=5 // pred_region
      // Predicated region
      $region29: #{bottleneck_forward.5} parent=27 // pred_check
        %p198 = pneg %p75
      $region30: #{bottleneck_forward.5} parent=27 // pred_check_branch
        %200 = sbr.rel (%p198) target = $region32
      $region31: #{bottleneck_forward.5} parent=27 // pred_region
        %p201 = scmp.lt.s32.totalorder %s13, 1
        %s202 = scalar_select %p201, %s13, 1
        %s203 = smul.addr %s202, 32
        %s204 = smul.addr %s203, 4
        %s205 = scalar_lea.vmem %s2, %s204
      $region32: #{bottleneck_forward.5} parent=27 // pred_fallthru
        _
    $region28: #{bottleneck_forward.5} parent=5 // pred_fallthru
      _
    %p206 = scmp.le.s32.totalorder 1, %s13
    %p207 = scmp.lt.s32.totalorder %s13, 3
    %p208 = pnand %p206, %p207
    %p209 = pneg %p208
    // Predicated region
    $region33: #{bottleneck_forward.5} parent=5 // pred_check
      _
    $region34: #{bottleneck_forward.5} parent=5 // pred_check_branch
      %211 = sbr.rel (%p208) target = $region36
    $region35: #{bottleneck_forward.5} parent=5 // pred_region
      %s212 = ssub.s32 %s13, 1
      %p213 = pneg %p34
      %p214 = pneg %p31
      %p215 = pneg %p55
      %p216 = pneg %p52
      %p217 = scmp.lt.s32.totalorder %s18, 1
      %s218 = scalar_select %p217, %s18, 1
      %s219 = smul.addr %s218, 32
      %s220 = smul.addr %s219, 4
      %s221 = scalar_lea.vmem %s2, %s220
      %p222 = pneg %p81
      %p223 = pneg %p78
      %p224 = pneg %p102
      %p225 = pneg %p99
      %p226 = pneg %p128
      %p227 = pneg %p125
      %p228 = scmp.lt.s32.totalorder %s18, 1
      %s229 = scalar_select %p228, %s18, 1
      %s230 = smul.addr %s229, 32
      %s231 = smul.addr %s230, 4
      %s232 = scalar_lea.vmem %s4, %s231
      %p233 = pneg %p149
      %p234 = pneg %p146
      %p235 = pneg %p170
      %p236 = pneg %p167
      %p237 = scmp.lt.s32.totalorder %s18, 1
      %s238 = scalar_select %p237, %s18, 1
      %s239 = smul.addr %s238, 32
      %s240 = smul.addr %s239, 4
      %s241 = scalar_lea.vmem %s2, %s240
      %p242 = scmp.lt.s32.totalorder %s18, 1
      %s243 = scalar_select %p242, %s18, 1
      %s244 = smul.addr %s243, 32
      %s245 = smul.addr %s244, 4
      %s246 = scalar_lea.vmem %s4, %s245
      %p250 = scmp.eq.s32.totalorder %s18, 0
      // Predicated region
      $region37: #{bottleneck_forward.5} parent=35 // pred_check
        %p251 = pneg %p250
      $region38: #{bottleneck_forward.5} parent=35 // pred_check_branch
        %253 = sbr.rel (%p251) target = $region40
      $region39: #{bottleneck_forward.5} parent=35 // pred_region
        %254 = vst [vmem:[%s5] sm:$0x1] 0.0
        %255 = vst [vmem:[%s6] sm:$0x1] 0.0
      $region40: #{bottleneck_forward.5} parent=35 // pred_fallthru
        _
      %256 = vst [vmem:[#allocation2] sm:$0xff] 0
      %257 = vst [vmem:[#allocation2 + $0x8] sm:$0xff] 0
      %258 = vst [vmem:[#allocation2 + $0x90] sm:$0xff] 0
      %259 = vst [vmem:[#allocation2 + $0x98] sm:$0xff] 0
      %v260 = vld [vmem:[%s0] sm:$0x1]
      %v261 = vld [vmem:[%s1] sm:$0x1]
      %v262 = vld [vmem:[%s241] sm:$0xf]
      %v263 = vld [vmem:[%s241 + $0x4] sm:$0xf]
      %v264 = vld [vmem:[%s241 + $0x8] sm:$0xf]
      %v265 = vld [vmem:[%s241 + $0xc] sm:$0xf]
      %v266 = vld [vmem:[%s241 + $0x10] sm:$0xf]
      %v267 = vld [vmem:[%s241 + $0x14] sm:$0xf]
      %v268 = vld [vmem:[%s241 + $0x18] sm:$0xf]
      %v269 = vld [vmem:[%s241 + $0x1c] sm:$0xf]
      %v270 = vld [vmem:[%s241 + $0x20] sm:$0xf]
      %v271 = vld [vmem:[%s241 + $0x24] sm:$0xf]
      %v272 = vld [vmem:[%s241 + $0x28] sm:$0xf]
      %v273 = vld [vmem:[%s241 + $0x2c] sm:$0xf]
      %v274 = vld [vmem:[%s241 + $0x30] sm:$0xf]
      %v275 = vld [vmem:[%s241 + $0x34] sm:$0xf]
      %v276 = vld [vmem:[%s241 + $0x38] sm:$0xf]
      %v277 = vld [vmem:[%s241 + $0x3c] sm:$0xf]
      %v278 = vld [vmem:[%s241 + $0x40] sm:$0xf]
      %v279 = vld [vmem:[%s241 + $0x44] sm:$0xf]
      %v280 = vld [vmem:[%s241 + $0x48] sm:$0xf]
      %v281 = vld [vmem:[%s241 + $0x4c] sm:$0xf]
      %v282 = vld [vmem:[%s241 + $0x50] sm:$0xf]
      %v283 = vld [vmem:[%s241 + $0x54] sm:$0xf]
      %v284 = vld [vmem:[%s241 + $0x58] sm:$0xf]
      %v285 = vld [vmem:[%s241 + $0x5c] sm:$0xf]
      %v286 = vld [vmem:[%s241 + $0x60] sm:$0xf]
      %v287 = vld [vmem:[%s241 + $0x64] sm:$0xf]
      %v288 = vld [vmem:[%s241 + $0x68] sm:$0xf]
      %v289 = vld [vmem:[%s241 + $0x6c] sm:$0xf]
      %v290 = vld [vmem:[%s241 + $0x70] sm:$0xf]
      %v291 = vld [vmem:[%s241 + $0x74] sm:$0xf]
      %v292 = vld [vmem:[%s241 + $0x78] sm:$0xf]
      %v293 = vld [vmem:[%s241 + $0x7c] sm:$0xf]
      %v294 = vunpack.c.l.bf16 %v262
      %v295 = vunpack.c.l.bf16 %v263
      %v296 = vunpack.c.l.bf16 %v264
      %v297 = vunpack.c.l.bf16 %v265
      %v298 = vunpack.c.l.bf16 %v266
      %v299 = vunpack.c.l.bf16 %v267
      %v300 = vunpack.c.l.bf16 %v268
      %v301 = vunpack.c.l.bf16 %v269
      %v302 = vunpack.c.l.bf16 %v270
      %v303 = vunpack.c.l.bf16 %v271
      %v304 = vunpack.c.l.bf16 %v272
      %v305 = vunpack.c.l.bf16 %v273
      %v306 = vunpack.c.l.bf16 %v274
      %v307 = vunpack.c.l.bf16 %v275
      %v308 = vunpack.c.l.bf16 %v276
      %v309 = vunpack.c.l.bf16 %v277
      %v310 = vunpack.c.l.bf16 %v278
      %v311 = vunpack.c.l.bf16 %v279
      %v312 = vunpack.c.l.bf16 %v280
      %v313 = vunpack.c.l.bf16 %v281
      %v314 = vunpack.c.l.bf16 %v282
      %v315 = vunpack.c.l.bf16 %v283
      %v316 = vunpack.c.l.bf16 %v284
      %v317 = vunpack.c.l.bf16 %v285
      %v318 = vunpack.c.l.bf16 %v286
      %v319 = vunpack.c.l.bf16 %v287
      %v320 = vunpack.c.l.bf16 %v288
      %v321 = vunpack.c.l.bf16 %v289
      %v322 = vunpack.c.l.bf16 %v290
      %v323 = vunpack.c.l.bf16 %v291
      %v324 = vunpack.c.l.bf16 %v292
      %v325 = vunpack.c.l.bf16 %v293
      %v327 = vlaneseq
      %v328 = vshrl.u32 %v327, 7
      %v329 = vsub.s32 0, %v328
      %v330 = vrot.slane %v260, %v329
      %v332 = vmul.f32 %v294, %v330
      %v333 = vmul.f32 %v295, %v330
      %v334 = vmul.f32 %v296, %v330
      %v335 = vmul.f32 %v297, %v330
      %v336 = vmul.f32 %v298, %v330
      %v337 = vmul.f32 %v299, %v330
      %v338 = vmul.f32 %v300, %v330
      %v339 = vmul.f32 %v301, %v330
      %v340 = vmul.f32 %v302, %v330
      %v341 = vmul.f32 %v303, %v330
      %v342 = vmul.f32 %v304, %v330
      %v343 = vmul.f32 %v305, %v330
      %v344 = vmul.f32 %v306, %v330
      %v345 = vmul.f32 %v307, %v330
      %v346 = vmul.f32 %v308, %v330
      %v347 = vmul.f32 %v309, %v330
      %v348 = vmul.f32 %v310, %v330
      %v349 = vmul.f32 %v311, %v330
      %v350 = vmul.f32 %v312, %v330
      %v351 = vmul.f32 %v313, %v330
      %v352 = vmul.f32 %v314, %v330
      %v353 = vmul.f32 %v315, %v330
      %v354 = vmul.f32 %v316, %v330
      %v355 = vmul.f32 %v317, %v330
      %v356 = vmul.f32 %v318, %v330
      %v357 = vmul.f32 %v319, %v330
      %v358 = vmul.f32 %v320, %v330
      %v359 = vmul.f32 %v321, %v330
      %v360 = vmul.f32 %v322, %v330
      %v361 = vmul.f32 %v323, %v330
      %v362 = vmul.f32 %v324, %v330
      %v363 = vmul.f32 %v325, %v330
      %v365 = vlaneseq
      %v366 = vshrl.u32 %v365, 7
      %v367 = vsub.s32 0, %v366
      %v368 = vrot.slane %v261, %v367
      %v370 = vadd.f32 %v332, %v368
      %v371 = vadd.f32 %v333, %v368
      %v372 = vadd.f32 %v334, %v368
      %v373 = vadd.f32 %v335, %v368
      %v374 = vadd.f32 %v336, %v368
      %v375 = vadd.f32 %v337, %v368
      %v376 = vadd.f32 %v338, %v368
      %v377 = vadd.f32 %v339, %v368
      %v378 = vadd.f32 %v340, %v368
      %v379 = vadd.f32 %v341, %v368
      %v380 = vadd.f32 %v342, %v368
      %v381 = vadd.f32 %v343, %v368
      %v382 = vadd.f32 %v344, %v368
      %v383 = vadd.f32 %v345, %v368
      %v384 = vadd.f32 %v346, %v368
      %v385 = vadd.f32 %v347, %v368
      %v386 = vadd.f32 %v348, %v368
      %v387 = vadd.f32 %v349, %v368
      %v388 = vadd.f32 %v350, %v368
      %v389 = vadd.f32 %v351, %v368
      %v390 = vadd.f32 %v352, %v368
      %v391 = vadd.f32 %v353, %v368
      %v392 = vadd.f32 %v354, %v368
      %v393 = vadd.f32 %v355, %v368
      %v394 = vadd.f32 %v356, %v368
      %v395 = vadd.f32 %v357, %v368
      %v396 = vadd.f32 %v358, %v368
      %v397 = vadd.f32 %v359, %v368
      %v398 = vadd.f32 %v360, %v368
      %v399 = vadd.f32 %v361, %v368
      %v400 = vadd.f32 %v362, %v368
      %v401 = vadd.f32 %v363, %v368
      %v402 = vmax.f32 %v370, 0.0
      %v403 = vmax.f32 %v371, 0.0
      %v404 = vmax.f32 %v372, 0.0
      %v405 = vmax.f32 %v373, 0.0
      %v406 = vmax.f32 %v374, 0.0
      %v407 = vmax.f32 %v375, 0.0
      %v408 = vmax.f32 %v376, 0.0
      %v409 = vmax.f32 %v377, 0.0
      %v410 = vmax.f32 %v378, 0.0
      %v411 = vmax.f32 %v379, 0.0
      %v412 = vmax.f32 %v380, 0.0
      %v413 = vmax.f32 %v381, 0.0
      %v414 = vmax.f32 %v382, 0.0
      %v415 = vmax.f32 %v383, 0.0
      %v416 = vmax.f32 %v384, 0.0
      %v417 = vmax.f32 %v385, 0.0
      %v418 = vmax.f32 %v386, 0.0
      %v419 = vmax.f32 %v387, 0.0
      %v420 = vmax.f32 %v388, 0.0
      %v421 = vmax.f32 %v389, 0.0
      %v422 = vmax.f32 %v390, 0.0
      %v423 = vmax.f32 %v391, 0.0
      %v424 = vmax.f32 %v392, 0.0
      %v425 = vmax.f32 %v393, 0.0
      %v426 = vmax.f32 %v394, 0.0
      %v427 = vmax.f32 %v395, 0.0
      %v428 = vmax.f32 %v396, 0.0
      %v429 = vmax.f32 %v397, 0.0
      %v430 = vmax.f32 %v398, 0.0
      %v431 = vmax.f32 %v399, 0.0
      %v432 = vmax.f32 %v400, 0.0
      %v433 = vmax.f32 %v401, 0.0
      %v434 = vpack.c.bf16 %v403, %v402
      %v435 = vpack.c.bf16 %v405, %v404
      %v436 = vpack.c.bf16 %v407, %v406
      %v437 = vpack.c.bf16 %v409, %v408
      %v438 = vpack.c.bf16 %v411, %v410
      %v439 = vpack.c.bf16 %v413, %v412
      %v440 = vpack.c.bf16 %v415, %v414
      %v441 = vpack.c.bf16 %v417, %v416
      %v442 = vpack.c.bf16 %v419, %v418
      %v443 = vpack.c.bf16 %v421, %v420
      %v444 = vpack.c.bf16 %v423, %v422
      %v445 = vpack.c.bf16 %v425, %v424
      %v446 = vpack.c.bf16 %v427, %v426
      %v447 = vpack.c.bf16 %v429, %v428
      %v448 = vpack.c.bf16 %v431, %v430
      %v449 = vpack.c.bf16 %v433, %v432
      %450 = vst [vmem:[#allocation2 + $0x10] sm:$0xff] %v434
      %451 = vst [vmem:[#allocation2 + $0x18] sm:$0xff] %v435
      %452 = vst [vmem:[#allocation2 + $0x20] sm:$0xff] %v436
      %453 = vst [vmem:[#allocation2 + $0x28] sm:$0xff] %v437
      %454 = vst [vmem:[#allocation2 + $0x30] sm:$0xff] %v438
      %455 = vst [vmem:[#allocation2 + $0x38] sm:$0xff] %v439
      %456 = vst [vmem:[#allocation2 + $0x40] sm:$0xff] %v440
      %457 = vst [vmem:[#allocation2 + $0x48] sm:$0xff] %v441
      %458 = vst [vmem:[#allocation2 + $0x50] sm:$0xff] %v442
      %459 = vst [vmem:[#allocation2 + $0x58] sm:$0xff] %v443
      %460 = vst [vmem:[#allocation2 + $0x60] sm:$0xff] %v444
      %461 = vst [vmem:[#allocation2 + $0x68] sm:$0xff] %v445
      %462 = vst [vmem:[#allocation2 + $0x70] sm:$0xff] %v446
      %463 = vst [vmem:[#allocation2 + $0x78] sm:$0xff] %v447
      %464 = vst [vmem:[#allocation2 + $0x80] sm:$0xff] %v448
      %465 = vst [vmem:[#allocation2 + $0x88] sm:$0xff] %v449
      %v466 = vlaneseq
      %v467 = vshrl.u32 %v466, 7
      %v468 = vadd.s32 %v467, 8
      %v469 = vadd.s32 %v467, 16
      %v470 = vadd.s32 %v467, 24
      %v471 = vadd.s32 %v467, 32
      %v472 = vadd.s32 %v467, 40
      %v473 = vadd.s32 %v467, 48
      %v474 = vadd.s32 %v467, 56
      %v475 = vadd.s32 %v467, 64
      %v476 = vadd.s32 %v467, 72
      %v477 = vadd.s32 %v467, 80
      %v478 = vadd.s32 %v467, 88
      %v479 = vadd.s32 %v467, 96
      %v480 = vadd.s32 %v467, 104
      %v481 = vadd.s32 %v467, 112
      %v482 = vadd.s32 %v467, 120
      %v483 = vadd.s32 %v467, 128
      %v484 = vadd.s32 %v467, 136
      %v485 = vadd.s32 %v467, 144
      %v486 = vadd.s32 %v467, 152
      %v487 = vadd.s32 %v467, 160
      %v488 = vadd.s32 %v467, 168
      %v489 = vadd.s32 %v467, 176
      %v490 = vadd.s32 %v467, 184
      %v491 = vadd.s32 %v467, 192
      %v492 = vadd.s32 %v467, 200
      %v493 = vadd.s32 %v467, 208
      %v494 = vadd.s32 %v467, 216
      %v495 = vadd.s32 %v467, 224
      %v496 = vadd.s32 %v467, 232
      %v497 = vadd.s32 %v467, 240
      %v498 = vadd.s32 %v467, 248
      %vm499 = vcmp.lt.s32.totalorder %v467, 0
      %v500 = vsub.s32 0, %v467
      %v501 = vsel %vm499, %v500, %v467
      %v502 = vshrl.u32 %v501, 4
      %v503 = vand.u32 %v501, 15
      %v504 = vsub.s32 0, %v503
      %v505 = vsel %vm499, %v504, %v503
      %vm506 = vcmp.lt.s32.totalorder %v468, 0
      %v507 = vsub.s32 0, %v468
      %v508 = vsel %vm506, %v507, %v468
      %v509 = vshrl.u32 %v508, 4
      %v510 = vand.u32 %v508, 15
      %v511 = vsub.s32 0, %v510
      %v512 = vsel %vm506, %v511, %v510
      %vm513 = vcmp.lt.s32.totalorder %v469, 0
      %v514 = vsub.s32 0, %v469
      %v515 = vsel %vm513, %v514, %v469
      %v516 = vshrl.u32 %v515, 4
      %v517 = vand.u32 %v515, 15
      %v518 = vsub.s32 0, %v517
      %v519 = vsel %vm513, %v518, %v517
      %vm520 = vcmp.lt.s32.totalorder %v470, 0
      %v521 = vsub.s32 0, %v470
      %v522 = vsel %vm520, %v521, %v470
      %v523 = vshrl.u32 %v522, 4
      %v524 = vand.u32 %v522, 15
      %v525 = vsub.s32 0, %v524
      %v526 = vsel %vm520, %v525, %v524
      %vm527 = vcmp.lt.s32.totalorder %v471, 0
      %v528 = vsub.s32 0, %v471
      %v529 = vsel %vm527, %v528, %v471
      %v530 = vshrl.u32 %v529, 4
      %v531 = vand.u32 %v529, 15
      %v532 = vsub.s32 0, %v531
      %v533 = vsel %vm527, %v532, %v531
      %vm534 = vcmp.lt.s32.totalorder %v472, 0
      %v535 = vsub.s32 0, %v472
      %v536 = vsel %vm534, %v535, %v472
      %v537 = vshrl.u32 %v536, 4
      %v538 = vand.u32 %v536, 15
      %v539 = vsub.s32 0, %v538
      %v540 = vsel %vm534, %v539, %v538
      %vm541 = vcmp.lt.s32.totalorder %v473, 0
      %v542 = vsub.s32 0, %v473
      %v543 = vsel %vm541, %v542, %v473
      %v544 = vshrl.u32 %v543, 4
      %v545 = vand.u32 %v543, 15
      %v546 = vsub.s32 0, %v545
      %v547 = vsel %vm541, %v546, %v545
      %vm548 = vcmp.lt.s32.totalorder %v474, 0
      %v549 = vsub.s32 0, %v474
      %v550 = vsel %vm548, %v549, %v474
      %v551 = vshrl.u32 %v550, 4
      %v552 = vand.u32 %v550, 15
      %v553 = vsub.s32 0, %v552
      %v554 = vsel %vm548, %v553, %v552
      %vm555 = vcmp.lt.s32.totalorder %v475, 0
      %v556 = vsub.s32 0, %v475
      %v557 = vsel %vm555, %v556, %v475
      %v558 = vshrl.u32 %v557, 4
      %v559 = vand.u32 %v557, 15
      %v560 = vsub.s32 0, %v559
      %v561 = vsel %vm555, %v560, %v559
      %vm562 = vcmp.lt.s32.totalorder %v476, 0
      %v563 = vsub.s32 0, %v476
      %v564 = vsel %vm562, %v563, %v476
      %v565 = vshrl.u32 %v564, 4
      %v566 = vand.u32 %v564, 15
      %v567 = vsub.s32 0, %v566
      %v568 = vsel %vm562, %v567, %v566
      %vm569 = vcmp.lt.s32.totalorder %v477, 0
      %v570 = vsub.s32 0, %v477
      %v571 = vsel %vm569, %v570, %v477
      %v572 = vshrl.u32 %v571, 4
      %v573 = vand.u32 %v571, 15
      %v574 = vsub.s32 0, %v573
      %v575 = vsel %vm569, %v574, %v573
      %vm576 = vcmp.lt.s32.totalorder %v478, 0
      %v577 = vsub.s32 0, %v478
      %v578 = vsel %vm576, %v577, %v478
      %v579 = vshrl.u32 %v578, 4
      %v580 = vand.u32 %v578, 15
      %v581 = vsub.s32 0, %v580
      %v582 = vsel %vm576, %v581, %v580
      %vm583 = vcmp.lt.s32.totalorder %v479, 0
      %v584 = vsub.s32 0, %v479
      %v585 = vsel %vm583, %v584, %v479
      %v586 = vshrl.u32 %v585, 4
      %v587 = vand.u32 %v585, 15
      %v588 = vsub.s32 0, %v587
      %v589 = vsel %vm583, %v588, %v587
      %vm590 = vcmp.lt.s32.totalorder %v480, 0
      %v591 = vsub.s32 0, %v480
      %v592 = vsel %vm590, %v591, %v480
      %v593 = vshrl.u32 %v592, 4
      %v594 = vand.u32 %v592, 15
      %v595 = vsub.s32 0, %v594
      %v596 = vsel %vm590, %v595, %v594
      %vm597 = vcmp.lt.s32.totalorder %v481, 0
      %v598 = vsub.s32 0, %v481
      %v599 = vsel %vm597, %v598, %v481
      %v600 = vshrl.u32 %v599, 4
      %v601 = vand.u32 %v599, 15
      %v602 = vsub.s32 0, %v601
      %v603 = vsel %vm597, %v602, %v601
      %vm604 = vcmp.lt.s32.totalorder %v482, 0
      %v605 = vsub.s32 0, %v482
      %v606 = vsel %vm604, %v605, %v482
      %v607 = vshrl.u32 %v606, 4
      %v608 = vand.u32 %v606, 15
      %v609 = vsub.s32 0, %v608
      %v610 = vsel %vm604, %v609, %v608
      %vm611 = vcmp.lt.s32.totalorder %v483, 0
      %v612 = vsub.s32 0, %v483
      %v613 = vsel %vm611, %v612, %v483
      %v614 = vshrl.u32 %v613, 4
      %v615 = vand.u32 %v613, 15
      %v616 = vsub.s32 0, %v615
      %v617 = vsel %vm611, %v616, %v615
      %vm618 = vcmp.lt.s32.totalorder %v484, 0
      %v619 = vsub.s32 0, %v484
      %v620 = vsel %vm618, %v619, %v484
      %v621 = vshrl.u32 %v620, 4
      %v622 = vand.u32 %v620, 15
      %v623 = vsub.s32 0, %v622
      %v624 = vsel %vm618, %v623, %v622
      %vm625 = vcmp.lt.s32.totalorder %v485, 0
      %v626 = vsub.s32 0, %v485
      %v627 = vsel %vm625, %v626, %v485
      %v628 = vshrl.u32 %v627, 4
      %v629 = vand.u32 %v627, 15
      %v630 = vsub.s32 0, %v629
      %v631 = vsel %vm625, %v630, %v629
      %vm632 = vcmp.lt.s32.totalorder %v486, 0
      %v633 = vsub.s32 0, %v486
      %v634 = vsel %vm632, %v633, %v486
      %v635 = vshrl.u32 %v634, 4
      %v636 = vand.u32 %v634, 15
      %v637 = vsub.s32 0, %v636
      %v638 = vsel %vm632, %v637, %v636
      %vm639 = vcmp.lt.s32.totalorder %v487, 0
      %v640 = vsub.s32 0, %v487
      %v641 = vsel %vm639, %v640, %v487
      %v642 = vshrl.u32 %v641, 4
      %v643 = vand.u32 %v641, 15
      %v644 = vsub.s32 0, %v643
      %v645 = vsel %vm639, %v644, %v643
      %vm646 = vcmp.lt.s32.totalorder %v488, 0
      %v647 = vsub.s32 0, %v488
      %v648 = vsel %vm646, %v647, %v488
      %v649 = vshrl.u32 %v648, 4
      %v650 = vand.u32 %v648, 15
      %v651 = vsub.s32 0, %v650
      %v652 = vsel %vm646, %v651, %v650
      %vm653 = vcmp.lt.s32.totalorder %v489, 0
      %v654 = vsub.s32 0, %v489
      %v655 = vsel %vm653, %v654, %v489
      %v656 = vshrl.u32 %v655, 4
      %v657 = vand.u32 %v655, 15
      %v658 = vsub.s32 0, %v657
      %v659 = vsel %vm653, %v658, %v657
      %vm660 = vcmp.lt.s32.totalorder %v490, 0
      %v661 = vsub.s32 0, %v490
      %v662 = vsel %vm660, %v661, %v490
      %v663 = vshrl.u32 %v662, 4
      %v664 = vand.u32 %v662, 15
      %v665 = vsub.s32 0, %v664
      %v666 = vsel %vm660, %v665, %v664
      %vm667 = vcmp.lt.s32.totalorder %v491, 0
      %v668 = vsub.s32 0, %v491
      %v669 = vsel %vm667, %v668, %v491
      %v670 = vshrl.u32 %v669, 4
      %v671 = vand.u32 %v669, 15
      %v672 = vsub.s32 0, %v671
      %v673 = vsel %vm667, %v672, %v671
      %vm674 = vcmp.lt.s32.totalorder %v492, 0
      %v675 = vsub.s32 0, %v492
      %v676 = vsel %vm674, %v675, %v492
      %v677 = vshrl.u32 %v676, 4
      %v678 = vand.u32 %v676, 15
      %v679 = vsub.s32 0, %v678
      %v680 = vsel %vm674, %v679, %v678
      %vm681 = vcmp.lt.s32.totalorder %v493, 0
      %v682 = vsub.s32 0, %v493
      %v683 = vsel %vm681, %v682, %v493
      %v684 = vshrl.u32 %v683, 4
      %v685 = vand.u32 %v683, 15
      %v686 = vsub.s32 0, %v685
      %v687 = vsel %vm681, %v686, %v685
      %vm688 = vcmp.lt.s32.totalorder %v494, 0
      %v689 = vsub.s32 0, %v494
      %v690 = vsel %vm688, %v689, %v494
      %v691 = vshrl.u32 %v690, 4
      %v692 = vand.u32 %v690, 15
      %v693 = vsub.s32 0, %v692
      %v694 = vsel %vm688, %v693, %v692
      %vm695 = vcmp.lt.s32.totalorder %v495, 0
      %v696 = vsub.s32 0, %v495
      %v697 = vsel %vm695, %v696, %v495
      %v698 = vshrl.u32 %v697, 4
      %v699 = vand.u32 %v697, 15
      %v700 = vsub.s32 0, %v699
      %v701 = vsel %vm695, %v700, %v699
      %vm702 = vcmp.lt.s32.totalorder %v496, 0
      %v703 = vsub.s32 0, %v496
      %v704 = vsel %vm702, %v703, %v496
      %v705 = vshrl.u32 %v704, 4
      %v706 = vand.u32 %v704, 15
      %v707 = vsub.s32 0, %v706
      %v708 = vsel %vm702, %v707, %v706
      %vm709 = vcmp.lt.s32.totalorder %v497, 0
      %v710 = vsub.s32 0, %v497
      %v711 = vsel %vm709, %v710, %v497
      %v712 = vshrl.u32 %v711, 4
      %v713 = vand.u32 %v711, 15
      %v714 = vsub.s32 0, %v713
      %v715 = vsel %vm709, %v714, %v713
      %vm716 = vcmp.lt.s32.totalorder %v498, 0
      %v717 = vsub.s32 0, %v498
      %v718 = vsel %vm716, %v717, %v498
      %v719 = vshrl.u32 %v718, 4
      %v720 = vand.u32 %v718, 15
      %v721 = vsub.s32 0, %v720
      %v722 = vsel %vm716, %v721, %v720
      %vm723 = vcmp.ne.s32.totalorder %v505, 0
      %vm724 = vcmp.ne.s32.totalorder %v512, 0
      %vm725 = vcmp.ne.s32.totalorder %v519, 0
      %vm726 = vcmp.ne.s32.totalorder %v526, 0
      %vm727 = vcmp.ne.s32.totalorder %v533, 0
      %vm728 = vcmp.ne.s32.totalorder %v540, 0
      %vm729 = vcmp.ne.s32.totalorder %v547, 0
      %vm730 = vcmp.ne.s32.totalorder %v554, 0
      %vm731 = vcmp.ne.s32.totalorder %v561, 0
      %vm732 = vcmp.ne.s32.totalorder %v568, 0
      %vm733 = vcmp.ne.s32.totalorder %v575, 0
      %vm734 = vcmp.ne.s32.totalorder %v582, 0
      %vm735 = vcmp.ne.s32.totalorder %v589, 0
      %vm736 = vcmp.ne.s32.totalorder %v596, 0
      %vm737 = vcmp.ne.s32.totalorder %v603, 0
      %vm738 = vcmp.ne.s32.totalorder %v610, 0
      %vm739 = vcmp.ne.s32.totalorder %v617, 0
      %vm740 = vcmp.ne.s32.totalorder %v624, 0
      %vm741 = vcmp.ne.s32.totalorder %v631, 0
      %vm742 = vcmp.ne.s32.totalorder %v638, 0
      %vm743 = vcmp.ne.s32.totalorder %v645, 0
      %vm744 = vcmp.ne.s32.totalorder %v652, 0
      %vm745 = vcmp.ne.s32.totalorder %v659, 0
      %vm746 = vcmp.ne.s32.totalorder %v666, 0
      %vm747 = vcmp.ne.s32.totalorder %v673, 0
      %vm748 = vcmp.ne.s32.totalorder %v680, 0
      %vm749 = vcmp.ne.s32.totalorder %v687, 0
      %vm750 = vcmp.ne.s32.totalorder %v694, 0
      %vm751 = vcmp.ne.s32.totalorder %v701, 0
      %vm752 = vcmp.ne.s32.totalorder %v708, 0
      %vm753 = vcmp.ne.s32.totalorder %v715, 0
      %vm754 = vcmp.ne.s32.totalorder %v722, 0
      %vm755 = vcmp.lt.s32.totalorder %v505, 0
      %vm756 = vcmp.lt.s32.totalorder %v512, 0
      %vm757 = vcmp.lt.s32.totalorder %v519, 0
      %vm758 = vcmp.lt.s32.totalorder %v526, 0
      %vm759 = vcmp.lt.s32.totalorder %v533, 0
      %vm760 = vcmp.lt.s32.totalorder %v540, 0
      %vm761 = vcmp.lt.s32.totalorder %v547, 0
      %vm762 = vcmp.lt.s32.totalorder %v554, 0
      %vm763 = vcmp.lt.s32.totalorder %v561, 0
      %vm764 = vcmp.lt.s32.totalorder %v568, 0
      %vm765 = vcmp.lt.s32.totalorder %v575, 0
      %vm766 = vcmp.lt.s32.totalorder %v582, 0
      %vm767 = vcmp.lt.s32.totalorder %v589, 0
      %vm768 = vcmp.lt.s32.totalorder %v596, 0
      %vm769 = vcmp.lt.s32.totalorder %v603, 0
      %vm770 = vcmp.lt.s32.totalorder %v610, 0
      %vm771 = vcmp.lt.s32.totalorder %v617, 0
      %vm772 = vcmp.lt.s32.totalorder %v624, 0
      %vm773 = vcmp.lt.s32.totalorder %v631, 0
      %vm774 = vcmp.lt.s32.totalorder %v638, 0
      %vm775 = vcmp.lt.s32.totalorder %v645, 0
      %vm776 = vcmp.lt.s32.totalorder %v652, 0
      %vm777 = vcmp.lt.s32.totalorder %v659, 0
      %vm778 = vcmp.lt.s32.totalorder %v666, 0
      %vm779 = vcmp.lt.s32.totalorder %v673, 0
      %vm780 = vcmp.lt.s32.totalorder %v680, 0
      %vm781 = vcmp.lt.s32.totalorder %v687, 0
      %vm782 = vcmp.lt.s32.totalorder %v694, 0
      %vm783 = vcmp.lt.s32.totalorder %v701, 0
      %vm784 = vcmp.lt.s32.totalorder %v708, 0
      %vm785 = vcmp.lt.s32.totalorder %v715, 0
      %vm786 = vcmp.lt.s32.totalorder %v722, 0
      %vm787 = vmand %vm755, %vm723
      %vm788 = vmand %vm756, %vm724
      %vm789 = vmand %vm757, %vm725
      %vm790 = vmand %vm758, %vm726
      %vm791 = vmand %vm759, %vm727
      %vm792 = vmand %vm760, %vm728
      %vm793 = vmand %vm761, %vm729
      %vm794 = vmand %vm762, %vm730
      %vm795 = vmand %vm763, %vm731
      %vm796 = vmand %vm764, %vm732
      %vm797 = vmand %vm765, %vm733
      %vm798 = vmand %vm766, %vm734
      %vm799 = vmand %vm767, %vm735
      %vm800 = vmand %vm768, %vm736
      %vm801 = vmand %vm769, %vm737
      %vm802 = vmand %vm770, %vm738
      %vm803 = vmand %vm771, %vm739
      %vm804 = vmand %vm772, %vm740
      %vm805 = vmand %vm773, %vm741
      %vm806 = vmand %vm774, %vm742
      %vm807 = vmand %vm775, %vm743
      %vm808 = vmand %vm776, %vm744
      %vm809 = vmand %vm777, %vm745
      %vm810 = vmand %vm778, %vm746
      %vm811 = vmand %vm779, %vm747
      %vm812 = vmand %vm780, %vm748
      %vm813 = vmand %vm781, %vm749
      %vm814 = vmand %vm782, %vm750
      %vm815 = vmand %vm783, %vm751
      %vm816 = vmand %vm784, %vm752
      %vm817 = vmand %vm785, %vm753
      %vm818 = vmand %vm786, %vm754
      %v819 = vadd.s32 %v505, 16
      %v820 = vadd.s32 %v512, 16
      %v821 = vadd.s32 %v519, 16
      %v822 = vadd.s32 %v526, 16
      %v823 = vadd.s32 %v533, 16
      %v824 = vadd.s32 %v540, 16
      %v825 = vadd.s32 %v547, 16
      %v826 = vadd.s32 %v554, 16
      %v827 = vadd.s32 %v561, 16
      %v828 = vadd.s32 %v568, 16
      %v829 = vadd.s32 %v575, 16
      %v830 = vadd.s32 %v582, 16
      %v831 = vadd.s32 %v589, 16
      %v832 = vadd.s32 %v596, 16
      %v833 = vadd.s32 %v603, 16
      %v834 = vadd.s32 %v610, 16
      %v835 = vadd.s32 %v617, 16
      %v836 = vadd.s32 %v624, 16
      %v837 = vadd.s32 %v631, 16
      %v838 = vadd.s32 %v638, 16
      %v839 = vadd.s32 %v645, 16
      %v840 = vadd.s32 %v652, 16
      %v841 = vadd.s32 %v659, 16
      %v842 = vadd.s32 %v666, 16
      %v843 = vadd.s32 %v673, 16
      %v844 = vadd.s32 %v680, 16
      %v845 = vadd.s32 %v687, 16
      %v846 = vadd.s32 %v694, 16
      %v847 = vadd.s32 %v701, 16
      %v848 = vadd.s32 %v708, 16
      %v849 = vadd.s32 %v715, 16
      %v850 = vadd.s32 %v722, 16
      %v851 = vsel %vm787, %v819, %v505
      %v852 = vsel %vm788, %v820, %v512
      %v853 = vsel %vm789, %v821, %v519
      %v854 = vsel %vm790, %v822, %v526
      %v855 = vsel %vm791, %v823, %v533
      %v856 = vsel %vm792, %v824, %v540
      %v857 = vsel %vm793, %v825, %v547
      %v858 = vsel %vm794, %v826, %v554
      %v859 = vsel %vm795, %v827, %v561
      %v860 = vsel %vm796, %v828, %v568
      %v861 = vsel %vm797, %v829, %v575
      %v862 = vsel %vm798, %v830, %v582
      %v863 = vsel %vm799, %v831, %v589
      %v864 = vsel %vm800, %v832, %v596
      %v865 = vsel %vm801, %v833, %v603
      %v866 = vsel %vm802, %v834, %v610
      %v867 = vsel %vm803, %v835, %v617
      %v868 = vsel %vm804, %v836, %v624
      %v869 = vsel %vm805, %v837, %v631
      %v870 = vsel %vm806, %v838, %v638
      %v871 = vsel %vm807, %v839, %v645
      %v872 = vsel %vm808, %v840, %v652
      %v873 = vsel %vm809, %v841, %v659
      %v874 = vsel %vm810, %v842, %v666
      %v875 = vsel %vm811, %v843, %v673
      %v876 = vsel %vm812, %v844, %v680
      %v877 = vsel %vm813, %v845, %v687
      %v878 = vsel %vm814, %v846, %v694
      %v879 = vsel %vm815, %v847, %v701
      %v880 = vsel %vm816, %v848, %v708
      %v881 = vsel %vm817, %v849, %v715
      %v882 = vsel %vm818, %v850, %v722
      %vm883 = vcmp.gt.s32.totalorder %v851, 0
      %vm884 = vcmp.gt.s32.totalorder %v852, 0
      %vm885 = vcmp.gt.s32.totalorder %v853, 0
      %vm886 = vcmp.gt.s32.totalorder %v854, 0
      %vm887 = vcmp.gt.s32.totalorder %v855, 0
      %vm888 = vcmp.gt.s32.totalorder %v856, 0
      %vm889 = vcmp.gt.s32.totalorder %v857, 0
      %vm890 = vcmp.gt.s32.totalorder %v858, 0
      %vm891 = vcmp.gt.s32.totalorder %v859, 0
      %vm892 = vcmp.gt.s32.totalorder %v860, 0
      %vm893 = vcmp.gt.s32.totalorder %v861, 0
      %vm894 = vcmp.gt.s32.totalorder %v862, 0
      %vm895 = vcmp.gt.s32.totalorder %v863, 0
      %vm896 = vcmp.gt.s32.totalorder %v864, 0
      %vm897 = vcmp.gt.s32.totalorder %v865, 0
      %vm898 = vcmp.gt.s32.totalorder %v866, 0
      %vm899 = vcmp.gt.s32.totalorder %v867, 0
      %vm900 = vcmp.gt.s32.totalorder %v868, 0
      %vm901 = vcmp.gt.s32.totalorder %v869, 0
      %vm902 = vcmp.gt.s32.totalorder %v870, 0
      %vm903 = vcmp.gt.s32.totalorder %v871, 0
      %vm904 = vcmp.gt.s32.totalorder %v872, 0
      %vm905 = vcmp.gt.s32.totalorder %v873, 0
      %vm906 = vcmp.gt.s32.totalorder %v874, 0
      %vm907 = vcmp.gt.s32.totalorder %v875, 0
      %vm908 = vcmp.gt.s32.totalorder %v876, 0
      %vm909 = vcmp.gt.s32.totalorder %v877, 0
      %vm910 = vcmp.gt.s32.totalorder %v878, 0
      %vm911 = vcmp.gt.s32.totalorder %v879, 0
      %vm912 = vcmp.gt.s32.totalorder %v880, 0
      %vm913 = vcmp.gt.s32.totalorder %v881, 0
      %vm914 = vcmp.gt.s32.totalorder %v882, 0
      %vm915 = vcmp.lt.s32.totalorder %v851, 15
      %vm916 = vcmp.lt.s32.totalorder %v852, 15
      %vm917 = vcmp.lt.s32.totalorder %v853, 15
      %vm918 = vcmp.lt.s32.totalorder %v854, 15
      %vm919 = vcmp.lt.s32.totalorder %v855, 15
      %vm920 = vcmp.lt.s32.totalorder %v856, 15
      %vm921 = vcmp.lt.s32.totalorder %v857, 15
      %vm922 = vcmp.lt.s32.totalorder %v858, 15
      %vm923 = vcmp.lt.s32.totalorder %v859, 15
      %vm924 = vcmp.lt.s32.totalorder %v860, 15
      %vm925 = vcmp.lt.s32.totalorder %v861, 15
      %vm926 = vcmp.lt.s32.totalorder %v862, 15
      %vm927 = vcmp.lt.s32.totalorder %v863, 15
      %vm928 = vcmp.lt.s32.totalorder %v864, 15
      %vm929 = vcmp.lt.s32.totalorder %v865, 15
      %vm930 = vcmp.lt.s32.totalorder %v866, 15
      %vm931 = vcmp.lt.s32.totalorder %v867, 15
      %vm932 = vcmp.lt.s32.totalorder %v868, 15
      %vm933 = vcmp.lt.s32.totalorder %v869, 15
      %vm934 = vcmp.lt.s32.totalorder %v870, 15
      %vm935 = vcmp.lt.s32.totalorder %v871, 15
      %vm936 = vcmp.lt.s32.totalorder %v872, 15
      %vm937 = vcmp.lt.s32.totalorder %v873, 15
      %vm938 = vcmp.lt.s32.totalorder %v874, 15
      %vm939 = vcmp.lt.s32.totalorder %v875, 15
      %vm940 = vcmp.lt.s32.totalorder %v876, 15
      %vm941 = vcmp.lt.s32.totalorder %v877, 15
      %vm942 = vcmp.lt.s32.totalorder %v878, 15
      %vm943 = vcmp.lt.s32.totalorder %v879, 15
      %vm944 = vcmp.lt.s32.totalorder %v880, 15
      %vm945 = vcmp.lt.s32.totalorder %v881, 15
      %vm946 = vcmp.lt.s32.totalorder %v882, 15
      %v947 = vld [vmem:[#allocation2] sm:$0x80]
      %v948 = vld [vmem:[#allocation2 + $0x8] sm:$0xff]
      %v949 = vld [vmem:[#allocation2 + $0x10] sm:$0xff]
      %v950 = vld [vmem:[#allocation2 + $0x18] sm:$0xff]
      %v951 = vld [vmem:[#allocation2 + $0x20] sm:$0xff]
      %v952 = vld [vmem:[#allocation2 + $0x28] sm:$0xff]
      %v953 = vld [vmem:[#allocation2 + $0x30] sm:$0xff]
      %v954 = vld [vmem:[#allocation2 + $0x38] sm:$0xff]
      %v955 = vld [vmem:[#allocation2 + $0x40] sm:$0xff]
      %v956 = vld [vmem:[#allocation2 + $0x48] sm:$0xff]
      %v957 = vld [vmem:[#allocation2 + $0x50] sm:$0xff]
      %v958 = vld [vmem:[#allocation2 + $0x58] sm:$0xff]
      %v959 = vld [vmem:[#allocation2 + $0x60] sm:$0xff]
      %v960 = vld [vmem:[#allocation2 + $0x68] sm:$0xff]
      %v961 = vld [vmem:[#allocation2 + $0x70] sm:$0xff]
      %v962 = vld [vmem:[#allocation2 + $0x78] sm:$0xff]
      %v963 = vld [vmem:[#allocation2 + $0x80] sm:$0xff]
      %v964 = vsel %vm883, 1, 0
      %v965 = vsel %vm884, 1, 0
      %v966 = vsel %vm885, 1, 0
      %v967 = vsel %vm886, 1, 0
      %v968 = vsel %vm887, 1, 0
      %v969 = vsel %vm888, 1, 0
      %v970 = vsel %vm889, 1, 0
      %v971 = vsel %vm890, 1, 0
      %v972 = vsel %vm891, 1, 0
      %v973 = vsel %vm892, 1, 0
      %v974 = vsel %vm893, 1, 0
      %v975 = vsel %vm894, 1, 0
      %v976 = vsel %vm895, 1, 0
      %v977 = vsel %vm896, 1, 0
      %v978 = vsel %vm897, 1, 0
      %v979 = vsel %vm898, 1, 0
      %v980 = vsel %vm899, 1, 0
      %v981 = vsel %vm900, 1, 0
      %v982 = vsel %vm901, 1, 0
      %v983 = vsel %vm902, 1, 0
      %v984 = vsel %vm903, 1, 0
      %v985 = vsel %vm904, 1, 0
      %v986 = vsel %vm905, 1, 0
      %v987 = vsel %vm906, 1, 0
      %v988 = vsel %vm907, 1, 0
      %v989 = vsel %vm908, 1, 0
      %v990 = vsel %vm909, 1, 0
      %v991 = vsel %vm910, 1, 0
      %v992 = vsel %vm911, 1, 0
      %v993 = vsel %vm912, 1, 0
      %v994 = vsel %vm913, 1, 0
      %v995 = vsel %vm914, 1, 0
      %vm996 = vcmp.eq.s32.totalorder %v964, 1
      %vm997 = vcmp.eq.s32.totalorder %v965, 1
      %vm998 = vcmp.eq.s32.totalorder %v966, 1
      %vm999 = vcmp.eq.s32.totalorder %v967, 1
      %vm1000 = vcmp.eq.s32.totalorder %v968, 1
      %vm1001 = vcmp.eq.s32.totalorder %v969, 1
      %vm1002 = vcmp.eq.s32.totalorder %v970, 1
      %vm1003 = vcmp.eq.s32.totalorder %v971, 1
      %vm1004 = vcmp.eq.s32.totalorder %v972, 1
      %vm1005 = vcmp.eq.s32.totalorder %v973, 1
      %vm1006 = vcmp.eq.s32.totalorder %v974, 1
      %vm1007 = vcmp.eq.s32.totalorder %v975, 1
      %vm1008 = vcmp.eq.s32.totalorder %v976, 1
      %vm1009 = vcmp.eq.s32.totalorder %v977, 1
      %vm1010 = vcmp.eq.s32.totalorder %v978, 1
      %vm1011 = vcmp.eq.s32.totalorder %v979, 1
      %vm1012 = vcmp.eq.s32.totalorder %v980, 1
      %vm1013 = vcmp.eq.s32.totalorder %v981, 1
      %vm1014 = vcmp.eq.s32.totalorder %v982, 1
      %vm1015 = vcmp.eq.s32.totalorder %v983, 1
      %vm1016 = vcmp.eq.s32.totalorder %v984, 1
      %vm1017 = vcmp.eq.s32.totalorder %v985, 1
      %vm1018 = vcmp.eq.s32.totalorder %v986, 1
      %vm1019 = vcmp.eq.s32.totalorder %v987, 1
      %vm1020 = vcmp.eq.s32.totalorder %v988, 1
      %vm1021 = vcmp.eq.s32.totalorder %v989, 1
      %vm1022 = vcmp.eq.s32.totalorder %v990, 1
      %vm1023 = vcmp.eq.s32.totalorder %v991, 1
      %vm1024 = vcmp.eq.s32.totalorder %v992, 1
      %vm1025 = vcmp.eq.s32.totalorder %v993, 1
      %vm1026 = vcmp.eq.s32.totalorder %v994, 1
      %vm1027 = vcmp.eq.s32.totalorder %v995, 1
      %vm1028 = vmpackc.low %vm996, %vm996
      %vm1029 = vmpackc.low %vm997, %vm997
      %vm1030 = vmpackc.low %vm998, %vm998
      %vm1031 = vmpackc.low %vm999, %vm999
      %vm1032 = vmpackc.low %vm1000, %vm1000
      %vm1033 = vmpackc.low %vm1001, %vm1001
      %vm1034 = vmpackc.low %vm1002, %vm1002
      %vm1035 = vmpackc.low %vm1003, %vm1003
      %vm1036 = vmpackc.low %vm1004, %vm1004
      %vm1037 = vmpackc.low %vm1005, %vm1005
      %vm1038 = vmpackc.low %vm1006, %vm1006
      %vm1039 = vmpackc.low %vm1007, %vm1007
      %vm1040 = vmpackc.low %vm1008, %vm1008
      %vm1041 = vmpackc.low %vm1009, %vm1009
      %vm1042 = vmpackc.low %vm1010, %vm1010
      %vm1043 = vmpackc.low %vm1011, %vm1011
      %vm1044 = vmpackc.low %vm1012, %vm1012
      %vm1045 = vmpackc.low %vm1013, %vm1013
      %vm1046 = vmpackc.low %vm1014, %vm1014
      %vm1047 = vmpackc.low %vm1015, %vm1015
      %vm1048 = vmpackc.low %vm1016, %vm1016
      %vm1049 = vmpackc.low %vm1017, %vm1017
      %vm1050 = vmpackc.low %vm1018, %vm1018
      %vm1051 = vmpackc.low %vm1019, %vm1019
      %vm1052 = vmpackc.low %vm1020, %vm1020
      %vm1053 = vmpackc.low %vm1021, %vm1021
      %vm1054 = vmpackc.low %vm1022, %vm1022
      %vm1055 = vmpackc.low %vm1023, %vm1023
      %vm1056 = vmpackc.low %vm1024, %vm1024
      %vm1057 = vmpackc.low %vm1025, %vm1025
      %vm1058 = vmpackc.low %vm1026, %vm1026
      %vm1059 = vmpackc.low %vm1027, %vm1027
      %v1060 = vsel %vm1028, 65537, 0
      %v1061 = vsel %vm1029, 65537, 0
      %v1062 = vsel %vm1030, 65537, 0
      %v1063 = vsel %vm1031, 65537, 0
      %v1064 = vsel %vm1032, 65537, 0
      %v1065 = vsel %vm1033, 65537, 0
      %v1066 = vsel %vm1034, 65537, 0
      %v1067 = vsel %vm1035, 65537, 0
      %v1068 = vsel %vm1036, 65537, 0
      %v1069 = vsel %vm1037, 65537, 0
      %v1070 = vsel %vm1038, 65537, 0
      %v1071 = vsel %vm1039, 65537, 0
      %v1072 = vsel %vm1040, 65537, 0
      %v1073 = vsel %vm1041, 65537, 0
      %v1074 = vsel %vm1042, 65537, 0
      %v1075 = vsel %vm1043, 65537, 0
      %v1076 = vsel %vm1044, 65537, 0
      %v1077 = vsel %vm1045, 65537, 0
      %v1078 = vsel %vm1046, 65537, 0
      %v1079 = vsel %vm1047, 65537, 0
      %v1080 = vsel %vm1048, 65537, 0
      %v1081 = vsel %vm1049, 65537, 0
      %v1082 = vsel %vm1050, 65537, 0
      %v1083 = vsel %vm1051, 65537, 0
      %v1084 = vsel %vm1052, 65537, 0
      %v1085 = vsel %vm1053, 65537, 0
      %v1086 = vsel %vm1054, 65537, 0
      %v1087 = vsel %vm1055, 65537, 0
      %v1088 = vsel %vm1056, 65537, 0
      %v1089 = vsel %vm1057, 65537, 0
      %v1090 = vsel %vm1058, 65537, 0
      %v1091 = vsel %vm1059, 65537, 0
      %v1092 = vunpack.c.l.b16 %v1060
      %v1093 = vunpack.c.l.b16 %v1061
      %v1094 = vunpack.c.l.b16 %v1062
      %v1095 = vunpack.c.l.b16 %v1063
      %v1096 = vunpack.c.l.b16 %v1064
      %v1097 = vunpack.c.l.b16 %v1065
      %v1098 = vunpack.c.l.b16 %v1066
      %v1099 = vunpack.c.l.b16 %v1067
      %v1100 = vunpack.c.l.b16 %v1068
      %v1101 = vunpack.c.l.b16 %v1069
      %v1102 = vunpack.c.l.b16 %v1070
      %v1103 = vunpack.c.l.b16 %v1071
      %v1104 = vunpack.c.l.b16 %v1072
      %v1105 = vunpack.c.l.b16 %v1073
      %v1106 = vunpack.c.l.b16 %v1074
      %v1107 = vunpack.c.l.b16 %v1075
      %v1108 = vunpack.c.l.b16 %v1076
      %v1109 = vunpack.c.l.b16 %v1077
      %v1110 = vunpack.c.l.b16 %v1078
      %v1111 = vunpack.c.l.b16 %v1079
      %v1112 = vunpack.c.l.b16 %v1080
      %v1113 = vunpack.c.l.b16 %v1081
      %v1114 = vunpack.c.l.b16 %v1082
      %v1115 = vunpack.c.l.b16 %v1083
      %v1116 = vunpack.c.l.b16 %v1084
      %v1117 = vunpack.c.l.b16 %v1085
      %v1118 = vunpack.c.l.b16 %v1086
      %v1119 = vunpack.c.l.b16 %v1087
      %v1120 = vunpack.c.l.b16 %v1088
      %v1121 = vunpack.c.l.b16 %v1089
      %v1122 = vunpack.c.l.b16 %v1090
      %v1123 = vunpack.c.l.b16 %v1091
      %v1124 = vpack.c.b16 %v1093, %v1092
      %v1125 = vpack.c.b16 %v1095, %v1094
      %v1126 = vpack.c.b16 %v1097, %v1096
      %v1127 = vpack.c.b16 %v1099, %v1098
      %v1128 = vpack.c.b16 %v1101, %v1100
      %v1129 = vpack.c.b16 %v1103, %v1102
      %v1130 = vpack.c.b16 %v1105, %v1104
      %v1131 = vpack.c.b16 %v1107, %v1106
      %v1132 = vpack.c.b16 %v1109, %v1108
      %v1133 = vpack.c.b16 %v1111, %v1110
      %v1134 = vpack.c.b16 %v1113, %v1112
      %v1135 = vpack.c.b16 %v1115, %v1114
      %v1136 = vpack.c.b16 %v1117, %v1116
      %v1137 = vpack.c.b16 %v1119, %v1118
      %v1138 = vpack.c.b16 %v1121, %v1120
      %v1139 = vpack.c.b16 %v1123, %v1122
      %vm1140 = vsmask.f32 7424
      %v1142 = vshll.u32 %v1124, 16
      %v1144 = vrot.slane %v1142, 1
      %v1145 = vshrl.u32 %v1124, 16
      %v1147 = vor.u32 %v1145, %v1144
      %v1149 = vshll.u32 %v1125, 16
      %v1151 = vrot.slane %v1149, 1
      %v1152 = vsel %vm1140, %v1147, %v1151
      %v1153 = vshrl.u32 %v1125, 16
      %v1155 = vor.u32 %v1153, %v1151
      %v1157 = vshll.u32 %v1126, 16
      %v1159 = vrot.slane %v1157, 1
      %v1160 = vsel %vm1140, %v1155, %v1159
      %v1161 = vshrl.u32 %v1126, 16
      %v1163 = vor.u32 %v1161, %v1159
      %v1165 = vshll.u32 %v1127, 16
      %v1167 = vrot.slane %v1165, 1
      %v1168 = vsel %vm1140, %v1163, %v1167
      %v1169 = vshrl.u32 %v1127, 16
      %v1171 = vor.u32 %v1169, %v1167
      %v1173 = vshll.u32 %v1128, 16
      %v1175 = vrot.slane %v1173, 1
      %v1176 = vsel %vm1140, %v1171, %v1175
      %v1177 = vshrl.u32 %v1128, 16
      %v1179 = vor.u32 %v1177, %v1175
      %v1181 = vshll.u32 %v1129, 16
      %v1183 = vrot.slane %v1181, 1
      %v1184 = vsel %vm1140, %v1179, %v1183
      %v1185 = vshrl.u32 %v1129, 16
      %v1187 = vor.u32 %v1185, %v1183
      %v1189 = vshll.u32 %v1130, 16
      %v1191 = vrot.slane %v1189, 1
      %v1192 = vsel %vm1140, %v1187, %v1191
      %v1193 = vshrl.u32 %v1130, 16
      %v1195 = vor.u32 %v1193, %v1191
      %v1197 = vshll.u32 %v1131, 16
      %v1199 = vrot.slane %v1197, 1
      %v1200 = vsel %vm1140, %v1195, %v1199
      %v1201 = vshrl.u32 %v1131, 16
      %v1203 = vor.u32 %v1201, %v1199
      %v1205 = vshll.u32 %v1132, 16
      %v1207 = vrot.slane %v1205, 1
      %v1208 = vsel %vm1140, %v1203, %v1207
      %v1209 = vshrl.u32 %v1132, 16
      %v1211 = vor.u32 %v1209, %v1207
      %v1213 = vshll.u32 %v1133, 16
      %v1215 = vrot.slane %v1213, 1
      %v1216 = vsel %vm1140, %v1211, %v1215
      %v1217 = vshrl.u32 %v1133, 16
      %v1219 = vor.u32 %v1217, %v1215
      %v1221 = vshll.u32 %v1134, 16
      %v1223 = vrot.slane %v1221, 1
      %v1224 = vsel %vm1140, %v1219, %v1223
      %v1225 = vshrl.u32 %v1134, 16
      %v1227 = vor.u32 %v1225, %v1223
      %v1229 = vshll.u32 %v1135, 16
      %v1231 = vrot.slane %v1229, 1
      %v1232 = vsel %vm1140, %v1227, %v1231
      %v1233 = vshrl.u32 %v1135, 16
      %v1235 = vor.u32 %v1233, %v1231
      %v1237 = vshll.u32 %v1136, 16
      %v1239 = vrot.slane %v1237, 1
      %v1240 = vsel %vm1140, %v1235, %v1239
      %v1241 = vshrl.u32 %v1136, 16
      %v1243 = vor.u32 %v1241, %v1239
      %v1245 = vshll.u32 %v1137, 16
      %v1247 = vrot.slane %v1245, 1
      %v1248 = vsel %vm1140, %v1243, %v1247
      %v1249 = vshrl.u32 %v1137, 16
      %v1251 = vor.u32 %v1249, %v1247
      %v1253 = vshll.u32 %v1138, 16
      %v1255 = vrot.slane %v1253, 1
      %v1256 = vsel %vm1140, %v1251, %v1255
      %v1257 = vshrl.u32 %v1138, 16
      %v1259 = vor.u32 %v1257, %v1255
      %v1261 = vshll.u32 %v1139, 16
      %v1263 = vrot.slane %v1261, 1
      %v1264 = vsel %vm1140, %v1259, %v1263
      %v1265 = vshrl.u32 %v1139, 16
      %v1267 = vor.u32 %v1265, %v1263
      %vm1268 = vcmp.ne.s16.totalorder %v1144, 0
      %vm1269 = vcmp.ne.s16.totalorder %v1152, 0
      %vm1270 = vcmp.ne.s16.totalorder %v1160, 0
      %vm1271 = vcmp.ne.s16.totalorder %v1168, 0
      %vm1272 = vcmp.ne.s16.totalorder %v1176, 0
      %vm1273 = vcmp.ne.s16.totalorder %v1184, 0
      %vm1274 = vcmp.ne.s16.totalorder %v1192, 0
      %vm1275 = vcmp.ne.s16.totalorder %v1200, 0
      %vm1276 = vcmp.ne.s16.totalorder %v1208, 0
      %vm1277 = vcmp.ne.s16.totalorder %v1216, 0
      %vm1278 = vcmp.ne.s16.totalorder %v1224, 0
      %vm1279 = vcmp.ne.s16.totalorder %v1232, 0
      %vm1280 = vcmp.ne.s16.totalorder %v1240, 0
      %vm1281 = vcmp.ne.s16.totalorder %v1248, 0
      %vm1282 = vcmp.ne.s16.totalorder %v1256, 0
      %vm1283 = vcmp.ne.s16.totalorder %v1264, 0
      %vm1284 = vcmp.ne.s16.totalorder %v1267, 0
      %v1285 = vsel %vm1268, %v947, 0
      %v1286 = vsel %vm1269, %v948, 0
      %v1287 = vsel %vm1270, %v949, 0
      %v1288 = vsel %vm1271, %v950, 0
      %v1289 = vsel %vm1272, %v951, 0
      %v1290 = vsel %vm1273, %v952, 0
      %v1291 = vsel %vm1274, %v953, 0
      %v1292 = vsel %vm1275, %v954, 0
      %v1293 = vsel %vm1276, %v955, 0
      %v1294 = vsel %vm1277, %v956, 0
      %v1295 = vsel %vm1278, %v957, 0
      %v1296 = vsel %vm1279, %v958, 0
      %v1297 = vsel %vm1280, %v959, 0
      %v1298 = vsel %vm1281, %v960, 0
      %v1299 = vsel %vm1282, %v961, 0
      %v1300 = vsel %vm1283, %v962, 0
      %v1301 = vsel %vm1284, %v963, 0
      %vm1302 = vsmask.f32 256
      %v1304 = vshrl.u32 %v1285, 16
      %v1306 = vrot.slane %v1304, 7
      %v1308 = vshrl.u32 %v1286, 16
      %v1310 = vrot.slane %v1308, 7
      %v1311 = vshll.u32 %v1286, 16
      %v1313 = vor.u32 %v1310, %v1311
      %v1314 = vsel %vm1302, %v1306, %v1313
      %v1316 = vshrl.u32 %v1287, 16
      %v1318 = vrot.slane %v1316, 7
      %v1319 = vshll.u32 %v1287, 16
      %v1321 = vor.u32 %v1318, %v1319
      %v1322 = vsel %vm1302, %v1310, %v1321
      %v1324 = vshrl.u32 %v1288, 16
      %v1326 = vrot.slane %v1324, 7
      %v1327 = vshll.u32 %v1288, 16
      %v1329 = vor.u32 %v1326, %v1327
      %v1330 = vsel %vm1302, %v1318, %v1329
      %v1332 = vshrl.u32 %v1289, 16
      %v1334 = vrot.slane %v1332, 7
      %v1335 = vshll.u32 %v1289, 16
      %v1337 = vor.u32 %v1334, %v1335
      %v1338 = vsel %vm1302, %v1326, %v1337
      %v1340 = vshrl.u32 %v1290, 16
      %v1342 = vrot.slane %v1340, 7
      %v1343 = vshll.u32 %v1290, 16
      %v1345 = vor.u32 %v1342, %v1343
      %v1346 = vsel %vm1302, %v1334, %v1345
      %v1348 = vshrl.u32 %v1291, 16
      %v1350 = vrot.slane %v1348, 7
      %v1351 = vshll.u32 %v1291, 16
      %v1353 = vor.u32 %v1350, %v1351
      %v1354 = vsel %vm1302, %v1342, %v1353
      %v1356 = vshrl.u32 %v1292, 16
      %v1358 = vrot.slane %v1356, 7
      %v1359 = vshll.u32 %v1292, 16
      %v1361 = vor.u32 %v1358, %v1359
      %v1362 = vsel %vm1302, %v1350, %v1361
      %v1364 = vshrl.u32 %v1293, 16
      %v1366 = vrot.slane %v1364, 7
      %v1367 = vshll.u32 %v1293, 16
      %v1369 = vor.u32 %v1366, %v1367
      %v1370 = vsel %vm1302, %v1358, %v1369
      %v1372 = vshrl.u32 %v1294, 16
      %v1374 = vrot.slane %v1372, 7
      %v1375 = vshll.u32 %v1294, 16
      %v1377 = vor.u32 %v1374, %v1375
      %v1378 = vsel %vm1302, %v1366, %v1377
      %v1380 = vshrl.u32 %v1295, 16
      %v1382 = vrot.slane %v1380, 7
      %v1383 = vshll.u32 %v1295, 16
      %v1385 = vor.u32 %v1382, %v1383
      %v1386 = vsel %vm1302, %v1374, %v1385
      %v1388 = vshrl.u32 %v1296, 16
      %v1390 = vrot.slane %v1388, 7
      %v1391 = vshll.u32 %v1296, 16
      %v1393 = vor.u32 %v1390, %v1391
      %v1394 = vsel %vm1302, %v1382, %v1393
      %v1396 = vshrl.u32 %v1297, 16
      %v1398 = vrot.slane %v1396, 7
      %v1399 = vshll.u32 %v1297, 16
      %v1401 = vor.u32 %v1398, %v1399
      %v1402 = vsel %vm1302, %v1390, %v1401
      %v1404 = vshrl.u32 %v1298, 16
      %v1406 = vrot.slane %v1404, 7
      %v1407 = vshll.u32 %v1298, 16
      %v1409 = vor.u32 %v1406, %v1407
      %v1410 = vsel %vm1302, %v1398, %v1409
      %v1412 = vshrl.u32 %v1299, 16
      %v1414 = vrot.slane %v1412, 7
      %v1415 = vshll.u32 %v1299, 16
      %v1417 = vor.u32 %v1414, %v1415
      %v1418 = vsel %vm1302, %v1406, %v1417
      %v1420 = vshrl.u32 %v1300, 16
      %v1422 = vrot.slane %v1420, 7
      %v1423 = vshll.u32 %v1300, 16
      %v1425 = vor.u32 %v1422, %v1423
      %v1426 = vsel %vm1302, %v1414, %v1425
      %v1428 = vshrl.u32 %v1301, 16
      %v1430 = vrot.slane %v1428, 7
      %v1431 = vshll.u32 %v1301, 16
      %v1433 = vor.u32 %v1430, %v1431
      %v1434 = vsel %vm1302, %v1422, %v1433
      %1451 = vst [vmem:[#allocation3] sm:$0xff] %v1314
      %1452 = vst [vmem:[#allocation3 + $0x48] sm:$0xff] %v1322
      %1453 = vst [vmem:[#allocation3 + $0x90] sm:$0xff] %v1330
      %1454 = vst [vmem:[#allocation3 + $0xd8] sm:$0xff] %v1338
      %1455 = vst [vmem:[#allocation3 + $0x120] sm:$0xff] %v1346
      %1456 = vst [vmem:[#allocation3 + $0x168] sm:$0xff] %v1354
      %1457 = vst [vmem:[#allocation3 + $0x1b0] sm:$0xff] %v1362
      %1458 = vst [vmem:[#allocation3 + $0x1f8] sm:$0xff] %v1370
      %1459 = vst [vmem:[#allocation3 + $0x240] sm:$0xff] %v1378
      %1460 = vst [vmem:[#allocation3 + $0x288] sm:$0xff] %v1386
      %1461 = vst [vmem:[#allocation3 + $0x2d0] sm:$0xff] %v1394
      %1462 = vst [vmem:[#allocation3 + $0x318] sm:$0xff] %v1402
      %1463 = vst [vmem:[#allocation3 + $0x360] sm:$0xff] %v1410
      %1464 = vst [vmem:[#allocation3 + $0x3a8] sm:$0xff] %v1418
      %1465 = vst [vmem:[#allocation3 + $0x3f0] sm:$0xff] %v1426
      %1466 = vst [vmem:[#allocation3 + $0x438] sm:$0xff] %v1434
      %v1467 = vld [vmem:[#allocation2 + $0x8] sm:$0xff]
      %v1468 = vld [vmem:[#allocation2 + $0x10] sm:$0xff]
      %v1469 = vld [vmem:[#allocation2 + $0x18] sm:$0xff]
      %v1470 = vld [vmem:[#allocation2 + $0x20] sm:$0xff]
      %v1471 = vld [vmem:[#allocation2 + $0x28] sm:$0xff]
      %v1472 = vld [vmem:[#allocation2 + $0x30] sm:$0xff]
      %v1473 = vld [vmem:[#allocation2 + $0x38] sm:$0xff]
      %v1474 = vld [vmem:[#allocation2 + $0x40] sm:$0xff]
      %v1475 = vld [vmem:[#allocation2 + $0x48] sm:$0xff]
      %v1476 = vld [vmem:[#allocation2 + $0x50] sm:$0xff]
      %v1477 = vld [vmem:[#allocation2 + $0x58] sm:$0xff]
      %v1478 = vld [vmem:[#allocation2 + $0x60] sm:$0xff]
      %v1479 = vld [vmem:[#allocation2 + $0x68] sm:$0xff]
      %v1480 = vld [vmem:[#allocation2 + $0x70] sm:$0xff]
      %v1481 = vld [vmem:[#allocation2 + $0x78] sm:$0xff]
      %v1482 = vld [vmem:[#allocation2 + $0x80] sm:$0xff]
      %1483 = vst [vmem:[#allocation3 + $0x8] sm:$0xff] %v1467
      %1484 = vst [vmem:[#allocation3 + $0x50] sm:$0xff] %v1468
      %1485 = vst [vmem:[#allocation3 + $0x98] sm:$0xff] %v1469
      %1486 = vst [vmem:[#allocation3 + $0xe0] sm:$0xff] %v1470
      %1487 = vst [vmem:[#allocation3 + $0x128] sm:$0xff] %v1471
      %1488 = vst [vmem:[#allocation3 + $0x170] sm:$0xff] %v1472
      %1489 = vst [vmem:[#allocation3 + $0x1b8] sm:$0xff] %v1473
      %1490 = vst [vmem:[#allocation3 + $0x200] sm:$0xff] %v1474
      %1491 = vst [vmem:[#allocation3 + $0x248] sm:$0xff] %v1475
      %1492 = vst [vmem:[#allocation3 + $0x290] sm:$0xff] %v1476
      %1493 = vst [vmem:[#allocation3 + $0x2d8] sm:$0xff] %v1477
      %1494 = vst [vmem:[#allocation3 + $0x320] sm:$0xff] %v1478
      %1495 = vst [vmem:[#allocation3 + $0x368] sm:$0xff] %v1479
      %1496 = vst [vmem:[#allocation3 + $0x3b0] sm:$0xff] %v1480
      %1497 = vst [vmem:[#allocation3 + $0x3f8] sm:$0xff] %v1481
      %1498 = vst [vmem:[#allocation3 + $0x440] sm:$0xff] %v1482
      %v1499 = vld [vmem:[#allocation2 + $0x8] sm:$0xff]
      %v1500 = vld [vmem:[#allocation2 + $0x10] sm:$0xff]
      %v1501 = vld [vmem:[#allocation2 + $0x18] sm:$0xff]
      %v1502 = vld [vmem:[#allocation2 + $0x20] sm:$0xff]
      %v1503 = vld [vmem:[#allocation2 + $0x28] sm:$0xff]
      %v1504 = vld [vmem:[#allocation2 + $0x30] sm:$0xff]
      %v1505 = vld [vmem:[#allocation2 + $0x38] sm:$0xff]
      %v1506 = vld [vmem:[#allocation2 + $0x40] sm:$0xff]
      %v1507 = vld [vmem:[#allocation2 + $0x48] sm:$0xff]
      %v1508 = vld [vmem:[#allocation2 + $0x50] sm:$0xff]
      %v1509 = vld [vmem:[#allocation2 + $0x58] sm:$0xff]
      %v1510 = vld [vmem:[#allocation2 + $0x60] sm:$0xff]
      %v1511 = vld [vmem:[#allocation2 + $0x68] sm:$0xff]
      %v1512 = vld [vmem:[#allocation2 + $0x70] sm:$0xff]
      %v1513 = vld [vmem:[#allocation2 + $0x78] sm:$0xff]
      %v1514 = vld [vmem:[#allocation2 + $0x80] sm:$0xff]
      %v1515 = vld [vmem:[#allocation2 + $0x88] sm:$0x1]
      %v1516 = vsel %vm915, 1, 0
      %v1517 = vsel %vm916, 1, 0
      %v1518 = vsel %vm917, 1, 0
      %v1519 = vsel %vm918, 1, 0
      %v1520 = vsel %vm919, 1, 0
      %v1521 = vsel %vm920, 1, 0
      %v1522 = vsel %vm921, 1, 0
      %v1523 = vsel %vm922, 1, 0
      %v1524 = vsel %vm923, 1, 0
      %v1525 = vsel %vm924, 1, 0
      %v1526 = vsel %vm925, 1, 0
      %v1527 = vsel %vm926, 1, 0
      %v1528 = vsel %vm927, 1, 0
      %v1529 = vsel %vm928, 1, 0
      %v1530 = vsel %vm929, 1, 0
      %v1531 = vsel %vm930, 1, 0
      %v1532 = vsel %vm931, 1, 0
      %v1533 = vsel %vm932, 1, 0
      %v1534 = vsel %vm933, 1, 0
      %v1535 = vsel %vm934, 1, 0
      %v1536 = vsel %vm935, 1, 0
      %v1537 = vsel %vm936, 1, 0
      %v1538 = vsel %vm937, 1, 0
      %v1539 = vsel %vm938, 1, 0
      %v1540 = vsel %vm939, 1, 0
      %v1541 = vsel %vm940, 1, 0
      %v1542 = vsel %vm941, 1, 0
      %v1543 = vsel %vm942, 1, 0
      %v1544 = vsel %vm943, 1, 0
      %v1545 = vsel %vm944, 1, 0
      %v1546 = vsel %vm945, 1, 0
      %v1547 = vsel %vm946, 1, 0
      %vm1548 = vcmp.eq.s32.totalorder %v1516, 1
      %vm1549 = vcmp.eq.s32.totalorder %v1517, 1
      %vm1550 = vcmp.eq.s32.totalorder %v1518, 1
      %vm1551 = vcmp.eq.s32.totalorder %v1519, 1
      %vm1552 = vcmp.eq.s32.totalorder %v1520, 1
      %vm1553 = vcmp.eq.s32.totalorder %v1521, 1
      %vm1554 = vcmp.eq.s32.totalorder %v1522, 1
      %vm1555 = vcmp.eq.s32.totalorder %v1523, 1
      %vm1556 = vcmp.eq.s32.totalorder %v1524, 1
      %vm1557 = vcmp.eq.s32.totalorder %v1525, 1
      %vm1558 = vcmp.eq.s32.totalorder %v1526, 1
      %vm1559 = vcmp.eq.s32.totalorder %v1527, 1
      %vm1560 = vcmp.eq.s32.totalorder %v1528, 1
      %vm1561 = vcmp.eq.s32.totalorder %v1529, 1
      %vm1562 = vcmp.eq.s32.totalorder %v1530, 1
      %vm1563 = vcmp.eq.s32.totalorder %v1531, 1
      %vm1564 = vcmp.eq.s32.totalorder %v1532, 1
      %vm1565 = vcmp.eq.s32.totalorder %v1533, 1
      %vm1566 = vcmp.eq.s32.totalorder %v1534, 1
      %vm1567 = vcmp.eq.s32.totalorder %v1535, 1
      %vm1568 = vcmp.eq.s32.totalorder %v1536, 1
      %vm1569 = vcmp.eq.s32.totalorder %v1537, 1
      %vm1570 = vcmp.eq.s32.totalorder %v1538, 1
      %vm1571 = vcmp.eq.s32.totalorder %v1539, 1
      %vm1572 = vcmp.eq.s32.totalorder %v1540, 1
      %vm1573 = vcmp.eq.s32.totalorder %v1541, 1
      %vm1574 = vcmp.eq.s32.totalorder %v1542, 1
      %vm1575 = vcmp.eq.s32.totalorder %v1543, 1
      %vm1576 = vcmp.eq.s32.totalorder %v1544, 1
      %vm1577 = vcmp.eq.s32.totalorder %v1545, 1
      %vm1578 = vcmp.eq.s32.totalorder %v1546, 1
      %vm1579 = vcmp.eq.s32.totalorder %v1547, 1
      %vm1580 = vmpackc.low %vm1548, %vm1548
      %vm1581 = vmpackc.low %vm1549, %vm1549
      %vm1582 = vmpackc.low %vm1550, %vm1550
      %vm1583 = vmpackc.low %vm1551, %vm1551
      %vm1584 = vmpackc.low %vm1552, %vm1552
      %vm1585 = vmpackc.low %vm1553, %vm1553
      %vm1586 = vmpackc.low %vm1554, %vm1554
      %vm1587 = vmpackc.low %vm1555, %vm1555
      %vm1588 = vmpackc.low %vm1556, %vm1556
      %vm1589 = vmpackc.low %vm1557, %vm1557
      %vm1590 = vmpackc.low %vm1558, %vm1558
      %vm1591 = vmpackc.low %vm1559, %vm1559
      %vm1592 = vmpackc.low %vm1560, %vm1560
      %vm1593 = vmpackc.low %vm1561, %vm1561
      %vm1594 = vmpackc.low %vm1562, %vm1562
      %vm1595 = vmpackc.low %vm1563, %vm1563
      %vm1596 = vmpackc.low %vm1564, %vm1564
      %vm1597 = vmpackc.low %vm1565, %vm1565
      %vm1598 = vmpackc.low %vm1566, %vm1566
      %vm1599 = vmpackc.low %vm1567, %vm1567
      %vm1600 = vmpackc.low %vm1568, %vm1568
      %vm1601 = vmpackc.low %vm1569, %vm1569
      %vm1602 = vmpackc.low %vm1570, %vm1570
      %vm1603 = vmpackc.low %vm1571, %vm1571
      %vm1604 = vmpackc.low %vm1572, %vm1572
      %vm1605 = vmpackc.low %vm1573, %vm1573
      %vm1606 = vmpackc.low %vm1574, %vm1574
      %vm1607 = vmpackc.low %vm1575, %vm1575
      %vm1608 = vmpackc.low %vm1576, %vm1576
      %vm1609 = vmpackc.low %vm1577, %vm1577
      %vm1610 = vmpackc.low %vm1578, %vm1578
      %vm1611 = vmpackc.low %vm1579, %vm1579
      %v1612 = vsel %vm1580, 65537, 0
      %v1613 = vsel %vm1581, 65537, 0
      %v1614 = vsel %vm1582, 65537, 0
      %v1615 = vsel %vm1583, 65537, 0
      %v1616 = vsel %vm1584, 65537, 0
      %v1617 = vsel %vm1585, 65537, 0
      %v1618 = vsel %vm1586, 65537, 0
      %v1619 = vsel %vm1587, 65537, 0
      %v1620 = vsel %vm1588, 65537, 0
      %v1621 = vsel %vm1589, 65537, 0
      %v1622 = vsel %vm1590, 65537, 0
      %v1623 = vsel %vm1591, 65537, 0
      %v1624 = vsel %vm1592, 65537, 0
      %v1625 = vsel %vm1593, 65537, 0
      %v1626 = vsel %vm1594, 65537, 0
      %v1627 = vsel %vm1595, 65537, 0
      %v1628 = vsel %vm1596, 65537, 0
      %v1629 = vsel %vm1597, 65537, 0
      %v1630 = vsel %vm1598, 65537, 0
      %v1631 = vsel %vm1599, 65537, 0
      %v1632 = vsel %vm1600, 65537, 0
      %v1633 = vsel %vm1601, 65537, 0
      %v1634 = vsel %vm1602, 65537, 0
      %v1635 = vsel %vm1603, 65537, 0
      %v1636 = vsel %vm1604, 65537, 0
      %v1637 = vsel %vm1605, 65537, 0
      %v1638 = vsel %vm1606, 65537, 0
      %v1639 = vsel %vm1607, 65537, 0
      %v1640 = vsel %vm1608, 65537, 0
      %v1641 = vsel %vm1609, 65537, 0
      %v1642 = vsel %vm1610, 65537, 0
      %v1643 = vsel %vm1611, 65537, 0
      %v1644 = vunpack.c.l.b16 %v1612
      %v1645 = vunpack.c.l.b16 %v1613
      %v1646 = vunpack.c.l.b16 %v1614
      %v1647 = vunpack.c.l.b16 %v1615
      %v1648 = vunpack.c.l.b16 %v1616
      %v1649 = vunpack.c.l.b16 %v1617
      %v1650 = vunpack.c.l.b16 %v1618
      %v1651 = vunpack.c.l.b16 %v1619
      %v1652 = vunpack.c.l.b16 %v1620
      %v1653 = vunpack.c.l.b16 %v1621
      %v1654 = vunpack.c.l.b16 %v1622
      %v1655 = vunpack.c.l.b16 %v1623
      %v1656 = vunpack.c.l.b16 %v1624
      %v1657 = vunpack.c.l.b16 %v1625
      %v1658 = vunpack.c.l.b16 %v1626
      %v1659 = vunpack.c.l.b16 %v1627
      %v1660 = vunpack.c.l.b16 %v1628
      %v1661 = vunpack.c.l.b16 %v1629
      %v1662 = vunpack.c.l.b16 %v1630
      %v1663 = vunpack.c.l.b16 %v1631
      %v1664 = vunpack.c.l.b16 %v1632
      %v1665 = vunpack.c.l.b16 %v1633
      %v1666 = vunpack.c.l.b16 %v1634
      %v1667 = vunpack.c.l.b16 %v1635
      %v1668 = vunpack.c.l.b16 %v1636
      %v1669 = vunpack.c.l.b16 %v1637
      %v1670 = vunpack.c.l.b16 %v1638
      %v1671 = vunpack.c.l.b16 %v1639
      %v1672 = vunpack.c.l.b16 %v1640
      %v1673 = vunpack.c.l.b16 %v1641
      %v1674 = vunpack.c.l.b16 %v1642
      %v1675 = vunpack.c.l.b16 %v1643
      %v1676 = vpack.c.b16 %v1645, %v1644
      %v1677 = vpack.c.b16 %v1647, %v1646
      %v1678 = vpack.c.b16 %v1649, %v1648
      %v1679 = vpack.c.b16 %v1651, %v1650
      %v1680 = vpack.c.b16 %v1653, %v1652
      %v1681 = vpack.c.b16 %v1655, %v1654
      %v1682 = vpack.c.b16 %v1657, %v1656
      %v1683 = vpack.c.b16 %v1659, %v1658
      %v1684 = vpack.c.b16 %v1661, %v1660
      %v1685 = vpack.c.b16 %v1663, %v1662
      %v1686 = vpack.c.b16 %v1665, %v1664
      %v1687 = vpack.c.b16 %v1667, %v1666
      %v1688 = vpack.c.b16 %v1669, %v1668
      %v1689 = vpack.c.b16 %v1671, %v1670
      %v1690 = vpack.c.b16 %v1673, %v1672
      %v1691 = vpack.c.b16 %v1675, %v1674
      %v1693 = vshrl.u32 %v1676, 16
      %v1695 = vrot.slane %v1693, 7
      %v1696 = vshll.u32 %v1676, 16
      %v1698 = vor.u32 %v1695, %v1696
      %v1700 = vshrl.u32 %v1677, 16
      %v1702 = vrot.slane %v1700, 7
      %v1703 = vshll.u32 %v1677, 16
      %v1705 = vor.u32 %v1702, %v1703
      %v1706 = vsel %vm1302, %v1695, %v1705
      %v1708 = vshrl.u32 %v1678, 16
      %v1710 = vrot.slane %v1708, 7
      %v1711 = vshll.u32 %v1678, 16
      %v1713 = vor.u32 %v1710, %v1711
      %v1714 = vsel %vm1302, %v1702, %v1713
      %v1716 = vshrl.u32 %v1679, 16
      %v1718 = vrot.slane %v1716, 7
      %v1719 = vshll.u32 %v1679, 16
      %v1721 = vor.u32 %v1718, %v1719
      %v1722 = vsel %vm1302, %v1710, %v1721
      %v1724 = vshrl.u32 %v1680, 16
      %v1726 = vrot.slane %v1724, 7
      %v1727 = vshll.u32 %v1680, 16
      %v1729 = vor.u32 %v1726, %v1727
      %v1730 = vsel %vm1302, %v1718, %v1729
      %v1732 = vshrl.u32 %v1681, 16
      %v1734 = vrot.slane %v1732, 7
      %v1735 = vshll.u32 %v1681, 16
      %v1737 = vor.u32 %v1734, %v1735
      %v1738 = vsel %vm1302, %v1726, %v1737
      %v1740 = vshrl.u32 %v1682, 16
      %v1742 = vrot.slane %v1740, 7
      %v1743 = vshll.u32 %v1682, 16
      %v1745 = vor.u32 %v1742, %v1743
      %v1746 = vsel %vm1302, %v1734, %v1745
      %v1748 = vshrl.u32 %v1683, 16
      %v1750 = vrot.slane %v1748, 7
      %v1751 = vshll.u32 %v1683, 16
      %v1753 = vor.u32 %v1750, %v1751
      %v1754 = vsel %vm1302, %v1742, %v1753
      %v1756 = vshrl.u32 %v1684, 16
      %v1758 = vrot.slane %v1756, 7
      %v1759 = vshll.u32 %v1684, 16
      %v1761 = vor.u32 %v1758, %v1759
      %v1762 = vsel %vm1302, %v1750, %v1761
      %v1764 = vshrl.u32 %v1685, 16
      %v1766 = vrot.slane %v1764, 7
      %v1767 = vshll.u32 %v1685, 16
      %v1769 = vor.u32 %v1766, %v1767
      %v1770 = vsel %vm1302, %v1758, %v1769
      %v1772 = vshrl.u32 %v1686, 16
      %v1774 = vrot.slane %v1772, 7
      %v1775 = vshll.u32 %v1686, 16
      %v1777 = vor.u32 %v1774, %v1775
      %v1778 = vsel %vm1302, %v1766, %v1777
      %v1780 = vshrl.u32 %v1687, 16
      %v1782 = vrot.slane %v1780, 7
      %v1783 = vshll.u32 %v1687, 16
      %v1785 = vor.u32 %v1782, %v1783
      %v1786 = vsel %vm1302, %v1774, %v1785
      %v1788 = vshrl.u32 %v1688, 16
      %v1790 = vrot.slane %v1788, 7
      %v1791 = vshll.u32 %v1688, 16
      %v1793 = vor.u32 %v1790, %v1791
      %v1794 = vsel %vm1302, %v1782, %v1793
      %v1796 = vshrl.u32 %v1689, 16
      %v1798 = vrot.slane %v1796, 7
      %v1799 = vshll.u32 %v1689, 16
      %v1801 = vor.u32 %v1798, %v1799
      %v1802 = vsel %vm1302, %v1790, %v1801
      %v1804 = vshrl.u32 %v1690, 16
      %v1806 = vrot.slane %v1804, 7
      %v1807 = vshll.u32 %v1690, 16
      %v1809 = vor.u32 %v1806, %v1807
      %v1810 = vsel %vm1302, %v1798, %v1809
      %v1812 = vshrl.u32 %v1691, 16
      %v1814 = vrot.slane %v1812, 7
      %v1815 = vshll.u32 %v1691, 16
      %v1817 = vor.u32 %v1814, %v1815
      %v1818 = vsel %vm1302, %v1806, %v1817
      %vm1819 = vcmp.ne.s16.totalorder %v1698, 0
      %vm1820 = vcmp.ne.s16.totalorder %v1706, 0
      %vm1821 = vcmp.ne.s16.totalorder %v1714, 0
      %vm1822 = vcmp.ne.s16.totalorder %v1722, 0
      %vm1823 = vcmp.ne.s16.totalorder %v1730, 0
      %vm1824 = vcmp.ne.s16.totalorder %v1738, 0
      %vm1825 = vcmp.ne.s16.totalorder %v1746, 0
      %vm1826 = vcmp.ne.s16.totalorder %v1754, 0
      %vm1827 = vcmp.ne.s16.totalorder %v1762, 0
      %vm1828 = vcmp.ne.s16.totalorder %v1770, 0
      %vm1829 = vcmp.ne.s16.totalorder %v1778, 0
      %vm1830 = vcmp.ne.s16.totalorder %v1786, 0
      %vm1831 = vcmp.ne.s16.totalorder %v1794, 0
      %vm1832 = vcmp.ne.s16.totalorder %v1802, 0
      %vm1833 = vcmp.ne.s16.totalorder %v1810, 0
      %vm1834 = vcmp.ne.s16.totalorder %v1818, 0
      %vm1835 = vcmp.ne.s16.totalorder %v1814, 0
      %v1836 = vsel %vm1819, %v1499, 0
      %v1837 = vsel %vm1820, %v1500, 0
      %v1838 = vsel %vm1821, %v1501, 0
      %v1839 = vsel %vm1822, %v1502, 0
      %v1840 = vsel %vm1823, %v1503, 0
      %v1841 = vsel %vm1824, %v1504, 0
      %v1842 = vsel %vm1825, %v1505, 0
      %v1843 = vsel %vm1826, %v1506, 0
      %v1844 = vsel %vm1827, %v1507, 0
      %v1845 = vsel %vm1828, %v1508, 0
      %v1846 = vsel %vm1829, %v1509, 0
      %v1847 = vsel %vm1830, %v1510, 0
      %v1848 = vsel %vm1831, %v1511, 0
      %v1849 = vsel %vm1832, %v1512, 0
      %v1850 = vsel %vm1833, %v1513, 0
      %v1851 = vsel %vm1834, %v1514, 0
      %v1852 = vsel %vm1835, %v1515, 0
      %v1854 = vshrl.u32 %v1836, 16
      %v1856 = vshll.u32 %v1836, 16
      %v1858 = vrot.slane %v1856, 1
      %v1859 = vor.u32 %v1854, %v1858
      %v1861 = vshll.u32 %v1837, 16
      %v1863 = vrot.slane %v1861, 1
      %v1864 = vsel %vm1140, %v1859, %v1863
      %v1865 = vshrl.u32 %v1837, 16
      %v1867 = vor.u32 %v1865, %v1863
      %v1869 = vshll.u32 %v1838, 16
      %v1871 = vrot.slane %v1869, 1
      %v1872 = vsel %vm1140, %v1867, %v1871
      %v1873 = vshrl.u32 %v1838, 16
      %v1875 = vor.u32 %v1873, %v1871
      %v1877 = vshll.u32 %v1839, 16
      %v1879 = vrot.slane %v1877, 1
      %v1880 = vsel %vm1140, %v1875, %v1879
      %v1881 = vshrl.u32 %v1839, 16
      %v1883 = vor.u32 %v1881, %v1879
      %v1885 = vshll.u32 %v1840, 16
      %v1887 = vrot.slane %v1885, 1
      %v1888 = vsel %vm1140, %v1883, %v1887
      %v1889 = vshrl.u32 %v1840, 16
      %v1891 = vor.u32 %v1889, %v1887
      %v1893 = vshll.u32 %v1841, 16
      %v1895 = vrot.slane %v1893, 1
      %v1896 = vsel %vm1140, %v1891, %v1895
      %v1897 = vshrl.u32 %v1841, 16
      %v1899 = vor.u32 %v1897, %v1895
      %v1901 = vshll.u32 %v1842, 16
      %v1903 = vrot.slane %v1901, 1
      %v1904 = vsel %vm1140, %v1899, %v1903
      %v1905 = vshrl.u32 %v1842, 16
      %v1907 = vor.u32 %v1905, %v1903
      %v1909 = vshll.u32 %v1843, 16
      %v1911 = vrot.slane %v1909, 1
      %v1912 = vsel %vm1140, %v1907, %v1911
      %v1913 = vshrl.u32 %v1843, 16
      %v1915 = vor.u32 %v1913, %v1911
      %v1917 = vshll.u32 %v1844, 16
      %v1919 = vrot.slane %v1917, 1
      %v1920 = vsel %vm1140, %v1915, %v1919
      %v1921 = vshrl.u32 %v1844, 16
      %v1923 = vor.u32 %v1921, %v1919
      %v1925 = vshll.u32 %v1845, 16
      %v1927 = vrot.slane %v1925, 1
      %v1928 = vsel %vm1140, %v1923, %v1927
      %v1929 = vshrl.u32 %v1845, 16
      %v1931 = vor.u32 %v1929, %v1927
      %v1933 = vshll.u32 %v1846, 16
      %v1935 = vrot.slane %v1933, 1
      %v1936 = vsel %vm1140, %v1931, %v1935
      %v1937 = vshrl.u32 %v1846, 16
      %v1939 = vor.u32 %v1937, %v1935
      %v1941 = vshll.u32 %v1847, 16
      %v1943 = vrot.slane %v1941, 1
      %v1944 = vsel %vm1140, %v1939, %v1943
      %v1945 = vshrl.u32 %v1847, 16
      %v1947 = vor.u32 %v1945, %v1943
      %v1949 = vshll.u32 %v1848, 16
      %v1951 = vrot.slane %v1949, 1
      %v1952 = vsel %vm1140, %v1947, %v1951
      %v1953 = vshrl.u32 %v1848, 16
      %v1955 = vor.u32 %v1953, %v1951
      %v1957 = vshll.u32 %v1849, 16
      %v1959 = vrot.slane %v1957, 1
      %v1960 = vsel %vm1140, %v1955, %v1959
      %v1961 = vshrl.u32 %v1849, 16
      %v1963 = vor.u32 %v1961, %v1959
      %v1965 = vshll.u32 %v1850, 16
      %v1967 = vrot.slane %v1965, 1
      %v1968 = vsel %vm1140, %v1963, %v1967
      %v1969 = vshrl.u32 %v1850, 16
      %v1971 = vor.u32 %v1969, %v1967
      %v1973 = vshll.u32 %v1851, 16
      %v1975 = vrot.slane %v1973, 1
      %v1976 = vsel %vm1140, %v1971, %v1975
      %v1977 = vshrl.u32 %v1851, 16
      %v1979 = vor.u32 %v1977, %v1975
      %v1981 = vshll.u32 %v1852, 16
      %v1983 = vrot.slane %v1981, 1
      %v1984 = vsel %vm1140, %v1979, %v1983
      %2001 = vst [vmem:[#allocation3 + $0x10] sm:$0xff] %v1864
      %2002 = vst [vmem:[#allocation3 + $0x58] sm:$0xff] %v1872
      %2003 = vst [vmem:[#allocation3 + $0xa0] sm:$0xff] %v1880
      %2004 = vst [vmem:[#allocation3 + $0xe8] sm:$0xff] %v1888
      %2005 = vst [vmem:[#allocation3 + $0x130] sm:$0xff] %v1896
      %2006 = vst [vmem:[#allocation3 + $0x178] sm:$0xff] %v1904
      %2007 = vst [vmem:[#allocation3 + $0x1c0] sm:$0xff] %v1912
      %2008 = vst [vmem:[#allocation3 + $0x208] sm:$0xff] %v1920
      %2009 = vst [vmem:[#allocation3 + $0x250] sm:$0xff] %v1928
      %2010 = vst [vmem:[#allocation3 + $0x298] sm:$0xff] %v1936
      %2011 = vst [vmem:[#allocation3 + $0x2e0] sm:$0xff] %v1944
      %2012 = vst [vmem:[#allocation3 + $0x328] sm:$0xff] %v1952
      %2013 = vst [vmem:[#allocation3 + $0x370] sm:$0xff] %v1960
      %2014 = vst [vmem:[#allocation3 + $0x3b8] sm:$0xff] %v1968
      %2015 = vst [vmem:[#allocation3 + $0x400] sm:$0xff] %v1976
      %2016 = vst [vmem:[#allocation3 + $0x448] sm:$0xff] %v1984
      %v2017 = vld [vmem:[#allocation2 + $0x8] sm:$0x80]
      %v2018 = vld [vmem:[#allocation2 + $0x10] sm:$0xff]
      %v2019 = vld [vmem:[#allocation2 + $0x18] sm:$0xff]
      %v2020 = vld [vmem:[#allocation2 + $0x20] sm:$0xff]
      %v2021 = vld [vmem:[#allocation2 + $0x28] sm:$0xff]
      %v2022 = vld [vmem:[#allocation2 + $0x30] sm:$0xff]
      %v2023 = vld [vmem:[#allocation2 + $0x38] sm:$0xff]
      %v2024 = vld [vmem:[#allocation2 + $0x40] sm:$0xff]
      %v2025 = vld [vmem:[#allocation2 + $0x48] sm:$0xff]
      %v2026 = vld [vmem:[#allocation2 + $0x50] sm:$0xff]
      %v2027 = vld [vmem:[#allocation2 + $0x58] sm:$0xff]
      %v2028 = vld [vmem:[#allocation2 + $0x60] sm:$0xff]
      %v2029 = vld [vmem:[#allocation2 + $0x68] sm:$0xff]
      %v2030 = vld [vmem:[#allocation2 + $0x70] sm:$0xff]
      %v2031 = vld [vmem:[#allocation2 + $0x78] sm:$0xff]
      %v2032 = vld [vmem:[#allocation2 + $0x80] sm:$0xff]
      %v2033 = vld [vmem:[#allocation2 + $0x88] sm:$0xff]
      %v2034 = vsel %vm1268, %v2017, 0
      %v2035 = vsel %vm1269, %v2018, 0
      %v2036 = vsel %vm1270, %v2019, 0
      %v2037 = vsel %vm1271, %v2020, 0
      %v2038 = vsel %vm1272, %v2021, 0
      %v2039 = vsel %vm1273, %v2022, 0
      %v2040 = vsel %vm1274, %v2023, 0
      %v2041 = vsel %vm1275, %v2024, 0
      %v2042 = vsel %vm1276, %v2025, 0
      %v2043 = vsel %vm1277, %v2026, 0
      %v2044 = vsel %vm1278, %v2027, 0
      %v2045 = vsel %vm1279, %v2028, 0
      %v2046 = vsel %vm1280, %v2029, 0
      %v2047 = vsel %vm1281, %v2030, 0
      %v2048 = vsel %vm1282, %v2031, 0
      %v2049 = vsel %vm1283, %v2032, 0
      %v2050 = vsel %vm1284, %v2033, 0
      %v2052 = vshrl.u32 %v2034, 16
      %v2054 = vrot.slane %v2052, 7
      %v2056 = vshrl.u32 %v2035, 16
      %v2058 = vrot.slane %v2056, 7
      %v2059 = vshll.u32 %v2035, 16
      %v2061 = vor.u32 %v2058, %v2059
      %v2062 = vsel %vm1302, %v2054, %v2061
      %v2064 = vshrl.u32 %v2036, 16
      %v2066 = vrot.slane %v2064, 7
      %v2067 = vshll.u32 %v2036, 16
      %v2069 = vor.u32 %v2066, %v2067
      %v2070 = vsel %vm1302, %v2058, %v2069
      %v2072 = vshrl.u32 %v2037, 16
      %v2074 = vrot.slane %v2072, 7
      %v2075 = vshll.u32 %v2037, 16
      %v2077 = vor.u32 %v2074, %v2075
      %v2078 = vsel %vm1302, %v2066, %v2077
      %v2080 = vshrl.u32 %v2038, 16
      %v2082 = vrot.slane %v2080, 7
      %v2083 = vshll.u32 %v2038, 16
      %v2085 = vor.u32 %v2082, %v2083
      %v2086 = vsel %vm1302, %v2074, %v2085
      %v2088 = vshrl.u32 %v2039, 16
      %v2090 = vrot.slane %v2088, 7
      %v2091 = vshll.u32 %v2039, 16
      %v2093 = vor.u32 %v2090, %v2091
      %v2094 = vsel %vm1302, %v2082, %v2093
      %v2096 = vshrl.u32 %v2040, 16
      %v2098 = vrot.slane %v2096, 7
      %v2099 = vshll.u32 %v2040, 16
      %v2101 = vor.u32 %v2098, %v2099
      %v2102 = vsel %vm1302, %v2090, %v2101
      %v2104 = vshrl.u32 %v2041, 16
      %v2106 = vrot.slane %v2104, 7
      %v2107 = vshll.u32 %v2041, 16
      %v2109 = vor.u32 %v2106, %v2107
      %v2110 = vsel %vm1302, %v2098, %v2109
      %v2112 = vshrl.u32 %v2042, 16
      %v2114 = vrot.slane %v2112, 7
      %v2115 = vshll.u32 %v2042, 16
      %v2117 = vor.u32 %v2114, %v2115
      %v2118 = vsel %vm1302, %v2106, %v2117
      %v2120 = vshrl.u32 %v2043, 16
      %v2122 = vrot.slane %v2120, 7
      %v2123 = vshll.u32 %v2043, 16
      %v2125 = vor.u32 %v2122, %v2123
      %v2126 = vsel %vm1302, %v2114, %v2125
      %v2128 = vshrl.u32 %v2044, 16
      %v2130 = vrot.slane %v2128, 7
      %v2131 = vshll.u32 %v2044, 16
      %v2133 = vor.u32 %v2130, %v2131
      %v2134 = vsel %vm1302, %v2122, %v2133
      %v2136 = vshrl.u32 %v2045, 16
      %v2138 = vrot.slane %v2136, 7
      %v2139 = vshll.u32 %v2045, 16
      %v2141 = vor.u32 %v2138, %v2139
      %v2142 = vsel %vm1302, %v2130, %v2141
      %v2144 = vshrl.u32 %v2046, 16
      %v2146 = vrot.slane %v2144, 7
      %v2147 = vshll.u32 %v2046, 16
      %v2149 = vor.u32 %v2146, %v2147
      %v2150 = vsel %vm1302, %v2138, %v2149
      %v2152 = vshrl.u32 %v2047, 16
      %v2154 = vrot.slane %v2152, 7
      %v2155 = vshll.u32 %v2047, 16
      %v2157 = vor.u32 %v2154, %v2155
      %v2158 = vsel %vm1302, %v2146, %v2157
      %v2160 = vshrl.u32 %v2048, 16
      %v2162 = vrot.slane %v2160, 7
      %v2163 = vshll.u32 %v2048, 16
      %v2165 = vor.u32 %v2162, %v2163
      %v2166 = vsel %vm1302, %v2154, %v2165
      %v2168 = vshrl.u32 %v2049, 16
      %v2170 = vrot.slane %v2168, 7
      %v2171 = vshll.u32 %v2049, 16
      %v2173 = vor.u32 %v2170, %v2171
      %v2174 = vsel %vm1302, %v2162, %v2173
      %v2176 = vshrl.u32 %v2050, 16
      %v2178 = vrot.slane %v2176, 7
      %v2179 = vshll.u32 %v2050, 16
      %v2181 = vor.u32 %v2178, %v2179
      %v2182 = vsel %vm1302, %v2170, %v2181
      %2199 = vst [vmem:[#allocation3 + $0x18] sm:$0xff] %v2062
      %2200 = vst [vmem:[#allocation3 + $0x60] sm:$0xff] %v2070
      %2201 = vst [vmem:[#allocation3 + $0xa8] sm:$0xff] %v2078
      %2202 = vst [vmem:[#allocation3 + $0xf0] sm:$0xff] %v2086
      %2203 = vst [vmem:[#allocation3 + $0x138] sm:$0xff] %v2094
      %2204 = vst [vmem:[#allocation3 + $0x180] sm:$0xff] %v2102
      %2205 = vst [vmem:[#allocation3 + $0x1c8] sm:$0xff] %v2110
      %2206 = vst [vmem:[#allocation3 + $0x210] sm:$0xff] %v2118
      %2207 = vst [vmem:[#allocation3 + $0x258] sm:$0xff] %v2126
      %2208 = vst [vmem:[#allocation3 + $0x2a0] sm:$0xff] %v2134
      %2209 = vst [vmem:[#allocation3 + $0x2e8] sm:$0xff] %v2142
      %2210 = vst [vmem:[#allocation3 + $0x330] sm:$0xff] %v2150
      %2211 = vst [vmem:[#allocation3 + $0x378] sm:$0xff] %v2158
      %2212 = vst [vmem:[#allocation3 + $0x3c0] sm:$0xff] %v2166
      %2213 = vst [vmem:[#allocation3 + $0x408] sm:$0xff] %v2174
      %2214 = vst [vmem:[#allocation3 + $0x450] sm:$0xff] %v2182
      %v2215 = vld [vmem:[#allocation2 + $0x10] sm:$0xff]
      %v2216 = vld [vmem:[#allocation2 + $0x18] sm:$0xff]
      %v2217 = vld [vmem:[#allocation2 + $0x20] sm:$0xff]
      %v2218 = vld [vmem:[#allocation2 + $0x28] sm:$0xff]
      %v2219 = vld [vmem:[#allocation2 + $0x30] sm:$0xff]
      %v2220 = vld [vmem:[#allocation2 + $0x38] sm:$0xff]
      %v2221 = vld [vmem:[#allocation2 + $0x40] sm:$0xff]
      %v2222 = vld [vmem:[#allocation2 + $0x48] sm:$0xff]
      %v2223 = vld [vmem:[#allocation2 + $0x50] sm:$0xff]
      %v2224 = vld [vmem:[#allocation2 + $0x58] sm:$0xff]
      %v2225 = vld [vmem:[#allocation2 + $0x60] sm:$0xff]
      %v2226 = vld [vmem:[#allocation2 + $0x68] sm:$0xff]
      %v2227 = vld [vmem:[#allocation2 + $0x70] sm:$0xff]
      %v2228 = vld [vmem:[#allocation2 + $0x78] sm:$0xff]
      %v2229 = vld [vmem:[#allocation2 + $0x80] sm:$0xff]
      %v2230 = vld [vmem:[#allocation2 + $0x88] sm:$0xff]
      %2231 = vst [vmem:[#allocation3 + $0x20] sm:$0xff] %v2215
      %2232 = vst [vmem:[#allocation3 + $0x68] sm:$0xff] %v2216
      %2233 = vst [vmem:[#allocation3 + $0xb0] sm:$0xff] %v2217
      %2234 = vst [vmem:[#allocation3 + $0xf8] sm:$0xff] %v2218
      %2235 = vst [vmem:[#allocation3 + $0x140] sm:$0xff] %v2219
      %2236 = vst [vmem:[#allocation3 + $0x188] sm:$0xff] %v2220
      %2237 = vst [vmem:[#allocation3 + $0x1d0] sm:$0xff] %v2221
      %2238 = vst [vmem:[#allocation3 + $0x218] sm:$0xff] %v2222
      %2239 = vst [vmem:[#allocation3 + $0x260] sm:$0xff] %v2223
      %2240 = vst [vmem:[#allocation3 + $0x2a8] sm:$0xff] %v2224
      %2241 = vst [vmem:[#allocation3 + $0x2f0] sm:$0xff] %v2225
      %2242 = vst [vmem:[#allocation3 + $0x338] sm:$0xff] %v2226
      %2243 = vst [vmem:[#allocation3 + $0x380] sm:$0xff] %v2227
      %2244 = vst [vmem:[#allocation3 + $0x3c8] sm:$0xff] %v2228
      %2245 = vst [vmem:[#allocation3 + $0x410] sm:$0xff] %v2229
      %2246 = vst [vmem:[#allocation3 + $0x458] sm:$0xff] %v2230
      %v2247 = vld [vmem:[#allocation2 + $0x10] sm:$0xff]
      %v2248 = vld [vmem:[#allocation2 + $0x18] sm:$0xff]
      %v2249 = vld [vmem:[#allocation2 + $0x20] sm:$0xff]
      %v2250 = vld [vmem:[#allocation2 + $0x28] sm:$0xff]
      %v2251 = vld [vmem:[#allocation2 + $0x30] sm:$0xff]
      %v2252 = vld [vmem:[#allocation2 + $0x38] sm:$0xff]
      %v2253 = vld [vmem:[#allocation2 + $0x40] sm:$0xff]
      %v2254 = vld [vmem:[#allocation2 + $0x48] sm:$0xff]
      %v2255 = vld [vmem:[#allocation2 + $0x50] sm:$0xff]
      %v2256 = vld [vmem:[#allocation2 + $0x58] sm:$0xff]
      %v2257 = vld [vmem:[#allocation2 + $0x60] sm:$0xff]
      %v2258 = vld [vmem:[#allocation2 + $0x68] sm:$0xff]
      %v2259 = vld [vmem:[#allocation2 + $0x70] sm:$0xff]
      %v2260 = vld [vmem:[#allocation2 + $0x78] sm:$0xff]
      %v2261 = vld [vmem:[#allocation2 + $0x80] sm:$0xff]
      %v2262 = vld [vmem:[#allocation2 + $0x88] sm:$0xff]
      %v2263 = vld [vmem:[#allocation2 + $0x90] sm:$0x1]
      %v2264 = vsel %vm1819, %v2247, 0
      %v2265 = vsel %vm1820, %v2248, 0
      %v2266 = vsel %vm1821, %v2249, 0
      %v2267 = vsel %vm1822, %v2250, 0
      %v2268 = vsel %vm1823, %v2251, 0
      %v2269 = vsel %vm1824, %v2252, 0
      %v2270 = vsel %vm1825, %v2253, 0
      %v2271 = vsel %vm1826, %v2254, 0
      %v2272 = vsel %vm1827, %v2255, 0
      %v2273 = vsel %vm1828, %v2256, 0
      %v2274 = vsel %vm1829, %v2257, 0
      %v2275 = vsel %vm1830, %v2258, 0
      %v2276 = vsel %vm1831, %v2259, 0
      %v2277 = vsel %vm1832, %v2260, 0
      %v2278 = vsel %vm1833, %v2261, 0
      %v2279 = vsel %vm1834, %v2262, 0
      %v2280 = vsel %vm1835, %v2263, 0
      %v2282 = vshrl.u32 %v2264, 16
      %v2284 = vshll.u32 %v2264, 16
      %v2286 = vrot.slane %v2284, 1
      %v2287 = vor.u32 %v2282, %v2286
      %v2289 = vshll.u32 %v2265, 16
      %v2291 = vrot.slane %v2289, 1
      %v2292 = vsel %vm1140, %v2287, %v2291
      %v2293 = vshrl.u32 %v2265, 16
      %v2295 = vor.u32 %v2293, %v2291
      %v2297 = vshll.u32 %v2266, 16
      %v2299 = vrot.slane %v2297, 1
      %v2300 = vsel %vm1140, %v2295, %v2299
      %v2301 = vshrl.u32 %v2266, 16
      %v2303 = vor.u32 %v2301, %v2299
      %v2305 = vshll.u32 %v2267, 16
      %v2307 = vrot.slane %v2305, 1
      %v2308 = vsel %vm1140, %v2303, %v2307
      %v2309 = vshrl.u32 %v2267, 16
      %v2311 = vor.u32 %v2309, %v2307
      %v2313 = vshll.u32 %v2268, 16
      %v2315 = vrot.slane %v2313, 1
      %v2316 = vsel %vm1140, %v2311, %v2315
      %v2317 = vshrl.u32 %v2268, 16
      %v2319 = vor.u32 %v2317, %v2315
      %v2321 = vshll.u32 %v2269, 16
      %v2323 = vrot.slane %v2321, 1
      %v2324 = vsel %vm1140, %v2319, %v2323
      %v2325 = vshrl.u32 %v2269, 16
      %v2327 = vor.u32 %v2325, %v2323
      %v2329 = vshll.u32 %v2270, 16
      %v2331 = vrot.slane %v2329, 1
      %v2332 = vsel %vm1140, %v2327, %v2331
      %v2333 = vshrl.u32 %v2270, 16
      %v2335 = vor.u32 %v2333, %v2331
      %v2337 = vshll.u32 %v2271, 16
      %v2339 = vrot.slane %v2337, 1
      %v2340 = vsel %vm1140, %v2335, %v2339
      %v2341 = vshrl.u32 %v2271, 16
      %v2343 = vor.u32 %v2341, %v2339
      %v2345 = vshll.u32 %v2272, 16
      %v2347 = vrot.slane %v2345, 1
      %v2348 = vsel %vm1140, %v2343, %v2347
      %v2349 = vshrl.u32 %v2272, 16
      %v2351 = vor.u32 %v2349, %v2347
      %v2353 = vshll.u32 %v2273, 16
      %v2355 = vrot.slane %v2353, 1
      %v2356 = vsel %vm1140, %v2351, %v2355
      %v2357 = vshrl.u32 %v2273, 16
      %v2359 = vor.u32 %v2357, %v2355
      %v2361 = vshll.u32 %v2274, 16
      %v2363 = vrot.slane %v2361, 1
      %v2364 = vsel %vm1140, %v2359, %v2363
      %v2365 = vshrl.u32 %v2274, 16
      %v2367 = vor.u32 %v2365, %v2363
      %v2369 = vshll.u32 %v2275, 16
      %v2371 = vrot.slane %v2369, 1
      %v2372 = vsel %vm1140, %v2367, %v2371
      %v2373 = vshrl.u32 %v2275, 16
      %v2375 = vor.u32 %v2373, %v2371
      %v2377 = vshll.u32 %v2276, 16
      %v2379 = vrot.slane %v2377, 1
      %v2380 = vsel %vm1140, %v2375, %v2379
      %v2381 = vshrl.u32 %v2276, 16
      %v2383 = vor.u32 %v2381, %v2379
      %v2385 = vshll.u32 %v2277, 16
      %v2387 = vrot.slane %v2385, 1
      %v2388 = vsel %vm1140, %v2383, %v2387
      %v2389 = vshrl.u32 %v2277, 16
      %v2391 = vor.u32 %v2389, %v2387
      %v2393 = vshll.u32 %v2278, 16
      %v2395 = vrot.slane %v2393, 1
      %v2396 = vsel %vm1140, %v2391, %v2395
      %v2397 = vshrl.u32 %v2278, 16
      %v2399 = vor.u32 %v2397, %v2395
      %v2401 = vshll.u32 %v2279, 16
      %v2403 = vrot.slane %v2401, 1
      %v2404 = vsel %vm1140, %v2399, %v2403
      %v2405 = vshrl.u32 %v2279, 16
      %v2407 = vor.u32 %v2405, %v2403
      %v2409 = vshll.u32 %v2280, 16
      %v2411 = vrot.slane %v2409, 1
      %v2412 = vsel %vm1140, %v2407, %v2411
      %2429 = vst [vmem:[#allocation3 + $0x28] sm:$0xff] %v2292
      %2430 = vst [vmem:[#allocation3 + $0x70] sm:$0xff] %v2300
      %2431 = vst [vmem:[#allocation3 + $0xb8] sm:$0xff] %v2308
      %2432 = vst [vmem:[#allocation3 + $0x100] sm:$0xff] %v2316
      %2433 = vst [vmem:[#allocation3 + $0x148] sm:$0xff] %v2324
      %2434 = vst [vmem:[#allocation3 + $0x190] sm:$0xff] %v2332
      %2435 = vst [vmem:[#allocation3 + $0x1d8] sm:$0xff] %v2340
      %2436 = vst [vmem:[#allocation3 + $0x220] sm:$0xff] %v2348
      %2437 = vst [vmem:[#allocation3 + $0x268] sm:$0xff] %v2356
      %2438 = vst [vmem:[#allocation3 + $0x2b0] sm:$0xff] %v2364
      %2439 = vst [vmem:[#allocation3 + $0x2f8] sm:$0xff] %v2372
      %2440 = vst [vmem:[#allocation3 + $0x340] sm:$0xff] %v2380
      %2441 = vst [vmem:[#allocation3 + $0x388] sm:$0xff] %v2388
      %2442 = vst [vmem:[#allocation3 + $0x3d0] sm:$0xff] %v2396
      %2443 = vst [vmem:[#allocation3 + $0x418] sm:$0xff] %v2404
      %2444 = vst [vmem:[#allocation3 + $0x460] sm:$0xff] %v2412
      %v2445 = vld [vmem:[#allocation2 + $0x10] sm:$0x80]
      %v2446 = vld [vmem:[#allocation2 + $0x18] sm:$0xff]
      %v2447 = vld [vmem:[#allocation2 + $0x20] sm:$0xff]
      %v2448 = vld [vmem:[#allocation2 + $0x28] sm:$0xff]
      %v2449 = vld [vmem:[#allocation2 + $0x30] sm:$0xff]
      %v2450 = vld [vmem:[#allocation2 + $0x38] sm:$0xff]
      %v2451 = vld [vmem:[#allocation2 + $0x40] sm:$0xff]
      %v2452 = vld [vmem:[#allocation2 + $0x48] sm:$0xff]
      %v2453 = vld [vmem:[#allocation2 + $0x50] sm:$0xff]
      %v2454 = vld [vmem:[#allocation2 + $0x58] sm:$0xff]
      %v2455 = vld [vmem:[#allocation2 + $0x60] sm:$0xff]
      %v2456 = vld [vmem:[#allocation2 + $0x68] sm:$0xff]
      %v2457 = vld [vmem:[#allocation2 + $0x70] sm:$0xff]
      %v2458 = vld [vmem:[#allocation2 + $0x78] sm:$0xff]
      %v2459 = vld [vmem:[#allocation2 + $0x80] sm:$0xff]
      %v2460 = vld [vmem:[#allocation2 + $0x88] sm:$0xff]
      %v2461 = vld [vmem:[#allocation2 + $0x90] sm:$0xff]
      %v2462 = vsel %vm1268, %v2445, 0
      %v2463 = vsel %vm1269, %v2446, 0
      %v2464 = vsel %vm1270, %v2447, 0
      %v2465 = vsel %vm1271, %v2448, 0
      %v2466 = vsel %vm1272, %v2449, 0
      %v2467 = vsel %vm1273, %v2450, 0
      %v2468 = vsel %vm1274, %v2451, 0
      %v2469 = vsel %vm1275, %v2452, 0
      %v2470 = vsel %vm1276, %v2453, 0
      %v2471 = vsel %vm1277, %v2454, 0
      %v2472 = vsel %vm1278, %v2455, 0
      %v2473 = vsel %vm1279, %v2456, 0
      %v2474 = vsel %vm1280, %v2457, 0
      %v2475 = vsel %vm1281, %v2458, 0
      %v2476 = vsel %vm1282, %v2459, 0
      %v2477 = vsel %vm1283, %v2460, 0
      %v2478 = vsel %vm1284, %v2461, 0
      %v2480 = vshrl.u32 %v2462, 16
      %v2482 = vrot.slane %v2480, 7
      %v2484 = vshrl.u32 %v2463, 16
      %v2486 = vrot.slane %v2484, 7
      %v2487 = vshll.u32 %v2463, 16
      %v2489 = vor.u32 %v2486, %v2487
      %v2490 = vsel %vm1302, %v2482, %v2489
      %v2492 = vshrl.u32 %v2464, 16
      %v2494 = vrot.slane %v2492, 7
      %v2495 = vshll.u32 %v2464, 16
      %v2497 = vor.u32 %v2494, %v2495
      %v2498 = vsel %vm1302, %v2486, %v2497
      %v2500 = vshrl.u32 %v2465, 16
      %v2502 = vrot.slane %v2500, 7
      %v2503 = vshll.u32 %v2465, 16
      %v2505 = vor.u32 %v2502, %v2503
      %v2506 = vsel %vm1302, %v2494, %v2505
      %v2508 = vshrl.u32 %v2466, 16
      %v2510 = vrot.slane %v2508, 7
      %v2511 = vshll.u32 %v2466, 16
      %v2513 = vor.u32 %v2510, %v2511
      %v2514 = vsel %vm1302, %v2502, %v2513
      %v2516 = vshrl.u32 %v2467, 16
      %v2518 = vrot.slane %v2516, 7
      %v2519 = vshll.u32 %v2467, 16
      %v2521 = vor.u32 %v2518, %v2519
      %v2522 = vsel %vm1302, %v2510, %v2521
      %v2524 = vshrl.u32 %v2468, 16
      %v2526 = vrot.slane %v2524, 7
      %v2527 = vshll.u32 %v2468, 16
      %v2529 = vor.u32 %v2526, %v2527
      %v2530 = vsel %vm1302, %v2518, %v2529
      %v2532 = vshrl.u32 %v2469, 16
      %v2534 = vrot.slane %v2532, 7
      %v2535 = vshll.u32 %v2469, 16
      %v2537 = vor.u32 %v2534, %v2535
      %v2538 = vsel %vm1302, %v2526, %v2537
      %v2540 = vshrl.u32 %v2470, 16
      %v2542 = vrot.slane %v2540, 7
      %v2543 = vshll.u32 %v2470, 16
      %v2545 = vor.u32 %v2542, %v2543
      %v2546 = vsel %vm1302, %v2534, %v2545
      %v2548 = vshrl.u32 %v2471, 16
      %v2550 = vrot.slane %v2548, 7
      %v2551 = vshll.u32 %v2471, 16
      %v2553 = vor.u32 %v2550, %v2551
      %v2554 = vsel %vm1302, %v2542, %v2553
      %v2556 = vshrl.u32 %v2472, 16
      %v2558 = vrot.slane %v2556, 7
      %v2559 = vshll.u32 %v2472, 16
      %v2561 = vor.u32 %v2558, %v2559
      %v2562 = vsel %vm1302, %v2550, %v2561
      %v2564 = vshrl.u32 %v2473, 16
      %v2566 = vrot.slane %v2564, 7
      %v2567 = vshll.u32 %v2473, 16
      %v2569 = vor.u32 %v2566, %v2567
      %v2570 = vsel %vm1302, %v2558, %v2569
      %v2572 = vshrl.u32 %v2474, 16
      %v2574 = vrot.slane %v2572, 7
      %v2575 = vshll.u32 %v2474, 16
      %v2577 = vor.u32 %v2574, %v2575
      %v2578 = vsel %vm1302, %v2566, %v2577
      %v2580 = vshrl.u32 %v2475, 16
      %v2582 = vrot.slane %v2580, 7
      %v2583 = vshll.u32 %v2475, 16
      %v2585 = vor.u32 %v2582, %v2583
      %v2586 = vsel %vm1302, %v2574, %v2585
      %v2588 = vshrl.u32 %v2476, 16
      %v2590 = vrot.slane %v2588, 7
      %v2591 = vshll.u32 %v2476, 16
      %v2593 = vor.u32 %v2590, %v2591
      %v2594 = vsel %vm1302, %v2582, %v2593
      %v2596 = vshrl.u32 %v2477, 16
      %v2598 = vrot.slane %v2596, 7
      %v2599 = vshll.u32 %v2477, 16
      %v2601 = vor.u32 %v2598, %v2599
      %v2602 = vsel %vm1302, %v2590, %v2601
      %v2604 = vshrl.u32 %v2478, 16
      %v2606 = vrot.slane %v2604, 7
      %v2607 = vshll.u32 %v2478, 16
      %v2609 = vor.u32 %v2606, %v2607
      %v2610 = vsel %vm1302, %v2598, %v2609
      %2627 = vst [vmem:[#allocation3 + $0x30] sm:$0xff] %v2490
      %2628 = vst [vmem:[#allocation3 + $0x78] sm:$0xff] %v2498
      %2629 = vst [vmem:[#allocation3 + $0xc0] sm:$0xff] %v2506
      %2630 = vst [vmem:[#allocation3 + $0x108] sm:$0xff] %v2514
      %2631 = vst [vmem:[#allocation3 + $0x150] sm:$0xff] %v2522
      %2632 = vst [vmem:[#allocation3 + $0x198] sm:$0xff] %v2530
      %2633 = vst [vmem:[#allocation3 + $0x1e0] sm:$0xff] %v2538
      %2634 = vst [vmem:[#allocation3 + $0x228] sm:$0xff] %v2546
      %2635 = vst [vmem:[#allocation3 + $0x270] sm:$0xff] %v2554
      %2636 = vst [vmem:[#allocation3 + $0x2b8] sm:$0xff] %v2562
      %2637 = vst [vmem:[#allocation3 + $0x300] sm:$0xff] %v2570
      %2638 = vst [vmem:[#allocation3 + $0x348] sm:$0xff] %v2578
      %2639 = vst [vmem:[#allocation3 + $0x390] sm:$0xff] %v2586
      %2640 = vst [vmem:[#allocation3 + $0x3d8] sm:$0xff] %v2594
      %2641 = vst [vmem:[#allocation3 + $0x420] sm:$0xff] %v2602
      %2642 = vst [vmem:[#allocation3 + $0x468] sm:$0xff] %v2610
      %v2643 = vld [vmem:[#allocation2 + $0x18] sm:$0xff]
      %v2644 = vld [vmem:[#allocation2 + $0x20] sm:$0xff]
      %v2645 = vld [vmem:[#allocation2 + $0x28] sm:$0xff]
      %v2646 = vld [vmem:[#allocation2 + $0x30] sm:$0xff]
      %v2647 = vld [vmem:[#allocation2 + $0x38] sm:$0xff]
      %v2648 = vld [vmem:[#allocation2 + $0x40] sm:$0xff]
      %v2649 = vld [vmem:[#allocation2 + $0x48] sm:$0xff]
      %v2650 = vld [vmem:[#allocation2 + $0x50] sm:$0xff]
      %v2651 = vld [vmem:[#allocation2 + $0x58] sm:$0xff]
      %v2652 = vld [vmem:[#allocation2 + $0x60] sm:$0xff]
      %v2653 = vld [vmem:[#allocation2 + $0x68] sm:$0xff]
      %v2654 = vld [vmem:[#allocation2 + $0x70] sm:$0xff]
      %v2655 = vld [vmem:[#allocation2 + $0x78] sm:$0xff]
      %v2656 = vld [vmem:[#allocation2 + $0x80] sm:$0xff]
      %v2657 = vld [vmem:[#allocation2 + $0x88] sm:$0xff]
      %v2658 = vld [vmem:[#allocation2 + $0x90] sm:$0xff]
      %2659 = vst [vmem:[#allocation3 + $0x38] sm:$0xff] %v2643
      %2660 = vst [vmem:[#allocation3 + $0x80] sm:$0xff] %v2644
      %2661 = vst [vmem:[#allocation3 + $0xc8] sm:$0xff] %v2645
      %2662 = vst [vmem:[#allocation3 + $0x110] sm:$0xff] %v2646
      %2663 = vst [vmem:[#allocation3 + $0x158] sm:$0xff] %v2647
      %2664 = vst [vmem:[#allocation3 + $0x1a0] sm:$0xff] %v2648
      %2665 = vst [vmem:[#allocation3 + $0x1e8] sm:$0xff] %v2649
      %2666 = vst [vmem:[#allocation3 + $0x230] sm:$0xff] %v2650
      %2667 = vst [vmem:[#allocation3 + $0x278] sm:$0xff] %v2651
      %2668 = vst [vmem:[#allocation3 + $0x2c0] sm:$0xff] %v2652
      %2669 = vst [vmem:[#allocation3 + $0x308] sm:$0xff] %v2653
      %2670 = vst [vmem:[#allocation3 + $0x350] sm:$0xff] %v2654
      %2671 = vst [vmem:[#allocation3 + $0x398] sm:$0xff] %v2655
      %2672 = vst [vmem:[#allocation3 + $0x3e0] sm:$0xff] %v2656
      %2673 = vst [vmem:[#allocation3 + $0x428] sm:$0xff] %v2657
      %2674 = vst [vmem:[#allocation3 + $0x470] sm:$0xff] %v2658
      %v2675 = vld [vmem:[#allocation2 + $0x18] sm:$0xff]
      %v2676 = vld [vmem:[#allocation2 + $0x20] sm:$0xff]
      %v2677 = vld [vmem:[#allocation2 + $0x28] sm:$0xff]
      %v2678 = vld [vmem:[#allocation2 + $0x30] sm:$0xff]
      %v2679 = vld [vmem:[#allocation2 + $0x38] sm:$0xff]
      %v2680 = vld [vmem:[#allocation2 + $0x40] sm:$0xff]
      %v2681 = vld [vmem:[#allocation2 + $0x48] sm:$0xff]
      %v2682 = vld [vmem:[#allocation2 + $0x50] sm:$0xff]
      %v2683 = vld [vmem:[#allocation2 + $0x58] sm:$0xff]
      %v2684 = vld [vmem:[#allocation2 + $0x60] sm:$0xff]
      %v2685 = vld [vmem:[#allocation2 + $0x68] sm:$0xff]
      %v2686 = vld [vmem:[#allocation2 + $0x70] sm:$0xff]
      %v2687 = vld [vmem:[#allocation2 + $0x78] sm:$0xff]
      %v2688 = vld [vmem:[#allocation2 + $0x80] sm:$0xff]
      %v2689 = vld [vmem:[#allocation2 + $0x88] sm:$0xff]
      %v2690 = vld [vmem:[#allocation2 + $0x90] sm:$0xff]
      %v2691 = vld [vmem:[#allocation2 + $0x98] sm:$0x1]
      %v2692 = vsel %vm1819, %v2675, 0
      %v2693 = vsel %vm1820, %v2676, 0
      %v2694 = vsel %vm1821, %v2677, 0
      %v2695 = vsel %vm1822, %v2678, 0
      %v2696 = vsel %vm1823, %v2679, 0
      %v2697 = vsel %vm1824, %v2680, 0
      %v2698 = vsel %vm1825, %v2681, 0
      %v2699 = vsel %vm1826, %v2682, 0
      %v2700 = vsel %vm1827, %v2683, 0
      %v2701 = vsel %vm1828, %v2684, 0
      %v2702 = vsel %vm1829, %v2685, 0
      %v2703 = vsel %vm1830, %v2686, 0
      %v2704 = vsel %vm1831, %v2687, 0
      %v2705 = vsel %vm1832, %v2688, 0
      %v2706 = vsel %vm1833, %v2689, 0
      %v2707 = vsel %vm1834, %v2690, 0
      %v2708 = vsel %vm1835, %v2691, 0
      %v2710 = vshrl.u32 %v2692, 16
      %v2712 = vshll.u32 %v2692, 16
      %v2714 = vrot.slane %v2712, 1
      %v2715 = vor.u32 %v2710, %v2714
      %v2717 = vshll.u32 %v2693, 16
      %v2719 = vrot.slane %v2717, 1
      %v2720 = vsel %vm1140, %v2715, %v2719
      %v2721 = vshrl.u32 %v2693, 16
      %v2723 = vor.u32 %v2721, %v2719
      %v2725 = vshll.u32 %v2694, 16
      %v2727 = vrot.slane %v2725, 1
      %v2728 = vsel %vm1140, %v2723, %v2727
      %v2729 = vshrl.u32 %v2694, 16
      %v2731 = vor.u32 %v2729, %v2727
      %v2733 = vshll.u32 %v2695, 16
      %v2735 = vrot.slane %v2733, 1
      %v2736 = vsel %vm1140, %v2731, %v2735
      %v2737 = vshrl.u32 %v2695, 16
      %v2739 = vor.u32 %v2737, %v2735
      %v2741 = vshll.u32 %v2696, 16
      %v2743 = vrot.slane %v2741, 1
      %v2744 = vsel %vm1140, %v2739, %v2743
      %v2745 = vshrl.u32 %v2696, 16
      %v2747 = vor.u32 %v2745, %v2743
      %v2749 = vshll.u32 %v2697, 16
      %v2751 = vrot.slane %v2749, 1
      %v2752 = vsel %vm1140, %v2747, %v2751
      %v2753 = vshrl.u32 %v2697, 16
      %v2755 = vor.u32 %v2753, %v2751
      %v2757 = vshll.u32 %v2698, 16
      %v2759 = vrot.slane %v2757, 1
      %v2760 = vsel %vm1140, %v2755, %v2759
      %v2761 = vshrl.u32 %v2698, 16
      %v2763 = vor.u32 %v2761, %v2759
      %v2765 = vshll.u32 %v2699, 16
      %v2767 = vrot.slane %v2765, 1
      %v2768 = vsel %vm1140, %v2763, %v2767
      %v2769 = vshrl.u32 %v2699, 16
      %v2771 = vor.u32 %v2769, %v2767
      %v2773 = vshll.u32 %v2700, 16
      %v2775 = vrot.slane %v2773, 1
      %v2776 = vsel %vm1140, %v2771, %v2775
      %v2777 = vshrl.u32 %v2700, 16
      %v2779 = vor.u32 %v2777, %v2775
      %v2781 = vshll.u32 %v2701, 16
      %v2783 = vrot.slane %v2781, 1
      %v2784 = vsel %vm1140, %v2779, %v2783
      %v2785 = vshrl.u32 %v2701, 16
      %v2787 = vor.u32 %v2785, %v2783
      %v2789 = vshll.u32 %v2702, 16
      %v2791 = vrot.slane %v2789, 1
      %v2792 = vsel %vm1140, %v2787, %v2791
      %v2793 = vshrl.u32 %v2702, 16
      %v2795 = vor.u32 %v2793, %v2791
      %v2797 = vshll.u32 %v2703, 16
      %v2799 = vrot.slane %v2797, 1
      %v2800 = vsel %vm1140, %v2795, %v2799
      %v2801 = vshrl.u32 %v2703, 16
      %v2803 = vor.u32 %v2801, %v2799
      %v2805 = vshll.u32 %v2704, 16
      %v2807 = vrot.slane %v2805, 1
      %v2808 = vsel %vm1140, %v2803, %v2807
      %v2809 = vshrl.u32 %v2704, 16
      %v2811 = vor.u32 %v2809, %v2807
      %v2813 = vshll.u32 %v2705, 16
      %v2815 = vrot.slane %v2813, 1
      %v2816 = vsel %vm1140, %v2811, %v2815
      %v2817 = vshrl.u32 %v2705, 16
      %v2819 = vor.u32 %v2817, %v2815
      %v2821 = vshll.u32 %v2706, 16
      %v2823 = vrot.slane %v2821, 1
      %v2824 = vsel %vm1140, %v2819, %v2823
      %v2825 = vshrl.u32 %v2706, 16
      %v2827 = vor.u32 %v2825, %v2823
      %v2829 = vshll.u32 %v2707, 16
      %v2831 = vrot.slane %v2829, 1
      %v2832 = vsel %vm1140, %v2827, %v2831
      %v2833 = vshrl.u32 %v2707, 16
      %v2835 = vor.u32 %v2833, %v2831
      %v2837 = vshll.u32 %v2708, 16
      %v2839 = vrot.slane %v2837, 1
      %v2840 = vsel %vm1140, %v2835, %v2839
      %2857 = vst [vmem:[#allocation3 + $0x40] sm:$0xff] %v2720
      %2858 = vst [vmem:[#allocation3 + $0x88] sm:$0xff] %v2728
      %2859 = vst [vmem:[#allocation3 + $0xd0] sm:$0xff] %v2736
      %2860 = vst [vmem:[#allocation3 + $0x118] sm:$0xff] %v2744
      %2861 = vst [vmem:[#allocation3 + $0x160] sm:$0xff] %v2752
      %2862 = vst [vmem:[#allocation3 + $0x1a8] sm:$0xff] %v2760
      %2863 = vst [vmem:[#allocation3 + $0x1f0] sm:$0xff] %v2768
      %2864 = vst [vmem:[#allocation3 + $0x238] sm:$0xff] %v2776
      %2865 = vst [vmem:[#allocation3 + $0x280] sm:$0xff] %v2784
      %2866 = vst [vmem:[#allocation3 + $0x2c8] sm:$0xff] %v2792
      %2867 = vst [vmem:[#allocation3 + $0x310] sm:$0xff] %v2800
      %2868 = vst [vmem:[#allocation3 + $0x358] sm:$0xff] %v2808
      %2869 = vst [vmem:[#allocation3 + $0x3a0] sm:$0xff] %v2816
      %2870 = vst [vmem:[#allocation3 + $0x3e8] sm:$0xff] %v2824
      %2871 = vst [vmem:[#allocation3 + $0x430] sm:$0xff] %v2832
      %2872 = vst [vmem:[#allocation3 + $0x478] sm:$0xff] %v2840
      %v2873 = vld [vmem:[#allocation3] sm:$0xff]
      %v2874 = vld [vmem:[#allocation3 + $0x8] sm:$0xff]
      %v2875 = vld [vmem:[#allocation3 + $0x10] sm:$0xff]
      %v2876 = vld [vmem:[#allocation3 + $0x18] sm:$0xff]
      %v2877 = vld [vmem:[#allocation3 + $0x20] sm:$0xff]
      %v2878 = vld [vmem:[#allocation3 + $0x28] sm:$0xff]
      %v2879 = vld [vmem:[#allocation3 + $0x30] sm:$0xff]
      %v2880 = vld [vmem:[#allocation3 + $0x38] sm:$0xff]
      %v2881 = vld [vmem:[#allocation3 + $0x40] sm:$0xff]
      %v2882 = vld [vmem:[#allocation3 + $0x48] sm:$0xff]
      %v2883 = vld [vmem:[#allocation3 + $0x50] sm:$0xff]
      %v2884 = vld [vmem:[#allocation3 + $0x58] sm:$0xff]
      %v2885 = vld [vmem:[#allocation3 + $0x60] sm:$0xff]
      %v2886 = vld [vmem:[#allocation3 + $0x68] sm:$0xff]
      %v2887 = vld [vmem:[#allocation3 + $0x70] sm:$0xff]
      %v2888 = vld [vmem:[#allocation3 + $0x78] sm:$0xff]
      %v2889 = vld [vmem:[#allocation3 + $0x80] sm:$0xff]
      %v2890 = vld [vmem:[#allocation3 + $0x88] sm:$0xff]
      %v2891 = vld [vmem:[#allocation3 + $0x90] sm:$0xff]
      %v2892 = vld [vmem:[#allocation3 + $0x98] sm:$0xff]
      %v2893 = vld [vmem:[#allocation3 + $0xa0] sm:$0xff]
      %v2894 = vld [vmem:[#allocation3 + $0xa8] sm:$0xff]
      %v2895 = vld [vmem:[#allocation3 + $0xb0] sm:$0xff]
      %v2896 = vld [vmem:[#allocation3 + $0xb8] sm:$0xff]
      %v2897 = vld [vmem:[#allocation3 + $0xc0] sm:$0xff]
      %v2898 = vld [vmem:[#allocation3 + $0xc8] sm:$0xff]
      %v2899 = vld [vmem:[#allocation3 + $0xd0] sm:$0xff]
      %v2900 = vld [vmem:[#allocation3 + $0xd8] sm:$0xff]
      %v2901 = vld [vmem:[#allocation3 + $0xe0] sm:$0xff]
      %v2902 = vld [vmem:[#allocation3 + $0xe8] sm:$0xff]
      %v2903 = vld [vmem:[#allocation3 + $0xf0] sm:$0xff]
      %v2904 = vld [vmem:[#allocation3 + $0xf8] sm:$0xff]
      %v2905 = vld [vmem:[#allocation3 + $0x100] sm:$0xff]
      %v2906 = vld [vmem:[#allocation3 + $0x108] sm:$0xff]
      %v2907 = vld [vmem:[#allocation3 + $0x110] sm:$0xff]
      %v2908 = vld [vmem:[#allocation3 + $0x118] sm:$0xff]
      %v2909 = vld [vmem:[#allocation3 + $0x120] sm:$0xff]
      %v2910 = vld [vmem:[#allocation3 + $0x128] sm:$0xff]
      %v2911 = vld [vmem:[#allocation3 + $0x130] sm:$0xff]
      %v2912 = vld [vmem:[#allocation3 + $0x138] sm:$0xff]
      %v2913 = vld [vmem:[#allocation3 + $0x140] sm:$0xff]
      %v2914 = vld [vmem:[#allocation3 + $0x148] sm:$0xff]
      %v2915 = vld [vmem:[#allocation3 + $0x150] sm:$0xff]
      %v2916 = vld [vmem:[#allocation3 + $0x158] sm:$0xff]
      %v2917 = vld [vmem:[#allocation3 + $0x160] sm:$0xff]
      %v2918 = vld [vmem:[#allocation3 + $0x168] sm:$0xff]
      %v2919 = vld [vmem:[#allocation3 + $0x170] sm:$0xff]
      %v2920 = vld [vmem:[#allocation3 + $0x178] sm:$0xff]
      %v2921 = vld [vmem:[#allocation3 + $0x180] sm:$0xff]
      %v2922 = vld [vmem:[#allocation3 + $0x188] sm:$0xff]
      %v2923 = vld [vmem:[#allocation3 + $0x190] sm:$0xff]
      %v2924 = vld [vmem:[#allocation3 + $0x198] sm:$0xff]
      %v2925 = vld [vmem:[#allocation3 + $0x1a0] sm:$0xff]
      %v2926 = vld [vmem:[#allocation3 + $0x1a8] sm:$0xff]
      %v2927 = vld [vmem:[#allocation3 + $0x1b0] sm:$0xff]
      %v2928 = vld [vmem:[#allocation3 + $0x1b8] sm:$0xff]
      %v2929 = vld [vmem:[#allocation3 + $0x1c0] sm:$0xff]
      %v2930 = vld [vmem:[#allocation3 + $0x1c8] sm:$0xff]
      %v2931 = vld [vmem:[#allocation3 + $0x1d0] sm:$0xff]
      %v2932 = vld [vmem:[#allocation3 + $0x1d8] sm:$0xff]
      %v2933 = vld [vmem:[#allocation3 + $0x1e0] sm:$0xff]
      %v2934 = vld [vmem:[#allocation3 + $0x1e8] sm:$0xff]
      %v2935 = vld [vmem:[#allocation3 + $0x1f0] sm:$0xff]
      %v2936 = vld [vmem:[#allocation3 + $0x1f8] sm:$0xff]
      %v2937 = vld [vmem:[#allocation3 + $0x200] sm:$0xff]
      %v2938 = vld [vmem:[#allocation3 + $0x208] sm:$0xff]
      %v2939 = vld [vmem:[#allocation3 + $0x210] sm:$0xff]
      %v2940 = vld [vmem:[#allocation3 + $0x218] sm:$0xff]
      %v2941 = vld [vmem:[#allocation3 + $0x220] sm:$0xff]
      %v2942 = vld [vmem:[#allocation3 + $0x228] sm:$0xff]
      %v2943 = vld [vmem:[#allocation3 + $0x230] sm:$0xff]
      %v2944 = vld [vmem:[#allocation3 + $0x238] sm:$0xff]
      %v2945 = vld [vmem:[#allocation3 + $0x240] sm:$0xff]
      %v2946 = vld [vmem:[#allocation3 + $0x248] sm:$0xff]
      %v2947 = vld [vmem:[#allocation3 + $0x250] sm:$0xff]
      %v2948 = vld [vmem:[#allocation3 + $0x258] sm:$0xff]
      %v2949 = vld [vmem:[#allocation3 + $0x260] sm:$0xff]
      %v2950 = vld [vmem:[#allocation3 + $0x268] sm:$0xff]
      %v2951 = vld [vmem:[#allocation3 + $0x270] sm:$0xff]
      %v2952 = vld [vmem:[#allocation3 + $0x278] sm:$0xff]
      %v2953 = vld [vmem:[#allocation3 + $0x280] sm:$0xff]
      %v2954 = vld [vmem:[#allocation3 + $0x288] sm:$0xff]
      %v2955 = vld [vmem:[#allocation3 + $0x290] sm:$0xff]
      %v2956 = vld [vmem:[#allocation3 + $0x298] sm:$0xff]
      %v2957 = vld [vmem:[#allocation3 + $0x2a0] sm:$0xff]
      %v2958 = vld [vmem:[#allocation3 + $0x2a8] sm:$0xff]
      %v2959 = vld [vmem:[#allocation3 + $0x2b0] sm:$0xff]
      %v2960 = vld [vmem:[#allocation3 + $0x2b8] sm:$0xff]
      %v2961 = vld [vmem:[#allocation3 + $0x2c0] sm:$0xff]
      %v2962 = vld [vmem:[#allocation3 + $0x2c8] sm:$0xff]
      %v2963 = vld [vmem:[#allocation3 + $0x2d0] sm:$0xff]
      %v2964 = vld [vmem:[#allocation3 + $0x2d8] sm:$0xff]
      %v2965 = vld [vmem:[#allocation3 + $0x2e0] sm:$0xff]
      %v2966 = vld [vmem:[#allocation3 + $0x2e8] sm:$0xff]
      %v2967 = vld [vmem:[#allocation3 + $0x2f0] sm:$0xff]
      %v2968 = vld [vmem:[#allocation3 + $0x2f8] sm:$0xff]
      %v2969 = vld [vmem:[#allocation3 + $0x300] sm:$0xff]
      %v2970 = vld [vmem:[#allocation3 + $0x308] sm:$0xff]
      %v2971 = vld [vmem:[#allocation3 + $0x310] sm:$0xff]
      %v2972 = vld [vmem:[#allocation3 + $0x318] sm:$0xff]
      %v2973 = vld [vmem:[#allocation3 + $0x320] sm:$0xff]
      %v2974 = vld [vmem:[#allocation3 + $0x328] sm:$0xff]
      %v2975 = vld [vmem:[#allocation3 + $0x330] sm:$0xff]
      %v2976 = vld [vmem:[#allocation3 + $0x338] sm:$0xff]
      %v2977 = vld [vmem:[#allocation3 + $0x340] sm:$0xff]
      %v2978 = vld [vmem:[#allocation3 + $0x348] sm:$0xff]
      %v2979 = vld [vmem:[#allocation3 + $0x350] sm:$0xff]
      %v2980 = vld [vmem:[#allocation3 + $0x358] sm:$0xff]
      %v2981 = vld [vmem:[#allocation3 + $0x360] sm:$0xff]
      %v2982 = vld [vmem:[#allocation3 + $0x368] sm:$0xff]
      %v2983 = vld [vmem:[#allocation3 + $0x370] sm:$0xff]
      %v2984 = vld [vmem:[#allocation3 + $0x378] sm:$0xff]
      %v2985 = vld [vmem:[#allocation3 + $0x380] sm:$0xff]
      %v2986 = vld [vmem:[#allocation3 + $0x388] sm:$0xff]
      %v2987 = vld [vmem:[#allocation3 + $0x390] sm:$0xff]
      %v2988 = vld [vmem:[#allocation3 + $0x398] sm:$0xff]
      %v2989 = vld [vmem:[#allocation3 + $0x3a0] sm:$0xff]
      %v2990 = vld [vmem:[#allocation3 + $0x3a8] sm:$0xff]
      %v2991 = vld [vmem:[#allocation3 + $0x3b0] sm:$0xff]
      %v2992 = vld [vmem:[#allocation3 + $0x3b8] sm:$0xff]
      %v2993 = vld [vmem:[#allocation3 + $0x3c0] sm:$0xff]
      %v2994 = vld [vmem:[#allocation3 + $0x3c8] sm:$0xff]
      %v2995 = vld [vmem:[#allocation3 + $0x3d0] sm:$0xff]
      %v2996 = vld [vmem:[#allocation3 + $0x3d8] sm:$0xff]
      %v2997 = vld [vmem:[#allocation3 + $0x3e0] sm:$0xff]
      %v2998 = vld [vmem:[#allocation3 + $0x3e8] sm:$0xff]
      %v2999 = vld [vmem:[#allocation3 + $0x3f0] sm:$0xff]
      %v3000 = vld [vmem:[#allocation3 + $0x3f8] sm:$0xff]
      %v3001 = vld [vmem:[#allocation3 + $0x400] sm:$0xff]
      %v3002 = vld [vmem:[#allocation3 + $0x408] sm:$0xff]
      %v3003 = vld [vmem:[#allocation3 + $0x410] sm:$0xff]
      %v3004 = vld [vmem:[#allocation3 + $0x418] sm:$0xff]
      %v3005 = vld [vmem:[#allocation3 + $0x420] sm:$0xff]
      %v3006 = vld [vmem:[#allocation3 + $0x428] sm:$0xff]
      %v3007 = vld [vmem:[#allocation3 + $0x430] sm:$0xff]
      %v3008 = vld [vmem:[#allocation3 + $0x438] sm:$0xff]
      %v3009 = vld [vmem:[#allocation3 + $0x440] sm:$0xff]
      %v3010 = vld [vmem:[#allocation3 + $0x448] sm:$0xff]
      %v3011 = vld [vmem:[#allocation3 + $0x450] sm:$0xff]
      %v3012 = vld [vmem:[#allocation3 + $0x458] sm:$0xff]
      %v3013 = vld [vmem:[#allocation3 + $0x460] sm:$0xff]
      %v3014 = vld [vmem:[#allocation3 + $0x468] sm:$0xff]
      %v3015 = vld [vmem:[#allocation3 + $0x470] sm:$0xff]
      %v3016 = vld [vmem:[#allocation3 + $0x478] sm:$0xff]
      %v3017 = vld [vmem:[%s3] sm:$0xf]
      %v3018 = vld [vmem:[%s3 + $0x4] sm:$0xf]
      %v3019 = vld [vmem:[%s3 + $0x8] sm:$0xf]
      %v3020 = vld [vmem:[%s3 + $0xc] sm:$0xf]
      %v3021 = vld [vmem:[%s3 + $0x10] sm:$0xf]
      %v3022 = vld [vmem:[%s3 + $0x14] sm:$0xf]
      %v3023 = vld [vmem:[%s3 + $0x18] sm:$0xf]
      %v3024 = vld [vmem:[%s3 + $0x1c] sm:$0xf]
      %v3025 = vld [vmem:[%s3 + $0x20] sm:$0xf]
      %v3026 = vld [vmem:[%s3 + $0x24] sm:$0xf]
      %v3027 = vld [vmem:[%s3 + $0x28] sm:$0xf]
      %v3028 = vld [vmem:[%s3 + $0x2c] sm:$0xf]
      %v3029 = vld [vmem:[%s3 + $0x30] sm:$0xf]
      %v3030 = vld [vmem:[%s3 + $0x34] sm:$0xf]
      %v3031 = vld [vmem:[%s3 + $0x38] sm:$0xf]
      %v3032 = vld [vmem:[%s3 + $0x3c] sm:$0xf]
      %v3033 = vld [vmem:[%s3 + $0x40] sm:$0xf]
      %v3034 = vld [vmem:[%s3 + $0x44] sm:$0xf]
      %v3035 = vld [vmem:[%s3 + $0x48] sm:$0xf]
      %v3036 = vld [vmem:[%s3 + $0x4c] sm:$0xf]
      %v3037 = vld [vmem:[%s3 + $0x50] sm:$0xf]
      %v3038 = vld [vmem:[%s3 + $0x54] sm:$0xf]
      %v3039 = vld [vmem:[%s3 + $0x58] sm:$0xf]
      %v3040 = vld [vmem:[%s3 + $0x5c] sm:$0xf]
      %v3041 = vld [vmem:[%s3 + $0x60] sm:$0xf]
      %v3042 = vld [vmem:[%s3 + $0x64] sm:$0xf]
      %v3043 = vld [vmem:[%s3 + $0x68] sm:$0xf]
      %v3044 = vld [vmem:[%s3 + $0x6c] sm:$0xf]
      %v3045 = vld [vmem:[%s3 + $0x70] sm:$0xf]
      %v3046 = vld [vmem:[%s3 + $0x74] sm:$0xf]
      %v3047 = vld [vmem:[%s3 + $0x78] sm:$0xf]
      %v3048 = vld [vmem:[%s3 + $0x7c] sm:$0xf]
      %v3049 = vld [vmem:[%s3 + $0x80] sm:$0xf]
      %v3050 = vld [vmem:[%s3 + $0x84] sm:$0xf]
      %v3051 = vld [vmem:[%s3 + $0x88] sm:$0xf]
      %v3052 = vld [vmem:[%s3 + $0x8c] sm:$0xf]
      %v3053 = vld [vmem:[%s3 + $0x90] sm:$0xf]
      %v3054 = vld [vmem:[%s3 + $0x94] sm:$0xf]
      %v3055 = vld [vmem:[%s3 + $0x98] sm:$0xf]
      %v3056 = vld [vmem:[%s3 + $0x9c] sm:$0xf]
      %v3057 = vld [vmem:[%s3 + $0xa0] sm:$0xf]
      %v3058 = vld [vmem:[%s3 + $0xa4] sm:$0xf]
      %v3059 = vld [vmem:[%s3 + $0xa8] sm:$0xf]
      %v3060 = vld [vmem:[%s3 + $0xac] sm:$0xf]
      %v3061 = vld [vmem:[%s3 + $0xb0] sm:$0xf]
      %v3062 = vld [vmem:[%s3 + $0xb4] sm:$0xf]
      %v3063 = vld [vmem:[%s3 + $0xb8] sm:$0xf]
      %v3064 = vld [vmem:[%s3 + $0xbc] sm:$0xf]
      %v3065 = vld [vmem:[%s3 + $0xc0] sm:$0xf]
      %v3066 = vld [vmem:[%s3 + $0xc4] sm:$0xf]
      %v3067 = vld [vmem:[%s3 + $0xc8] sm:$0xf]
      %v3068 = vld [vmem:[%s3 + $0xcc] sm:$0xf]
      %v3069 = vld [vmem:[%s3 + $0xd0] sm:$0xf]
      %v3070 = vld [vmem:[%s3 + $0xd4] sm:$0xf]
      %v3071 = vld [vmem:[%s3 + $0xd8] sm:$0xf]
      %v3072 = vld [vmem:[%s3 + $0xdc] sm:$0xf]
      %v3073 = vld [vmem:[%s3 + $0xe0] sm:$0xf]
      %v3074 = vld [vmem:[%s3 + $0xe4] sm:$0xf]
      %v3075 = vld [vmem:[%s3 + $0xe8] sm:$0xf]
      %v3076 = vld [vmem:[%s3 + $0xec] sm:$0xf]
      %v3077 = vld [vmem:[%s3 + $0xf0] sm:$0xf]
      %v3078 = vld [vmem:[%s3 + $0xf4] sm:$0xf]
      %v3079 = vld [vmem:[%s3 + $0xf8] sm:$0xf]
      %v3080 = vld [vmem:[%s3 + $0xfc] sm:$0xf]
      %v3081 = vld [vmem:[%s3 + $0x100] sm:$0xf]
      %v3082 = vld [vmem:[%s3 + $0x104] sm:$0xf]
      %v3083 = vld [vmem:[%s3 + $0x108] sm:$0xf]
      %v3084 = vld [vmem:[%s3 + $0x10c] sm:$0xf]
      %v3085 = vld [vmem:[%s3 + $0x110] sm:$0xf]
      %v3086 = vld [vmem:[%s3 + $0x114] sm:$0xf]
      %v3087 = vld [vmem:[%s3 + $0x118] sm:$0xf]
      %v3088 = vld [vmem:[%s3 + $0x11c] sm:$0xf]
      %v3089 = vld [vmem:[%s3 + $0x120] sm:$0xf]
      %v3090 = vld [vmem:[%s3 + $0x124] sm:$0xf]
      %v3091 = vld [vmem:[%s3 + $0x128] sm:$0xf]
      %v3092 = vld [vmem:[%s3 + $0x12c] sm:$0xf]
      %v3093 = vld [vmem:[%s3 + $0x130] sm:$0xf]
      %v3094 = vld [vmem:[%s3 + $0x134] sm:$0xf]
      %v3095 = vld [vmem:[%s3 + $0x138] sm:$0xf]
      %v3096 = vld [vmem:[%s3 + $0x13c] sm:$0xf]
      %v3097 = vld [vmem:[%s3 + $0x140] sm:$0xf]
      %v3098 = vld [vmem:[%s3 + $0x144] sm:$0xf]
      %v3099 = vld [vmem:[%s3 + $0x148] sm:$0xf]
      %v3100 = vld [vmem:[%s3 + $0x14c] sm:$0xf]
      %v3101 = vld [vmem:[%s3 + $0x150] sm:$0xf]
      %v3102 = vld [vmem:[%s3 + $0x154] sm:$0xf]
      %v3103 = vld [vmem:[%s3 + $0x158] sm:$0xf]
      %v3104 = vld [vmem:[%s3 + $0x15c] sm:$0xf]
      %v3105 = vld [vmem:[%s3 + $0x160] sm:$0xf]
      %v3106 = vld [vmem:[%s3 + $0x164] sm:$0xf]
      %v3107 = vld [vmem:[%s3 + $0x168] sm:$0xf]
      %v3108 = vld [vmem:[%s3 + $0x16c] sm:$0xf]
      %v3109 = vld [vmem:[%s3 + $0x170] sm:$0xf]
      %v3110 = vld [vmem:[%s3 + $0x174] sm:$0xf]
      %v3111 = vld [vmem:[%s3 + $0x178] sm:$0xf]
      %v3112 = vld [vmem:[%s3 + $0x17c] sm:$0xf]
      %v3113 = vld [vmem:[%s3 + $0x180] sm:$0xf]
      %v3114 = vld [vmem:[%s3 + $0x184] sm:$0xf]
      %v3115 = vld [vmem:[%s3 + $0x188] sm:$0xf]
      %v3116 = vld [vmem:[%s3 + $0x18c] sm:$0xf]
      %v3117 = vld [vmem:[%s3 + $0x190] sm:$0xf]
      %v3118 = vld [vmem:[%s3 + $0x194] sm:$0xf]
      %v3119 = vld [vmem:[%s3 + $0x198] sm:$0xf]
      %v3120 = vld [vmem:[%s3 + $0x19c] sm:$0xf]
      %v3121 = vld [vmem:[%s3 + $0x1a0] sm:$0xf]
      %v3122 = vld [vmem:[%s3 + $0x1a4] sm:$0xf]
      %v3123 = vld [vmem:[%s3 + $0x1a8] sm:$0xf]
      %v3124 = vld [vmem:[%s3 + $0x1ac] sm:$0xf]
      %v3125 = vld [vmem:[%s3 + $0x1b0] sm:$0xf]
      %v3126 = vld [vmem:[%s3 + $0x1b4] sm:$0xf]
      %v3127 = vld [vmem:[%s3 + $0x1b8] sm:$0xf]
      %v3128 = vld [vmem:[%s3 + $0x1bc] sm:$0xf]
      %v3129 = vld [vmem:[%s3 + $0x1c0] sm:$0xf]
      %v3130 = vld [vmem:[%s3 + $0x1c4] sm:$0xf]
      %v3131 = vld [vmem:[%s3 + $0x1c8] sm:$0xf]
      %v3132 = vld [vmem:[%s3 + $0x1cc] sm:$0xf]
      %v3133 = vld [vmem:[%s3 + $0x1d0] sm:$0xf]
      %v3134 = vld [vmem:[%s3 + $0x1d4] sm:$0xf]
      %v3135 = vld [vmem:[%s3 + $0x1d8] sm:$0xf]
      %v3136 = vld [vmem:[%s3 + $0x1dc] sm:$0xf]
      %v3137 = vld [vmem:[%s3 + $0x1e0] sm:$0xf]
      %v3138 = vld [vmem:[%s3 + $0x1e4] sm:$0xf]
      %v3139 = vld [vmem:[%s3 + $0x1e8] sm:$0xf]
      %v3140 = vld [vmem:[%s3 + $0x1ec] sm:$0xf]
      %v3141 = vld [vmem:[%s3 + $0x1f0] sm:$0xf]
      %v3142 = vld [vmem:[%s3 + $0x1f4] sm:$0xf]
      %v3143 = vld [vmem:[%s3 + $0x1f8] sm:$0xf]
      %v3144 = vld [vmem:[%s3 + $0x1fc] sm:$0xf]
      %v3145 = vld [vmem:[%s3 + $0x200] sm:$0xf]
      %v3146 = vld [vmem:[%s3 + $0x204] sm:$0xf]
      %v3147 = vld [vmem:[%s3 + $0x208] sm:$0xf]
      %v3148 = vld [vmem:[%s3 + $0x20c] sm:$0xf]
      %v3149 = vld [vmem:[%s3 + $0x210] sm:$0xf]
      %v3150 = vld [vmem:[%s3 + $0x214] sm:$0xf]
      %v3151 = vld [vmem:[%s3 + $0x218] sm:$0xf]
      %v3152 = vld [vmem:[%s3 + $0x21c] sm:$0xf]
      %v3153 = vld [vmem:[%s3 + $0x220] sm:$0xf]
      %v3154 = vld [vmem:[%s3 + $0x224] sm:$0xf]
      %v3155 = vld [vmem:[%s3 + $0x228] sm:$0xf]
      %v3156 = vld [vmem:[%s3 + $0x22c] sm:$0xf]
      %v3157 = vld [vmem:[%s3 + $0x230] sm:$0xf]
      %v3158 = vld [vmem:[%s3 + $0x234] sm:$0xf]
      %v3159 = vld [vmem:[%s3 + $0x238] sm:$0xf]
      %v3160 = vld [vmem:[%s3 + $0x23c] sm:$0xf]
      %v3305 = vunpack.c.l.b16 %v3017
      %v3306 = vunpack.c.l.b16 %v3018
      %v3307 = vunpack.c.l.b16 %v3019
      %v3308 = vunpack.c.l.b16 %v3020
      %v3309 = vunpack.c.l.b16 %v3021
      %v3310 = vunpack.c.l.b16 %v3022
      %v3311 = vunpack.c.l.b16 %v3023
      %v3312 = vunpack.c.l.b16 %v3024
      %v3313 = vunpack.c.l.b16 %v3025
      %v3314 = vunpack.c.l.b16 %v3026
      %v3315 = vunpack.c.l.b16 %v3027
      %v3316 = vunpack.c.l.b16 %v3028
      %v3317 = vunpack.c.l.b16 %v3029
      %v3318 = vunpack.c.l.b16 %v3030
      %v3319 = vunpack.c.l.b16 %v3031
      %v3320 = vunpack.c.l.b16 %v3032
      %v3321 = vunpack.c.l.b16 %v3033
      %v3322 = vunpack.c.l.b16 %v3034
      %v3323 = vunpack.c.l.b16 %v3035
      %v3324 = vunpack.c.l.b16 %v3036
      %v3325 = vunpack.c.l.b16 %v3037
      %v3326 = vunpack.c.l.b16 %v3038
      %v3327 = vunpack.c.l.b16 %v3039
      %v3328 = vunpack.c.l.b16 %v3040
      %v3329 = vunpack.c.l.b16 %v3041
      %v3330 = vunpack.c.l.b16 %v3042
      %v3331 = vunpack.c.l.b16 %v3043
      %v3332 = vunpack.c.l.b16 %v3044
      %v3333 = vunpack.c.l.b16 %v3045
      %v3334 = vunpack.c.l.b16 %v3046
      %v3335 = vunpack.c.l.b16 %v3047
      %v3336 = vunpack.c.l.b16 %v3048
      %v3337 = vunpack.c.l.b16 %v3049
      %v3338 = vunpack.c.l.b16 %v3050
      %v3339 = vunpack.c.l.b16 %v3051
      %v3340 = vunpack.c.l.b16 %v3052
      %v3341 = vunpack.c.l.b16 %v3053
      %v3342 = vunpack.c.l.b16 %v3054
      %v3343 = vunpack.c.l.b16 %v3055
      %v3344 = vunpack.c.l.b16 %v3056
      %v3345 = vunpack.c.l.b16 %v3057
      %v3346 = vunpack.c.l.b16 %v3058
      %v3347 = vunpack.c.l.b16 %v3059
      %v3348 = vunpack.c.l.b16 %v3060
      %v3349 = vunpack.c.l.b16 %v3061
      %v3350 = vunpack.c.l.b16 %v3062
      %v3351 = vunpack.c.l.b16 %v3063
      %v3352 = vunpack.c.l.b16 %v3064
      %v3353 = vunpack.c.l.b16 %v3065
      %v3354 = vunpack.c.l.b16 %v3066
      %v3355 = vunpack.c.l.b16 %v3067
      %v3356 = vunpack.c.l.b16 %v3068
      %v3357 = vunpack.c.l.b16 %v3069
      %v3358 = vunpack.c.l.b16 %v3070
      %v3359 = vunpack.c.l.b16 %v3071
      %v3360 = vunpack.c.l.b16 %v3072
      %v3361 = vunpack.c.l.b16 %v3073
      %v3362 = vunpack.c.l.b16 %v3074
      %v3363 = vunpack.c.l.b16 %v3075
      %v3364 = vunpack.c.l.b16 %v3076
      %v3365 = vunpack.c.l.b16 %v3077
      %v3366 = vunpack.c.l.b16 %v3078
      %v3367 = vunpack.c.l.b16 %v3079
      %v3368 = vunpack.c.l.b16 %v3080
      %v3369 = vunpack.c.l.b16 %v3081
      %v3370 = vunpack.c.l.b16 %v3082
      %v3371 = vunpack.c.l.b16 %v3083
      %v3372 = vunpack.c.l.b16 %v3084
      %v3373 = vunpack.c.l.b16 %v3085
      %v3374 = vunpack.c.l.b16 %v3086
      %v3375 = vunpack.c.l.b16 %v3087
      %v3376 = vunpack.c.l.b16 %v3088
      %v3377 = vunpack.c.l.b16 %v3089
      %v3378 = vunpack.c.l.b16 %v3090
      %v3379 = vunpack.c.l.b16 %v3091
      %v3380 = vunpack.c.l.b16 %v3092
      %v3381 = vunpack.c.l.b16 %v3093
      %v3382 = vunpack.c.l.b16 %v3094
      %v3383 = vunpack.c.l.b16 %v3095
      %v3384 = vunpack.c.l.b16 %v3096
      %v3385 = vunpack.c.l.b16 %v3097
      %v3386 = vunpack.c.l.b16 %v3098
      %v3387 = vunpack.c.l.b16 %v3099
      %v3388 = vunpack.c.l.b16 %v3100
      %v3389 = vunpack.c.l.b16 %v3101
      %v3390 = vunpack.c.l.b16 %v3102
      %v3391 = vunpack.c.l.b16 %v3103
      %v3392 = vunpack.c.l.b16 %v3104
      %v3393 = vunpack.c.l.b16 %v3105
      %v3394 = vunpack.c.l.b16 %v3106
      %v3395 = vunpack.c.l.b16 %v3107
      %v3396 = vunpack.c.l.b16 %v3108
      %v3397 = vunpack.c.l.b16 %v3109
      %v3398 = vunpack.c.l.b16 %v3110
      %v3399 = vunpack.c.l.b16 %v3111
      %v3400 = vunpack.c.l.b16 %v3112
      %v3401 = vunpack.c.l.b16 %v3113
      %v3402 = vunpack.c.l.b16 %v3114
      %v3403 = vunpack.c.l.b16 %v3115
      %v3404 = vunpack.c.l.b16 %v3116
      %v3405 = vunpack.c.l.b16 %v3117
      %v3406 = vunpack.c.l.b16 %v3118
      %v3407 = vunpack.c.l.b16 %v3119
      %v3408 = vunpack.c.l.b16 %v3120
      %v3409 = vunpack.c.l.b16 %v3121
      %v3410 = vunpack.c.l.b16 %v3122
      %v3411 = vunpack.c.l.b16 %v3123
      %v3412 = vunpack.c.l.b16 %v3124
      %v3413 = vunpack.c.l.b16 %v3125
      %v3414 = vunpack.c.l.b16 %v3126
      %v3415 = vunpack.c.l.b16 %v3127
      %v3416 = vunpack.c.l.b16 %v3128
      %v3417 = vunpack.c.l.b16 %v3129
      %v3418 = vunpack.c.l.b16 %v3130
      %v3419 = vunpack.c.l.b16 %v3131
      %v3420 = vunpack.c.l.b16 %v3132
      %v3421 = vunpack.c.l.b16 %v3133
      %v3422 = vunpack.c.l.b16 %v3134
      %v3423 = vunpack.c.l.b16 %v3135
      %v3424 = vunpack.c.l.b16 %v3136
      %v3425 = vunpack.c.l.b16 %v3137
      %v3426 = vunpack.c.l.b16 %v3138
      %v3427 = vunpack.c.l.b16 %v3139
      %v3428 = vunpack.c.l.b16 %v3140
      %v3429 = vunpack.c.l.b16 %v3141
      %v3430 = vunpack.c.l.b16 %v3142
      %v3431 = vunpack.c.l.b16 %v3143
      %v3432 = vunpack.c.l.b16 %v3144
      %v3433 = vunpack.c.l.b16 %v3145
      %v3434 = vunpack.c.l.b16 %v3146
      %v3435 = vunpack.c.l.b16 %v3147
      %v3436 = vunpack.c.l.b16 %v3148
      %v3437 = vunpack.c.l.b16 %v3149
      %v3438 = vunpack.c.l.b16 %v3150
      %v3439 = vunpack.c.l.b16 %v3151
      %v3440 = vunpack.c.l.b16 %v3152
      %v3441 = vunpack.c.l.b16 %v3153
      %v3442 = vunpack.c.l.b16 %v3154
      %v3443 = vunpack.c.l.b16 %v3155
      %v3444 = vunpack.c.l.b16 %v3156
      %v3445 = vunpack.c.l.b16 %v3157
      %v3446 = vunpack.c.l.b16 %v3158
      %v3447 = vunpack.c.l.b16 %v3159
      %v3448 = vunpack.c.l.b16 %v3160
      %v3449 = vpack.c.b16 %v3306, %v3305
      %v3450 = vpack.c.b16 %v3308, %v3307
      %v3451 = vpack.c.b16 %v3310, %v3309
      %v3452 = vpack.c.b16 %v3312, %v3311
      %v3453 = vpack.c.b16 %v3314, %v3313
      %v3454 = vpack.c.b16 %v3316, %v3315
      %v3455 = vpack.c.b16 %v3318, %v3317
      %v3456 = vpack.c.b16 %v3320, %v3319
      %v3457 = vpack.c.b16 %v3322, %v3321
      %v3458 = vpack.c.b16 %v3324, %v3323
      %v3459 = vpack.c.b16 %v3326, %v3325
      %v3460 = vpack.c.b16 %v3328, %v3327
      %v3461 = vpack.c.b16 %v3330, %v3329
      %v3462 = vpack.c.b16 %v3332, %v3331
      %v3463 = vpack.c.b16 %v3334, %v3333
      %v3464 = vpack.c.b16 %v3336, %v3335
      %v3465 = vpack.c.b16 %v3338, %v3337
      %v3466 = vpack.c.b16 %v3340, %v3339
      %v3467 = vpack.c.b16 %v3342, %v3341
      %v3468 = vpack.c.b16 %v3344, %v3343
      %v3469 = vpack.c.b16 %v3346, %v3345
      %v3470 = vpack.c.b16 %v3348, %v3347
      %v3471 = vpack.c.b16 %v3350, %v3349
      %v3472 = vpack.c.b16 %v3352, %v3351
      %v3473 = vpack.c.b16 %v3354, %v3353
      %v3474 = vpack.c.b16 %v3356, %v3355
      %v3475 = vpack.c.b16 %v3358, %v3357
      %v3476 = vpack.c.b16 %v3360, %v3359
      %v3477 = vpack.c.b16 %v3362, %v3361
      %v3478 = vpack.c.b16 %v3364, %v3363
      %v3479 = vpack.c.b16 %v3366, %v3365
      %v3480 = vpack.c.b16 %v3368, %v3367
      %v3481 = vpack.c.b16 %v3370, %v3369
      %v3482 = vpack.c.b16 %v3372, %v3371
      %v3483 = vpack.c.b16 %v3374, %v3373
      %v3484 = vpack.c.b16 %v3376, %v3375
      %v3485 = vpack.c.b16 %v3378, %v3377
      %v3486 = vpack.c.b16 %v3380, %v3379
      %v3487 = vpack.c.b16 %v3382, %v3381
      %v3488 = vpack.c.b16 %v3384, %v3383
      %v3489 = vpack.c.b16 %v3386, %v3385
      %v3490 = vpack.c.b16 %v3388, %v3387
      %v3491 = vpack.c.b16 %v3390, %v3389
      %v3492 = vpack.c.b16 %v3392, %v3391
      %v3493 = vpack.c.b16 %v3394, %v3393
      %v3494 = vpack.c.b16 %v3396, %v3395
      %v3495 = vpack.c.b16 %v3398, %v3397
      %v3496 = vpack.c.b16 %v3400, %v3399
      %v3497 = vpack.c.b16 %v3402, %v3401
      %v3498 = vpack.c.b16 %v3404, %v3403
      %v3499 = vpack.c.b16 %v3406, %v3405
      %v3500 = vpack.c.b16 %v3408, %v3407
      %v3501 = vpack.c.b16 %v3410, %v3409
      %v3502 = vpack.c.b16 %v3412, %v3411
      %v3503 = vpack.c.b16 %v3414, %v3413
      %v3504 = vpack.c.b16 %v3416, %v3415
      %v3505 = vpack.c.b16 %v3418, %v3417
      %v3506 = vpack.c.b16 %v3420, %v3419
      %v3507 = vpack.c.b16 %v3422, %v3421
      %v3508 = vpack.c.b16 %v3424, %v3423
      %v3509 = vpack.c.b16 %v3426, %v3425
      %v3510 = vpack.c.b16 %v3428, %v3427
      %v3511 = vpack.c.b16 %v3430, %v3429
      %v3512 = vpack.c.b16 %v3432, %v3431
      %v3513 = vpack.c.b16 %v3434, %v3433
      %v3514 = vpack.c.b16 %v3436, %v3435
      %v3515 = vpack.c.b16 %v3438, %v3437
      %v3516 = vpack.c.b16 %v3440, %v3439
      %v3517 = vpack.c.b16 %v3442, %v3441
      %v3518 = vpack.c.b16 %v3444, %v3443
      %v3519 = vpack.c.b16 %v3446, %v3445
      %v3520 = vpack.c.b16 %v3448, %v3447
      %3593 = vmatprep.subr.bf16.mxu0 0
      %3594 = vmatpush1.bf16.msra.mxu0 %v3449
      %3595 = vmatprep.subr.bf16.mxu0 0
      %3596 = vmatpush1.bf16.msra.mxu0 %v3450
      %3597 = vmatprep.subr.bf16.mxu0 0
      %3598 = vmatpush1.bf16.msra.mxu0 %v3451
      %3599 = vmatprep.subr.bf16.mxu0 0
      %3600 = vmatpush1.bf16.msra.mxu0 %v3452
      %3601 = vmatprep.subr.bf16.mxu0 0
      %3602 = vmatpush1.bf16.msra.mxu0 %v3453
      %3603 = vmatprep.subr.bf16.mxu0 0
      %3604 = vmatpush1.bf16.msra.mxu0 %v3454
      %3605 = vmatprep.subr.bf16.mxu0 0
      %3606 = vmatpush1.bf16.msra.mxu0 %v3455
      %3607 = vmatprep.subr.bf16.mxu0 0
      %3608 = vmatpush1.bf16.msra.mxu0 %v3456
      %3609 = vmatprep.subr.bf16.mxu0 0
      %3610 = vmatpush1.bf16.msra.mxu0 %v3457
      %3611 = vmatprep.subr.bf16.mxu0 0
      %3612 = vmatpush1.bf16.msra.mxu0 %v3458
      %3613 = vmatprep.subr.bf16.mxu0 0
      %3614 = vmatpush1.bf16.msra.mxu0 %v3459
      %3615 = vmatprep.subr.bf16.mxu0 0
      %3616 = vmatpush1.bf16.msra.mxu0 %v3460
      %3617 = vmatprep.subr.bf16.mxu0 0
      %3618 = vmatpush1.bf16.msra.mxu0 %v3461
      %3619 = vmatprep.subr.bf16.mxu0 0
      %3620 = vmatpush1.bf16.msra.mxu0 %v3462
      %3621 = vmatprep.subr.bf16.mxu0 0
      %3622 = vmatpush1.bf16.msra.mxu0 %v3463
      %3623 = vmatprep.subr.bf16.mxu0 0
      %3624 = vmatpush1.bf16.msra.mxu0 %v3464
      %3625 = vmatprep.mubr.bf16.mxu0 %v2874
      %3626 = vmatmul.mubr.bf16.gmra.mrb[0].mxu0 %v2873
      %v3627 = vpop.f32.mrb[0].mxu0
      %v3628 = vadd.f32 0.0, %v3627
      %v3629 = vpop.f32.mrb[0].mxu0
      %v3630 = vpop.f32.mrb[0].mxu0
      %v3631 = vadd.f32 0.0, %v3630
      %v3632 = vpop.f32.mrb[0].mxu0
      %3633 = vmatprep.mubr.bf16.mxu0 %v2883
      %3634 = vmatmul.mubr.bf16.gmra.mrb[0].mxu0 %v2882
      %v3635 = vpop.f32.mrb[0].mxu0
      %v3636 = vadd.f32 0.0, %v3635
      %v3637 = vpop.f32.mrb[0].mxu0
      %v3638 = vpop.f32.mrb[0].mxu0
      %v3639 = vadd.f32 0.0, %v3638
      %v3640 = vpop.f32.mrb[0].mxu0
      %3641 = vmatprep.mubr.bf16.mxu0 %v2892
      %3642 = vmatmul.mubr.bf16.gmra.mrb[0].mxu0 %v2891
      %v3643 = vpop.f32.mrb[0].mxu0
      %v3644 = vadd.f32 0.0, %v3643
      %v3645 = vpop.f32.mrb[0].mxu0
      %v3646 = vpop.f32.mrb[0].mxu0
      %v3647 = vadd.f32 0.0, %v3646
      %v3648 = vpop.f32.mrb[0].mxu0
      %3649 = vmatprep.mubr.bf16.mxu0 %v2901
      %3650 = vmatmul.mubr.bf16.gmra.mrb[0].mxu0 %v2900
      %v3651 = vpop.f32.mrb[0].mxu0
      %v3652 = vadd.f32 0.0, %v3651
      %v3653 = vpop.f32.mrb[0].mxu0
      %v3654 = vpop.f32.mrb[0].mxu0
      %v3655 = vadd.f32 0.0, %v3654
      %v3656 = vpop.f32.mrb[0].mxu0
      %3657 = vmatprep.mubr.bf16.mxu0 %v2910
      %3658 = vmatmul.mubr.bf16.gmra.mrb[0].mxu0 %v2909
      %v3659 = vpop.f32.mrb[0].mxu0
      %v3660 = vadd.f32 0.0, %v3659
      %v3661 = vpop.f32.mrb[0].mxu0
      %v3662 = vpop.f32.mrb[0].mxu0
      %v3663 = vadd.f32 0.0, %v3662
      %v3664 = vpop.f32.mrb[0].mxu0
      %3665 = vmatprep.mubr.bf16.mxu0 %v2919
      %3666 = vmatmul.mubr.bf16.gmra.mrb[0].mxu0 %v2918
      %v3667 = vpop.f32.mrb[0].mxu0
      %v3668 = vadd.f32 0.0, %v3667
      %v3669 = vpop.f32.mrb[0].mxu0
      %v3670 = vpop.f32.mrb[0].mxu0
      %v3671 = vadd.f32 0.0, %v3670
      %v3672 = vpop.f32.mrb[0].mxu0
      %3673 = vmatprep.mubr.bf16.mxu0 %v2928
      %3674 = vmatmul.mubr.bf16.gmra.mrb[0].mxu0 %v2927
      %v3675 = vpop.f32.mrb[0].mxu0
      %v3676 = vadd.f32 0.0, %v3675
      %v3677 = vpop.f32.mrb[0].mxu0
      %v3678 = vpop.f32.mrb[0].mxu0
      %v3679 = vadd.f32 0.0, %v3678
      %v3680 = vpop.f32.mrb[0].mxu0
      %3681 = vmatprep.mubr.bf16.mxu0 %v2937
      %3682 = vmatmul.mubr.bf16.gmra.mrb[0].mxu0 %v2936
      %v3683 = vpop.f32.mrb[0].mxu0
      %v3684 = vadd.f32 0.0, %v3683
      %v3685 = vpop.f32.mrb[0].mxu0
      %v3686 = vpop.f32.mrb[0].mxu0
      %v3687 = vadd.f32 0.0, %v3686
      %v3688 = vpop.f32.mrb[0].mxu0
      %3689 = vmatprep.mubr.bf16.mxu0 %v2946
      %3690 = vmatmul.mubr.bf16.gmra.mrb[0].mxu0 %v2945
      %v3691 = vpop.f32.mrb[0].mxu0
      %v3692 = vadd.f32 0.0, %v3691
      %v3693 = vpop.f32.mrb[0].mxu0
      %v3694 = vpop.f32.mrb[0].mxu0
      %v3695 = vadd.f32 0.0, %v3694
      %v3696 = vpop.f32.mrb[0].mxu0
      %3697 = vmatprep.mubr.bf16.mxu0 %v2955
      %3698 = vmatmul.mubr.bf16.gmra.mrb[0].mxu0 %v2954
      %v3699 = vpop.f32.mrb[0].mxu0
      %v3700 = vadd.f32 0.0, %v3699
      %v3701 = vpop.f32.mrb[0].mxu0
      %v3702 = vpop.f32.mrb[0].mxu0
      %v3703 = vadd.f32 0.0, %v3702
      %v3704 = vpop.f32.mrb[0].mxu0
      %3705 = vmatprep.mubr.bf16.mxu0 %v2964
      %3706 = vmatmul.mubr.bf16.gmra.mrb[0].mxu0 %v2963
      %v3707 = vpop.f32.mrb[0].mxu0
      %v3708 = vadd.f32 0.0, %v3707
      %v3709 = vpop.f32.mrb[0].mxu0
      %v3710 = vpop.f32.mrb[0].mxu0
      %v3711 = vadd.f32 0.0, %v3710
      %v3712 = vpop.f32.mrb[0].mxu0
      %3713 = vmatprep.mubr.bf16.mxu0 %v2973
      %3714 = vmatmul.mubr.bf16.gmra.mrb[0].mxu0 %v2972
      %v3715 = vpop.f32.mrb[0].mxu0
      %v3716 = vadd.f32 0.0, %v3715
      %v3717 = vpop.f32.mrb[0].mxu0
      %v3718 = vpop.f32.mrb[0].mxu0
      %v3719 = vadd.f32 0.0, %v3718
      %v3720 = vpop.f32.mrb[0].mxu0
      %3721 = vmatprep.mubr.bf16.mxu0 %v2982
      %3722 = vmatmul.mubr.bf16.gmra.mrb[0].mxu0 %v2981
      %v3723 = vpop.f32.mrb[0].mxu0
      %v3724 = vadd.f32 0.0, %v3723
      %v3725 = vpop.f32.mrb[0].mxu0
      %v3726 = vpop.f32.mrb[0].mxu0
      %v3727 = vadd.f32 0.0, %v3726
      %v3728 = vpop.f32.mrb[0].mxu0
      %3729 = vmatprep.mubr.bf16.mxu0 %v2991
      %3730 = vmatmul.mubr.bf16.gmra.mrb[0].mxu0 %v2990
      %v3731 = vpop.f32.mrb[0].mxu0
      %v3732 = vadd.f32 0.0, %v3731
      %v3733 = vpop.f32.mrb[0].mxu0
      %v3734 = vpop.f32.mrb[0].mxu0
      %v3735 = vadd.f32 0.0, %v3734
      %v3736 = vpop.f32.mrb[0].mxu0
      %3737 = vmatprep.mubr.bf16.mxu0 %v3000
      %3738 = vmatmul.mubr.bf16.gmra.mrb[0].mxu0 %v2999
      %v3739 = vpop.f32.mrb[0].mxu0
      %v3740 = vadd.f32 0.0, %v3739
      %v3741 = vpop.f32.mrb[0].mxu0
      %v3742 = vpop.f32.mrb[0].mxu0
      %v3743 = vadd.f32 0.0, %v3742
      %v3744 = vpop.f32.mrb[0].mxu0
      %3745 = vmatprep.mubr.bf16.mxu0 %v3009
      %3746 = vmatmul.mubr.bf16.gmra.mrb[0].mxu0 %v3008
      %v3747 = vpop.f32.mrb[0].mxu0
      %v3748 = vadd.f32 0.0, %v3747
      %v3749 = vpop.f32.mrb[0].mxu0
      %v3750 = vpop.f32.mrb[0].mxu0
      %v3751 = vadd.f32 0.0, %v3750
      %v3752 = vpop.f32.mrb[0].mxu0
      %3753 = vdwg.mxu0
      %3754 = vmatprep.subr.bf16.mxu0 0
      %3755 = vmatpush1.bf16.msra.mxu0 %v3465
      %3756 = vmatprep.subr.bf16.mxu0 0
      %3757 = vmatpush1.bf16.msra.mxu0 %v3466
      %3758 = vmatprep.subr.bf16.mxu0 0
      %3759 = vmatpush1.bf16.msra.mxu0 %v3467
      %3760 = vmatprep.subr.bf16.mxu0 0
      %3761 = vmatpush1.bf16.msra.mxu0 %v3468
      %3762 = vmatprep.subr.bf16.mxu0 0
      %3763 = vmatpush1.bf16.msra.mxu0 %v3469
      %3764 = vmatprep.subr.bf16.mxu0 0
      %3765 = vmatpush1.bf16.msra.mxu0 %v3470
      %3766 = vmatprep.subr.bf16.mxu0 0
      %3767 = vmatpush1.bf16.msra.mxu0 %v3471
      %3768 = vmatprep.subr.bf16.mxu0 0
      %3769 = vmatpush1.bf16.msra.mxu0 %v3472
      %3770 = vmatprep.subr.bf16.mxu0 0
      %3771 = vmatpush1.bf16.msra.mxu0 %v3473
      %3772 = vmatprep.subr.bf16.mxu0 0
      %3773 = vmatpush1.bf16.msra.mxu0 %v3474
      %3774 = vmatprep.subr.bf16.mxu0 0
      %3775 = vmatpush1.bf16.msra.mxu0 %v3475
      %3776 = vmatprep.subr.bf16.mxu0 0
      %3777 = vmatpush1.bf16.msra.mxu0 %v3476
      %3778 = vmatprep.subr.bf16.mxu0 0
      %3779 = vmatpush1.bf16.msra.mxu0 %v3477
      %3780 = vmatprep.subr.bf16.mxu0 0
      %3781 = vmatpush1.bf16.msra.mxu0 %v3478
      %3782 = vmatprep.subr.bf16.mxu0 0
      %3783 = vmatpush1.bf16.msra.mxu0 %v3479
      %3784 = vmatprep.subr.bf16.mxu0 0
      %3785 = vmatpush1.bf16.msra.mxu0 %v3480
      %3786 = vmatprep.mubr.bf16.mxu0 %v2876
      %3787 = vmatmul.mubr.bf16.gmra.mrb[0].mxu0 %v2875
      %v3788 = vpop.f32.mrb[0].mxu0
      %v3789 = vadd.f32 %v3628, %v3788
      %v3790 = vpop.f32.mrb[0].mxu0
      %v3791 = vpop.f32.mrb[0].mxu0
      %v3792 = vadd.f32 %v3631, %v3791
      %v3793 = vpop.f32.mrb[0].mxu0
      %3794 = vmatprep.mubr.bf16.mxu0 %v2885
      %3795 = vmatmul.mubr.bf16.gmra.mrb[0].mxu0 %v2884
      %v3796 = vpop.f32.mrb[0].mxu0
      %v3797 = vadd.f32 %v3636, %v3796
      %v3798 = vpop.f32.mrb[0].mxu0
      %v3799 = vpop.f32.mrb[0].mxu0
      %v3800 = vadd.f32 %v3639, %v3799
      %v3801 = vpop.f32.mrb[0].mxu0
      %3802 = vmatprep.mubr.bf16.mxu0 %v2894
      %3803 = vmatmul.mubr.bf16.gmra.mrb[0].mxu0 %v2893
      %v3804 = vpop.f32.mrb[0].mxu0
      %v3805 = vadd.f32 %v3644, %v3804
      %v3806 = vpop.f32.mrb[0].mxu0
      %v3807 = vpop.f32.mrb[0].mxu0
      %v3808 = vadd.f32 %v3647, %v3807
      %v3809 = vpop.f32.mrb[0].mxu0
      %3810 = vmatprep.mubr.bf16.mxu0 %v2903
      %3811 = vmatmul.mubr.bf16.gmra.mrb[0].mxu0 %v2902
      %v3812 = vpop.f32.mrb[0].mxu0
      %v3813 = vadd.f32 %v3652, %v3812
      %v3814 = vpop.f32.mrb[0].mxu0
      %v3815 = vpop.f32.mrb[0].mxu0
      %v3816 = vadd.f32 %v3655, %v3815
      %v3817 = vpop.f32.mrb[0].mxu0
      %3818 = vmatprep.mubr.bf16.mxu0 %v2912
      %3819 = vmatmul.mubr.bf16.gmra.mrb[0].mxu0 %v2911
      %v3820 = vpop.f32.mrb[0].mxu0
      %v3821 = vadd.f32 %v3660, %v3820
      %v3822 = vpop.f32.mrb[0].mxu0
      %v3823 = vpop.f32.mrb[0].mxu0
      %v3824 = vadd.f32 %v3663, %v3823
      %v3825 = vpop.f32.mrb[0].mxu0
      %3826 = vmatprep.mubr.bf16.mxu0 %v2921
      %3827 = vmatmul.mubr.bf16.gmra.mrb[0].mxu0 %v2920
      %v3828 = vpop.f32.mrb[0].mxu0
      %v3829 = vadd.f32 %v3668, %v3828
      %v3830 = vpop.f32.mrb[0].mxu0
      %v3831 = vpop.f32.mrb[0].mxu0
      %v3832 = vadd.f32 %v3671, %v3831
      %v3833 = vpop.f32.mrb[0].mxu0
      %3834 = vmatprep.mubr.bf16.mxu0 %v2930
      %3835 = vmatmul.mubr.bf16.gmra.mrb[0].mxu0 %v2929
      %v3836 = vpop.f32.mrb[0].mxu0
      %v3837 = vadd.f32 %v3676, %v3836
      %v3838 = vpop.f32.mrb[0].mxu0
      %v3839 = vpop.f32.mrb[0].mxu0
      %v3840 = vadd.f32 %v3679, %v3839
      %v3841 = vpop.f32.mrb[0].mxu0
      %3842 = vmatprep.mubr.bf16.mxu0 %v2939
      %3843 = vmatmul.mubr.bf16.gmra.mrb[0].mxu0 %v2938
      %v3844 = vpop.f32.mrb[0].mxu0
      %v3845 = vadd.f32 %v3684, %v3844
      %v3846 = vpop.f32.mrb[0].mxu0
      %v3847 = vpop.f32.mrb[0].mxu0
      %v3848 = vadd.f32 %v3687, %v3847
      %v3849 = vpop.f32.mrb[0].mxu0
      %3850 = vmatprep.mubr.bf16.mxu0 %v2948
      %3851 = vmatmul.mubr.bf16.gmra.mrb[0].mxu0 %v2947
      %v3852 = vpop.f32.mrb[0].mxu0
      %v3853 = vadd.f32 %v3692, %v3852
      %v3854 = vpop.f32.mrb[0].mxu0
      %v3855 = vpop.f32.mrb[0].mxu0
      %v3856 = vadd.f32 %v3695, %v3855
      %v3857 = vpop.f32.mrb[0].mxu0
      %3858 = vmatprep.mubr.bf16.mxu0 %v2957
      %3859 = vmatmul.mubr.bf16.gmra.mrb[0].mxu0 %v2956
      %v3860 = vpop.f32.mrb[0].mxu0
      %v3861 = vadd.f32 %v3700, %v3860
      %v3862 = vpop.f32.mrb[0].mxu0
      %v3863 = vpop.f32.mrb[0].mxu0
      %v3864 = vadd.f32 %v3703, %v3863
      %v3865 = vpop.f32.mrb[0].mxu0
      %3866 = vmatprep.mubr.bf16.mxu0 %v2966
      %3867 = vmatmul.mubr.bf16.gmra.mrb[0].mxu0 %v2965
      %v3868 = vpop.f32.mrb[0].mxu0
      %v3869 = vadd.f32 %v3708, %v3868
      %v3870 = vpop.f32.mrb[0].mxu0
      %v3871 = vpop.f32.mrb[0].mxu0
      %v3872 = vadd.f32 %v3711, %v3871
      %v3873 = vpop.f32.mrb[0].mxu0
      %3874 = vmatprep.mubr.bf16.mxu0 %v2975
      %3875 = vmatmul.mubr.bf16.gmra.mrb[0].mxu0 %v2974
      %v3876 = vpop.f32.mrb[0].mxu0
      %v3877 = vadd.f32 %v3716, %v3876
      %v3878 = vpop.f32.mrb[0].mxu0
      %v3879 = vpop.f32.mrb[0].mxu0
      %v3880 = vadd.f32 %v3719, %v3879
      %v3881 = vpop.f32.mrb[0].mxu0
      %3882 = vmatprep.mubr.bf16.mxu0 %v2984
      %3883 = vmatmul.mubr.bf16.gmra.mrb[0].mxu0 %v2983
      %v3884 = vpop.f32.mrb[0].mxu0
      %v3885 = vadd.f32 %v3724, %v3884
      %v3886 = vpop.f32.mrb[0].mxu0
      %v3887 = vpop.f32.mrb[0].mxu0
      %v3888 = vadd.f32 %v3727, %v3887
      %v3889 = vpop.f32.mrb[0].mxu0
      %3890 = vmatprep.mubr.bf16.mxu0 %v2993
      %3891 = vmatmul.mubr.bf16.gmra.mrb[0].mxu0 %v2992
      %v3892 = vpop.f32.mrb[0].mxu0
      %v3893 = vadd.f32 %v3732, %v3892
      %v3894 = vpop.f32.mrb[0].mxu0
      %v3895 = vpop.f32.mrb[0].mxu0
      %v3896 = vadd.f32 %v3735, %v3895
      %v3897 = vpop.f32.mrb[0].mxu0
      %3898 = vmatprep.mubr.bf16.mxu0 %v3002
      %3899 = vmatmul.mubr.bf16.gmra.mrb[0].mxu0 %v3001
      %v3900 = vpop.f32.mrb[0].mxu0
      %v3901 = vadd.f32 %v3740, %v3900
      %v3902 = vpop.f32.mrb[0].mxu0
      %v3903 = vpop.f32.mrb[0].mxu0
      %v3904 = vadd.f32 %v3743, %v3903
      %v3905 = vpop.f32.mrb[0].mxu0
      %3906 = vmatprep.mubr.bf16.mxu0 %v3011
      %3907 = vmatmul.mubr.bf16.gmra.mrb[0].mxu0 %v3010
      %v3908 = vpop.f32.mrb[0].mxu0
      %v3909 = vadd.f32 %v3748, %v3908
      %v3910 = vpop.f32.mrb[0].mxu0
      %v3911 = vpop.f32.mrb[0].mxu0
      %v3912 = vadd.f32 %v3751, %v3911
      %v3913 = vpop.f32.mrb[0].mxu0
      %3914 = vdwg.mxu0
      %3915 = vmatprep.subr.bf16.mxu0 0
      %3916 = vmatpush1.bf16.msra.mxu0 %v3481
      %3917 = vmatprep.subr.bf16.mxu0 0
      %3918 = vmatpush1.bf16.msra.mxu0 %v3482
      %3919 = vmatprep.subr.bf16.mxu0 0
      %3920 = vmatpush1.bf16.msra.mxu0 %v3483
      %3921 = vmatprep.subr.bf16.mxu0 0
      %3922 = vmatpush1.bf16.msra.mxu0 %v3484
      %3923 = vmatprep.subr.bf16.mxu0 0
      %3924 = vmatpush1.bf16.msra.mxu0 %v3485
      %3925 = vmatprep.subr.bf16.mxu0 0
      %3926 = vmatpush1.bf16.msra.mxu0 %v3486
      %3927 = vmatprep.subr.bf16.mxu0 0
      %3928 = vmatpush1.bf16.msra.mxu0 %v3487
      %3929 = vmatprep.subr.bf16.mxu0 0
      %3930 = vmatpush1.bf16.msra.mxu0 %v3488
      %3931 = vmatprep.subr.bf16.mxu0 0
      %3932 = vmatpush1.bf16.msra.mxu0 %v3489
      %3933 = vmatprep.subr.bf16.mxu0 0
      %3934 = vmatpush1.bf16.msra.mxu0 %v3490
      %3935 = vmatprep.subr.bf16.mxu0 0
      %3936 = vmatpush1.bf16.msra.mxu0 %v3491
      %3937 = vmatprep.subr.bf16.mxu0 0
      %3938 = vmatpush1.bf16.msra.mxu0 %v3492
      %3939 = vmatprep.subr.bf16.mxu0 0
      %3940 = vmatpush1.bf16.msra.mxu0 %v3493
      %3941 = vmatprep.subr.bf16.mxu0 0
      %3942 = vmatpush1.bf16.msra.mxu0 %v3494
      %3943 = vmatprep.subr.bf16.mxu0 0
      %3944 = vmatpush1.bf16.msra.mxu0 %v3495
      %3945 = vmatprep.subr.bf16.mxu0 0
      %3946 = vmatpush1.bf16.msra.mxu0 %v3496
      %3947 = vmatprep.mubr.bf16.mxu0 %v2878
      %3948 = vmatmul.mubr.bf16.gmra.mrb[0].mxu0 %v2877
      %v3949 = vpop.f32.mrb[0].mxu0
      %v3950 = vadd.f32 %v3789, %v3949
      %v3951 = vpop.f32.mrb[0].mxu0
      %v3952 = vpop.f32.mrb[0].mxu0
      %v3953 = vadd.f32 %v3792, %v3952
      %v3954 = vpop.f32.mrb[0].mxu0
      %3955 = vmatprep.mubr.bf16.mxu0 %v2887
      %3956 = vmatmul.mubr.bf16.gmra.mrb[0].mxu0 %v2886
      %v3957 = vpop.f32.mrb[0].mxu0
      %v3958 = vadd.f32 %v3797, %v3957
      %v3959 = vpop.f32.mrb[0].mxu0
      %v3960 = vpop.f32.mrb[0].mxu0
      %v3961 = vadd.f32 %v3800, %v3960
      %v3962 = vpop.f32.mrb[0].mxu0
      %3963 = vmatprep.mubr.bf16.mxu0 %v2896
      %3964 = vmatmul.mubr.bf16.gmra.mrb[0].mxu0 %v2895
      %v3965 = vpop.f32.mrb[0].mxu0
      %v3966 = vadd.f32 %v3805, %v3965
      %v3967 = vpop.f32.mrb[0].mxu0
      %v3968 = vpop.f32.mrb[0].mxu0
      %v3969 = vadd.f32 %v3808, %v3968
      %v3970 = vpop.f32.mrb[0].mxu0
      %3971 = vmatprep.mubr.bf16.mxu0 %v2905
      %3972 = vmatmul.mubr.bf16.gmra.mrb[0].mxu0 %v2904
      %v3973 = vpop.f32.mrb[0].mxu0
      %v3974 = vadd.f32 %v3813, %v3973
      %v3975 = vpop.f32.mrb[0].mxu0
      %v3976 = vpop.f32.mrb[0].mxu0
      %v3977 = vadd.f32 %v3816, %v3976
      %v3978 = vpop.f32.mrb[0].mxu0
      %3979 = vmatprep.mubr.bf16.mxu0 %v2914
      %3980 = vmatmul.mubr.bf16.gmra.mrb[0].mxu0 %v2913
      %v3981 = vpop.f32.mrb[0].mxu0
      %v3982 = vadd.f32 %v3821, %v3981
      %v3983 = vpop.f32.mrb[0].mxu0
      %v3984 = vpop.f32.mrb[0].mxu0
      %v3985 = vadd.f32 %v3824, %v3984
      %v3986 = vpop.f32.mrb[0].mxu0
      %3987 = vmatprep.mubr.bf16.mxu0 %v2923
      %3988 = vmatmul.mubr.bf16.gmra.mrb[0].mxu0 %v2922
      %v3989 = vpop.f32.mrb[0].mxu0
      %v3990 = vadd.f32 %v3829, %v3989
      %v3991 = vpop.f32.mrb[0].mxu0
      %v3992 = vpop.f32.mrb[0].mxu0
      %v3993 = vadd.f32 %v3832, %v3992
      %v3994 = vpop.f32.mrb[0].mxu0
      %3995 = vmatprep.mubr.bf16.mxu0 %v2932
      %3996 = vmatmul.mubr.bf16.gmra.mrb[0].mxu0 %v2931
      %v3997 = vpop.f32.mrb[0].mxu0
      %v3998 = vadd.f32 %v3837, %v3997
      %v3999 = vpop.f32.mrb[0].mxu0
      %v4000 = vpop.f32.mrb[0].mxu0
      %v4001 = vadd.f32 %v3840, %v4000
      %v4002 = vpop.f32.mrb[0].mxu0
      %4003 = vmatprep.mubr.bf16.mxu0 %v2941
      %4004 = vmatmul.mubr.bf16.gmra.mrb[0].mxu0 %v2940
      %v4005 = vpop.f32.mrb[0].mxu0
      %v4006 = vadd.f32 %v3845, %v4005
      %v4007 = vpop.f32.mrb[0].mxu0
      %v4008 = vpop.f32.mrb[0].mxu0
      %v4009 = vadd.f32 %v3848, %v4008
      %v4010 = vpop.f32.mrb[0].mxu0
      %4011 = vmatprep.mubr.bf16.mxu0 %v2950
      %4012 = vmatmul.mubr.bf16.gmra.mrb[0].mxu0 %v2949
      %v4013 = vpop.f32.mrb[0].mxu0
      %v4014 = vadd.f32 %v3853, %v4013
      %v4015 = vpop.f32.mrb[0].mxu0
      %v4016 = vpop.f32.mrb[0].mxu0
      %v4017 = vadd.f32 %v3856, %v4016
      %v4018 = vpop.f32.mrb[0].mxu0
      %4019 = vmatprep.mubr.bf16.mxu0 %v2959
      %4020 = vmatmul.mubr.bf16.gmra.mrb[0].mxu0 %v2958
      %v4021 = vpop.f32.mrb[0].mxu0
      %v4022 = vadd.f32 %v3861, %v4021
      %v4023 = vpop.f32.mrb[0].mxu0
      %v4024 = vpop.f32.mrb[0].mxu0
      %v4025 = vadd.f32 %v3864, %v4024
      %v4026 = vpop.f32.mrb[0].mxu0
      %4027 = vmatprep.mubr.bf16.mxu0 %v2968
      %4028 = vmatmul.mubr.bf16.gmra.mrb[0].mxu0 %v2967
      %v4029 = vpop.f32.mrb[0].mxu0
      %v4030 = vadd.f32 %v3869, %v4029
      %v4031 = vpop.f32.mrb[0].mxu0
      %v4032 = vpop.f32.mrb[0].mxu0
      %v4033 = vadd.f32 %v3872, %v4032
      %v4034 = vpop.f32.mrb[0].mxu0
      %4035 = vmatprep.mubr.bf16.mxu0 %v2977
      %4036 = vmatmul.mubr.bf16.gmra.mrb[0].mxu0 %v2976
      %v4037 = vpop.f32.mrb[0].mxu0
      %v4038 = vadd.f32 %v3877, %v4037
      %v4039 = vpop.f32.mrb[0].mxu0
      %v4040 = vpop.f32.mrb[0].mxu0
      %v4041 = vadd.f32 %v3880, %v4040
      %v4042 = vpop.f32.mrb[0].mxu0
      %4043 = vmatprep.mubr.bf16.mxu0 %v2986
      %4044 = vmatmul.mubr.bf16.gmra.mrb[0].mxu0 %v2985
      %v4045 = vpop.f32.mrb[0].mxu0
      %v4046 = vadd.f32 %v3885, %v4045
      %v4047 = vpop.f32.mrb[0].mxu0
      %v4048 = vpop.f32.mrb[0].mxu0
      %v4049 = vadd.f32 %v3888, %v4048
      %v4050 = vpop.f32.mrb[0].mxu0
      %4051 = vmatprep.mubr.bf16.mxu0 %v2995
      %4052 = vmatmul.mubr.bf16.gmra.mrb[0].mxu0 %v2994
      %v4053 = vpop.f32.mrb[0].mxu0
      %v4054 = vadd.f32 %v3893, %v4053
      %v4055 = vpop.f32.mrb[0].mxu0
      %v4056 = vpop.f32.mrb[0].mxu0
      %v4057 = vadd.f32 %v3896, %v4056
      %v4058 = vpop.f32.mrb[0].mxu0
      %4059 = vmatprep.mubr.bf16.mxu0 %v3004
      %4060 = vmatmul.mubr.bf16.gmra.mrb[0].mxu0 %v3003
      %v4061 = vpop.f32.mrb[0].mxu0
      %v4062 = vadd.f32 %v3901, %v4061
      %v4063 = vpop.f32.mrb[0].mxu0
      %v4064 = vpop.f32.mrb[0].mxu0
      %v4065 = vadd.f32 %v3904, %v4064
      %v4066 = vpop.f32.mrb[0].mxu0
      %4067 = vmatprep.mubr.bf16.mxu0 %v3013
      %4068 = vmatmul.mubr.bf16.gmra.mrb[0].mxu0 %v3012
      %v4069 = vpop.f32.mrb[0].mxu0
      %v4070 = vadd.f32 %v3909, %v4069
      %v4071 = vpop.f32.mrb[0].mxu0
      %v4072 = vpop.f32.mrb[0].mxu0
      %v4073 = vadd.f32 %v3912, %v4072
      %v4074 = vpop.f32.mrb[0].mxu0
      %4075 = vdwg.mxu0
      %4076 = vmatprep.subr.bf16.mxu0 0
      %4077 = vmatpush1.bf16.msra.mxu0 %v3497
      %4078 = vmatprep.subr.bf16.mxu0 0
      %4079 = vmatpush1.bf16.msra.mxu0 %v3498
      %4080 = vmatprep.subr.bf16.mxu0 0
      %4081 = vmatpush1.bf16.msra.mxu0 %v3499
      %4082 = vmatprep.subr.bf16.mxu0 0
      %4083 = vmatpush1.bf16.msra.mxu0 %v3500
      %4084 = vmatprep.subr.bf16.mxu0 0
      %4085 = vmatpush1.bf16.msra.mxu0 %v3501
      %4086 = vmatprep.subr.bf16.mxu0 0
      %4087 = vmatpush1.bf16.msra.mxu0 %v3502
      %4088 = vmatprep.subr.bf16.mxu0 0
      %4089 = vmatpush1.bf16.msra.mxu0 %v3503
      %4090 = vmatprep.subr.bf16.mxu0 0
      %4091 = vmatpush1.bf16.msra.mxu0 %v3504
      %4092 = vmatprep.subr.bf16.mxu0 0
      %4093 = vmatpush1.bf16.msra.mxu0 %v3505
      %4094 = vmatprep.subr.bf16.mxu0 0
      %4095 = vmatpush1.bf16.msra.mxu0 %v3506
      %4096 = vmatprep.subr.bf16.mxu0 0
      %4097 = vmatpush1.bf16.msra.mxu0 %v3507
      %4098 = vmatprep.subr.bf16.mxu0 0
      %4099 = vmatpush1.bf16.msra.mxu0 %v3508
      %4100 = vmatprep.subr.bf16.mxu0 0
      %4101 = vmatpush1.bf16.msra.mxu0 %v3509
      %4102 = vmatprep.subr.bf16.mxu0 0
      %4103 = vmatpush1.bf16.msra.mxu0 %v3510
      %4104 = vmatprep.subr.bf16.mxu0 0
      %4105 = vmatpush1.bf16.msra.mxu0 %v3511
      %4106 = vmatprep.subr.bf16.mxu0 0
      %4107 = vmatpush1.bf16.msra.mxu0 %v3512
      %4108 = vmatprep.mubr.bf16.mxu0 %v2880
      %4109 = vmatmul.mubr.bf16.gmra.mrb[0].mxu0 %v2879
      %v4110 = vpop.f32.mrb[0].mxu0
      %v4111 = vadd.f32 %v3950, %v4110
      %v4112 = vpop.f32.mrb[0].mxu0
      %v4113 = vpop.f32.mrb[0].mxu0
      %v4114 = vadd.f32 %v3953, %v4113
      %v4115 = vpop.f32.mrb[0].mxu0
      %4116 = vmatprep.mubr.bf16.mxu0 %v2889
      %4117 = vmatmul.mubr.bf16.gmra.mrb[0].mxu0 %v2888
      %v4118 = vpop.f32.mrb[0].mxu0
      %v4119 = vadd.f32 %v3958, %v4118
      %v4120 = vpop.f32.mrb[0].mxu0
      %v4121 = vpop.f32.mrb[0].mxu0
      %v4122 = vadd.f32 %v3961, %v4121
      %v4123 = vpop.f32.mrb[0].mxu0
      %4124 = vmatprep.mubr.bf16.mxu0 %v2898
      %4125 = vmatmul.mubr.bf16.gmra.mrb[0].mxu0 %v2897
      %v4126 = vpop.f32.mrb[0].mxu0
      %v4127 = vadd.f32 %v3966, %v4126
      %v4128 = vpop.f32.mrb[0].mxu0
      %v4129 = vpop.f32.mrb[0].mxu0
      %v4130 = vadd.f32 %v3969, %v4129
      %v4131 = vpop.f32.mrb[0].mxu0
      %4132 = vmatprep.mubr.bf16.mxu0 %v2907
      %4133 = vmatmul.mubr.bf16.gmra.mrb[0].mxu0 %v2906
      %v4134 = vpop.f32.mrb[0].mxu0
      %v4135 = vadd.f32 %v3974, %v4134
      %v4136 = vpop.f32.mrb[0].mxu0
      %v4137 = vpop.f32.mrb[0].mxu0
      %v4138 = vadd.f32 %v3977, %v4137
      %v4139 = vpop.f32.mrb[0].mxu0
      %4140 = vmatprep.mubr.bf16.mxu0 %v2916
      %4141 = vmatmul.mubr.bf16.gmra.mrb[0].mxu0 %v2915
      %v4142 = vpop.f32.mrb[0].mxu0
      %v4143 = vadd.f32 %v3982, %v4142
      %v4144 = vpop.f32.mrb[0].mxu0
      %v4145 = vpop.f32.mrb[0].mxu0
      %v4146 = vadd.f32 %v3985, %v4145
      %v4147 = vpop.f32.mrb[0].mxu0
      %4148 = vmatprep.mubr.bf16.mxu0 %v2925
      %4149 = vmatmul.mubr.bf16.gmra.mrb[0].mxu0 %v2924
      %v4150 = vpop.f32.mrb[0].mxu0
      %v4151 = vadd.f32 %v3990, %v4150
      %v4152 = vpop.f32.mrb[0].mxu0
      %v4153 = vpop.f32.mrb[0].mxu0
      %v4154 = vadd.f32 %v3993, %v4153
      %v4155 = vpop.f32.mrb[0].mxu0
      %4156 = vmatprep.mubr.bf16.mxu0 %v2934
      %4157 = vmatmul.mubr.bf16.gmra.mrb[0].mxu0 %v2933
      %v4158 = vpop.f32.mrb[0].mxu0
      %v4159 = vadd.f32 %v3998, %v4158
      %v4160 = vpop.f32.mrb[0].mxu0
      %v4161 = vpop.f32.mrb[0].mxu0
      %v4162 = vadd.f32 %v4001, %v4161
      %v4163 = vpop.f32.mrb[0].mxu0
      %4164 = vmatprep.mubr.bf16.mxu0 %v2943
      %4165 = vmatmul.mubr.bf16.gmra.mrb[0].mxu0 %v2942
      %v4166 = vpop.f32.mrb[0].mxu0
      %v4167 = vadd.f32 %v4006, %v4166
      %v4168 = vpop.f32.mrb[0].mxu0
      %v4169 = vpop.f32.mrb[0].mxu0
      %v4170 = vadd.f32 %v4009, %v4169
      %v4171 = vpop.f32.mrb[0].mxu0
      %4172 = vmatprep.mubr.bf16.mxu0 %v2952
      %4173 = vmatmul.mubr.bf16.gmra.mrb[0].mxu0 %v2951
      %v4174 = vpop.f32.mrb[0].mxu0
      %v4175 = vadd.f32 %v4014, %v4174
      %v4176 = vpop.f32.mrb[0].mxu0
      %v4177 = vpop.f32.mrb[0].mxu0
      %v4178 = vadd.f32 %v4017, %v4177
      %v4179 = vpop.f32.mrb[0].mxu0
      %4180 = vmatprep.mubr.bf16.mxu0 %v2961
      %4181 = vmatmul.mubr.bf16.gmra.mrb[0].mxu0 %v2960
      %v4182 = vpop.f32.mrb[0].mxu0
      %v4183 = vadd.f32 %v4022, %v4182
      %v4184 = vpop.f32.mrb[0].mxu0
      %v4185 = vpop.f32.mrb[0].mxu0
      %v4186 = vadd.f32 %v4025, %v4185
      %v4187 = vpop.f32.mrb[0].mxu0
      %4188 = vmatprep.mubr.bf16.mxu0 %v2970
      %4189 = vmatmul.mubr.bf16.gmra.mrb[0].mxu0 %v2969
      %v4190 = vpop.f32.mrb[0].mxu0
      %v4191 = vadd.f32 %v4030, %v4190
      %v4192 = vpop.f32.mrb[0].mxu0
      %v4193 = vpop.f32.mrb[0].mxu0
      %v4194 = vadd.f32 %v4033, %v4193
      %v4195 = vpop.f32.mrb[0].mxu0
      %4196 = vmatprep.mubr.bf16.mxu0 %v2979
      %4197 = vmatmul.mubr.bf16.gmra.mrb[0].mxu0 %v2978
      %v4198 = vpop.f32.mrb[0].mxu0
      %v4199 = vadd.f32 %v4038, %v4198
      %v4200 = vpop.f32.mrb[0].mxu0
      %v4201 = vpop.f32.mrb[0].mxu0
      %v4202 = vadd.f32 %v4041, %v4201
      %v4203 = vpop.f32.mrb[0].mxu0
      %4204 = vmatprep.mubr.bf16.mxu0 %v2988
      %4205 = vmatmul.mubr.bf16.gmra.mrb[0].mxu0 %v2987
      %v4206 = vpop.f32.mrb[0].mxu0
      %v4207 = vadd.f32 %v4046, %v4206
      %v4208 = vpop.f32.mrb[0].mxu0
      %v4209 = vpop.f32.mrb[0].mxu0
      %v4210 = vadd.f32 %v4049, %v4209
      %v4211 = vpop.f32.mrb[0].mxu0
      %4212 = vmatprep.mubr.bf16.mxu0 %v2997
      %4213 = vmatmul.mubr.bf16.gmra.mrb[0].mxu0 %v2996
      %v4214 = vpop.f32.mrb[0].mxu0
      %v4215 = vadd.f32 %v4054, %v4214
      %v4216 = vpop.f32.mrb[0].mxu0
      %v4217 = vpop.f32.mrb[0].mxu0
      %v4218 = vadd.f32 %v4057, %v4217
      %v4219 = vpop.f32.mrb[0].mxu0
      %4220 = vmatprep.mubr.bf16.mxu0 %v3006
      %4221 = vmatmul.mubr.bf16.gmra.mrb[0].mxu0 %v3005
      %v4222 = vpop.f32.mrb[0].mxu0
      %v4223 = vadd.f32 %v4062, %v4222
      %v4224 = vpop.f32.mrb[0].mxu0
      %v4225 = vpop.f32.mrb[0].mxu0
      %v4226 = vadd.f32 %v4065, %v4225
      %v4227 = vpop.f32.mrb[0].mxu0
      %4228 = vmatprep.mubr.bf16.mxu0 %v3015
      %4229 = vmatmul.mubr.bf16.gmra.mrb[0].mxu0 %v3014
      %v4230 = vpop.f32.mrb[0].mxu0
      %v4231 = vadd.f32 %v4070, %v4230
      %v4232 = vpop.f32.mrb[0].mxu0
      %v4233 = vpop.f32.mrb[0].mxu0
      %v4234 = vadd.f32 %v4073, %v4233
      %v4235 = vpop.f32.mrb[0].mxu0
      %4236 = vdwg.mxu0
      %4237 = vmatprep.subr.bf16.mxu0 0
      %4238 = vmatpush1.bf16.msra.mxu0 %v3513
      %4239 = vmatprep.subr.bf16.mxu0 0
      %4240 = vmatpush1.bf16.msra.mxu0 %v3514
      %4241 = vmatprep.subr.bf16.mxu0 0
      %4242 = vmatpush1.bf16.msra.mxu0 %v3515
      %4243 = vmatprep.subr.bf16.mxu0 0
      %4244 = vmatpush1.bf16.msra.mxu0 %v3516
      %4245 = vmatprep.subr.bf16.mxu0 0
      %4246 = vmatpush1.bf16.msra.mxu0 %v3517
      %4247 = vmatprep.subr.bf16.mxu0 0
      %4248 = vmatpush1.bf16.msra.mxu0 %v3518
      %4249 = vmatprep.subr.bf16.mxu0 0
      %4250 = vmatpush1.bf16.msra.mxu0 %v3519
      %4251 = vmatprep.subr.bf16.mxu0 0
      %4252 = vmatpush1.bf16.msra.mxu0 %v3520
      %4253 = vmatprep.subr.bf16.mxu0 0
      %4254 = vmatpush1.bf16.msra.mxu0 0
      %4255 = vmatprep.subr.bf16.mxu0 0
      %4256 = vmatpush1.bf16.msra.mxu0 0
      %4257 = vmatprep.subr.bf16.mxu0 0
      %4258 = vmatpush1.bf16.msra.mxu0 0
      %4259 = vmatprep.subr.bf16.mxu0 0
      %4260 = vmatpush1.bf16.msra.mxu0 0
      %4261 = vmatprep.subr.bf16.mxu0 0
      %4262 = vmatpush1.bf16.msra.mxu0 0
      %4263 = vmatprep.subr.bf16.mxu0 0
      %4264 = vmatpush1.bf16.msra.mxu0 0
      %4265 = vmatprep.subr.bf16.mxu0 0
      %4266 = vmatpush1.bf16.msra.mxu0 0
      %4267 = vmatprep.subr.bf16.mxu0 0
      %4268 = vmatpush1.bf16.msra.mxu0 0
      %4269 = vmatprep.mubr.bf16.mxu0 0
      %4270 = vmatmul.mubr.bf16.gmra.mrb[0].mxu0 %v2881
      %v4271 = vpop.f32.mrb[0].mxu0
      %v4272 = vadd.f32 %v4111, %v4271
      %v4273 = vpop.f32.mrb[0].mxu0
      %v4274 = vpop.f32.mrb[0].mxu0
      %v4275 = vadd.f32 %v4114, %v4274
      %v4276 = vpop.f32.mrb[0].mxu0
      %4277 = vmatprep.mubr.bf16.mxu0 0
      %4278 = vmatmul.mubr.bf16.gmra.mrb[0].mxu0 %v2890
      %v4279 = vpop.f32.mrb[0].mxu0
      %v4280 = vadd.f32 %v4119, %v4279
      %v4281 = vpop.f32.mrb[0].mxu0
      %v4282 = vpop.f32.mrb[0].mxu0
      %v4283 = vadd.f32 %v4122, %v4282
      %v4284 = vpop.f32.mrb[0].mxu0
      %4285 = vmatprep.mubr.bf16.mxu0 0
      %4286 = vmatmul.mubr.bf16.gmra.mrb[0].mxu0 %v2899
      %v4287 = vpop.f32.mrb[0].mxu0
      %v4288 = vadd.f32 %v4127, %v4287
      %v4289 = vpop.f32.mrb[0].mxu0
      %v4290 = vpop.f32.mrb[0].mxu0
      %v4291 = vadd.f32 %v4130, %v4290
      %v4292 = vpop.f32.mrb[0].mxu0
      %4293 = vmatprep.mubr.bf16.mxu0 0
      %4294 = vmatmul.mubr.bf16.gmra.mrb[0].mxu0 %v2908
      %v4295 = vpop.f32.mrb[0].mxu0
      %v4296 = vadd.f32 %v4135, %v4295
      %v4297 = vpop.f32.mrb[0].mxu0
      %v4298 = vpop.f32.mrb[0].mxu0
      %v4299 = vadd.f32 %v4138, %v4298
      %v4300 = vpop.f32.mrb[0].mxu0
      %4301 = vmatprep.mubr.bf16.mxu0 0
      %4302 = vmatmul.mubr.bf16.gmra.mrb[0].mxu0 %v2917
      %v4303 = vpop.f32.mrb[0].mxu0
      %v4304 = vadd.f32 %v4143, %v4303
      %v4305 = vpop.f32.mrb[0].mxu0
      %v4306 = vpop.f32.mrb[0].mxu0
      %v4307 = vadd.f32 %v4146, %v4306
      %v4308 = vpop.f32.mrb[0].mxu0
      %4309 = vmatprep.mubr.bf16.mxu0 0
      %4310 = vmatmul.mubr.bf16.gmra.mrb[0].mxu0 %v2926
      %v4311 = vpop.f32.mrb[0].mxu0
      %v4312 = vadd.f32 %v4151, %v4311
      %v4313 = vpop.f32.mrb[0].mxu0
      %v4314 = vpop.f32.mrb[0].mxu0
      %v4315 = vadd.f32 %v4154, %v4314
      %v4316 = vpop.f32.mrb[0].mxu0
      %4317 = vmatprep.mubr.bf16.mxu0 0
      %4318 = vmatmul.mubr.bf16.gmra.mrb[0].mxu0 %v2935
      %v4319 = vpop.f32.mrb[0].mxu0
      %v4320 = vadd.f32 %v4159, %v4319
      %v4321 = vpop.f32.mrb[0].mxu0
      %v4322 = vpop.f32.mrb[0].mxu0
      %v4323 = vadd.f32 %v4162, %v4322
      %v4324 = vpop.f32.mrb[0].mxu0
      %4325 = vmatprep.mubr.bf16.mxu0 0
      %4326 = vmatmul.mubr.bf16.gmra.mrb[0].mxu0 %v2944
      %v4327 = vpop.f32.mrb[0].mxu0
      %v4328 = vadd.f32 %v4167, %v4327
      %v4329 = vpop.f32.mrb[0].mxu0
      %v4330 = vpop.f32.mrb[0].mxu0
      %v4331 = vadd.f32 %v4170, %v4330
      %v4332 = vpop.f32.mrb[0].mxu0
      %4333 = vmatprep.mubr.bf16.mxu0 0
      %4334 = vmatmul.mubr.bf16.gmra.mrb[0].mxu0 %v2953
      %v4335 = vpop.f32.mrb[0].mxu0
      %v4336 = vadd.f32 %v4175, %v4335
      %v4337 = vpop.f32.mrb[0].mxu0
      %v4338 = vpop.f32.mrb[0].mxu0
      %v4339 = vadd.f32 %v4178, %v4338
      %v4340 = vpop.f32.mrb[0].mxu0
      %4341 = vmatprep.mubr.bf16.mxu0 0
      %4342 = vmatmul.mubr.bf16.gmra.mrb[0].mxu0 %v2962
      %v4343 = vpop.f32.mrb[0].mxu0
      %v4344 = vadd.f32 %v4183, %v4343
      %v4345 = vpop.f32.mrb[0].mxu0
      %v4346 = vpop.f32.mrb[0].mxu0
      %v4347 = vadd.f32 %v4186, %v4346
      %v4348 = vpop.f32.mrb[0].mxu0
      %4349 = vmatprep.mubr.bf16.mxu0 0
      %4350 = vmatmul.mubr.bf16.gmra.mrb[0].mxu0 %v2971
      %v4351 = vpop.f32.mrb[0].mxu0
      %v4352 = vadd.f32 %v4191, %v4351
      %v4353 = vpop.f32.mrb[0].mxu0
      %v4354 = vpop.f32.mrb[0].mxu0
      %v4355 = vadd.f32 %v4194, %v4354
      %v4356 = vpop.f32.mrb[0].mxu0
      %4357 = vmatprep.mubr.bf16.mxu0 0
      %4358 = vmatmul.mubr.bf16.gmra.mrb[0].mxu0 %v2980
      %v4359 = vpop.f32.mrb[0].mxu0
      %v4360 = vadd.f32 %v4199, %v4359
      %v4361 = vpop.f32.mrb[0].mxu0
      %v4362 = vpop.f32.mrb[0].mxu0
      %v4363 = vadd.f32 %v4202, %v4362
      %v4364 = vpop.f32.mrb[0].mxu0
      %4365 = vmatprep.mubr.bf16.mxu0 0
      %4366 = vmatmul.mubr.bf16.gmra.mrb[0].mxu0 %v2989
      %v4367 = vpop.f32.mrb[0].mxu0
      %v4368 = vadd.f32 %v4207, %v4367
      %v4369 = vpop.f32.mrb[0].mxu0
      %v4370 = vpop.f32.mrb[0].mxu0
      %v4371 = vadd.f32 %v4210, %v4370
      %v4372 = vpop.f32.mrb[0].mxu0
      %4373 = vmatprep.mubr.bf16.mxu0 0
      %4374 = vmatmul.mubr.bf16.gmra.mrb[0].mxu0 %v2998
      %v4375 = vpop.f32.mrb[0].mxu0
      %v4376 = vadd.f32 %v4215, %v4375
      %v4377 = vpop.f32.mrb[0].mxu0
      %v4378 = vpop.f32.mrb[0].mxu0
      %v4379 = vadd.f32 %v4218, %v4378
      %v4380 = vpop.f32.mrb[0].mxu0
      %4381 = vmatprep.mubr.bf16.mxu0 0
      %4382 = vmatmul.mubr.bf16.gmra.mrb[0].mxu0 %v3007
      %v4383 = vpop.f32.mrb[0].mxu0
      %v4384 = vadd.f32 %v4223, %v4383
      %v4385 = vpop.f32.mrb[0].mxu0
      %v4386 = vpop.f32.mrb[0].mxu0
      %v4387 = vadd.f32 %v4226, %v4386
      %v4388 = vpop.f32.mrb[0].mxu0
      %4389 = vmatprep.mubr.bf16.mxu0 0
      %4390 = vmatmul.mubr.bf16.gmra.mrb[0].mxu0 %v3016
      %v4391 = vpop.f32.mrb[0].mxu0
      %v4392 = vadd.f32 %v4231, %v4391
      %v4393 = vpop.f32.mrb[0].mxu0
      %v4394 = vpop.f32.mrb[0].mxu0
      %v4395 = vadd.f32 %v4234, %v4394
      %v4396 = vpop.f32.mrb[0].mxu0
      %4397 = vdwg.mxu0
      %v4398 = vpack.c.bf16 %v4275, %v4272
      %v4399 = vpack.c.bf16 %v4283, %v4280
      %v4400 = vpack.c.bf16 %v4291, %v4288
      %v4401 = vpack.c.bf16 %v4299, %v4296
      %v4402 = vpack.c.bf16 %v4307, %v4304
      %v4403 = vpack.c.bf16 %v4315, %v4312
      %v4404 = vpack.c.bf16 %v4323, %v4320
      %v4405 = vpack.c.bf16 %v4331, %v4328
      %v4406 = vpack.c.bf16 %v4339, %v4336
      %v4407 = vpack.c.bf16 %v4347, %v4344
      %v4408 = vpack.c.bf16 %v4355, %v4352
      %v4409 = vpack.c.bf16 %v4363, %v4360
      %v4410 = vpack.c.bf16 %v4371, %v4368
      %v4411 = vpack.c.bf16 %v4379, %v4376
      %v4412 = vpack.c.bf16 %v4387, %v4384
      %v4413 = vpack.c.bf16 %v4395, %v4392
      %v4430 = vunpack.c.l.b16 %v4398
      %v4431 = vunpack.c.h.b16 %v4398
      %v4432 = vunpack.c.l.b16 %v4399
      %v4433 = vunpack.c.h.b16 %v4399
      %v4434 = vunpack.c.l.b16 %v4400
      %v4435 = vunpack.c.h.b16 %v4400
      %v4436 = vunpack.c.l.b16 %v4401
      %v4437 = vunpack.c.h.b16 %v4401
      %v4438 = vunpack.c.l.b16 %v4402
      %v4439 = vunpack.c.h.b16 %v4402
      %v4440 = vunpack.c.l.b16 %v4403
      %v4441 = vunpack.c.h.b16 %v4403
      %v4442 = vunpack.c.l.b16 %v4404
      %v4443 = vunpack.c.h.b16 %v4404
      %v4444 = vunpack.c.l.b16 %v4405
      %v4445 = vunpack.c.h.b16 %v4405
      %v4446 = vunpack.c.l.b16 %v4406
      %v4447 = vunpack.c.h.b16 %v4406
      %v4448 = vunpack.c.l.b16 %v4407
      %v4449 = vunpack.c.h.b16 %v4407
      %v4450 = vunpack.c.l.b16 %v4408
      %v4451 = vunpack.c.h.b16 %v4408
      %v4452 = vunpack.c.l.b16 %v4409
      %v4453 = vunpack.c.h.b16 %v4409
      %v4454 = vunpack.c.l.b16 %v4410
      %v4455 = vunpack.c.h.b16 %v4410
      %v4456 = vunpack.c.l.b16 %v4411
      %v4457 = vunpack.c.h.b16 %v4411
      %v4458 = vunpack.c.l.b16 %v4412
      %v4459 = vunpack.c.h.b16 %v4412
      %v4460 = vunpack.c.l.b16 %v4413
      %v4461 = vunpack.c.h.b16 %v4413
      %v4462 = vpack.c.b16 %v4430, %v4430
      %v4463 = vpack.c.b16 %v4431, %v4431
      %v4464 = vpack.c.b16 %v4432, %v4432
      %v4465 = vpack.c.b16 %v4433, %v4433
      %v4466 = vpack.c.b16 %v4434, %v4434
      %v4467 = vpack.c.b16 %v4435, %v4435
      %v4468 = vpack.c.b16 %v4436, %v4436
      %v4469 = vpack.c.b16 %v4437, %v4437
      %v4470 = vpack.c.b16 %v4438, %v4438
      %v4471 = vpack.c.b16 %v4439, %v4439
      %v4472 = vpack.c.b16 %v4440, %v4440
      %v4473 = vpack.c.b16 %v4441, %v4441
      %v4474 = vpack.c.b16 %v4442, %v4442
      %v4475 = vpack.c.b16 %v4443, %v4443
      %v4476 = vpack.c.b16 %v4444, %v4444
      %v4477 = vpack.c.b16 %v4445, %v4445
      %v4478 = vpack.c.b16 %v4446, %v4446
      %v4479 = vpack.c.b16 %v4447, %v4447
      %v4480 = vpack.c.b16 %v4448, %v4448
      %v4481 = vpack.c.b16 %v4449, %v4449
      %v4482 = vpack.c.b16 %v4450, %v4450
      %v4483 = vpack.c.b16 %v4451, %v4451
      %v4484 = vpack.c.b16 %v4452, %v4452
      %v4485 = vpack.c.b16 %v4453, %v4453
      %v4486 = vpack.c.b16 %v4454, %v4454
      %v4487 = vpack.c.b16 %v4455, %v4455
      %v4488 = vpack.c.b16 %v4456, %v4456
      %v4489 = vpack.c.b16 %v4457, %v4457
      %v4490 = vpack.c.b16 %v4458, %v4458
      %v4491 = vpack.c.b16 %v4459, %v4459
      %v4492 = vpack.c.b16 %v4460, %v4460
      %v4493 = vpack.c.b16 %v4461, %v4461
      %4526 = vst [vmem:[%s246] sm:$0xf] %v4462
      %4527 = vst [vmem:[%s246 + $0x4] sm:$0xf] %v4463
      %4528 = vst [vmem:[%s246 + $0x8] sm:$0xf] %v4464
      %4529 = vst [vmem:[%s246 + $0xc] sm:$0xf] %v4465
      %4530 = vst [vmem:[%s246 + $0x10] sm:$0xf] %v4466
      %4531 = vst [vmem:[%s246 + $0x14] sm:$0xf] %v4467
      %4532 = vst [vmem:[%s246 + $0x18] sm:$0xf] %v4468
      %4533 = vst [vmem:[%s246 + $0x1c] sm:$0xf] %v4469
      %4534 = vst [vmem:[%s246 + $0x20] sm:$0xf] %v4470
      %4535 = vst [vmem:[%s246 + $0x24] sm:$0xf] %v4471
      %4536 = vst [vmem:[%s246 + $0x28] sm:$0xf] %v4472
      %4537 = vst [vmem:[%s246 + $0x2c] sm:$0xf] %v4473
      %4538 = vst [vmem:[%s246 + $0x30] sm:$0xf] %v4474
      %4539 = vst [vmem:[%s246 + $0x34] sm:$0xf] %v4475
      %4540 = vst [vmem:[%s246 + $0x38] sm:$0xf] %v4476
      %4541 = vst [vmem:[%s246 + $0x3c] sm:$0xf] %v4477
      %4542 = vst [vmem:[%s246 + $0x40] sm:$0xf] %v4478
      %4543 = vst [vmem:[%s246 + $0x44] sm:$0xf] %v4479
      %4544 = vst [vmem:[%s246 + $0x48] sm:$0xf] %v4480
      %4545 = vst [vmem:[%s246 + $0x4c] sm:$0xf] %v4481
      %4546 = vst [vmem:[%s246 + $0x50] sm:$0xf] %v4482
      %4547 = vst [vmem:[%s246 + $0x54] sm:$0xf] %v4483
      %4548 = vst [vmem:[%s246 + $0x58] sm:$0xf] %v4484
      %4549 = vst [vmem:[%s246 + $0x5c] sm:$0xf] %v4485
      %4550 = vst [vmem:[%s246 + $0x60] sm:$0xf] %v4486
      %4551 = vst [vmem:[%s246 + $0x64] sm:$0xf] %v4487
      %4552 = vst [vmem:[%s246 + $0x68] sm:$0xf] %v4488
      %4553 = vst [vmem:[%s246 + $0x6c] sm:$0xf] %v4489
      %4554 = vst [vmem:[%s246 + $0x70] sm:$0xf] %v4490
      %4555 = vst [vmem:[%s246 + $0x74] sm:$0xf] %v4491
      %4556 = vst [vmem:[%s246 + $0x78] sm:$0xf] %v4492
      %4557 = vst [vmem:[%s246 + $0x7c] sm:$0xf] %v4493
      %v4558 = vadd.f32 %v4272, %v4275
      %v4559 = vadd.f32 %v4558, %v4280
      %v4560 = vadd.f32 %v4559, %v4283
      %v4561 = vadd.f32 %v4560, %v4288
      %v4562 = vadd.f32 %v4561, %v4291
      %v4563 = vadd.f32 %v4562, %v4296
      %v4564 = vadd.f32 %v4563, %v4299
      %v4565 = vadd.f32 %v4564, %v4304
      %v4566 = vadd.f32 %v4565, %v4307
      %v4567 = vadd.f32 %v4566, %v4312
      %v4568 = vadd.f32 %v4567, %v4315
      %v4569 = vadd.f32 %v4568, %v4320
      %v4570 = vadd.f32 %v4569, %v4323
      %v4571 = vadd.f32 %v4570, %v4328
      %v4572 = vadd.f32 %v4571, %v4331
      %v4573 = vadd.f32 %v4572, %v4336
      %v4574 = vadd.f32 %v4573, %v4339
      %v4575 = vadd.f32 %v4574, %v4344
      %v4576 = vadd.f32 %v4575, %v4347
      %v4577 = vadd.f32 %v4576, %v4352
      %v4578 = vadd.f32 %v4577, %v4355
      %v4579 = vadd.f32 %v4578, %v4360
      %v4580 = vadd.f32 %v4579, %v4363
      %v4581 = vadd.f32 %v4580, %v4368
      %v4582 = vadd.f32 %v4581, %v4371
      %v4583 = vadd.f32 %v4582, %v4376
      %v4584 = vadd.f32 %v4583, %v4379
      %v4585 = vadd.f32 %v4584, %v4384
      %v4586 = vadd.f32 %v4585, %v4387
      %v4587 = vadd.f32 %v4586, %v4392
      %v4588 = vadd.f32 %v4587, %v4395
      %v4589 = vrot.slane %v4588, 4
      %v4590 = vadd.f32 %v4588, %v4589
      %v4591 = vrot.slane %v4590, 2
      %v4592 = vadd.f32 %v4590, %v4591
      %v4593 = vrot.slane %v4592, 1
      %v4594 = vadd.f32 %v4592, %v4593
      %v4595 = vadd.f32 %v4594, 0.0
      %v4596 = vmul.f32 %v4272, %v4272
      %v4597 = vmul.f32 %v4275, %v4275
      %v4598 = vmul.f32 %v4280, %v4280
      %v4599 = vmul.f32 %v4283, %v4283
      %v4600 = vmul.f32 %v4288, %v4288
      %v4601 = vmul.f32 %v4291, %v4291
      %v4602 = vmul.f32 %v4296, %v4296
      %v4603 = vmul.f32 %v4299, %v4299
      %v4604 = vmul.f32 %v4304, %v4304
      %v4605 = vmul.f32 %v4307, %v4307
      %v4606 = vmul.f32 %v4312, %v4312
      %v4607 = vmul.f32 %v4315, %v4315
      %v4608 = vmul.f32 %v4320, %v4320
      %v4609 = vmul.f32 %v4323, %v4323
      %v4610 = vmul.f32 %v4328, %v4328
      %v4611 = vmul.f32 %v4331, %v4331
      %v4612 = vmul.f32 %v4336, %v4336
      %v4613 = vmul.f32 %v4339, %v4339
      %v4614 = vmul.f32 %v4344, %v4344
      %v4615 = vmul.f32 %v4347, %v4347
      %v4616 = vmul.f32 %v4352, %v4352
      %v4617 = vmul.f32 %v4355, %v4355
      %v4618 = vmul.f32 %v4360, %v4360
      %v4619 = vmul.f32 %v4363, %v4363
      %v4620 = vmul.f32 %v4368, %v4368
      %v4621 = vmul.f32 %v4371, %v4371
      %v4622 = vmul.f32 %v4376, %v4376
      %v4623 = vmul.f32 %v4379, %v4379
      %v4624 = vmul.f32 %v4384, %v4384
      %v4625 = vmul.f32 %v4387, %v4387
      %v4626 = vmul.f32 %v4392, %v4392
      %v4627 = vmul.f32 %v4395, %v4395
      %v4628 = vadd.f32 %v4596, %v4597
      %v4629 = vadd.f32 %v4628, %v4598
      %v4630 = vadd.f32 %v4629, %v4599
      %v4631 = vadd.f32 %v4630, %v4600
      %v4632 = vadd.f32 %v4631, %v4601
      %v4633 = vadd.f32 %v4632, %v4602
      %v4634 = vadd.f32 %v4633, %v4603
      %v4635 = vadd.f32 %v4634, %v4604
      %v4636 = vadd.f32 %v4635, %v4605
      %v4637 = vadd.f32 %v4636, %v4606
      %v4638 = vadd.f32 %v4637, %v4607
      %v4639 = vadd.f32 %v4638, %v4608
      %v4640 = vadd.f32 %v4639, %v4609
      %v4641 = vadd.f32 %v4640, %v4610
      %v4642 = vadd.f32 %v4641, %v4611
      %v4643 = vadd.f32 %v4642, %v4612
      %v4644 = vadd.f32 %v4643, %v4613
      %v4645 = vadd.f32 %v4644, %v4614
      %v4646 = vadd.f32 %v4645, %v4615
      %v4647 = vadd.f32 %v4646, %v4616
      %v4648 = vadd.f32 %v4647, %v4617
      %v4649 = vadd.f32 %v4648, %v4618
      %v4650 = vadd.f32 %v4649, %v4619
      %v4651 = vadd.f32 %v4650, %v4620
      %v4652 = vadd.f32 %v4651, %v4621
      %v4653 = vadd.f32 %v4652, %v4622
      %v4654 = vadd.f32 %v4653, %v4623
      %v4655 = vadd.f32 %v4654, %v4624
      %v4656 = vadd.f32 %v4655, %v4625
      %v4657 = vadd.f32 %v4656, %v4626
      %v4658 = vadd.f32 %v4657, %v4627
      %v4659 = vrot.slane %v4658, 4
      %v4660 = vadd.f32 %v4658, %v4659
      %v4661 = vrot.slane %v4660, 2
      %v4662 = vadd.f32 %v4660, %v4661
      %v4663 = vrot.slane %v4662, 1
      %v4664 = vadd.f32 %v4662, %v4663
      %v4665 = vadd.f32 %v4664, 0.0
      %v4666 = vld [vmem:[%s5] sm:$0x1]
      %v4667 = vadd.f32 %v4666, %v4595
      %4668 = vst [vmem:[%s5] sm:$0x1] %v4667
      %v4669 = vld [vmem:[%s6] sm:$0x1]
      %v4670 = vadd.f32 %v4669, %v4665
      %4671 = vst [vmem:[%s6] sm:$0x1] %v4670
      %p4672 = scmp.lt.s32.totalorder %s18, 1
      %s4673 = scalar_select %p4672, %s18, 1
      %s4674 = smul.addr %s4673, 32
      %s4675 = smul.addr %s4674, 4
      %s4676 = scalar_lea.vmem %s4, %s4675
      // Predicated region
      $region41: #{bottleneck_forward.5} parent=35 // pred_check
        %p4677 = pneg %p125
      $region42: #{bottleneck_forward.5} parent=35 // pred_check_branch
        %4679 = sbr.rel (%p4677) target = $region44
      $region43: #{bottleneck_forward.5} parent=35 // pred_region
        _
      $region44: #{bottleneck_forward.5} parent=35 // pred_fallthru
        _
      // Predicated region
      $region45: #{bottleneck_forward.5} parent=35 // pred_check
        %p4680 = pneg %p146
      $region46: #{bottleneck_forward.5} parent=35 // pred_check_branch
        %4682 = sbr.rel (%p4680) target = $region48
      $region47: #{bottleneck_forward.5} parent=35 // pred_region
        _
      $region48: #{bottleneck_forward.5} parent=35 // pred_fallthru
        _
      // Predicated region
      $region49: #{bottleneck_forward.5} parent=35 // pred_check
        %p4683 = pneg %p167
      $region50: #{bottleneck_forward.5} parent=35 // pred_check_branch
        %4685 = sbr.rel (%p4683) target = $region52
      $region51: #{bottleneck_forward.5} parent=35 // pred_region
        _
      $region52: #{bottleneck_forward.5} parent=35 // pred_fallthru
        _
      // Predicated region
      $region53: #{bottleneck_forward.5} parent=35 // pred_check
        %p4686 = pneg %p146
      $region54: #{bottleneck_forward.5} parent=35 // pred_check_branch
        %4688 = sbr.rel (%p4686) target = $region56
      $region55: #{bottleneck_forward.5} parent=35 // pred_region
        _
      $region56: #{bottleneck_forward.5} parent=35 // pred_fallthru
        _
      // Predicated region
      $region57: #{bottleneck_forward.5} parent=35 // pred_check
        %p4689 = pneg %p167
      $region58: #{bottleneck_forward.5} parent=35 // pred_check_branch
        %4691 = sbr.rel (%p4689) target = $region60
      $region59: #{bottleneck_forward.5} parent=35 // pred_region
        _
      $region60: #{bottleneck_forward.5} parent=35 // pred_fallthru
        _
    $region36: #{bottleneck_forward.5} parent=5 // pred_fallthru
      _
    %p4692 = scmp.le.s32.totalorder 2, %s13
    // Predicated region
    $region61: #{bottleneck_forward.5} parent=5 // pred_check
      %p4693 = pneg %p4692
    $region62: #{bottleneck_forward.5} parent=5 // pred_check_branch
      %4695 = sbr.rel (%p4693) target = $region64
    $region63: #{bottleneck_forward.5} parent=5 // pred_region
      %s4696 = ssub.s32 %s13, 2
      // Predicated region
      $region65: #{bottleneck_forward.5} parent=63 // pred_check
        %p4697 = pneg %p131
      $region66: #{bottleneck_forward.5} parent=63 // pred_check_branch
        %4699 = sbr.rel (%p4697) target = $region68
      $region67: #{bottleneck_forward.5} parent=63 // pred_region
        %p4700 = scmp.lt.s32.totalorder %s19, 1
        %s4701 = scalar_select %p4700, %s19, 1
        %s4702 = smul.addr %s4701, 32
        %s4703 = smul.addr %s4702, 4
        %s4704 = scalar_lea.vmem %s4, %s4703
      $region68: #{bottleneck_forward.5} parent=63 // pred_fallthru
        _
    $region64: #{bottleneck_forward.5} parent=5 // pred_fallthru
      _
  $region6: #{bottleneck_forward.5} parent=0 // loop_footer
    %s17 = sadd.s32 1, %s13
  $region7: #{bottleneck_forward.5} parent=0 // loop_footer_branch
    %12 = sbr.rel target = $region3
  $region8: #{bottleneck_forward.5} parent=0 // loop_exit
    _

</llo_original>
